<compile_context>
chip_gen: v5e
topology: v5e:2x2
jax: 0.10.0
libtpu: 0.0.40
codegen_flags: <defaults>
</compile_context>

<pallas_src>
import numpy as np
import jax
import jax.numpy as jnp
from jax.experimental import pallas as pl
from jax.experimental.pallas import tpu as pltpu

POLY_A2, POLY_A1, POLY_A0 = 0.09, 0.5, 0.47
KSIZE = 3
CONV_COUT = (32, 64, 128, 256)


# ------------------------------ fused kernel --------------------------------

def _make_vgg5_kernel(input_size, cls_pad, d):
    K = KSIZE
    sizes = [input_size // (2 ** l) for l in range(4)]      # spatial size per conv block

    def kernel(x_ref, w1_ref, w2_ref, w3_ref, w4_ref, wl_ref, out_ref,
               act1, pad1, act2, pad2, act3, pad3, act4):
        w_refs = [w1_ref, w2_ref, w3_ref, w4_ref]
        act_refs = [act1, act2, act3, act4]
        pad_refs = [pad1, pad2, pad3]

        # Zero the padded staging buffers: their untouched border rows ARE the zero
        # padding of the next conv block.
        for pr in pad_refs:
            pr[...] = jnp.zeros(pr.shape, pr.dtype)

        def run_block(load_rows, w_ref, act_ref, H, emit):
            """conv3x3('same') -> poly act -> 2x2 avg-pool for one HxH feature map.

            The input is a zero-padded (H+2)x(H+2) map flattened to a 2D (rows, Cin)
            slab; tap (dy, dx) is then a contiguous row window, so the conv becomes
            9 (rows, Cin) @ (Cin, Cout) MXU matmuls accumulated in f32.
            """
            Wp2 = H + 2                       # padded width
            L = H * Wp2 - 2                   # rows covering every valid output pixel
            acc = None
            for t in range(K * K):
                dy, dx = t // K, t % K
                xs = load_rows(dy * Wp2 + dx, L).astype(jnp.bfloat16)   # (L, Cin)
                part = jnp.dot(xs, w_ref[t], preferred_element_type=jnp.float32)
                acc = part if acc is None else acc + part
            # polynomial activation (Horner form), f32 on the VPU.
            act_ref[...] = acc * (POLY_A2 * acc + POLY_A1) + POLY_A0

            Hp = H // 2                       # pooled spatial size (square maps)

            def quarter(base):
                if Hp == 1:
                    return act_ref[pl.ds(base, 1), :]
                return act_ref[pl.ds(base, Hp, stride=2), :]

            for ho in range(Hp):
                r0 = (2 * ho) * Wp2
                r1 = (2 * ho + 1) * Wp2
                pooled = 0.25 * (quarter(r0) + quarter(r0 + 1) +
                                 quarter(r1) + quarter(r1 + 1))         # (Hp, Cout)
                emit(ho, pooled)

        def pad_writer(pr, Wp):
            W2 = Wp + 2

            def emit(ho, pooled):
                # write the pooled row into the interior of the next padded slab
                pr[pl.ds((ho + 1) * W2 + 1, Wp), :] = pooled
            return emit

        loaders = [lambda s, n: x_ref[0, pl.ds(s, n), :]]
        for pr in pad_refs:
            loaders.append((lambda r: (lambda s, n: r[pl.ds(s, n), :]))(pr))

        # Blocks 1-3 pool straight into the next block's padded VMEM slab.
        for b in range(3):
            run_block(loaders[b], w_refs[b], act_refs[b], sizes[b],
                      pad_writer(pad_refs[b], sizes[b] // 2))

        # Block 4 pools straight into the classifier accumulation (no HBM round trip).
        pooled_rows = []
        run_block(loaders[3], w_refs[3], act_refs[3], sizes[3],
                  lambda ho, p: pooled_rows.append(p))

        acc_cls = jnp.zeros((1, cls_pad), jnp.float32)
        for ho, pooled in enumerate(pooled_rows):
            for wo in range(d):
                row = pooled[wo:wo + 1, :].astype(jnp.bfloat16)         # (1, 256)
                acc_cls = acc_cls + jnp.dot(row, wl_ref[ho * d + wo],
                                            preferred_element_type=jnp.float32)
        out_ref[0] = acc_cls

    return kernel


def vgg5_pallas(x_flat, conv_w, linear_w, input_size, cls_pad):
    # x_flat: (N, (H+2)*(W+2), Cin) bf16, zero-padded, width-flattened NHWC input.
    N, Lp, Cin = x_flat.shape
    d = input_size // 16
    kernel = _make_vgg5_kernel(input_size, cls_pad, d)

    scratch = []
    for b in range(4):
        Hs = input_size // (2 ** b)
        # conv + activation staging (f32)
        scratch.append(pltpu.VMEM((Hs * (Hs + 2) - 2, CONV_COUT[b]), jnp.float32))
        if b < 3:
            Hn = Hs // 2
            # zero-padded input slab for the next block (f32)
            scratch.append(pltpu.VMEM(((Hn + 2) * (Hn + 2), CONV_COUT[b]), jnp.float32))

    in_specs = [pl.BlockSpec((1, Lp, Cin), lambda n: (n, 0, 0))]
    for w in (*conv_w, linear_w):
        in_specs.append(pl.BlockSpec(w.shape, lambda n: (0, 0, 0)))

    return pl.pallas_call(
        kernel,
        out_shape=jax.ShapeDtypeStruct((N, 1, cls_pad), jnp.float32),
        grid_spec=pltpu.PrefetchScalarGridSpec(
            num_scalar_prefetch=0,
            grid=(N,),
            in_specs=in_specs,
            out_specs=pl.BlockSpec((1, 1, cls_pad), lambda n: (n, 0, 0)),
            scratch_shapes=scratch,
        ),
        compiler_params=pltpu.CompilerParams(
            dimension_semantics=("parallel",),
            vmem_limit_bytes=32 * 1024 * 1024,
        ),
    )(x_flat, *conv_w, linear_w)


# --------------------------------- glue -------------------------------------

def xavier_uniform(key, shape):
    fan_in = shape[1] * shape[2] * shape[3]
    fan_out = shape[0] * shape[2] * shape[3]
    bound = float(np.sqrt(6.0 / (fan_in + fan_out)))
    return jax.random.uniform(key, shape, jnp.float32, -bound, bound)


def expand_grouped_weight(w, groups):
    # (Cout, Cin/groups, K, K) grouped -> dense block-diagonal (Cout, Cin, K, K)
    Cout, Cin_g, K, _ = w.shape
    Cin = Cin_g * groups
    Cout_g = Cout // groups
    dense = jnp.zeros((Cout, Cin, K, K), dtype=w.dtype)
    for g in range(groups):
        dense = dense.at[g * Cout_g:(g + 1) * Cout_g,
                         g * Cin_g:(g + 1) * Cin_g].set(w[g * Cout_g:(g + 1) * Cout_g])
    return dense


def init_params(key, in_channels, input_size, num_classes):
    assert input_size % 16 == 0, "input_size must be divisible by 16"
    keys = jax.random.split(key, 5)
    specs = [(32, in_channels, 1), (64, 32, 8), (128, 64, 8), (256, 128, 8)]
    conv_w = []
    for i, (cout, cin, groups) in enumerate(specs):
        wg = xavier_uniform(keys[i], (cout, cin // groups, KSIZE, KSIZE))
        wd = expand_grouped_weight(wg, groups) if groups > 1 else wg
        # (Cout, Cin, K, K) -> per-tap matrices (K*K, Cin, Cout); bf16 for the MXU.
        wt = jnp.transpose(wd, (2, 3, 1, 0)).reshape(KSIZE * KSIZE, cin, cout)
        conv_w.append(wt.astype(jnp.bfloat16))

    d = input_size // 16
    F = 256 * d * d
    bound = float(np.sqrt(1.0 / F))
    wl = jax.random.uniform(keys[4], (num_classes, F), jnp.float32, -bound, bound)
    # PyTorch flattens NCHW (index = c*d*d + h*d + w); our pooled features are
    # indexed (h*d + w, c), so reorder to (d*d, 256, classes) and zero-pad the class
    # dim to a lane-dense multiple of 128 (cropped after the kernel).
    cls_pad = ((num_classes + 127) // 128) * 128
    wm = jnp.transpose(wl.reshape(num_classes, 256, d * d), (2, 1, 0))
    wm = jnp.pad(wm, ((0, 0), (0, 0), (0, cls_pad - num_classes))).astype(jnp.bfloat16)
    return {"conv_w": conv_w, "linear_w": wm,
            "num_classes": num_classes, "cls_pad": cls_pad}


def vgg5_forward(x_nchw, params):
    N, Cin, H, W = x_nchw.shape
    assert H == W and H % 16 == 0
    x = jnp.transpose(x_nchw, (0, 2, 3, 1)).astype(jnp.float32)       # NCHW -> NHWC
    xp = jnp.pad(x, ((0, 0), (1, 1), (1, 1), (0, 0)))                 # 'same' zero padding
    x_flat = xp.reshape(N, (H + 2) * (W + 2), Cin).astype(jnp.bfloat16)
    out = vgg5_pallas(x_flat, params["conv_w"], params["linear_w"], H,
                      params["cls_pad"])                              # (N, 1, cls_pad)
    return out[:, 0, :params["num_classes"]]


# --------------------------------- main --------------------------------------

if __name__ == "__main__":
    N, in_channels, input_size, num_classes = 2, 3, 16, 2
    key = jax.random.PRNGKey(0)
    kx, kw = jax.random.split(key)
    x = jax.random.normal(kx, (N, in_channels, input_size, input_size),
                          dtype=jnp.float32)
    params = init_params(kw, in_channels, input_size, num_classes)
    out = vgg5_forward(x, params)
    out = jax.block_until_ready(out)
    assert out.shape == (N, num_classes), out.shape
    assert bool(jnp.all(jnp.isfinite(out)))
    print("KERNEL_OK")
</pallas_src>

<mosaic_0001>
module attributes {stable_mosaic.version = 11 : i64} {
  func.func @kernel(%arg0: i32, %arg1: memref<1x324x3xbf16, #tpu.memory_space<vmem>>, %arg2: memref<9x3x32xbf16, #tpu.memory_space<vmem>>, %arg3: memref<9x32x64xbf16, #tpu.memory_space<vmem>>, %arg4: memref<9x64x128xbf16, #tpu.memory_space<vmem>>, %arg5: memref<9x128x256xbf16, #tpu.memory_space<vmem>>, %arg6: memref<1x256x128xbf16, #tpu.memory_space<vmem>>, %arg7: memref<1x1x128xf32, #tpu.memory_space<vmem>>, %arg8: memref<286x32xf32, #tpu.memory_space<vmem>>, %arg9: memref<100x32xf32, #tpu.memory_space<vmem>>, %arg10: memref<78x64xf32, #tpu.memory_space<vmem>>, %arg11: memref<36x64xf32, #tpu.memory_space<vmem>>, %arg12: memref<22x128xf32, #tpu.memory_space<vmem>>, %arg13: memref<16x128xf32, #tpu.memory_space<vmem>>, %arg14: memref<6x256xf32, #tpu.memory_space<vmem>>) attributes {dimension_semantics = [#tpu.dimension_semantics<parallel>], iteration_bounds = array<i64: 2>, scalar_prefetch = 0 : i64, scratch_operands = 7 : i64, tpu.core_type = #tpu.core_type<tc>, window_params = [{transform_indices = @transform_0, window_bounds = array<i64: 1, 324, 3>}, {pipeline_mode = #tpu.pipeline_mode<synchronous>, transform_indices = @transform_1, window_bounds = array<i64: 9, 3, 32>}, {pipeline_mode = #tpu.pipeline_mode<synchronous>, transform_indices = @transform_2, window_bounds = array<i64: 9, 32, 64>}, {pipeline_mode = #tpu.pipeline_mode<synchronous>, transform_indices = @transform_3, window_bounds = array<i64: 9, 64, 128>}, {pipeline_mode = #tpu.pipeline_mode<synchronous>, transform_indices = @transform_4, window_bounds = array<i64: 9, 128, 256>}, {pipeline_mode = #tpu.pipeline_mode<synchronous>, transform_indices = @transform_5, window_bounds = array<i64: 1, 256, 128>}, {transform_indices = @transform_6, window_bounds = array<i64: 1, 1, 128>}]} {
    %cst = arith.constant 0.000000e+00 : f32
    %0 = vector.broadcast %cst : f32 to vector<100x32xf32>
    %c0 = arith.constant 0 : index
    %c0_0 = arith.constant 0 : index
    %1 = vector.load %arg9[%c0, %c0_0] : memref<100x32xf32, #tpu.memory_space<vmem>>, vector<100x32xf32>
    tpu.vector_store %arg9[%c0, %c0_0], %0 {strides = array<i32>} : memref<100x32xf32, #tpu.memory_space<vmem>>, vector<100x32xf32>,
    %cst_1 = arith.constant 0.000000e+00 : f32
    %2 = vector.broadcast %cst_1 : f32 to vector<36x64xf32>
    %c0_2 = arith.constant 0 : index
    %c0_3 = arith.constant 0 : index
    %3 = vector.load %arg11[%c0_2, %c0_3] : memref<36x64xf32, #tpu.memory_space<vmem>>, vector<36x64xf32>
    tpu.vector_store %arg11[%c0_2, %c0_3], %2 {strides = array<i32>} : memref<36x64xf32, #tpu.memory_space<vmem>>, vector<36x64xf32>,
    %cst_4 = arith.constant 0.000000e+00 : f32
    %4 = vector.broadcast %cst_4 : f32 to vector<16x128xf32>
    %c0_5 = arith.constant 0 : index
    %c0_6 = arith.constant 0 : index
    %5 = vector.load %arg13[%c0_5, %c0_6] : memref<16x128xf32, #tpu.memory_space<vmem>>, vector<16x128xf32>
    tpu.vector_store %arg13[%c0_5, %c0_6], %4 {strides = array<i32>} : memref<16x128xf32, #tpu.memory_space<vmem>>, vector<16x128xf32>,
    %c0_7 = arith.constant 0 : index
    %c0_8 = arith.constant 0 : index
    %c0_9 = arith.constant 0 : index
    %6 = vector.load %arg1[%c0_7, %c0_8, %c0_9] : memref<1x324x3xbf16, #tpu.memory_space<vmem>>, vector<1x286x3xbf16>
    %7 = vector.shape_cast %6 : vector<1x286x3xbf16> to vector<286x3xbf16>
    %c0_10 = arith.constant 0 : index
    %c0_11 = arith.constant 0 : index
    %c0_12 = arith.constant 0 : index
    %8 = vector.load %arg2[%c0_10, %c0_11, %c0_12] : memref<9x3x32xbf16, #tpu.memory_space<vmem>>, vector<1x3x32xbf16>
    %9 = vector.shape_cast %8 : vector<1x3x32xbf16> to vector<3x32xbf16>
    %cst_13 = arith.constant dense<0.000000e+00> : vector<286x32xf32>
    %10 = tpu.matmul %7, %9, %cst_13 {dimension_numbers = #tpu.dot_dimension_numbers<[1], [0], [0], [1], [0, 0, 1, 1], [], []>} : vector<286x3xbf16>, vector<3x32xbf16>, vector<286x32xf32> -> vector<286x32xf32>
    %c0_14 = arith.constant 0 : index
    %c1 = arith.constant 1 : index
    %c0_15 = arith.constant 0 : index
    %11 = vector.load %arg1[%c0_14, %c1, %c0_15] : memref<1x324x3xbf16, #tpu.memory_space<vmem>>, vector<1x286x3xbf16>
    %12 = vector.shape_cast %11 : vector<1x286x3xbf16> to vector<286x3xbf16>
    %c1_16 = arith.constant 1 : index
    %c0_17 = arith.constant 0 : index
    %c0_18 = arith.constant 0 : index
    %13 = vector.load %arg2[%c1_16, %c0_17, %c0_18] : memref<9x3x32xbf16, #tpu.memory_space<vmem>>, vector<1x3x32xbf16>
    %14 = vector.shape_cast %13 : vector<1x3x32xbf16> to vector<3x32xbf16>
    %cst_19 = arith.constant dense<0.000000e+00> : vector<286x32xf32>
    %15 = tpu.matmul %12, %14, %cst_19 {dimension_numbers = #tpu.dot_dimension_numbers<[1], [0], [0], [1], [0, 0, 1, 1], [], []>} : vector<286x3xbf16>, vector<3x32xbf16>, vector<286x32xf32> -> vector<286x32xf32>
    %16 = arith.addf %10, %15 : vector<286x32xf32>
    %c0_20 = arith.constant 0 : index
    %c2 = arith.constant 2 : index
    %c0_21 = arith.constant 0 : index
    %17 = vector.load %arg1[%c0_20, %c2, %c0_21] : memref<1x324x3xbf16, #tpu.memory_space<vmem>>, vector<1x286x3xbf16>
    %18 = vector.shape_cast %17 : vector<1x286x3xbf16> to vector<286x3xbf16>
    %c2_22 = arith.constant 2 : index
    %c0_23 = arith.constant 0 : index
    %c0_24 = arith.constant 0 : index
    %19 = vector.load %arg2[%c2_22, %c0_23, %c0_24] : memref<9x3x32xbf16, #tpu.memory_space<vmem>>, vector<1x3x32xbf16>
    %20 = vector.shape_cast %19 : vector<1x3x32xbf16> to vector<3x32xbf16>
    %cst_25 = arith.constant dense<0.000000e+00> : vector<286x32xf32>
    %21 = tpu.matmul %18, %20, %cst_25 {dimension_numbers = #tpu.dot_dimension_numbers<[1], [0], [0], [1], [0, 0, 1, 1], [], []>} : vector<286x3xbf16>, vector<3x32xbf16>, vector<286x32xf32> -> vector<286x32xf32>
    %22 = arith.addf %16, %21 : vector<286x32xf32>
    %c0_26 = arith.constant 0 : index
    %c18 = arith.constant 18 : index
    %c0_27 = arith.constant 0 : index
    %23 = vector.load %arg1[%c0_26, %c18, %c0_27] : memref<1x324x3xbf16, #tpu.memory_space<vmem>>, vector<1x286x3xbf16>
    %24 = vector.shape_cast %23 : vector<1x286x3xbf16> to vector<286x3xbf16>
    %c3 = arith.constant 3 : index
    %c0_28 = arith.constant 0 : index
    %c0_29 = arith.constant 0 : index
    %25 = vector.load %arg2[%c3, %c0_28, %c0_29] : memref<9x3x32xbf16, #tpu.memory_space<vmem>>, vector<1x3x32xbf16>
    %26 = vector.shape_cast %25 : vector<1x3x32xbf16> to vector<3x32xbf16>
    %cst_30 = arith.constant dense<0.000000e+00> : vector<286x32xf32>
    %27 = tpu.matmul %24, %26, %cst_30 {dimension_numbers = #tpu.dot_dimension_numbers<[1], [0], [0], [1], [0, 0, 1, 1], [], []>} : vector<286x3xbf16>, vector<3x32xbf16>, vector<286x32xf32> -> vector<286x32xf32>
    %28 = arith.addf %22, %27 : vector<286x32xf32>
    %c0_31 = arith.constant 0 : index
    %c19 = arith.constant 19 : index
    %c0_32 = arith.constant 0 : index
    %29 = vector.load %arg1[%c0_31, %c19, %c0_32] : memref<1x324x3xbf16, #tpu.memory_space<vmem>>, vector<1x286x3xbf16>
    %30 = vector.shape_cast %29 : vector<1x286x3xbf16> to vector<286x3xbf16>
    %c4 = arith.constant 4 : index
    %c0_33 = arith.constant 0 : index
    %c0_34 = arith.constant 0 : index
    %31 = vector.load %arg2[%c4, %c0_33, %c0_34] : memref<9x3x32xbf16, #tpu.memory_space<vmem>>, vector<1x3x32xbf16>
    %32 = vector.shape_cast %31 : vector<1x3x32xbf16> to vector<3x32xbf16>
    %cst_35 = arith.constant dense<0.000000e+00> : vector<286x32xf32>
    %33 = tpu.matmul %30, %32, %cst_35 {dimension_numbers = #tpu.dot_dimension_numbers<[1], [0], [0], [1], [0, 0, 1, 1], [], []>} : vector<286x3xbf16>, vector<3x32xbf16>, vector<286x32xf32> -> vector<286x32xf32>
    %34 = arith.addf %28, %33 : vector<286x32xf32>
    %c0_36 = arith.constant 0 : index
    %c20 = arith.constant 20 : index
    %c0_37 = arith.constant 0 : index
    %35 = vector.load %arg1[%c0_36, %c20, %c0_37] : memref<1x324x3xbf16, #tpu.memory_space<vmem>>, vector<1x286x3xbf16>
    %36 = vector.shape_cast %35 : vector<1x286x3xbf16> to vector<286x3xbf16>
    %c5 = arith.constant 5 : index
    %c0_38 = arith.constant 0 : index
    %c0_39 = arith.constant 0 : index
    %37 = vector.load %arg2[%c5, %c0_38, %c0_39] : memref<9x3x32xbf16, #tpu.memory_space<vmem>>, vector<1x3x32xbf16>
    %38 = vector.shape_cast %37 : vector<1x3x32xbf16> to vector<3x32xbf16>
    %cst_40 = arith.constant dense<0.000000e+00> : vector<286x32xf32>
    %39 = tpu.matmul %36, %38, %cst_40 {dimension_numbers = #tpu.dot_dimension_numbers<[1], [0], [0], [1], [0, 0, 1, 1], [], []>} : vector<286x3xbf16>, vector<3x32xbf16>, vector<286x32xf32> -> vector<286x32xf32>
    %40 = arith.addf %34, %39 : vector<286x32xf32>
    %c0_41 = arith.constant 0 : index
    %c36 = arith.constant 36 : index
    %c0_42 = arith.constant 0 : index
    %41 = vector.load %arg1[%c0_41, %c36, %c0_42] : memref<1x324x3xbf16, #tpu.memory_space<vmem>>, vector<1x286x3xbf16>
    %42 = vector.shape_cast %41 : vector<1x286x3xbf16> to vector<286x3xbf16>
    %c6 = arith.constant 6 : index
    %c0_43 = arith.constant 0 : index
    %c0_44 = arith.constant 0 : index
    %43 = vector.load %arg2[%c6, %c0_43, %c0_44] : memref<9x3x32xbf16, #tpu.memory_space<vmem>>, vector<1x3x32xbf16>
    %44 = vector.shape_cast %43 : vector<1x3x32xbf16> to vector<3x32xbf16>
    %cst_45 = arith.constant dense<0.000000e+00> : vector<286x32xf32>
    %45 = tpu.matmul %42, %44, %cst_45 {dimension_numbers = #tpu.dot_dimension_numbers<[1], [0], [0], [1], [0, 0, 1, 1], [], []>} : vector<286x3xbf16>, vector<3x32xbf16>, vector<286x32xf32> -> vector<286x32xf32>
    %46 = arith.addf %40, %45 : vector<286x32xf32>
    %c0_46 = arith.constant 0 : index
    %c37 = arith.constant 37 : index
    %c0_47 = arith.constant 0 : index
    %47 = vector.load %arg1[%c0_46, %c37, %c0_47] : memref<1x324x3xbf16, #tpu.memory_space<vmem>>, vector<1x286x3xbf16>
    %48 = vector.shape_cast %47 : vector<1x286x3xbf16> to vector<286x3xbf16>
    %c7 = arith.constant 7 : index
    %c0_48 = arith.constant 0 : index
    %c0_49 = arith.constant 0 : index
    %49 = vector.load %arg2[%c7, %c0_48, %c0_49] : memref<9x3x32xbf16, #tpu.memory_space<vmem>>, vector<1x3x32xbf16>
    %50 = vector.shape_cast %49 : vector<1x3x32xbf16> to vector<3x32xbf16>
    %cst_50 = arith.constant dense<0.000000e+00> : vector<286x32xf32>
    %51 = tpu.matmul %48, %50, %cst_50 {dimension_numbers = #tpu.dot_dimension_numbers<[1], [0], [0], [1], [0, 0, 1, 1], [], []>} : vector<286x3xbf16>, vector<3x32xbf16>, vector<286x32xf32> -> vector<286x32xf32>
    %52 = arith.addf %46, %51 : vector<286x32xf32>
    %c0_51 = arith.constant 0 : index
    %c38 = arith.constant 38 : index
    %c0_52 = arith.constant 0 : index
    %53 = vector.load %arg1[%c0_51, %c38, %c0_52] : memref<1x324x3xbf16, #tpu.memory_space<vmem>>, vector<1x286x3xbf16>
    %54 = vector.shape_cast %53 : vector<1x286x3xbf16> to vector<286x3xbf16>
    %c8 = arith.constant 8 : index
    %c0_53 = arith.constant 0 : index
    %c0_54 = arith.constant 0 : index
    %55 = vector.load %arg2[%c8, %c0_53, %c0_54] : memref<9x3x32xbf16, #tpu.memory_space<vmem>>, vector<1x3x32xbf16>
    %56 = vector.shape_cast %55 : vector<1x3x32xbf16> to vector<3x32xbf16>
    %cst_55 = arith.constant dense<0.000000e+00> : vector<286x32xf32>
    %57 = tpu.matmul %54, %56, %cst_55 {dimension_numbers = #tpu.dot_dimension_numbers<[1], [0], [0], [1], [0, 0, 1, 1], [], []>} : vector<286x3xbf16>, vector<3x32xbf16>, vector<286x32xf32> -> vector<286x32xf32>
    %58 = arith.addf %52, %57 : vector<286x32xf32>
    %cst_56 = arith.constant 9.000000e-02 : f32
    %59 = vector.broadcast %cst_56 : f32 to vector<286x32xf32>
    %60 = arith.mulf %59, %58 : vector<286x32xf32>
    %cst_57 = arith.constant 5.000000e-01 : f32
    %61 = vector.broadcast %cst_57 : f32 to vector<286x32xf32>
    %62 = arith.addf %60, %61 : vector<286x32xf32>
    %63 = arith.mulf %58, %62 : vector<286x32xf32>
    %cst_58 = arith.constant 4.700000e-01 : f32
    %64 = vector.broadcast %cst_58 : f32 to vector<286x32xf32>
    %65 = arith.addf %63, %64 : vector<286x32xf32>
    %c0_59 = arith.constant 0 : index
    %c0_60 = arith.constant 0 : index
    %66 = vector.load %arg8[%c0_59, %c0_60] : memref<286x32xf32, #tpu.memory_space<vmem>>, vector<286x32xf32>
    tpu.vector_store %arg8[%c0_59, %c0_60], %65 {strides = array<i32>} : memref<286x32xf32, #tpu.memory_space<vmem>>, vector<286x32xf32>,
    %c0_61 = arith.constant 0 : index
    %c0_62 = arith.constant 0 : index
    %67 = tpu.strided_load %arg8[%c0_61, %c0_62] {strides = array<i32: 2, 1>} : memref<286x32xf32, #tpu.memory_space<vmem>>, vector<8x32xf32>
    %c1_63 = arith.constant 1 : index
    %c0_64 = arith.constant 0 : index
    %68 = tpu.strided_load %arg8[%c1_63, %c0_64] {strides = array<i32: 2, 1>} : memref<286x32xf32, #tpu.memory_space<vmem>>, vector<8x32xf32>
    %69 = arith.addf %67, %68 : vector<8x32xf32>
    %c18_65 = arith.constant 18 : index
    %c0_66 = arith.constant 0 : index
    %70 = tpu.strided_load %arg8[%c18_65, %c0_66] {strides = array<i32: 2, 1>} : memref<286x32xf32, #tpu.memory_space<vmem>>, vector<8x32xf32>
    %71 = arith.addf %69, %70 : vector<8x32xf32>
    %c19_67 = arith.constant 19 : index
    %c0_68 = arith.constant 0 : index
    %72 = tpu.strided_load %arg8[%c19_67, %c0_68] {strides = array<i32: 2, 1>} : memref<286x32xf32, #tpu.memory_space<vmem>>, vector<8x32xf32>
    %73 = arith.addf %71, %72 : vector<8x32xf32>
    %cst_69 = arith.constant 2.500000e-01 : f32
    %74 = vector.broadcast %cst_69 : f32 to vector<8x32xf32>
    %75 = arith.mulf %74, %73 : vector<8x32xf32>
    %c11 = arith.constant 11 : index
    %c0_70 = arith.constant 0 : index
    %76 = vector.load %arg9[%c11, %c0_70] : memref<100x32xf32, #tpu.memory_space<vmem>>, vector<8x32xf32>
    tpu.vector_store %arg9[%c11, %c0_70], %75 {strides = array<i32>} : memref<100x32xf32, #tpu.memory_space<vmem>>, vector<8x32xf32>,
    %c36_71 = arith.constant 36 : index
    %c0_72 = arith.constant 0 : index
    %77 = tpu.strided_load %arg8[%c36_71, %c0_72] {strides = array<i32: 2, 1>} : memref<286x32xf32, #tpu.memory_space<vmem>>, vector<8x32xf32>
    %c37_73 = arith.constant 37 : index
    %c0_74 = arith.constant 0 : index
    %78 = tpu.strided_load %arg8[%c37_73, %c0_74] {strides = array<i32: 2, 1>} : memref<286x32xf32, #tpu.memory_space<vmem>>, vector<8x32xf32>
    %79 = arith.addf %77, %78 : vector<8x32xf32>
    %c54 = arith.constant 54 : index
    %c0_75 = arith.constant 0 : index
    %80 = tpu.strided_load %arg8[%c54, %c0_75] {strides = array<i32: 2, 1>} : memref<286x32xf32, #tpu.memory_space<vmem>>, vector<8x32xf32>
    %81 = arith.addf %79, %80 : vector<8x32xf32>
    %c55 = arith.constant 55 : index
    %c0_76 = arith.constant 0 : index
    %82 = tpu.strided_load %arg8[%c55, %c0_76] {strides = array<i32: 2, 1>} : memref<286x32xf32, #tpu.memory_space<vmem>>, vector<8x32xf32>
    %83 = arith.addf %81, %82 : vector<8x32xf32>
    %cst_77 = arith.constant 2.500000e-01 : f32
    %84 = vector.broadcast %cst_77 : f32 to vector<8x32xf32>
    %85 = arith.mulf %84, %83 : vector<8x32xf32>
    %c21 = arith.constant 21 : index
    %c0_78 = arith.constant 0 : index
    %86 = vector.load %arg9[%c21, %c0_78] : memref<100x32xf32, #tpu.memory_space<vmem>>, vector<8x32xf32>
    tpu.vector_store %arg9[%c21, %c0_78], %85 {strides = array<i32>} : memref<100x32xf32, #tpu.memory_space<vmem>>, vector<8x32xf32>,
    %c72 = arith.constant 72 : index
    %c0_79 = arith.constant 0 : index
    %87 = tpu.strided_load %arg8[%c72, %c0_79] {strides = array<i32: 2, 1>} : memref<286x32xf32, #tpu.memory_space<vmem>>, vector<8x32xf32>
    %c73 = arith.constant 73 : index
    %c0_80 = arith.constant 0 : index
    %88 = tpu.strided_load %arg8[%c73, %c0_80] {strides = array<i32: 2, 1>} : memref<286x32xf32, #tpu.memory_space<vmem>>, vector<8x32xf32>
    %89 = arith.addf %87, %88 : vector<8x32xf32>
    %c90 = arith.constant 90 : index
    %c0_81 = arith.constant 0 : index
    %90 = tpu.strided_load %arg8[%c90, %c0_81] {strides = array<i32: 2, 1>} : memref<286x32xf32, #tpu.memory_space<vmem>>, vector<8x32xf32>
    %91 = arith.addf %89, %90 : vector<8x32xf32>
    %c91 = arith.constant 91 : index
    %c0_82 = arith.constant 0 : index
    %92 = tpu.strided_load %arg8[%c91, %c0_82] {strides = array<i32: 2, 1>} : memref<286x32xf32, #tpu.memory_space<vmem>>, vector<8x32xf32>
    %93 = arith.addf %91, %92 : vector<8x32xf32>
    %cst_83 = arith.constant 2.500000e-01 : f32
    %94 = vector.broadcast %cst_83 : f32 to vector<8x32xf32>
    %95 = arith.mulf %94, %93 : vector<8x32xf32>
    %c31 = arith.constant 31 : index
    %c0_84 = arith.constant 0 : index
    %96 = vector.load %arg9[%c31, %c0_84] : memref<100x32xf32, #tpu.memory_space<vmem>>, vector<8x32xf32>
    tpu.vector_store %arg9[%c31, %c0_84], %95 {strides = array<i32>} : memref<100x32xf32, #tpu.memory_space<vmem>>, vector<8x32xf32>,
    %c108 = arith.constant 108 : index
    %c0_85 = arith.constant 0 : index
    %97 = tpu.strided_load %arg8[%c108, %c0_85] {strides = array<i32: 2, 1>} : memref<286x32xf32, #tpu.memory_space<vmem>>, vector<8x32xf32>
    %c109 = arith.constant 109 : index
    %c0_86 = arith.constant 0 : index
    %98 = tpu.strided_load %arg8[%c109, %c0_86] {strides = array<i32: 2, 1>} : memref<286x32xf32, #tpu.memory_space<vmem>>, vector<8x32xf32>
    %99 = arith.addf %97, %98 : vector<8x32xf32>
    %c126 = arith.constant 126 : index
    %c0_87 = arith.constant 0 : index
    %100 = tpu.strided_load %arg8[%c126, %c0_87] {strides = array<i32: 2, 1>} : memref<286x32xf32, #tpu.memory_space<vmem>>, vector<8x32xf32>
    %101 = arith.addf %99, %100 : vector<8x32xf32>
    %c127 = arith.constant 127 : index
    %c0_88 = arith.constant 0 : index
    %102 = tpu.strided_load %arg8[%c127, %c0_88] {strides = array<i32: 2, 1>} : memref<286x32xf32, #tpu.memory_space<vmem>>, vector<8x32xf32>
    %103 = arith.addf %101, %102 : vector<8x32xf32>
    %cst_89 = arith.constant 2.500000e-01 : f32
    %104 = vector.broadcast %cst_89 : f32 to vector<8x32xf32>
    %105 = arith.mulf %104, %103 : vector<8x32xf32>
    %c41 = arith.constant 41 : index
    %c0_90 = arith.constant 0 : index
    %106 = vector.load %arg9[%c41, %c0_90] : memref<100x32xf32, #tpu.memory_space<vmem>>, vector<8x32xf32>
    tpu.vector_store %arg9[%c41, %c0_90], %105 {strides = array<i32>} : memref<100x32xf32, #tpu.memory_space<vmem>>, vector<8x32xf32>,
    %c144 = arith.constant 144 : index
    %c0_91 = arith.constant 0 : index
    %107 = tpu.strided_load %arg8[%c144, %c0_91] {strides = array<i32: 2, 1>} : memref<286x32xf32, #tpu.memory_space<vmem>>, vector<8x32xf32>
    %c145 = arith.constant 145 : index
    %c0_92 = arith.constant 0 : index
    %108 = tpu.strided_load %arg8[%c145, %c0_92] {strides = array<i32: 2, 1>} : memref<286x32xf32, #tpu.memory_space<vmem>>, vector<8x32xf32>
    %109 = arith.addf %107, %108 : vector<8x32xf32>
    %c162 = arith.constant 162 : index
    %c0_93 = arith.constant 0 : index
    %110 = tpu.strided_load %arg8[%c162, %c0_93] {strides = array<i32: 2, 1>} : memref<286x32xf32, #tpu.memory_space<vmem>>, vector<8x32xf32>
    %111 = arith.addf %109, %110 : vector<8x32xf32>
    %c163 = arith.constant 163 : index
    %c0_94 = arith.constant 0 : index
    %112 = tpu.strided_load %arg8[%c163, %c0_94] {strides = array<i32: 2, 1>} : memref<286x32xf32, #tpu.memory_space<vmem>>, vector<8x32xf32>
    %113 = arith.addf %111, %112 : vector<8x32xf32>
    %cst_95 = arith.constant 2.500000e-01 : f32
    %114 = vector.broadcast %cst_95 : f32 to vector<8x32xf32>
    %115 = arith.mulf %114, %113 : vector<8x32xf32>
    %c51 = arith.constant 51 : index
    %c0_96 = arith.constant 0 : index
    %116 = vector.load %arg9[%c51, %c0_96] : memref<100x32xf32, #tpu.memory_space<vmem>>, vector<8x32xf32>
    tpu.vector_store %arg9[%c51, %c0_96], %115 {strides = array<i32>} : memref<100x32xf32, #tpu.memory_space<vmem>>, vector<8x32xf32>,
    %c180 = arith.constant 180 : index
    %c0_97 = arith.constant 0 : index
    %117 = tpu.strided_load %arg8[%c180, %c0_97] {strides = array<i32: 2, 1>} : memref<286x32xf32, #tpu.memory_space<vmem>>, vector<8x32xf32>
    %c181 = arith.constant 181 : index
    %c0_98 = arith.constant 0 : index
    %118 = tpu.strided_load %arg8[%c181, %c0_98] {strides = array<i32: 2, 1>} : memref<286x32xf32, #tpu.memory_space<vmem>>, vector<8x32xf32>
    %119 = arith.addf %117, %118 : vector<8x32xf32>
    %c198 = arith.constant 198 : index
    %c0_99 = arith.constant 0 : index
    %120 = tpu.strided_load %arg8[%c198, %c0_99] {strides = array<i32: 2, 1>} : memref<286x32xf32, #tpu.memory_space<vmem>>, vector<8x32xf32>
    %121 = arith.addf %119, %120 : vector<8x32xf32>
    %c199 = arith.constant 199 : index
    %c0_100 = arith.constant 0 : index
    %122 = tpu.strided_load %arg8[%c199, %c0_100] {strides = array<i32: 2, 1>} : memref<286x32xf32, #tpu.memory_space<vmem>>, vector<8x32xf32>
    %123 = arith.addf %121, %122 : vector<8x32xf32>
    %cst_101 = arith.constant 2.500000e-01 : f32
    %124 = vector.broadcast %cst_101 : f32 to vector<8x32xf32>
    %125 = arith.mulf %124, %123 : vector<8x32xf32>
    %c61 = arith.constant 61 : index
    %c0_102 = arith.constant 0 : index
    %126 = vector.load %arg9[%c61, %c0_102] : memref<100x32xf32, #tpu.memory_space<vmem>>, vector<8x32xf32>
    tpu.vector_store %arg9[%c61, %c0_102], %125 {strides = array<i32>} : memref<100x32xf32, #tpu.memory_space<vmem>>, vector<8x32xf32>,
    %c216 = arith.constant 216 : index
    %c0_103 = arith.constant 0 : index
    %127 = tpu.strided_load %arg8[%c216, %c0_103] {strides = array<i32: 2, 1>} : memref<286x32xf32, #tpu.memory_space<vmem>>, vector<8x32xf32>
    %c217 = arith.constant 217 : index
    %c0_104 = arith.constant 0 : index
    %128 = tpu.strided_load %arg8[%c217, %c0_104] {strides = array<i32: 2, 1>} : memref<286x32xf32, #tpu.memory_space<vmem>>, vector<8x32xf32>
    %129 = arith.addf %127, %128 : vector<8x32xf32>
    %c234 = arith.constant 234 : index
    %c0_105 = arith.constant 0 : index
    %130 = tpu.strided_load %arg8[%c234, %c0_105] {strides = array<i32: 2, 1>} : memref<286x32xf32, #tpu.memory_space<vmem>>, vector<8x32xf32>
    %131 = arith.addf %129, %130 : vector<8x32xf32>
    %c235 = arith.constant 235 : index
    %c0_106 = arith.constant 0 : index
    %132 = tpu.strided_load %arg8[%c235, %c0_106] {strides = array<i32: 2, 1>} : memref<286x32xf32, #tpu.memory_space<vmem>>, vector<8x32xf32>
    %133 = arith.addf %131, %132 : vector<8x32xf32>
    %cst_107 = arith.constant 2.500000e-01 : f32
    %134 = vector.broadcast %cst_107 : f32 to vector<8x32xf32>
    %135 = arith.mulf %134, %133 : vector<8x32xf32>
    %c71 = arith.constant 71 : index
    %c0_108 = arith.constant 0 : index
    %136 = vector.load %arg9[%c71, %c0_108] : memref<100x32xf32, #tpu.memory_space<vmem>>, vector<8x32xf32>
    tpu.vector_store %arg9[%c71, %c0_108], %135 {strides = array<i32>} : memref<100x32xf32, #tpu.memory_space<vmem>>, vector<8x32xf32>,
    %c252 = arith.constant 252 : index
    %c0_109 = arith.constant 0 : index
    %137 = tpu.strided_load %arg8[%c252, %c0_109] {strides = array<i32: 2, 1>} : memref<286x32xf32, #tpu.memory_space<vmem>>, vector<8x32xf32>
    %c253 = arith.constant 253 : index
    %c0_110 = arith.constant 0 : index
    %138 = tpu.strided_load %arg8[%c253, %c0_110] {strides = array<i32: 2, 1>} : memref<286x32xf32, #tpu.memory_space<vmem>>, vector<8x32xf32>
    %139 = arith.addf %137, %138 : vector<8x32xf32>
    %c270 = arith.constant 270 : index
    %c0_111 = arith.constant 0 : index
    %140 = tpu.strided_load %arg8[%c270, %c0_111] {strides = array<i32: 2, 1>} : memref<286x32xf32, #tpu.memory_space<vmem>>, vector<8x32xf32>
    %141 = arith.addf %139, %140 : vector<8x32xf32>
    %c271 = arith.constant 271 : index
    %c0_112 = arith.constant 0 : index
    %142 = tpu.strided_load %arg8[%c271, %c0_112] {strides = array<i32: 2, 1>} : memref<286x32xf32, #tpu.memory_space<vmem>>, vector<8x32xf32>
    %143 = arith.addf %141, %142 : vector<8x32xf32>
    %cst_113 = arith.constant 2.500000e-01 : f32
    %144 = vector.broadcast %cst_113 : f32 to vector<8x32xf32>
    %145 = arith.mulf %144, %143 : vector<8x32xf32>
    %c81 = arith.constant 81 : index
    %c0_114 = arith.constant 0 : index
    %146 = vector.load %arg9[%c81, %c0_114] : memref<100x32xf32, #tpu.memory_space<vmem>>, vector<8x32xf32>
    tpu.vector_store %arg9[%c81, %c0_114], %145 {strides = array<i32>} : memref<100x32xf32, #tpu.memory_space<vmem>>, vector<8x32xf32>,
    %c0_115 = arith.constant 0 : index
    %c0_116 = arith.constant 0 : index
    %147 = vector.load %arg9[%c0_115, %c0_116] : memref<100x32xf32, #tpu.memory_space<vmem>>, vector<78x32xf32>
    %148 = arith.truncf %147 : vector<78x32xf32> to vector<78x32xbf16>
    %c0_117 = arith.constant 0 : index
    %c0_118 = arith.constant 0 : index
    %c0_119 = arith.constant 0 : index
    %149 = vector.load %arg3[%c0_117, %c0_118, %c0_119] : memref<9x32x64xbf16, #tpu.memory_space<vmem>>, vector<1x32x64xbf16>
    %150 = vector.shape_cast %149 : vector<1x32x64xbf16> to vector<32x64xbf16>
    %cst_120 = arith.constant dense<0.000000e+00> : vector<78x64xf32>
    %151 = tpu.matmul %148, %150, %cst_120 {dimension_numbers = #tpu.dot_dimension_numbers<[1], [0], [0], [1], [0, 0, 1, 1], [], []>} : vector<78x32xbf16>, vector<32x64xbf16>, vector<78x64xf32> -> vector<78x64xf32>
    %c1_121 = arith.constant 1 : index
    %c0_122 = arith.constant 0 : index
    %152 = vector.load %arg9[%c1_121, %c0_122] : memref<100x32xf32, #tpu.memory_space<vmem>>, vector<78x32xf32>
    %153 = arith.truncf %152 : vector<78x32xf32> to vector<78x32xbf16>
    %c1_123 = arith.constant 1 : index
    %c0_124 = arith.constant 0 : index
    %c0_125 = arith.constant 0 : index
    %154 = vector.load %arg3[%c1_123, %c0_124, %c0_125] : memref<9x32x64xbf16, #tpu.memory_space<vmem>>, vector<1x32x64xbf16>
    %155 = vector.shape_cast %154 : vector<1x32x64xbf16> to vector<32x64xbf16>
    %cst_126 = arith.constant dense<0.000000e+00> : vector<78x64xf32>
    %156 = tpu.matmul %153, %155, %cst_126 {dimension_numbers = #tpu.dot_dimension_numbers<[1], [0], [0], [1], [0, 0, 1, 1], [], []>} : vector<78x32xbf16>, vector<32x64xbf16>, vector<78x64xf32> -> vector<78x64xf32>
    %157 = arith.addf %151, %156 : vector<78x64xf32>
    %c2_127 = arith.constant 2 : index
    %c0_128 = arith.constant 0 : index
    %158 = vector.load %arg9[%c2_127, %c0_128] : memref<100x32xf32, #tpu.memory_space<vmem>>, vector<78x32xf32>
    %159 = arith.truncf %158 : vector<78x32xf32> to vector<78x32xbf16>
    %c2_129 = arith.constant 2 : index
    %c0_130 = arith.constant 0 : index
    %c0_131 = arith.constant 0 : index
    %160 = vector.load %arg3[%c2_129, %c0_130, %c0_131] : memref<9x32x64xbf16, #tpu.memory_space<vmem>>, vector<1x32x64xbf16>
    %161 = vector.shape_cast %160 : vector<1x32x64xbf16> to vector<32x64xbf16>
    %cst_132 = arith.constant dense<0.000000e+00> : vector<78x64xf32>
    %162 = tpu.matmul %159, %161, %cst_132 {dimension_numbers = #tpu.dot_dimension_numbers<[1], [0], [0], [1], [0, 0, 1, 1], [], []>} : vector<78x32xbf16>, vector<32x64xbf16>, vector<78x64xf32> -> vector<78x64xf32>
    %163 = arith.addf %157, %162 : vector<78x64xf32>
    %c10 = arith.constant 10 : index
    %c0_133 = arith.constant 0 : index
    %164 = vector.load %arg9[%c10, %c0_133] : memref<100x32xf32, #tpu.memory_space<vmem>>, vector<78x32xf32>
    %165 = arith.truncf %164 : vector<78x32xf32> to vector<78x32xbf16>
    %c3_134 = arith.constant 3 : index
    %c0_135 = arith.constant 0 : index
    %c0_136 = arith.constant 0 : index
    %166 = vector.load %arg3[%c3_134, %c0_135, %c0_136] : memref<9x32x64xbf16, #tpu.memory_space<vmem>>, vector<1x32x64xbf16>
    %167 = vector.shape_cast %166 : vector<1x32x64xbf16> to vector<32x64xbf16>
    %cst_137 = arith.constant dense<0.000000e+00> : vector<78x64xf32>
    %168 = tpu.matmul %165, %167, %cst_137 {dimension_numbers = #tpu.dot_dimension_numbers<[1], [0], [0], [1], [0, 0, 1, 1], [], []>} : vector<78x32xbf16>, vector<32x64xbf16>, vector<78x64xf32> -> vector<78x64xf32>
    %169 = arith.addf %163, %168 : vector<78x64xf32>
    %c11_138 = arith.constant 11 : index
    %c0_139 = arith.constant 0 : index
    %170 = vector.load %arg9[%c11_138, %c0_139] : memref<100x32xf32, #tpu.memory_space<vmem>>, vector<78x32xf32>
    %171 = arith.truncf %170 : vector<78x32xf32> to vector<78x32xbf16>
    %c4_140 = arith.constant 4 : index
    %c0_141 = arith.constant 0 : index
    %c0_142 = arith.constant 0 : index
    %172 = vector.load %arg3[%c4_140, %c0_141, %c0_142] : memref<9x32x64xbf16, #tpu.memory_space<vmem>>, vector<1x32x64xbf16>
    %173 = vector.shape_cast %172 : vector<1x32x64xbf16> to vector<32x64xbf16>
    %cst_143 = arith.constant dense<0.000000e+00> : vector<78x64xf32>
    %174 = tpu.matmul %171, %173, %cst_143 {dimension_numbers = #tpu.dot_dimension_numbers<[1], [0], [0], [1], [0, 0, 1, 1], [], []>} : vector<78x32xbf16>, vector<32x64xbf16>, vector<78x64xf32> -> vector<78x64xf32>
    %175 = arith.addf %169, %174 : vector<78x64xf32>
    %c12 = arith.constant 12 : index
    %c0_144 = arith.constant 0 : index
    %176 = vector.load %arg9[%c12, %c0_144] : memref<100x32xf32, #tpu.memory_space<vmem>>, vector<78x32xf32>
    %177 = arith.truncf %176 : vector<78x32xf32> to vector<78x32xbf16>
    %c5_145 = arith.constant 5 : index
    %c0_146 = arith.constant 0 : index
    %c0_147 = arith.constant 0 : index
    %178 = vector.load %arg3[%c5_145, %c0_146, %c0_147] : memref<9x32x64xbf16, #tpu.memory_space<vmem>>, vector<1x32x64xbf16>
    %179 = vector.shape_cast %178 : vector<1x32x64xbf16> to vector<32x64xbf16>
    %cst_148 = arith.constant dense<0.000000e+00> : vector<78x64xf32>
    %180 = tpu.matmul %177, %179, %cst_148 {dimension_numbers = #tpu.dot_dimension_numbers<[1], [0], [0], [1], [0, 0, 1, 1], [], []>} : vector<78x32xbf16>, vector<32x64xbf16>, vector<78x64xf32> -> vector<78x64xf32>
    %181 = arith.addf %175, %180 : vector<78x64xf32>
    %c20_149 = arith.constant 20 : index
    %c0_150 = arith.constant 0 : index
    %182 = vector.load %arg9[%c20_149, %c0_150] : memref<100x32xf32, #tpu.memory_space<vmem>>, vector<78x32xf32>
    %183 = arith.truncf %182 : vector<78x32xf32> to vector<78x32xbf16>
    %c6_151 = arith.constant 6 : index
    %c0_152 = arith.constant 0 : index
    %c0_153 = arith.constant 0 : index
    %184 = vector.load %arg3[%c6_151, %c0_152, %c0_153] : memref<9x32x64xbf16, #tpu.memory_space<vmem>>, vector<1x32x64xbf16>
    %185 = vector.shape_cast %184 : vector<1x32x64xbf16> to vector<32x64xbf16>
    %cst_154 = arith.constant dense<0.000000e+00> : vector<78x64xf32>
    %186 = tpu.matmul %183, %185, %cst_154 {dimension_numbers = #tpu.dot_dimension_numbers<[1], [0], [0], [1], [0, 0, 1, 1], [], []>} : vector<78x32xbf16>, vector<32x64xbf16>, vector<78x64xf32> -> vector<78x64xf32>
    %187 = arith.addf %181, %186 : vector<78x64xf32>
    %c21_155 = arith.constant 21 : index
    %c0_156 = arith.constant 0 : index
    %188 = vector.load %arg9[%c21_155, %c0_156] : memref<100x32xf32, #tpu.memory_space<vmem>>, vector<78x32xf32>
    %189 = arith.truncf %188 : vector<78x32xf32> to vector<78x32xbf16>
    %c7_157 = arith.constant 7 : index
    %c0_158 = arith.constant 0 : index
    %c0_159 = arith.constant 0 : index
    %190 = vector.load %arg3[%c7_157, %c0_158, %c0_159] : memref<9x32x64xbf16, #tpu.memory_space<vmem>>, vector<1x32x64xbf16>
    %191 = vector.shape_cast %190 : vector<1x32x64xbf16> to vector<32x64xbf16>
    %cst_160 = arith.constant dense<0.000000e+00> : vector<78x64xf32>
    %192 = tpu.matmul %189, %191, %cst_160 {dimension_numbers = #tpu.dot_dimension_numbers<[1], [0], [0], [1], [0, 0, 1, 1], [], []>} : vector<78x32xbf16>, vector<32x64xbf16>, vector<78x64xf32> -> vector<78x64xf32>
    %193 = arith.addf %187, %192 : vector<78x64xf32>
    %c22 = arith.constant 22 : index
    %c0_161 = arith.constant 0 : index
    %194 = vector.load %arg9[%c22, %c0_161] : memref<100x32xf32, #tpu.memory_space<vmem>>, vector<78x32xf32>
    %195 = arith.truncf %194 : vector<78x32xf32> to vector<78x32xbf16>
    %c8_162 = arith.constant 8 : index
    %c0_163 = arith.constant 0 : index
    %c0_164 = arith.constant 0 : index
    %196 = vector.load %arg3[%c8_162, %c0_163, %c0_164] : memref<9x32x64xbf16, #tpu.memory_space<vmem>>, vector<1x32x64xbf16>
    %197 = vector.shape_cast %196 : vector<1x32x64xbf16> to vector<32x64xbf16>
    %cst_165 = arith.constant dense<0.000000e+00> : vector<78x64xf32>
    %198 = tpu.matmul %195, %197, %cst_165 {dimension_numbers = #tpu.dot_dimension_numbers<[1], [0], [0], [1], [0, 0, 1, 1], [], []>} : vector<78x32xbf16>, vector<32x64xbf16>, vector<78x64xf32> -> vector<78x64xf32>
    %199 = arith.addf %193, %198 : vector<78x64xf32>
    %cst_166 = arith.constant 9.000000e-02 : f32
    %200 = vector.broadcast %cst_166 : f32 to vector<78x64xf32>
    %201 = arith.mulf %200, %199 : vector<78x64xf32>
    %cst_167 = arith.constant 5.000000e-01 : f32
    %202 = vector.broadcast %cst_167 : f32 to vector<78x64xf32>
    %203 = arith.addf %201, %202 : vector<78x64xf32>
    %204 = arith.mulf %199, %203 : vector<78x64xf32>
    %cst_168 = arith.constant 4.700000e-01 : f32
    %205 = vector.broadcast %cst_168 : f32 to vector<78x64xf32>
    %206 = arith.addf %204, %205 : vector<78x64xf32>
    %c0_169 = arith.constant 0 : index
    %c0_170 = arith.constant 0 : index
    %207 = vector.load %arg10[%c0_169, %c0_170] : memref<78x64xf32, #tpu.memory_space<vmem>>, vector<78x64xf32>
    tpu.vector_store %arg10[%c0_169, %c0_170], %206 {strides = array<i32>} : memref<78x64xf32, #tpu.memory_space<vmem>>, vector<78x64xf32>,
    %c0_171 = arith.constant 0 : index
    %c0_172 = arith.constant 0 : index
    %208 = tpu.strided_load %arg10[%c0_171, %c0_172] {strides = array<i32: 2, 1>} : memref<78x64xf32, #tpu.memory_space<vmem>>, vector<4x64xf32>
    %c1_173 = arith.constant 1 : index
    %c0_174 = arith.constant 0 : index
    %209 = tpu.strided_load %arg10[%c1_173, %c0_174] {strides = array<i32: 2, 1>} : memref<78x64xf32, #tpu.memory_space<vmem>>, vector<4x64xf32>
    %210 = arith.addf %208, %209 : vector<4x64xf32>
    %c10_175 = arith.constant 10 : index
    %c0_176 = arith.constant 0 : index
    %211 = tpu.strided_load %arg10[%c10_175, %c0_176] {strides = array<i32: 2, 1>} : memref<78x64xf32, #tpu.memory_space<vmem>>, vector<4x64xf32>
    %212 = arith.addf %210, %211 : vector<4x64xf32>
    %c11_177 = arith.constant 11 : index
    %c0_178 = arith.constant 0 : index
    %213 = tpu.strided_load %arg10[%c11_177, %c0_178] {strides = array<i32: 2, 1>} : memref<78x64xf32, #tpu.memory_space<vmem>>, vector<4x64xf32>
    %214 = arith.addf %212, %213 : vector<4x64xf32>
    %cst_179 = arith.constant 2.500000e-01 : f32
    %215 = vector.broadcast %cst_179 : f32 to vector<4x64xf32>
    %216 = arith.mulf %215, %214 : vector<4x64xf32>
    %c7_180 = arith.constant 7 : index
    %c0_181 = arith.constant 0 : index
    %217 = vector.load %arg11[%c7_180, %c0_181] : memref<36x64xf32, #tpu.memory_space<vmem>>, vector<4x64xf32>
    tpu.vector_store %arg11[%c7_180, %c0_181], %216 {strides = array<i32>} : memref<36x64xf32, #tpu.memory_space<vmem>>, vector<4x64xf32>,
    %c20_182 = arith.constant 20 : index
    %c0_183 = arith.constant 0 : index
    %218 = tpu.strided_load %arg10[%c20_182, %c0_183] {strides = array<i32: 2, 1>} : memref<78x64xf32, #tpu.memory_space<vmem>>, vector<4x64xf32>
    %c21_184 = arith.constant 21 : index
    %c0_185 = arith.constant 0 : index
    %219 = tpu.strided_load %arg10[%c21_184, %c0_185] {strides = array<i32: 2, 1>} : memref<78x64xf32, #tpu.memory_space<vmem>>, vector<4x64xf32>
    %220 = arith.addf %218, %219 : vector<4x64xf32>
    %c30 = arith.constant 30 : index
    %c0_186 = arith.constant 0 : index
    %221 = tpu.strided_load %arg10[%c30, %c0_186] {strides = array<i32: 2, 1>} : memref<78x64xf32, #tpu.memory_space<vmem>>, vector<4x64xf32>
    %222 = arith.addf %220, %221 : vector<4x64xf32>
    %c31_187 = arith.constant 31 : index
    %c0_188 = arith.constant 0 : index
    %223 = tpu.strided_load %arg10[%c31_187, %c0_188] {strides = array<i32: 2, 1>} : memref<78x64xf32, #tpu.memory_space<vmem>>, vector<4x64xf32>
    %224 = arith.addf %222, %223 : vector<4x64xf32>
    %cst_189 = arith.constant 2.500000e-01 : f32
    %225 = vector.broadcast %cst_189 : f32 to vector<4x64xf32>
    %226 = arith.mulf %225, %224 : vector<4x64xf32>
    %c13 = arith.constant 13 : index
    %c0_190 = arith.constant 0 : index
    %227 = vector.load %arg11[%c13, %c0_190] : memref<36x64xf32, #tpu.memory_space<vmem>>, vector<4x64xf32>
    tpu.vector_store %arg11[%c13, %c0_190], %226 {strides = array<i32>} : memref<36x64xf32, #tpu.memory_space<vmem>>, vector<4x64xf32>,
    %c40 = arith.constant 40 : index
    %c0_191 = arith.constant 0 : index
    %228 = tpu.strided_load %arg10[%c40, %c0_191] {strides = array<i32: 2, 1>} : memref<78x64xf32, #tpu.memory_space<vmem>>, vector<4x64xf32>
    %c41_192 = arith.constant 41 : index
    %c0_193 = arith.constant 0 : index
    %229 = tpu.strided_load %arg10[%c41_192, %c0_193] {strides = array<i32: 2, 1>} : memref<78x64xf32, #tpu.memory_space<vmem>>, vector<4x64xf32>
    %230 = arith.addf %228, %229 : vector<4x64xf32>
    %c50 = arith.constant 50 : index
    %c0_194 = arith.constant 0 : index
    %231 = tpu.strided_load %arg10[%c50, %c0_194] {strides = array<i32: 2, 1>} : memref<78x64xf32, #tpu.memory_space<vmem>>, vector<4x64xf32>
    %232 = arith.addf %230, %231 : vector<4x64xf32>
    %c51_195 = arith.constant 51 : index
    %c0_196 = arith.constant 0 : index
    %233 = tpu.strided_load %arg10[%c51_195, %c0_196] {strides = array<i32: 2, 1>} : memref<78x64xf32, #tpu.memory_space<vmem>>, vector<4x64xf32>
    %234 = arith.addf %232, %233 : vector<4x64xf32>
    %cst_197 = arith.constant 2.500000e-01 : f32
    %235 = vector.broadcast %cst_197 : f32 to vector<4x64xf32>
    %236 = arith.mulf %235, %234 : vector<4x64xf32>
    %c19_198 = arith.constant 19 : index
    %c0_199 = arith.constant 0 : index
    %237 = vector.load %arg11[%c19_198, %c0_199] : memref<36x64xf32, #tpu.memory_space<vmem>>, vector<4x64xf32>
    tpu.vector_store %arg11[%c19_198, %c0_199], %236 {strides = array<i32>} : memref<36x64xf32, #tpu.memory_space<vmem>>, vector<4x64xf32>,
    %c60 = arith.constant 60 : index
    %c0_200 = arith.constant 0 : index
    %238 = tpu.strided_load %arg10[%c60, %c0_200] {strides = array<i32: 2, 1>} : memref<78x64xf32, #tpu.memory_space<vmem>>, vector<4x64xf32>
    %c61_201 = arith.constant 61 : index
    %c0_202 = arith.constant 0 : index
    %239 = tpu.strided_load %arg10[%c61_201, %c0_202] {strides = array<i32: 2, 1>} : memref<78x64xf32, #tpu.memory_space<vmem>>, vector<4x64xf32>
    %240 = arith.addf %238, %239 : vector<4x64xf32>
    %c70 = arith.constant 70 : index
    %c0_203 = arith.constant 0 : index
    %241 = tpu.strided_load %arg10[%c70, %c0_203] {strides = array<i32: 2, 1>} : memref<78x64xf32, #tpu.memory_space<vmem>>, vector<4x64xf32>
    %242 = arith.addf %240, %241 : vector<4x64xf32>
    %c71_204 = arith.constant 71 : index
    %c0_205 = arith.constant 0 : index
    %243 = tpu.strided_load %arg10[%c71_204, %c0_205] {strides = array<i32: 2, 1>} : memref<78x64xf32, #tpu.memory_space<vmem>>, vector<4x64xf32>
    %244 = arith.addf %242, %243 : vector<4x64xf32>
    %cst_206 = arith.constant 2.500000e-01 : f32
    %245 = vector.broadcast %cst_206 : f32 to vector<4x64xf32>
    %246 = arith.mulf %245, %244 : vector<4x64xf32>
    %c25 = arith.constant 25 : index
    %c0_207 = arith.constant 0 : index
    %247 = vector.load %arg11[%c25, %c0_207] : memref<36x64xf32, #tpu.memory_space<vmem>>, vector<4x64xf32>
    tpu.vector_store %arg11[%c25, %c0_207], %246 {strides = array<i32>} : memref<36x64xf32, #tpu.memory_space<vmem>>, vector<4x64xf32>,
    %c0_208 = arith.constant 0 : index
    %c0_209 = arith.constant 0 : index
    %248 = vector.load %arg11[%c0_208, %c0_209] : memref<36x64xf32, #tpu.memory_space<vmem>>, vector<22x64xf32>
    %249 = arith.truncf %248 : vector<22x64xf32> to vector<22x64xbf16>
    %c0_210 = arith.constant 0 : index
    %c0_211 = arith.constant 0 : index
    %c0_212 = arith.constant 0 : index
    %250 = vector.load %arg4[%c0_210, %c0_211, %c0_212] : memref<9x64x128xbf16, #tpu.memory_space<vmem>>, vector<1x64x128xbf16>
    %251 = vector.shape_cast %250 : vector<1x64x128xbf16> to vector<64x128xbf16>
    %cst_213 = arith.constant dense<0.000000e+00> : vector<22x128xf32>
    %252 = tpu.matmul %249, %251, %cst_213 {dimension_numbers = #tpu.dot_dimension_numbers<[1], [0], [0], [1], [0, 0, 1, 1], [], []>} : vector<22x64xbf16>, vector<64x128xbf16>, vector<22x128xf32> -> vector<22x128xf32>
    %c1_214 = arith.constant 1 : index
    %c0_215 = arith.constant 0 : index
    %253 = vector.load %arg11[%c1_214, %c0_215] : memref<36x64xf32, #tpu.memory_space<vmem>>, vector<22x64xf32>
    %254 = arith.truncf %253 : vector<22x64xf32> to vector<22x64xbf16>
    %c1_216 = arith.constant 1 : index
    %c0_217 = arith.constant 0 : index
    %c0_218 = arith.constant 0 : index
    %255 = vector.load %arg4[%c1_216, %c0_217, %c0_218] : memref<9x64x128xbf16, #tpu.memory_space<vmem>>, vector<1x64x128xbf16>
    %256 = vector.shape_cast %255 : vector<1x64x128xbf16> to vector<64x128xbf16>
    %cst_219 = arith.constant dense<0.000000e+00> : vector<22x128xf32>
    %257 = tpu.matmul %254, %256, %cst_219 {dimension_numbers = #tpu.dot_dimension_numbers<[1], [0], [0], [1], [0, 0, 1, 1], [], []>} : vector<22x64xbf16>, vector<64x128xbf16>, vector<22x128xf32> -> vector<22x128xf32>
    %258 = arith.addf %252, %257 : vector<22x128xf32>
    %c2_220 = arith.constant 2 : index
    %c0_221 = arith.constant 0 : index
    %259 = vector.load %arg11[%c2_220, %c0_221] : memref<36x64xf32, #tpu.memory_space<vmem>>, vector<22x64xf32>
    %260 = arith.truncf %259 : vector<22x64xf32> to vector<22x64xbf16>
    %c2_222 = arith.constant 2 : index
    %c0_223 = arith.constant 0 : index
    %c0_224 = arith.constant 0 : index
    %261 = vector.load %arg4[%c2_222, %c0_223, %c0_224] : memref<9x64x128xbf16, #tpu.memory_space<vmem>>, vector<1x64x128xbf16>
    %262 = vector.shape_cast %261 : vector<1x64x128xbf16> to vector<64x128xbf16>
    %cst_225 = arith.constant dense<0.000000e+00> : vector<22x128xf32>
    %263 = tpu.matmul %260, %262, %cst_225 {dimension_numbers = #tpu.dot_dimension_numbers<[1], [0], [0], [1], [0, 0, 1, 1], [], []>} : vector<22x64xbf16>, vector<64x128xbf16>, vector<22x128xf32> -> vector<22x128xf32>
    %264 = arith.addf %258, %263 : vector<22x128xf32>
    %c6_226 = arith.constant 6 : index
    %c0_227 = arith.constant 0 : index
    %265 = vector.load %arg11[%c6_226, %c0_227] : memref<36x64xf32, #tpu.memory_space<vmem>>, vector<22x64xf32>
    %266 = arith.truncf %265 : vector<22x64xf32> to vector<22x64xbf16>
    %c3_228 = arith.constant 3 : index
    %c0_229 = arith.constant 0 : index
    %c0_230 = arith.constant 0 : index
    %267 = vector.load %arg4[%c3_228, %c0_229, %c0_230] : memref<9x64x128xbf16, #tpu.memory_space<vmem>>, vector<1x64x128xbf16>
    %268 = vector.shape_cast %267 : vector<1x64x128xbf16> to vector<64x128xbf16>
    %cst_231 = arith.constant dense<0.000000e+00> : vector<22x128xf32>
    %269 = tpu.matmul %266, %268, %cst_231 {dimension_numbers = #tpu.dot_dimension_numbers<[1], [0], [0], [1], [0, 0, 1, 1], [], []>} : vector<22x64xbf16>, vector<64x128xbf16>, vector<22x128xf32> -> vector<22x128xf32>
    %270 = arith.addf %264, %269 : vector<22x128xf32>
    %c7_232 = arith.constant 7 : index
    %c0_233 = arith.constant 0 : index
    %271 = vector.load %arg11[%c7_232, %c0_233] : memref<36x64xf32, #tpu.memory_space<vmem>>, vector<22x64xf32>
    %272 = arith.truncf %271 : vector<22x64xf32> to vector<22x64xbf16>
    %c4_234 = arith.constant 4 : index
    %c0_235 = arith.constant 0 : index
    %c0_236 = arith.constant 0 : index
    %273 = vector.load %arg4[%c4_234, %c0_235, %c0_236] : memref<9x64x128xbf16, #tpu.memory_space<vmem>>, vector<1x64x128xbf16>
    %274 = vector.shape_cast %273 : vector<1x64x128xbf16> to vector<64x128xbf16>
    %cst_237 = arith.constant dense<0.000000e+00> : vector<22x128xf32>
    %275 = tpu.matmul %272, %274, %cst_237 {dimension_numbers = #tpu.dot_dimension_numbers<[1], [0], [0], [1], [0, 0, 1, 1], [], []>} : vector<22x64xbf16>, vector<64x128xbf16>, vector<22x128xf32> -> vector<22x128xf32>
    %276 = arith.addf %270, %275 : vector<22x128xf32>
    %c8_238 = arith.constant 8 : index
    %c0_239 = arith.constant 0 : index
    %277 = vector.load %arg11[%c8_238, %c0_239] : memref<36x64xf32, #tpu.memory_space<vmem>>, vector<22x64xf32>
    %278 = arith.truncf %277 : vector<22x64xf32> to vector<22x64xbf16>
    %c5_240 = arith.constant 5 : index
    %c0_241 = arith.constant 0 : index
    %c0_242 = arith.constant 0 : index
    %279 = vector.load %arg4[%c5_240, %c0_241, %c0_242] : memref<9x64x128xbf16, #tpu.memory_space<vmem>>, vector<1x64x128xbf16>
    %280 = vector.shape_cast %279 : vector<1x64x128xbf16> to vector<64x128xbf16>
    %cst_243 = arith.constant dense<0.000000e+00> : vector<22x128xf32>
    %281 = tpu.matmul %278, %280, %cst_243 {dimension_numbers = #tpu.dot_dimension_numbers<[1], [0], [0], [1], [0, 0, 1, 1], [], []>} : vector<22x64xbf16>, vector<64x128xbf16>, vector<22x128xf32> -> vector<22x128xf32>
    %282 = arith.addf %276, %281 : vector<22x128xf32>
    %c12_244 = arith.constant 12 : index
    %c0_245 = arith.constant 0 : index
    %283 = vector.load %arg11[%c12_244, %c0_245] : memref<36x64xf32, #tpu.memory_space<vmem>>, vector<22x64xf32>
    %284 = arith.truncf %283 : vector<22x64xf32> to vector<22x64xbf16>
    %c6_246 = arith.constant 6 : index
    %c0_247 = arith.constant 0 : index
    %c0_248 = arith.constant 0 : index
    %285 = vector.load %arg4[%c6_246, %c0_247, %c0_248] : memref<9x64x128xbf16, #tpu.memory_space<vmem>>, vector<1x64x128xbf16>
    %286 = vector.shape_cast %285 : vector<1x64x128xbf16> to vector<64x128xbf16>
    %cst_249 = arith.constant dense<0.000000e+00> : vector<22x128xf32>
    %287 = tpu.matmul %284, %286, %cst_249 {dimension_numbers = #tpu.dot_dimension_numbers<[1], [0], [0], [1], [0, 0, 1, 1], [], []>} : vector<22x64xbf16>, vector<64x128xbf16>, vector<22x128xf32> -> vector<22x128xf32>
    %288 = arith.addf %282, %287 : vector<22x128xf32>
    %c13_250 = arith.constant 13 : index
    %c0_251 = arith.constant 0 : index
    %289 = vector.load %arg11[%c13_250, %c0_251] : memref<36x64xf32, #tpu.memory_space<vmem>>, vector<22x64xf32>
    %290 = arith.truncf %289 : vector<22x64xf32> to vector<22x64xbf16>
    %c7_252 = arith.constant 7 : index
    %c0_253 = arith.constant 0 : index
    %c0_254 = arith.constant 0 : index
    %291 = vector.load %arg4[%c7_252, %c0_253, %c0_254] : memref<9x64x128xbf16, #tpu.memory_space<vmem>>, vector<1x64x128xbf16>
    %292 = vector.shape_cast %291 : vector<1x64x128xbf16> to vector<64x128xbf16>
    %cst_255 = arith.constant dense<0.000000e+00> : vector<22x128xf32>
    %293 = tpu.matmul %290, %292, %cst_255 {dimension_numbers = #tpu.dot_dimension_numbers<[1], [0], [0], [1], [0, 0, 1, 1], [], []>} : vector<22x64xbf16>, vector<64x128xbf16>, vector<22x128xf32> -> vector<22x128xf32>
    %294 = arith.addf %288, %293 : vector<22x128xf32>
    %c14 = arith.constant 14 : index
    %c0_256 = arith.constant 0 : index
    %295 = vector.load %arg11[%c14, %c0_256] : memref<36x64xf32, #tpu.memory_space<vmem>>, vector<22x64xf32>
    %296 = arith.truncf %295 : vector<22x64xf32> to vector<22x64xbf16>
    %c8_257 = arith.constant 8 : index
    %c0_258 = arith.constant 0 : index
    %c0_259 = arith.constant 0 : index
    %297 = vector.load %arg4[%c8_257, %c0_258, %c0_259] : memref<9x64x128xbf16, #tpu.memory_space<vmem>>, vector<1x64x128xbf16>
    %298 = vector.shape_cast %297 : vector<1x64x128xbf16> to vector<64x128xbf16>
    %cst_260 = arith.constant dense<0.000000e+00> : vector<22x128xf32>
    %299 = tpu.matmul %296, %298, %cst_260 {dimension_numbers = #tpu.dot_dimension_numbers<[1], [0], [0], [1], [0, 0, 1, 1], [], []>} : vector<22x64xbf16>, vector<64x128xbf16>, vector<22x128xf32> -> vector<22x128xf32>
    %300 = arith.addf %294, %299 : vector<22x128xf32>
    %cst_261 = arith.constant 9.000000e-02 : f32
    %301 = vector.broadcast %cst_261 : f32 to vector<22x128xf32>
    %302 = arith.mulf %301, %300 : vector<22x128xf32>
    %cst_262 = arith.constant 5.000000e-01 : f32
    %303 = vector.broadcast %cst_262 : f32 to vector<22x128xf32>
    %304 = arith.addf %302, %303 : vector<22x128xf32>
    %305 = arith.mulf %300, %304 : vector<22x128xf32>
    %cst_263 = arith.constant 4.700000e-01 : f32
    %306 = vector.broadcast %cst_263 : f32 to vector<22x128xf32>
    %307 = arith.addf %305, %306 : vector<22x128xf32>
    %c0_264 = arith.constant 0 : index
    %c0_265 = arith.constant 0 : index
    %308 = vector.load %arg12[%c0_264, %c0_265] : memref<22x128xf32, #tpu.memory_space<vmem>>, vector<22x128xf32>
    tpu.vector_store %arg12[%c0_264, %c0_265], %307 {strides = array<i32>} : memref<22x128xf32, #tpu.memory_space<vmem>>, vector<22x128xf32>,
    %c0_266 = arith.constant 0 : index
    %c0_267 = arith.constant 0 : index
    %309 = tpu.strided_load %arg12[%c0_266, %c0_267] {strides = array<i32: 2, 1>} : memref<22x128xf32, #tpu.memory_space<vmem>>, vector<2x128xf32>
    %c1_268 = arith.constant 1 : index
    %c0_269 = arith.constant 0 : index
    %310 = tpu.strided_load %arg12[%c1_268, %c0_269] {strides = array<i32: 2, 1>} : memref<22x128xf32, #tpu.memory_space<vmem>>, vector<2x128xf32>
    %311 = arith.addf %309, %310 : vector<2x128xf32>
    %c6_270 = arith.constant 6 : index
    %c0_271 = arith.constant 0 : index
    %312 = tpu.strided_load %arg12[%c6_270, %c0_271] {strides = array<i32: 2, 1>} : memref<22x128xf32, #tpu.memory_space<vmem>>, vector<2x128xf32>
    %313 = arith.addf %311, %312 : vector<2x128xf32>
    %c7_272 = arith.constant 7 : index
    %c0_273 = arith.constant 0 : index
    %314 = tpu.strided_load %arg12[%c7_272, %c0_273] {strides = array<i32: 2, 1>} : memref<22x128xf32, #tpu.memory_space<vmem>>, vector<2x128xf32>
    %315 = arith.addf %313, %314 : vector<2x128xf32>
    %cst_274 = arith.constant 2.500000e-01 : f32
    %316 = vector.broadcast %cst_274 : f32 to vector<2x128xf32>
    %317 = arith.mulf %316, %315 : vector<2x128xf32>
    %c5_275 = arith.constant 5 : index
    %c0_276 = arith.constant 0 : index
    %318 = vector.load %arg13[%c5_275, %c0_276] : memref<16x128xf32, #tpu.memory_space<vmem>>, vector<2x128xf32>
    tpu.vector_store %arg13[%c5_275, %c0_276], %317 {strides = array<i32>} : memref<16x128xf32, #tpu.memory_space<vmem>>, vector<2x128xf32>,
    %c12_277 = arith.constant 12 : index
    %c0_278 = arith.constant 0 : index
    %319 = tpu.strided_load %arg12[%c12_277, %c0_278] {strides = array<i32: 2, 1>} : memref<22x128xf32, #tpu.memory_space<vmem>>, vector<2x128xf32>
    %c13_279 = arith.constant 13 : index
    %c0_280 = arith.constant 0 : index
    %320 = tpu.strided_load %arg12[%c13_279, %c0_280] {strides = array<i32: 2, 1>} : memref<22x128xf32, #tpu.memory_space<vmem>>, vector<2x128xf32>
    %321 = arith.addf %319, %320 : vector<2x128xf32>
    %c18_281 = arith.constant 18 : index
    %c0_282 = arith.constant 0 : index
    %322 = tpu.strided_load %arg12[%c18_281, %c0_282] {strides = array<i32: 2, 1>} : memref<22x128xf32, #tpu.memory_space<vmem>>, vector<2x128xf32>
    %323 = arith.addf %321, %322 : vector<2x128xf32>
    %c19_283 = arith.constant 19 : index
    %c0_284 = arith.constant 0 : index
    %324 = tpu.strided_load %arg12[%c19_283, %c0_284] {strides = array<i32: 2, 1>} : memref<22x128xf32, #tpu.memory_space<vmem>>, vector<2x128xf32>
    %325 = arith.addf %323, %324 : vector<2x128xf32>
    %cst_285 = arith.constant 2.500000e-01 : f32
    %326 = vector.broadcast %cst_285 : f32 to vector<2x128xf32>
    %327 = arith.mulf %326, %325 : vector<2x128xf32>
    %c9 = arith.constant 9 : index
    %c0_286 = arith.constant 0 : index
    %328 = vector.load %arg13[%c9, %c0_286] : memref<16x128xf32, #tpu.memory_space<vmem>>, vector<2x128xf32>
    tpu.vector_store %arg13[%c9, %c0_286], %327 {strides = array<i32>} : memref<16x128xf32, #tpu.memory_space<vmem>>, vector<2x128xf32>,
    %c0_287 = arith.constant 0 : index
    %c0_288 = arith.constant 0 : index
    %329 = vector.load %arg13[%c0_287, %c0_288] : memref<16x128xf32, #tpu.memory_space<vmem>>, vector<6x128xf32>
    %330 = arith.truncf %329 : vector<6x128xf32> to vector<6x128xbf16>
    %c0_289 = arith.constant 0 : index
    %c0_290 = arith.constant 0 : index
    %c0_291 = arith.constant 0 : index
    %331 = vector.load %arg5[%c0_289, %c0_290, %c0_291] : memref<9x128x256xbf16, #tpu.memory_space<vmem>>, vector<1x128x256xbf16>
    %332 = vector.shape_cast %331 : vector<1x128x256xbf16> to vector<128x256xbf16>
    %cst_292 = arith.constant dense<0.000000e+00> : vector<6x256xf32>
    %333 = tpu.matmul %330, %332, %cst_292 {dimension_numbers = #tpu.dot_dimension_numbers<[1], [0], [0], [1], [0, 0, 1, 1], [], []>} : vector<6x128xbf16>, vector<128x256xbf16>, vector<6x256xf32> -> vector<6x256xf32>
    %c1_293 = arith.constant 1 : index
    %c0_294 = arith.constant 0 : index
    %334 = vector.load %arg13[%c1_293, %c0_294] : memref<16x128xf32, #tpu.memory_space<vmem>>, vector<6x128xf32>
    %335 = arith.truncf %334 : vector<6x128xf32> to vector<6x128xbf16>
    %c1_295 = arith.constant 1 : index
    %c0_296 = arith.constant 0 : index
    %c0_297 = arith.constant 0 : index
    %336 = vector.load %arg5[%c1_295, %c0_296, %c0_297] : memref<9x128x256xbf16, #tpu.memory_space<vmem>>, vector<1x128x256xbf16>
    %337 = vector.shape_cast %336 : vector<1x128x256xbf16> to vector<128x256xbf16>
    %cst_298 = arith.constant dense<0.000000e+00> : vector<6x256xf32>
    %338 = tpu.matmul %335, %337, %cst_298 {dimension_numbers = #tpu.dot_dimension_numbers<[1], [0], [0], [1], [0, 0, 1, 1], [], []>} : vector<6x128xbf16>, vector<128x256xbf16>, vector<6x256xf32> -> vector<6x256xf32>
    %339 = arith.addf %333, %338 : vector<6x256xf32>
    %c2_299 = arith.constant 2 : index
    %c0_300 = arith.constant 0 : index
    %340 = vector.load %arg13[%c2_299, %c0_300] : memref<16x128xf32, #tpu.memory_space<vmem>>, vector<6x128xf32>
    %341 = arith.truncf %340 : vector<6x128xf32> to vector<6x128xbf16>
    %c2_301 = arith.constant 2 : index
    %c0_302 = arith.constant 0 : index
    %c0_303 = arith.constant 0 : index
    %342 = vector.load %arg5[%c2_301, %c0_302, %c0_303] : memref<9x128x256xbf16, #tpu.memory_space<vmem>>, vector<1x128x256xbf16>
    %343 = vector.shape_cast %342 : vector<1x128x256xbf16> to vector<128x256xbf16>
    %cst_304 = arith.constant dense<0.000000e+00> : vector<6x256xf32>
    %344 = tpu.matmul %341, %343, %cst_304 {dimension_numbers = #tpu.dot_dimension_numbers<[1], [0], [0], [1], [0, 0, 1, 1], [], []>} : vector<6x128xbf16>, vector<128x256xbf16>, vector<6x256xf32> -> vector<6x256xf32>
    %345 = arith.addf %339, %344 : vector<6x256xf32>
    %c4_305 = arith.constant 4 : index
    %c0_306 = arith.constant 0 : index
    %346 = vector.load %arg13[%c4_305, %c0_306] : memref<16x128xf32, #tpu.memory_space<vmem>>, vector<6x128xf32>
    %347 = arith.truncf %346 : vector<6x128xf32> to vector<6x128xbf16>
    %c3_307 = arith.constant 3 : index
    %c0_308 = arith.constant 0 : index
    %c0_309 = arith.constant 0 : index
    %348 = vector.load %arg5[%c3_307, %c0_308, %c0_309] : memref<9x128x256xbf16, #tpu.memory_space<vmem>>, vector<1x128x256xbf16>
    %349 = vector.shape_cast %348 : vector<1x128x256xbf16> to vector<128x256xbf16>
    %cst_310 = arith.constant dense<0.000000e+00> : vector<6x256xf32>
    %350 = tpu.matmul %347, %349, %cst_310 {dimension_numbers = #tpu.dot_dimension_numbers<[1], [0], [0], [1], [0, 0, 1, 1], [], []>} : vector<6x128xbf16>, vector<128x256xbf16>, vector<6x256xf32> -> vector<6x256xf32>
    %351 = arith.addf %345, %350 : vector<6x256xf32>
    %c5_311 = arith.constant 5 : index
    %c0_312 = arith.constant 0 : index
    %352 = vector.load %arg13[%c5_311, %c0_312] : memref<16x128xf32, #tpu.memory_space<vmem>>, vector<6x128xf32>
    %353 = arith.truncf %352 : vector<6x128xf32> to vector<6x128xbf16>
    %c4_313 = arith.constant 4 : index
    %c0_314 = arith.constant 0 : index
    %c0_315 = arith.constant 0 : index
    %354 = vector.load %arg5[%c4_313, %c0_314, %c0_315] : memref<9x128x256xbf16, #tpu.memory_space<vmem>>, vector<1x128x256xbf16>
    %355 = vector.shape_cast %354 : vector<1x128x256xbf16> to vector<128x256xbf16>
    %cst_316 = arith.constant dense<0.000000e+00> : vector<6x256xf32>
    %356 = tpu.matmul %353, %355, %cst_316 {dimension_numbers = #tpu.dot_dimension_numbers<[1], [0], [0], [1], [0, 0, 1, 1], [], []>} : vector<6x128xbf16>, vector<128x256xbf16>, vector<6x256xf32> -> vector<6x256xf32>
    %357 = arith.addf %351, %356 : vector<6x256xf32>
    %c6_317 = arith.constant 6 : index
    %c0_318 = arith.constant 0 : index
    %358 = vector.load %arg13[%c6_317, %c0_318] : memref<16x128xf32, #tpu.memory_space<vmem>>, vector<6x128xf32>
    %359 = arith.truncf %358 : vector<6x128xf32> to vector<6x128xbf16>
    %c5_319 = arith.constant 5 : index
    %c0_320 = arith.constant 0 : index
    %c0_321 = arith.constant 0 : index
    %360 = vector.load %arg5[%c5_319, %c0_320, %c0_321] : memref<9x128x256xbf16, #tpu.memory_space<vmem>>, vector<1x128x256xbf16>
    %361 = vector.shape_cast %360 : vector<1x128x256xbf16> to vector<128x256xbf16>
    %cst_322 = arith.constant dense<0.000000e+00> : vector<6x256xf32>
    %362 = tpu.matmul %359, %361, %cst_322 {dimension_numbers = #tpu.dot_dimension_numbers<[1], [0], [0], [1], [0, 0, 1, 1], [], []>} : vector<6x128xbf16>, vector<128x256xbf16>, vector<6x256xf32> -> vector<6x256xf32>
    %363 = arith.addf %357, %362 : vector<6x256xf32>
    %c8_323 = arith.constant 8 : index
    %c0_324 = arith.constant 0 : index
    %364 = vector.load %arg13[%c8_323, %c0_324] : memref<16x128xf32, #tpu.memory_space<vmem>>, vector<6x128xf32>
    %365 = arith.truncf %364 : vector<6x128xf32> to vector<6x128xbf16>
    %c6_325 = arith.constant 6 : index
    %c0_326 = arith.constant 0 : index
    %c0_327 = arith.constant 0 : index
    %366 = vector.load %arg5[%c6_325, %c0_326, %c0_327] : memref<9x128x256xbf16, #tpu.memory_space<vmem>>, vector<1x128x256xbf16>
    %367 = vector.shape_cast %366 : vector<1x128x256xbf16> to vector<128x256xbf16>
    %cst_328 = arith.constant dense<0.000000e+00> : vector<6x256xf32>
    %368 = tpu.matmul %365, %367, %cst_328 {dimension_numbers = #tpu.dot_dimension_numbers<[1], [0], [0], [1], [0, 0, 1, 1], [], []>} : vector<6x128xbf16>, vector<128x256xbf16>, vector<6x256xf32> -> vector<6x256xf32>
    %369 = arith.addf %363, %368 : vector<6x256xf32>
    %c9_329 = arith.constant 9 : index
    %c0_330 = arith.constant 0 : index
    %370 = vector.load %arg13[%c9_329, %c0_330] : memref<16x128xf32, #tpu.memory_space<vmem>>, vector<6x128xf32>
    %371 = arith.truncf %370 : vector<6x128xf32> to vector<6x128xbf16>
    %c7_331 = arith.constant 7 : index
    %c0_332 = arith.constant 0 : index
    %c0_333 = arith.constant 0 : index
    %372 = vector.load %arg5[%c7_331, %c0_332, %c0_333] : memref<9x128x256xbf16, #tpu.memory_space<vmem>>, vector<1x128x256xbf16>
    %373 = vector.shape_cast %372 : vector<1x128x256xbf16> to vector<128x256xbf16>
    %cst_334 = arith.constant dense<0.000000e+00> : vector<6x256xf32>
    %374 = tpu.matmul %371, %373, %cst_334 {dimension_numbers = #tpu.dot_dimension_numbers<[1], [0], [0], [1], [0, 0, 1, 1], [], []>} : vector<6x128xbf16>, vector<128x256xbf16>, vector<6x256xf32> -> vector<6x256xf32>
    %375 = arith.addf %369, %374 : vector<6x256xf32>
    %c10_335 = arith.constant 10 : index
    %c0_336 = arith.constant 0 : index
    %376 = vector.load %arg13[%c10_335, %c0_336] : memref<16x128xf32, #tpu.memory_space<vmem>>, vector<6x128xf32>
    %377 = arith.truncf %376 : vector<6x128xf32> to vector<6x128xbf16>
    %c8_337 = arith.constant 8 : index
    %c0_338 = arith.constant 0 : index
    %c0_339 = arith.constant 0 : index
    %378 = vector.load %arg5[%c8_337, %c0_338, %c0_339] : memref<9x128x256xbf16, #tpu.memory_space<vmem>>, vector<1x128x256xbf16>
    %379 = vector.shape_cast %378 : vector<1x128x256xbf16> to vector<128x256xbf16>
    %cst_340 = arith.constant dense<0.000000e+00> : vector<6x256xf32>
    %380 = tpu.matmul %377, %379, %cst_340 {dimension_numbers = #tpu.dot_dimension_numbers<[1], [0], [0], [1], [0, 0, 1, 1], [], []>} : vector<6x128xbf16>, vector<128x256xbf16>, vector<6x256xf32> -> vector<6x256xf32>
    %381 = arith.addf %375, %380 : vector<6x256xf32>
    %cst_341 = arith.constant 9.000000e-02 : f32
    %382 = vector.broadcast %cst_341 : f32 to vector<6x256xf32>
    %383 = arith.mulf %382, %381 : vector<6x256xf32>
    %cst_342 = arith.constant 5.000000e-01 : f32
    %384 = vector.broadcast %cst_342 : f32 to vector<6x256xf32>
    %385 = arith.addf %383, %384 : vector<6x256xf32>
    %386 = arith.mulf %381, %385 : vector<6x256xf32>
    %cst_343 = arith.constant 4.700000e-01 : f32
    %387 = vector.broadcast %cst_343 : f32 to vector<6x256xf32>
    %388 = arith.addf %386, %387 : vector<6x256xf32>
    %c0_344 = arith.constant 0 : index
    %c0_345 = arith.constant 0 : index
    %389 = vector.load %arg14[%c0_344, %c0_345] : memref<6x256xf32, #tpu.memory_space<vmem>>, vector<6x256xf32>
    tpu.vector_store %arg14[%c0_344, %c0_345], %388 {strides = array<i32>} : memref<6x256xf32, #tpu.memory_space<vmem>>, vector<6x256xf32>,
    %c0_346 = arith.constant 0 : index
    %c0_347 = arith.constant 0 : index
    %390 = vector.load %arg14[%c0_346, %c0_347] : memref<6x256xf32, #tpu.memory_space<vmem>>, vector<1x256xf32>
    %c1_348 = arith.constant 1 : index
    %c0_349 = arith.constant 0 : index
    %391 = vector.load %arg14[%c1_348, %c0_349] : memref<6x256xf32, #tpu.memory_space<vmem>>, vector<1x256xf32>
    %392 = arith.addf %390, %391 : vector<1x256xf32>
    %c4_350 = arith.constant 4 : index
    %c0_351 = arith.constant 0 : index
    %393 = vector.load %arg14[%c4_350, %c0_351] : memref<6x256xf32, #tpu.memory_space<vmem>>, vector<1x256xf32>
    %394 = arith.addf %392, %393 : vector<1x256xf32>
    %c5_352 = arith.constant 5 : index
    %c0_353 = arith.constant 0 : index
    %395 = vector.load %arg14[%c5_352, %c0_353] : memref<6x256xf32, #tpu.memory_space<vmem>>, vector<1x256xf32>
    %396 = arith.addf %394, %395 : vector<1x256xf32>
    %cst_354 = arith.constant 2.500000e-01 : f32
    %397 = vector.broadcast %cst_354 : f32 to vector<1x256xf32>
    %398 = arith.mulf %397, %396 : vector<1x256xf32>
    %cst_355 = arith.constant 0.000000e+00 : f32
    %399 = vector.broadcast %cst_355 : f32 to vector<1x128xf32>
    %400 = arith.truncf %398 : vector<1x256xf32> to vector<1x256xbf16>
    %c0_356 = arith.constant 0 : index
    %c0_357 = arith.constant 0 : index
    %c0_358 = arith.constant 0 : index
    %401 = vector.load %arg6[%c0_356, %c0_357, %c0_358] : memref<1x256x128xbf16, #tpu.memory_space<vmem>>, vector<1x256x128xbf16>
    %402 = vector.shape_cast %401 : vector<1x256x128xbf16> to vector<256x128xbf16>
    %cst_359 = arith.constant dense<0.000000e+00> : vector<1x128xf32>
    %403 = tpu.matmul %400, %402, %cst_359 {dimension_numbers = #tpu.dot_dimension_numbers<[1], [0], [0], [1], [0, 0, 1, 1], [], []>} : vector<1x256xbf16>, vector<256x128xbf16>, vector<1x128xf32> -> vector<1x128xf32>
    %404 = arith.addf %399, %403 : vector<1x128xf32>
    %c0_360 = arith.constant 0 : index
    %c0_361 = arith.constant 0 : index
    %c0_362 = arith.constant 0 : index
    %405 = vector.load %arg7[%c0_360, %c0_361, %c0_362] : memref<1x1x128xf32, #tpu.memory_space<vmem>>, vector<1x1x128xf32>
    %406 = vector.shape_cast %405 : vector<1x1x128xf32> to vector<1x128xf32>
    %407 = vector.shape_cast %404 : vector<1x128xf32> to vector<1x1x128xf32>
    tpu.vector_store %arg7[%c0_360, %c0_361, %c0_362], %407 {strides = array<i32>} : memref<1x1x128xf32, #tpu.memory_space<vmem>>, vector<1x1x128xf32>,
    return
  }
  func.func @transform_0(%arg0: i32) -> (i32, i32, i32) {
    %c0_i32 = arith.constant 0 : i32
    %c0_i32_0 = arith.constant 0 : i32
    %c0_i32_1 = arith.constant 0 : i32
    return %arg0, %c0_i32, %c0_i32_0 : i32, i32, i32
  }
  func.func @transform_1(%arg0: i32) -> (i32, i32, i32) {
    %c0_i32 = arith.constant 0 : i32
    %c0_i32_0 = arith.constant 0 : i32
    %c0_i32_1 = arith.constant 0 : i32
    %c0_i32_2 = arith.constant 0 : i32
    return %c0_i32, %c0_i32_0, %c0_i32_1 : i32, i32, i32
  }
  func.func @transform_2(%arg0: i32) -> (i32, i32, i32) {
    %c0_i32 = arith.constant 0 : i32
    %c0_i32_0 = arith.constant 0 : i32
    %c0_i32_1 = arith.constant 0 : i32
    %c0_i32_2 = arith.constant 0 : i32
    return %c0_i32, %c0_i32_0, %c0_i32_1 : i32, i32, i32
  }
  func.func @transform_3(%arg0: i32) -> (i32, i32, i32) {
    %c0_i32 = arith.constant 0 : i32
    %c0_i32_0 = arith.constant 0 : i32
    %c0_i32_1 = arith.constant 0 : i32
    %c0_i32_2 = arith.constant 0 : i32
    return %c0_i32, %c0_i32_0, %c0_i32_1 : i32, i32, i32
  }
  func.func @transform_4(%arg0: i32) -> (i32, i32, i32) {
    %c0_i32 = arith.constant 0 : i32
    %c0_i32_0 = arith.constant 0 : i32
    %c0_i32_1 = arith.constant 0 : i32
    %c0_i32_2 = arith.constant 0 : i32
    return %c0_i32, %c0_i32_0, %c0_i32_1 : i32, i32, i32
  }
  func.func @transform_5(%arg0: i32) -> (i32, i32, i32) {
    %c0_i32 = arith.constant 0 : i32
    %c0_i32_0 = arith.constant 0 : i32
    %c0_i32_1 = arith.constant 0 : i32
    %c0_i32_2 = arith.constant 0 : i32
    return %c0_i32, %c0_i32_0, %c0_i32_1 : i32, i32, i32
  }
  func.func @transform_6(%arg0: i32) -> (i32, i32, i32) {
    %c0_i32 = arith.constant 0 : i32
    %c0_i32_0 = arith.constant 0 : i32
    %c0_i32_1 = arith.constant 0 : i32
    return %arg0, %c0_i32, %c0_i32_0 : i32, i32, i32
  }
}

</mosaic_0001>

<llo_original>
// kernel: tpu_custom_call.1
$region0: #{tpu_custom_call.1}
  #allocation0 [shape = 'u32[]', space=smem, size = 0x4, offset = 0x4, fixed_abs, tag = 'smem constant byte address 0x4 - core index']
  #allocation1 [shape = 'u32[72,128]{1,0:T(1,128)}', space=vmem, size = 0x9000, scoped, tag = 'internal scratch']
  #allocation2 [shape = 'f32[286,32]{1,0:T(8,128)}', space=vmem, size = 0x24000, scoped, tag = 'scratch operand']
  #allocation3 [shape = 'f32[100,32]{1,0:T(8,128)}', space=vmem, size = 0xd000, scoped, tag = 'scratch operand']
  #allocation4 [shape = 'f32[78,64]{1,0:T(8,128)}', space=vmem, size = 0xa000, scoped, tag = 'scratch operand']
  #allocation5 [shape = 'f32[36,64]{1,0:T(8,128)}', space=vmem, size = 0x5000, scoped, tag = 'scratch operand']
  #allocation6 [shape = 'f32[22,128]{1,0:T(8,128)}', space=vmem, size = 0x3000, scoped, tag = 'scratch operand']
  #allocation7 [shape = 'f32[16,128]{1,0:T(8,128)}', space=vmem, size = 0x2000, scoped, tag = 'scratch operand']
  #allocation8 [shape = 'f32[6,256]{1,0:T(8,128)}', space=vmem, size = 0x2000, scoped, tag = 'scratch operand']
  %s0 = inlined_call_operand.vmem [shape: bf16[2,324,3], index: 0, kind: input, shape index: {}]
  %s1 = inlined_call_operand.vmem [shape: bf16[9,3,32], index: 1, kind: input, shape index: {}]
  %s2 = inlined_call_operand.hbm [shape: bf16[9,32,64], index: 2, kind: input, shape index: {}]
  %s3 = inlined_call_operand.vmem [shape: bf16[9,64,128], index: 3, kind: input, shape index: {}]
  %s4 = inlined_call_operand.hbm [shape: bf16[9,128,256], index: 4, kind: input, shape index: {}]
  %s5 = inlined_call_operand.hbm [shape: bf16[1,256,128], index: 5, kind: input, shape index: {}]
  %s6 = inlined_call_operand.hbm [shape: f32[2,1,128], index: 6, kind: output, shape index: {}]
  %s7 = sld [smem:[#allocation0]]
  $region69: #{tpu_custom_call.1} parent=0
    _
  %s9 = ssub.s32 1, %s7
  %s10 = scalar_select 0, %s9, %s7
  $region1: #{tpu_custom_call.1} parent=0
    #allocation9 [shape = 'u8[73728]{0}', space=vmem, size = 0x12000, scoped, tag = 'input window, operand 2, single buffered']
    #allocation10 [shape = 's32[2]{0}', space=sflag, size = 0x8, scoped, tag = 'scoped memory for tpu_custom_call.1']
    #allocation11 [shape = 's32[2]{0}', space=sflag, size = 0x8, scoped, tag = 'scoped memory for tpu_custom_call.1']
    #allocation12 [shape = 'u8[589824]{0}', space=vmem, size = 0x90000, scoped, tag = 'input window, operand 4, single buffered']
    #allocation13 [shape = 's32[1]{0}', space=sflag, size = 0x4, scoped, tag = 'scoped memory for tpu_custom_call.1']
    #allocation14 [shape = 'u8[65536]{0}', space=vmem, size = 0x10000, scoped, tag = 'input window, operand 5, single buffered']
    #allocation15 [shape = 'u8[1024]{0}', space=vmem, size = 0x400, scoped, tag = 'output window, operand 0']
    %11 = vsyncpa [#allocation10], 0
    %12 = vsyncpa [#allocation13], 0
    %13 = vsyncpa [#allocation11], 0
    %s14 = scalar_lea.sflag [#allocation11], 1
    %15 = vsyncpa %s14, 0
    loop: start=0, step=1, limit=4
    $region2: #{tpu_custom_call.1} parent=1 // loop_pre_header
      _
    $region3: #{tpu_custom_call.1} parent=1 // loop_header
      %s17 = sphi 0, %s21
      %p18 = scmp.ge.s32.totalorder %s17, 4
      %s27 = sphi 0, %s29
      %s30 = sphi 0, %s27
      %s31 = sphi 0, %s30
      %s47 = sphi 0, %s31
      %s51 = sphi 0, %s51
      %s53 = sphi 0, %s51
      %s54 = sphi 0, %s53
      %s68 = sphi 0, %s54
      %s72 = sphi 0, %s72
      %s74 = sphi 0, %s72
      %s75 = sphi 0, %s74
      %s89 = sphi 0, %s75
      %s93 = sphi 0, %s93
      %s95 = sphi 0, %s93
      %s96 = sphi 0, %s95
      %s110 = sphi 0, %s96
      %s114 = sphi 0, %s114
      %s116 = sphi 0, %s114
      %s117 = sphi 0, %s116
      %s131 = sphi 0, %s117
      %s135 = sphi 0, %s135
      %s137 = sphi 0, %s135
      %s138 = sphi 0, %s137
      %s152 = sphi 0, %s138
      %s158 = sphi 0, %s160
      %s161 = sphi 0, %s158
      %s162 = sphi 0, %s161
      %s178 = sphi 0, %s162
    $region4: #{tpu_custom_call.1} parent=1 // loop_header_branch
      %20 = sbr.rel (%p18) target = $region8
    $region5: #{tpu_custom_call.1} parent=1 // loop_body
      %s22 = ssub.s32 %s17, 1
      %s23 = ssub.s32 %s17, 2
      %s24 = sadd.s32 %s17, 1
      %s25 = ssub.s32 %s17, %s24
      %p26 = scmp.eq.s32.totalorder %s25, 0
      %s28 = sadd.s32 %s27, 1
      %s29 = scalar_select %p26, %s27, %s28
      %p32 = pneg %p26
      %p33 = scmp.eq.s32.totalorder %s17, 1
      %p34 = por %p32, %p33
      %p35 = scmp.ne.s32.totalorder %s27, %s30
      %p36 = scmp.eq.s32.totalorder %s17, 0
      %p37 = por %p35, %p36
      %p38 = scmp.ne.s32.totalorder %s27, %s30
      %p39 = scmp.eq.s32.totalorder %s22, 1
      %p40 = por %p38, %p39
      %p41 = scmp.ne.s32.totalorder %s30, %s31
      %p42 = scmp.eq.s32.totalorder %s22, 0
      %p43 = por %p41, %p42
      %p44 = scmp.ne.s32.totalorder %s30, %s31
      %p45 = scmp.eq.s32.totalorder %s23, 1
      %p46 = por %p44, %p45
      %p48 = scmp.ne.s32.totalorder %s31, %s47
      %p49 = scmp.eq.s32.totalorder %s23, 0
      %p50 = por %p48, %p49
      %s52 = sadd.s32 %s51, 1
      %p55 = scmp.eq.s32.totalorder %s17, 1
      %p56 = scmp.ne.s32.totalorder %s51, %s53
      %p57 = scmp.eq.s32.totalorder %s17, 0
      %p58 = por %p56, %p57
      %p59 = scmp.ne.s32.totalorder %s51, %s53
      %p60 = scmp.eq.s32.totalorder %s22, 1
      %p61 = por %p59, %p60
      %p62 = scmp.ne.s32.totalorder %s53, %s54
      %p63 = scmp.eq.s32.totalorder %s22, 0
      %p64 = por %p62, %p63
      %p65 = scmp.ne.s32.totalorder %s53, %s54
      %p66 = scmp.eq.s32.totalorder %s23, 1
      %p67 = por %p65, %p66
      %p69 = scmp.ne.s32.totalorder %s54, %s68
      %p70 = scmp.eq.s32.totalorder %s23, 0
      %p71 = por %p69, %p70
      %s73 = sadd.s32 %s72, 1
      %p76 = scmp.eq.s32.totalorder %s17, 1
      %p77 = scmp.ne.s32.totalorder %s72, %s74
      %p78 = scmp.eq.s32.totalorder %s17, 0
      %p79 = por %p77, %p78
      %p80 = scmp.ne.s32.totalorder %s72, %s74
      %p81 = scmp.eq.s32.totalorder %s22, 1
      %p82 = por %p80, %p81
      %p83 = scmp.ne.s32.totalorder %s74, %s75
      %p84 = scmp.eq.s32.totalorder %s22, 0
      %p85 = por %p83, %p84
      %p86 = scmp.ne.s32.totalorder %s74, %s75
      %p87 = scmp.eq.s32.totalorder %s23, 1
      %p88 = por %p86, %p87
      %p90 = scmp.ne.s32.totalorder %s75, %s89
      %p91 = scmp.eq.s32.totalorder %s23, 0
      %p92 = por %p90, %p91
      %s94 = sadd.s32 %s93, 1
      %p97 = scmp.eq.s32.totalorder %s17, 1
      %p98 = scmp.ne.s32.totalorder %s93, %s95
      %p99 = scmp.eq.s32.totalorder %s17, 0
      %p100 = por %p98, %p99
      %p101 = scmp.ne.s32.totalorder %s93, %s95
      %p102 = scmp.eq.s32.totalorder %s22, 1
      %p103 = por %p101, %p102
      %p104 = scmp.ne.s32.totalorder %s95, %s96
      %p105 = scmp.eq.s32.totalorder %s22, 0
      %p106 = por %p104, %p105
      %p107 = scmp.ne.s32.totalorder %s95, %s96
      %p108 = scmp.eq.s32.totalorder %s23, 1
      %p109 = por %p107, %p108
      %p111 = scmp.ne.s32.totalorder %s96, %s110
      %p112 = scmp.eq.s32.totalorder %s23, 0
      %p113 = por %p111, %p112
      %s115 = sadd.s32 %s114, 1
      %p118 = scmp.eq.s32.totalorder %s17, 1
      %p119 = scmp.ne.s32.totalorder %s114, %s116
      %p120 = scmp.eq.s32.totalorder %s17, 0
      %p121 = por %p119, %p120
      %p122 = scmp.ne.s32.totalorder %s114, %s116
      %p123 = scmp.eq.s32.totalorder %s22, 1
      %p124 = por %p122, %p123
      %p125 = scmp.ne.s32.totalorder %s116, %s117
      %p126 = scmp.eq.s32.totalorder %s22, 0
      %p127 = por %p125, %p126
      %p128 = scmp.ne.s32.totalorder %s116, %s117
      %p129 = scmp.eq.s32.totalorder %s23, 1
      %p130 = por %p128, %p129
      %p132 = scmp.ne.s32.totalorder %s117, %s131
      %p133 = scmp.eq.s32.totalorder %s23, 0
      %p134 = por %p132, %p133
      %s136 = sadd.s32 %s135, 1
      %p139 = scmp.eq.s32.totalorder %s17, 1
      %p140 = scmp.ne.s32.totalorder %s135, %s137
      %p141 = scmp.eq.s32.totalorder %s17, 0
      %p142 = por %p140, %p141
      %p143 = scmp.ne.s32.totalorder %s135, %s137
      %p144 = scmp.eq.s32.totalorder %s22, 1
      %p145 = por %p143, %p144
      %p146 = scmp.ne.s32.totalorder %s137, %s138
      %p147 = scmp.eq.s32.totalorder %s22, 0
      %p148 = por %p146, %p147
      %p149 = scmp.ne.s32.totalorder %s137, %s138
      %p150 = scmp.eq.s32.totalorder %s23, 1
      %p151 = por %p149, %p150
      %p153 = scmp.ne.s32.totalorder %s138, %s152
      %p154 = scmp.eq.s32.totalorder %s23, 0
      %p155 = por %p153, %p154
      %s156 = ssub.s32 %s17, %s24
      %p157 = scmp.eq.s32.totalorder %s156, 0
      %s159 = sadd.s32 %s158, 1
      %s160 = scalar_select %p157, %s158, %s159
      %p163 = pneg %p157
      %p164 = scmp.eq.s32.totalorder %s17, 1
      %p165 = por %p163, %p164
      %p166 = scmp.ne.s32.totalorder %s158, %s161
      %p167 = scmp.eq.s32.totalorder %s17, 0
      %p168 = por %p166, %p167
      %p169 = scmp.ne.s32.totalorder %s158, %s161
      %p170 = scmp.eq.s32.totalorder %s22, 1
      %p171 = por %p169, %p170
      %p172 = scmp.ne.s32.totalorder %s161, %s162
      %p173 = scmp.eq.s32.totalorder %s22, 0
      %p174 = por %p172, %p173
      %p175 = scmp.ne.s32.totalorder %s161, %s162
      %p176 = scmp.eq.s32.totalorder %s23, 1
      %p177 = por %p175, %p176
      %p179 = scmp.ne.s32.totalorder %s162, %s178
      %p180 = scmp.eq.s32.totalorder %s23, 0
      %p181 = por %p179, %p180
      %p182 = scmp.le.s32.totalorder 1, %s17
      %p183 = scmp.lt.s32.totalorder %s17, 3
      %p184 = pnand %p182, %p183
      %p185 = pneg %p184
      // Predicated region
      $region9: #{tpu_custom_call.1} parent=5 // pred_check
        _
      $region10: #{tpu_custom_call.1} parent=5 // pred_check_branch
        %187 = sbr.rel (%p184) target = $region12
      $region11: #{tpu_custom_call.1} parent=5 // pred_region
        %s188 = ssub.s32 %s17, 1
        // Predicated region
        $region13: #{tpu_custom_call.1} parent=11 // pred_check
          %p189 = pneg %p64
        $region14: #{tpu_custom_call.1} parent=11 // pred_check_branch
          %191 = sbr.rel (%p189) target = $region16
        $region15: #{tpu_custom_call.1} parent=11 // pred_region
          _
        $region16: #{tpu_custom_call.1} parent=11 // pred_fallthru
          _
        // Predicated region
        $region17: #{tpu_custom_call.1} parent=11 // pred_check
          %p192 = pneg %p85
        $region18: #{tpu_custom_call.1} parent=11 // pred_check_branch
          %194 = sbr.rel (%p192) target = $region20
        $region19: #{tpu_custom_call.1} parent=11 // pred_region
          %196 = vsyncadd [#allocation10], 0
          %s197 = sshll.u32 %s2, 4
          %s198 = int_to_ptr.hbm [resolvable:$true] %s197
          %s199 = sshll.u32 [#allocation9], 4
          %s200 = int_to_ptr.vmem [resolvable:$true] %s199
          %205 = dma.hbm_to_vmem [thread:$0]  %s198, 2304, %s200, [#allocation10], 64, 64, 4
        $region20: #{tpu_custom_call.1} parent=11 // pred_fallthru
          _
        // Predicated region
        $region21: #{tpu_custom_call.1} parent=11 // pred_check
          %p206 = pneg %p106
        $region22: #{tpu_custom_call.1} parent=11 // pred_check_branch
          %208 = sbr.rel (%p206) target = $region24
        $region23: #{tpu_custom_call.1} parent=11 // pred_region
          _
        $region24: #{tpu_custom_call.1} parent=11 // pred_fallthru
          _
        // Predicated region
        $region25: #{tpu_custom_call.1} parent=11 // pred_check
          %p209 = pneg %p127
        $region26: #{tpu_custom_call.1} parent=11 // pred_check_branch
          %211 = sbr.rel (%p209) target = $region28
        $region27: #{tpu_custom_call.1} parent=11 // pred_region
          %213 = vsyncadd [#allocation13], 0
          %s214 = sshll.u32 %s4, 4
          %s215 = int_to_ptr.hbm [resolvable:$true] %s214
          %s216 = sshll.u32 [#allocation12], 4
          %s217 = int_to_ptr.vmem [resolvable:$true] %s216
          %222 = dma.hbm_to_vmem [thread:$0]  %s215, 18432, %s217, [#allocation13], 128, 128, 8
        $region28: #{tpu_custom_call.1} parent=11 // pred_fallthru
          _
        // Predicated region
        $region29: #{tpu_custom_call.1} parent=11 // pred_check
          %p223 = pneg %p148
        $region30: #{tpu_custom_call.1} parent=11 // pred_check_branch
          %225 = sbr.rel (%p223) target = $region32
        $region31: #{tpu_custom_call.1} parent=11 // pred_region
          %227 = vsyncadd [#allocation13], 0
          %s228 = sshll.u32 %s5, 4
          %s229 = int_to_ptr.hbm [resolvable:$true] %s228
          %s230 = sshll.u32 [#allocation14], 4
          %s231 = int_to_ptr.vmem [resolvable:$true] %s230
          %236 = dma.hbm_to_vmem [thread:$0]  %s229, 2048, %s231, [#allocation13], 64, 64, 4
        $region32: #{tpu_custom_call.1} parent=11 // pred_fallthru
          _
      $region12: #{tpu_custom_call.1} parent=5 // pred_fallthru
        _
      %p237 = scmp.lt.s32.totalorder %s17, 2
      // Predicated region
      $region33: #{tpu_custom_call.1} parent=5 // pred_check
        %p238 = pneg %p237
      $region34: #{tpu_custom_call.1} parent=5 // pred_check_branch
        %240 = sbr.rel (%p238) target = $region36
      $region35: #{tpu_custom_call.1} parent=5 // pred_region
        // Predicated region
        $region37: #{tpu_custom_call.1} parent=35 // pred_check
          %p241 = pneg %p37
        $region38: #{tpu_custom_call.1} parent=35 // pred_check_branch
          %243 = sbr.rel (%p241) target = $region40
        $region39: #{tpu_custom_call.1} parent=35 // pred_region
          %p244 = scmp.lt.s32.totalorder %s17, 1
          %s245 = scalar_select %p244, %s17, 1
          %s246 = smul.addr %s245, 41
          %s247 = smul.addr %s246, 4
          %s248 = scalar_lea.vmem %s0, %s247
        $region40: #{tpu_custom_call.1} parent=35 // pred_fallthru
          _
      $region36: #{tpu_custom_call.1} parent=5 // pred_fallthru
        _
      %p249 = scmp.le.s32.totalorder 1, %s17
      %p250 = scmp.lt.s32.totalorder %s17, 3
      %p251 = pnand %p249, %p250
      %p252 = pneg %p251
      // Predicated region
      $region41: #{tpu_custom_call.1} parent=5 // pred_check
        _
      $region42: #{tpu_custom_call.1} parent=5 // pred_check_branch
        %254 = sbr.rel (%p251) target = $region44
      $region43: #{tpu_custom_call.1} parent=5 // pred_region
        %s255 = ssub.s32 %s17, 1
        // Predicated region
        $region45: #{tpu_custom_call.1} parent=43 // pred_check
          %p256 = pneg %p85
        $region46: #{tpu_custom_call.1} parent=43 // pred_check_branch
          %258 = sbr.rel (%p256) target = $region48
        $region47: #{tpu_custom_call.1} parent=43 // pred_region
          %260 = dma.done [#allocation10], 2304
        $region48: #{tpu_custom_call.1} parent=43 // pred_fallthru
          _
        // Predicated region
        $region49: #{tpu_custom_call.1} parent=43 // pred_check
          %p261 = pneg %p127
        $region50: #{tpu_custom_call.1} parent=43 // pred_check_branch
          %263 = sbr.rel (%p261) target = $region52
        $region51: #{tpu_custom_call.1} parent=43 // pred_region
          %265 = dma.done [#allocation13], 18432
        $region52: #{tpu_custom_call.1} parent=43 // pred_fallthru
          _
        // Predicated region
        $region53: #{tpu_custom_call.1} parent=43 // pred_check
          %p266 = pneg %p148
        $region54: #{tpu_custom_call.1} parent=43 // pred_check_branch
          %268 = sbr.rel (%p266) target = $region56
        $region55: #{tpu_custom_call.1} parent=43 // pred_region
          %270 = dma.done [#allocation13], 2048
        $region56: #{tpu_custom_call.1} parent=43 // pred_fallthru
          _
        %p271 = scmp.lt.s32.totalorder %s22, 1
        %s272 = scalar_select %p271, %s22, 1
        %s273 = smul.addr %s272, 41
        %s274 = smul.addr %s273, 4
        %s275 = scalar_lea.vmem %s0, %s274
        %p276 = pneg %p43
        %p277 = pneg %p40
        %p278 = pneg %p64
        %p279 = pneg %p61
        %p280 = pneg %p85
        %p281 = pneg %p82
        %p282 = pneg %p106
        %p283 = pneg %p103
        %p284 = pneg %p127
        %p285 = pneg %p124
        %p286 = pneg %p148
        %p287 = pneg %p145
        %p288 = pneg %p174
        %p289 = pneg %p171
        %s290 = sand.u32 %s161, 1
        %s291 = scalar_lea.sflag [#allocation11], %s290
        %s292 = sand.u32 %s161, 1
        %s293 = scalar_lea.vmem [#allocation15], %s292
        %p294 = scmp.lt.s32.totalorder %s22, 1
        %s295 = scalar_select %p294, %s22, 1
        %s296 = smul.addr %s295, 41
        %s297 = smul.addr %s296, 4
        %s298 = scalar_lea.vmem %s0, %s297
        %vm300 = vcmask 261120
        %301 = vst.msk [vmem:[#allocation3] sm:$0xff] %vm300, 0.0
        %302 = vst.msk [vmem:[#allocation3 + $0x8] sm:$0xff] %vm300, 0.0
        %303 = vst.msk [vmem:[#allocation3 + $0x10] sm:$0xff] %vm300, 0.0
        %304 = vst.msk [vmem:[#allocation3 + $0x18] sm:$0xff] %vm300, 0.0
        %305 = vst.msk [vmem:[#allocation3 + $0x20] sm:$0xff] %vm300, 0.0
        %306 = vst.msk [vmem:[#allocation3 + $0x28] sm:$0xff] %vm300, 0.0
        %307 = vst.msk [vmem:[#allocation3 + $0x30] sm:$0xff] %vm300, 0.0
        %308 = vst.msk [vmem:[#allocation3 + $0x38] sm:$0xff] %vm300, 0.0
        %309 = vst.msk [vmem:[#allocation3 + $0x40] sm:$0xff] %vm300, 0.0
        %310 = vst.msk [vmem:[#allocation3 + $0x48] sm:$0xff] %vm300, 0.0
        %311 = vst.msk [vmem:[#allocation3 + $0x50] sm:$0xff] %vm300, 0.0
        %312 = vst.msk [vmem:[#allocation3 + $0x58] sm:$0xff] %vm300, 0.0
        %vm313 = vcmask 257024
        %314 = vst.msk [vmem:[#allocation3 + $0x60] sm:$0xf] %vm313, 0.0
        %vm315 = vcmask 523264
        %316 = vst.msk [vmem:[#allocation5] sm:$0xff] %vm315, 0.0
        %317 = vst.msk [vmem:[#allocation5 + $0x8] sm:$0xff] %vm315, 0.0
        %318 = vst.msk [vmem:[#allocation5 + $0x10] sm:$0xff] %vm315, 0.0
        %319 = vst.msk [vmem:[#allocation5 + $0x18] sm:$0xff] %vm315, 0.0
        %vm320 = vcmask 519168
        %321 = vst.msk [vmem:[#allocation5 + $0x20] sm:$0xf] %vm320, 0.0
        %322 = vst [vmem:[#allocation7] sm:$0xff] 0.0
        %323 = vst [vmem:[#allocation7 + $0x8] sm:$0xff] 0.0
        %v324 = vld [vmem:[%s298] sm:$0xf]
        %v325 = vld [vmem:[%s298 + $0x4] sm:$0xf]
        %v326 = vld [vmem:[%s298 + $0x8] sm:$0xf]
        %v327 = vld [vmem:[%s298 + $0xc] sm:$0xf]
        %v328 = vld [vmem:[%s298 + $0x10] sm:$0xf]
        %v329 = vld [vmem:[%s298 + $0x14] sm:$0xf]
        %v330 = vld [vmem:[%s298 + $0x18] sm:$0xf]
        %v331 = vld [vmem:[%s298 + $0x1c] sm:$0xf]
        %v332 = vld [vmem:[%s298 + $0x20] sm:$0xf]
        %v333 = vld [vmem:[%s298 + $0x24] sm:$0xf]
        %v334 = vld [vmem:[%s298 + $0x28] sm:$0xf]
        %v335 = vld [vmem:[%s298 + $0x2c] sm:$0xf]
        %v336 = vld [vmem:[%s298 + $0x30] sm:$0xf]
        %v337 = vld [vmem:[%s298 + $0x34] sm:$0xf]
        %v338 = vld [vmem:[%s298 + $0x38] sm:$0xf]
        %v339 = vld [vmem:[%s298 + $0x3c] sm:$0xf]
        %v340 = vld [vmem:[%s298 + $0x40] sm:$0xf]
        %v341 = vld [vmem:[%s298 + $0x44] sm:$0xf]
        %v342 = vld [vmem:[%s298 + $0x48] sm:$0xf]
        %v343 = vld [vmem:[%s298 + $0x4c] sm:$0xf]
        %v344 = vld [vmem:[%s298 + $0x50] sm:$0xf]
        %v345 = vld [vmem:[%s298 + $0x54] sm:$0xf]
        %v346 = vld [vmem:[%s298 + $0x58] sm:$0xf]
        %v347 = vld [vmem:[%s298 + $0x5c] sm:$0xf]
        %v348 = vld [vmem:[%s298 + $0x60] sm:$0xf]
        %v349 = vld [vmem:[%s298 + $0x64] sm:$0xf]
        %v350 = vld [vmem:[%s298 + $0x68] sm:$0xf]
        %v351 = vld [vmem:[%s298 + $0x6c] sm:$0xf]
        %v352 = vld [vmem:[%s298 + $0x70] sm:$0xf]
        %v353 = vld [vmem:[%s298 + $0x74] sm:$0xf]
        %v354 = vld [vmem:[%s298 + $0x78] sm:$0xf]
        %v355 = vld [vmem:[%s298 + $0x7c] sm:$0xf]
        %v356 = vld [vmem:[%s298 + $0x80] sm:$0xf]
        %v357 = vld [vmem:[%s298 + $0x84] sm:$0xf]
        %v358 = vld [vmem:[%s298 + $0x88] sm:$0xf]
        %v359 = vld [vmem:[%s298 + $0x8c] sm:$0x7]
        %v360 = vld [vmem:[%s1] sm:$0x3]
        %v361 = vld [vmem:[%s298 + $0x8c] sm:$0xf]
        %s362 = scalar_lea.vmem %s1, 2
        %v363 = vld [vmem:[%s362] sm:$0x3]
        %v400 = vunpack.c.l.b16 %v324
        %v401 = vunpack.c.l.b16 %v325
        %v402 = vunpack.c.l.b16 %v326
        %v403 = vunpack.c.l.b16 %v327
        %v404 = vunpack.c.l.b16 %v328
        %v405 = vunpack.c.l.b16 %v329
        %v406 = vunpack.c.l.b16 %v330
        %v407 = vunpack.c.l.b16 %v331
        %v408 = vunpack.c.l.b16 %v332
        %v409 = vunpack.c.l.b16 %v333
        %v410 = vunpack.c.l.b16 %v334
        %v411 = vunpack.c.l.b16 %v335
        %v412 = vunpack.c.l.b16 %v336
        %v413 = vunpack.c.l.b16 %v337
        %v414 = vunpack.c.l.b16 %v338
        %v415 = vunpack.c.l.b16 %v339
        %v416 = vunpack.c.l.b16 %v340
        %v417 = vunpack.c.l.b16 %v341
        %v418 = vunpack.c.l.b16 %v342
        %v419 = vunpack.c.l.b16 %v343
        %v420 = vunpack.c.l.b16 %v344
        %v421 = vunpack.c.l.b16 %v345
        %v422 = vunpack.c.l.b16 %v346
        %v423 = vunpack.c.l.b16 %v347
        %v424 = vunpack.c.l.b16 %v348
        %v425 = vunpack.c.l.b16 %v349
        %v426 = vunpack.c.l.b16 %v350
        %v427 = vunpack.c.l.b16 %v351
        %v428 = vunpack.c.l.b16 %v352
        %v429 = vunpack.c.l.b16 %v353
        %v430 = vunpack.c.l.b16 %v354
        %v431 = vunpack.c.l.b16 %v355
        %v432 = vunpack.c.l.b16 %v356
        %v433 = vunpack.c.l.b16 %v357
        %v434 = vunpack.c.l.b16 %v358
        %v435 = vunpack.c.l.b16 %v361
        %v436 = vpack.c.b16 %v401, %v400
        %v437 = vpack.c.b16 %v403, %v402
        %v438 = vpack.c.b16 %v405, %v404
        %v439 = vpack.c.b16 %v407, %v406
        %v440 = vpack.c.b16 %v409, %v408
        %v441 = vpack.c.b16 %v411, %v410
        %v442 = vpack.c.b16 %v413, %v412
        %v443 = vpack.c.b16 %v415, %v414
        %v444 = vpack.c.b16 %v417, %v416
        %v445 = vpack.c.b16 %v419, %v418
        %v446 = vpack.c.b16 %v421, %v420
        %v447 = vpack.c.b16 %v423, %v422
        %v448 = vpack.c.b16 %v425, %v424
        %v449 = vpack.c.b16 %v427, %v426
        %v450 = vpack.c.b16 %v429, %v428
        %v451 = vpack.c.b16 %v431, %v430
        %v452 = vpack.c.b16 %v433, %v432
        %v453 = vpack.c.b16 %v435, %v434
        %vm454 = vsmask.f32 7424
        %v456 = vshrl.u32 %v436, 16
        %v458 = vshll.u32 %v436, 16
        %v460 = vrot.slane %v458, 1
        %v461 = vor.u32 %v456, %v460
        %v463 = vshll.u32 %v437, 16
        %v465 = vrot.slane %v463, 1
        %v466 = vsel %vm454, %v461, %v465
        %v467 = vshrl.u32 %v437, 16
        %v469 = vor.u32 %v467, %v465
        %v471 = vshll.u32 %v438, 16
        %v473 = vrot.slane %v471, 1
        %v474 = vsel %vm454, %v469, %v473
        %v475 = vshrl.u32 %v438, 16
        %v477 = vor.u32 %v475, %v473
        %v479 = vshll.u32 %v439, 16
        %v481 = vrot.slane %v479, 1
        %v482 = vsel %vm454, %v477, %v481
        %v483 = vshrl.u32 %v439, 16
        %v485 = vor.u32 %v483, %v481
        %v487 = vshll.u32 %v440, 16
        %v489 = vrot.slane %v487, 1
        %v490 = vsel %vm454, %v485, %v489
        %v491 = vshrl.u32 %v440, 16
        %v493 = vor.u32 %v491, %v489
        %v495 = vshll.u32 %v441, 16
        %v497 = vrot.slane %v495, 1
        %v498 = vsel %vm454, %v493, %v497
        %v499 = vshrl.u32 %v441, 16
        %v501 = vor.u32 %v499, %v497
        %v503 = vshll.u32 %v442, 16
        %v505 = vrot.slane %v503, 1
        %v506 = vsel %vm454, %v501, %v505
        %v507 = vshrl.u32 %v442, 16
        %v509 = vor.u32 %v507, %v505
        %v511 = vshll.u32 %v443, 16
        %v513 = vrot.slane %v511, 1
        %v514 = vsel %vm454, %v509, %v513
        %v515 = vshrl.u32 %v443, 16
        %v517 = vor.u32 %v515, %v513
        %v519 = vshll.u32 %v444, 16
        %v521 = vrot.slane %v519, 1
        %v522 = vsel %vm454, %v517, %v521
        %v523 = vshrl.u32 %v444, 16
        %v525 = vor.u32 %v523, %v521
        %v527 = vshll.u32 %v445, 16
        %v529 = vrot.slane %v527, 1
        %v530 = vsel %vm454, %v525, %v529
        %v531 = vshrl.u32 %v445, 16
        %v533 = vor.u32 %v531, %v529
        %v535 = vshll.u32 %v446, 16
        %v537 = vrot.slane %v535, 1
        %v538 = vsel %vm454, %v533, %v537
        %v539 = vshrl.u32 %v446, 16
        %v541 = vor.u32 %v539, %v537
        %v543 = vshll.u32 %v447, 16
        %v545 = vrot.slane %v543, 1
        %v546 = vsel %vm454, %v541, %v545
        %v547 = vshrl.u32 %v447, 16
        %v549 = vor.u32 %v547, %v545
        %v551 = vshll.u32 %v448, 16
        %v553 = vrot.slane %v551, 1
        %v554 = vsel %vm454, %v549, %v553
        %v555 = vshrl.u32 %v448, 16
        %v557 = vor.u32 %v555, %v553
        %v559 = vshll.u32 %v449, 16
        %v561 = vrot.slane %v559, 1
        %v562 = vsel %vm454, %v557, %v561
        %v563 = vshrl.u32 %v449, 16
        %v565 = vor.u32 %v563, %v561
        %v567 = vshll.u32 %v450, 16
        %v569 = vrot.slane %v567, 1
        %v570 = vsel %vm454, %v565, %v569
        %v571 = vshrl.u32 %v450, 16
        %v573 = vor.u32 %v571, %v569
        %v575 = vshll.u32 %v451, 16
        %v577 = vrot.slane %v575, 1
        %v578 = vsel %vm454, %v573, %v577
        %v579 = vshrl.u32 %v451, 16
        %v581 = vor.u32 %v579, %v577
        %v583 = vshll.u32 %v452, 16
        %v585 = vrot.slane %v583, 1
        %v586 = vsel %vm454, %v581, %v585
        %v587 = vshrl.u32 %v452, 16
        %v589 = vor.u32 %v587, %v585
        %v591 = vshll.u32 %v453, 16
        %v593 = vrot.slane %v591, 1
        %v594 = vsel %vm454, %v589, %v593
        %v595 = vshrl.u32 %v453, 16
        %v597 = vor.u32 %v595, %v593
        %vm598 = vcmask 23552
        %v600 = vsel %vm598, %v466, 0
        %v603 = vsel %vm598, %v474, 0
        %v606 = vsel %vm598, %v482, 0
        %v609 = vsel %vm598, %v490, 0
        %v612 = vsel %vm598, %v498, 0
        %v615 = vsel %vm598, %v506, 0
        %v618 = vsel %vm598, %v514, 0
        %v621 = vsel %vm598, %v522, 0
        %v624 = vsel %vm598, %v530, 0
        %v627 = vsel %vm598, %v538, 0
        %v630 = vsel %vm598, %v546, 0
        %v633 = vsel %vm598, %v554, 0
        %v636 = vsel %vm598, %v562, 0
        %v639 = vsel %vm598, %v570, 0
        %v642 = vsel %vm598, %v578, 0
        %v645 = vsel %vm598, %v586, 0
        %v648 = vsel %vm598, %v594, 0
        %v651 = vsel %vm598, %v597, 0
        %vm653 = vcmask 1040384
        %vm654 = vcmask 1041408
        %v655 = vsel %vm653, 4294967295, 65535
        %v656 = vsel %vm654, %v655, 0
        %v658 = vand.u32 %v363, %v656
        %660 = vmatpush.bf16.msra.mxu0 0
        %661 = vmatpush.bf16.msra.mxu0 0
        %662 = vmatpush.bf16.msra.mxu0 0
        %663 = vmatpush.bf16.msra.mxu0 0
        %664 = vmatpush.bf16.msra.mxu0 0
        %665 = vmatpush.bf16.msra.mxu0 0
        %666 = vmatpush.bf16.msra.mxu0 0
        %667 = vmatpush.bf16.msra.mxu0 %v658
        %668 = vmatmul.bf16.gmra.mxu0 %v600
        %v669 = vpop.f32.mrf.mxu0
        %v670 = vadd.f32 0.0, %v669
        %v671 = vpop.f32.mrf.mxu0
        %v672 = vadd.f32 0.0, %v671
        %673 = vmatmul.bf16.gmra.mxu0 %v603
        %v674 = vpop.f32.mrf.mxu0
        %v675 = vadd.f32 0.0, %v674
        %v676 = vpop.f32.mrf.mxu0
        %v677 = vadd.f32 0.0, %v676
        %678 = vmatmul.bf16.gmra.mxu0 %v606
        %v679 = vpop.f32.mrf.mxu0
        %v680 = vadd.f32 0.0, %v679
        %v681 = vpop.f32.mrf.mxu0
        %v682 = vadd.f32 0.0, %v681
        %683 = vmatmul.bf16.gmra.mxu0 %v609
        %v684 = vpop.f32.mrf.mxu0
        %v685 = vadd.f32 0.0, %v684
        %v686 = vpop.f32.mrf.mxu0
        %v687 = vadd.f32 0.0, %v686
        %688 = vmatmul.bf16.gmra.mxu0 %v612
        %v689 = vpop.f32.mrf.mxu0
        %v690 = vadd.f32 0.0, %v689
        %v691 = vpop.f32.mrf.mxu0
        %v692 = vadd.f32 0.0, %v691
        %693 = vmatmul.bf16.gmra.mxu0 %v615
        %v694 = vpop.f32.mrf.mxu0
        %v695 = vadd.f32 0.0, %v694
        %v696 = vpop.f32.mrf.mxu0
        %v697 = vadd.f32 0.0, %v696
        %698 = vmatmul.bf16.gmra.mxu0 %v618
        %v699 = vpop.f32.mrf.mxu0
        %v700 = vadd.f32 0.0, %v699
        %v701 = vpop.f32.mrf.mxu0
        %v702 = vadd.f32 0.0, %v701
        %703 = vmatmul.bf16.gmra.mxu0 %v621
        %v704 = vpop.f32.mrf.mxu0
        %v705 = vadd.f32 0.0, %v704
        %v706 = vpop.f32.mrf.mxu0
        %v707 = vadd.f32 0.0, %v706
        %708 = vmatmul.bf16.gmra.mxu0 %v624
        %v709 = vpop.f32.mrf.mxu0
        %v710 = vadd.f32 0.0, %v709
        %v711 = vpop.f32.mrf.mxu0
        %v712 = vadd.f32 0.0, %v711
        %713 = vmatmul.bf16.gmra.mxu0 %v627
        %v714 = vpop.f32.mrf.mxu0
        %v715 = vadd.f32 0.0, %v714
        %v716 = vpop.f32.mrf.mxu0
        %v717 = vadd.f32 0.0, %v716
        %718 = vmatmul.bf16.gmra.mxu0 %v630
        %v719 = vpop.f32.mrf.mxu0
        %v720 = vadd.f32 0.0, %v719
        %v721 = vpop.f32.mrf.mxu0
        %v722 = vadd.f32 0.0, %v721
        %723 = vmatmul.bf16.gmra.mxu0 %v633
        %v724 = vpop.f32.mrf.mxu0
        %v725 = vadd.f32 0.0, %v724
        %v726 = vpop.f32.mrf.mxu0
        %v727 = vadd.f32 0.0, %v726
        %728 = vmatmul.bf16.gmra.mxu0 %v636
        %v729 = vpop.f32.mrf.mxu0
        %v730 = vadd.f32 0.0, %v729
        %v731 = vpop.f32.mrf.mxu0
        %v732 = vadd.f32 0.0, %v731
        %733 = vmatmul.bf16.gmra.mxu0 %v639
        %v734 = vpop.f32.mrf.mxu0
        %v735 = vadd.f32 0.0, %v734
        %v736 = vpop.f32.mrf.mxu0
        %v737 = vadd.f32 0.0, %v736
        %738 = vmatmul.bf16.gmra.mxu0 %v642
        %v739 = vpop.f32.mrf.mxu0
        %v740 = vadd.f32 0.0, %v739
        %v741 = vpop.f32.mrf.mxu0
        %v742 = vadd.f32 0.0, %v741
        %743 = vmatmul.bf16.gmra.mxu0 %v645
        %v744 = vpop.f32.mrf.mxu0
        %v745 = vadd.f32 0.0, %v744
        %v746 = vpop.f32.mrf.mxu0
        %v747 = vadd.f32 0.0, %v746
        %748 = vmatmul.bf16.gmra.mxu0 %v648
        %v749 = vpop.f32.mrf.mxu0
        %v750 = vadd.f32 0.0, %v749
        %v751 = vpop.f32.mrf.mxu0
        %v752 = vadd.f32 0.0, %v751
        %753 = vmatmul.bf16.gmra.mxu0 %v651
        %v754 = vpop.f32.mrf.mxu0
        %v755 = vadd.f32 0.0, %v754
        %v756 = vpop.f32.mrf.mxu0
        %v757 = vadd.f32 0.0, %v756
        %758 = vdwg.mxu0
        %v760 = vunpack.c.l.b16 %v359
        %v761 = vpack.c.b16 %v760, %v434
        %v762 = vsel %vm598, %v436, 0
        %v764 = vsel %vm598, %v437, 0
        %v766 = vsel %vm598, %v438, 0
        %v768 = vsel %vm598, %v439, 0
        %v770 = vsel %vm598, %v440, 0
        %v772 = vsel %vm598, %v441, 0
        %v774 = vsel %vm598, %v442, 0
        %v776 = vsel %vm598, %v443, 0
        %v778 = vsel %vm598, %v444, 0
        %v780 = vsel %vm598, %v445, 0
        %v782 = vsel %vm598, %v446, 0
        %v784 = vsel %vm598, %v447, 0
        %v786 = vsel %vm598, %v448, 0
        %v788 = vsel %vm598, %v449, 0
        %v790 = vsel %vm598, %v450, 0
        %v792 = vsel %vm598, %v451, 0
        %v794 = vsel %vm598, %v452, 0
        %v797 = vsel %vm598, %v761, 0
        %v800 = vand.u32 %v360, %v656
        %802 = vmatpush.bf16.msra.mxu0 0
        %803 = vmatpush.bf16.msra.mxu0 0
        %804 = vmatpush.bf16.msra.mxu0 0
        %805 = vmatpush.bf16.msra.mxu0 0
        %806 = vmatpush.bf16.msra.mxu0 0
        %807 = vmatpush.bf16.msra.mxu0 0
        %808 = vmatpush.bf16.msra.mxu0 0
        %809 = vmatpush.bf16.msra.mxu0 %v800
        %810 = vmatmul.bf16.gmra.mxu0 %v762
        %v811 = vpop.f32.mrf.mxu0
        %v812 = vadd.f32 %v670, %v811
        %v813 = vpop.f32.mrf.mxu0
        %v814 = vadd.f32 %v672, %v813
        %815 = vmatmul.bf16.gmra.mxu0 %v764
        %v816 = vpop.f32.mrf.mxu0
        %v817 = vadd.f32 %v675, %v816
        %v818 = vpop.f32.mrf.mxu0
        %v819 = vadd.f32 %v677, %v818
        %820 = vmatmul.bf16.gmra.mxu0 %v766
        %v821 = vpop.f32.mrf.mxu0
        %v822 = vadd.f32 %v680, %v821
        %v823 = vpop.f32.mrf.mxu0
        %v824 = vadd.f32 %v682, %v823
        %825 = vmatmul.bf16.gmra.mxu0 %v768
        %v826 = vpop.f32.mrf.mxu0
        %v827 = vadd.f32 %v685, %v826
        %v828 = vpop.f32.mrf.mxu0
        %v829 = vadd.f32 %v687, %v828
        %830 = vmatmul.bf16.gmra.mxu0 %v770
        %v831 = vpop.f32.mrf.mxu0
        %v832 = vadd.f32 %v690, %v831
        %v833 = vpop.f32.mrf.mxu0
        %v834 = vadd.f32 %v692, %v833
        %835 = vmatmul.bf16.gmra.mxu0 %v772
        %v836 = vpop.f32.mrf.mxu0
        %v837 = vadd.f32 %v695, %v836
        %v838 = vpop.f32.mrf.mxu0
        %v839 = vadd.f32 %v697, %v838
        %840 = vmatmul.bf16.gmra.mxu0 %v774
        %v841 = vpop.f32.mrf.mxu0
        %v842 = vadd.f32 %v700, %v841
        %v843 = vpop.f32.mrf.mxu0
        %v844 = vadd.f32 %v702, %v843
        %845 = vmatmul.bf16.gmra.mxu0 %v776
        %v846 = vpop.f32.mrf.mxu0
        %v847 = vadd.f32 %v705, %v846
        %v848 = vpop.f32.mrf.mxu0
        %v849 = vadd.f32 %v707, %v848
        %850 = vmatmul.bf16.gmra.mxu0 %v778
        %v851 = vpop.f32.mrf.mxu0
        %v852 = vadd.f32 %v710, %v851
        %v853 = vpop.f32.mrf.mxu0
        %v854 = vadd.f32 %v712, %v853
        %855 = vmatmul.bf16.gmra.mxu0 %v780
        %v856 = vpop.f32.mrf.mxu0
        %v857 = vadd.f32 %v715, %v856
        %v858 = vpop.f32.mrf.mxu0
        %v859 = vadd.f32 %v717, %v858
        %860 = vmatmul.bf16.gmra.mxu0 %v782
        %v861 = vpop.f32.mrf.mxu0
        %v862 = vadd.f32 %v720, %v861
        %v863 = vpop.f32.mrf.mxu0
        %v864 = vadd.f32 %v722, %v863
        %865 = vmatmul.bf16.gmra.mxu0 %v784
        %v866 = vpop.f32.mrf.mxu0
        %v867 = vadd.f32 %v725, %v866
        %v868 = vpop.f32.mrf.mxu0
        %v869 = vadd.f32 %v727, %v868
        %870 = vmatmul.bf16.gmra.mxu0 %v786
        %v871 = vpop.f32.mrf.mxu0
        %v872 = vadd.f32 %v730, %v871
        %v873 = vpop.f32.mrf.mxu0
        %v874 = vadd.f32 %v732, %v873
        %875 = vmatmul.bf16.gmra.mxu0 %v788
        %v876 = vpop.f32.mrf.mxu0
        %v877 = vadd.f32 %v735, %v876
        %v878 = vpop.f32.mrf.mxu0
        %v879 = vadd.f32 %v737, %v878
        %880 = vmatmul.bf16.gmra.mxu0 %v790
        %v881 = vpop.f32.mrf.mxu0
        %v882 = vadd.f32 %v740, %v881
        %v883 = vpop.f32.mrf.mxu0
        %v884 = vadd.f32 %v742, %v883
        %885 = vmatmul.bf16.gmra.mxu0 %v792
        %v886 = vpop.f32.mrf.mxu0
        %v887 = vadd.f32 %v745, %v886
        %v888 = vpop.f32.mrf.mxu0
        %v889 = vadd.f32 %v747, %v888
        %890 = vmatmul.bf16.gmra.mxu0 %v794
        %v891 = vpop.f32.mrf.mxu0
        %v892 = vadd.f32 %v750, %v891
        %v893 = vpop.f32.mrf.mxu0
        %v894 = vadd.f32 %v752, %v893
        %895 = vmatmul.bf16.gmra.mxu0 %v797
        %v896 = vpop.f32.mrf.mxu0
        %v897 = vadd.f32 %v755, %v896
        %v898 = vpop.f32.mrf.mxu0
        %v899 = vadd.f32 %v757, %v898
        %900 = vdwg.mxu0
        %v901 = vld [vmem:[%s298] sm:$0xe]
        %s902 = scalar_lea.vmem %s1, 4
        %v903 = vld [vmem:[%s902] sm:$0x3]
        %v905 = vunpack.c.l.b16 %v901
        %v906 = vpack.c.b16 %v401, %v905
        %vm907 = vcmask 1046528
        %v908 = vrot.slane %v906, 1
        %v909 = vrot.slane %v437, 1
        %v910 = vsel %vm907, %v908, %v909
        %v911 = vrot.slane %v438, 1
        %v912 = vsel %vm907, %v909, %v911
        %v913 = vrot.slane %v439, 1
        %v914 = vsel %vm907, %v911, %v913
        %v915 = vrot.slane %v440, 1
        %v916 = vsel %vm907, %v913, %v915
        %v917 = vrot.slane %v441, 1
        %v918 = vsel %vm907, %v915, %v917
        %v919 = vrot.slane %v442, 1
        %v920 = vsel %vm907, %v917, %v919
        %v921 = vrot.slane %v443, 1
        %v922 = vsel %vm907, %v919, %v921
        %v923 = vrot.slane %v444, 1
        %v924 = vsel %vm907, %v921, %v923
        %v925 = vrot.slane %v445, 1
        %v926 = vsel %vm907, %v923, %v925
        %v927 = vrot.slane %v446, 1
        %v928 = vsel %vm907, %v925, %v927
        %v929 = vrot.slane %v447, 1
        %v930 = vsel %vm907, %v927, %v929
        %v931 = vrot.slane %v448, 1
        %v932 = vsel %vm907, %v929, %v931
        %v933 = vrot.slane %v449, 1
        %v934 = vsel %vm907, %v931, %v933
        %v935 = vrot.slane %v450, 1
        %v936 = vsel %vm907, %v933, %v935
        %v937 = vrot.slane %v451, 1
        %v938 = vsel %vm907, %v935, %v937
        %v939 = vrot.slane %v452, 1
        %v940 = vsel %vm907, %v937, %v939
        %v941 = vrot.slane %v453, 1
        %v942 = vsel %vm907, %v939, %v941
        %v944 = vsel %vm598, %v910, 0
        %v947 = vsel %vm598, %v912, 0
        %v950 = vsel %vm598, %v914, 0
        %v953 = vsel %vm598, %v916, 0
        %v956 = vsel %vm598, %v918, 0
        %v959 = vsel %vm598, %v920, 0
        %v962 = vsel %vm598, %v922, 0
        %v965 = vsel %vm598, %v924, 0
        %v968 = vsel %vm598, %v926, 0
        %v971 = vsel %vm598, %v928, 0
        %v974 = vsel %vm598, %v930, 0
        %v977 = vsel %vm598, %v932, 0
        %v980 = vsel %vm598, %v934, 0
        %v983 = vsel %vm598, %v936, 0
        %v986 = vsel %vm598, %v938, 0
        %v989 = vsel %vm598, %v940, 0
        %v992 = vsel %vm598, %v942, 0
        %v995 = vsel %vm598, %v941, 0
        %v998 = vand.u32 %v903, %v656
        %1000 = vmatpush.bf16.msra.mxu0 0
        %1001 = vmatpush.bf16.msra.mxu0 0
        %1002 = vmatpush.bf16.msra.mxu0 0
        %1003 = vmatpush.bf16.msra.mxu0 0
        %1004 = vmatpush.bf16.msra.mxu0 0
        %1005 = vmatpush.bf16.msra.mxu0 0
        %1006 = vmatpush.bf16.msra.mxu0 0
        %1007 = vmatpush.bf16.msra.mxu0 %v998
        %1008 = vmatmul.bf16.gmra.mxu0 %v944
        %v1009 = vpop.f32.mrf.mxu0
        %v1010 = vadd.f32 0.0, %v1009
        %v1011 = vpop.f32.mrf.mxu0
        %v1012 = vadd.f32 0.0, %v1011
        %1013 = vmatmul.bf16.gmra.mxu0 %v947
        %v1014 = vpop.f32.mrf.mxu0
        %v1015 = vadd.f32 0.0, %v1014
        %v1016 = vpop.f32.mrf.mxu0
        %v1017 = vadd.f32 0.0, %v1016
        %1018 = vmatmul.bf16.gmra.mxu0 %v950
        %v1019 = vpop.f32.mrf.mxu0
        %v1020 = vadd.f32 0.0, %v1019
        %v1021 = vpop.f32.mrf.mxu0
        %v1022 = vadd.f32 0.0, %v1021
        %1023 = vmatmul.bf16.gmra.mxu0 %v953
        %v1024 = vpop.f32.mrf.mxu0
        %v1025 = vadd.f32 0.0, %v1024
        %v1026 = vpop.f32.mrf.mxu0
        %v1027 = vadd.f32 0.0, %v1026
        %1028 = vmatmul.bf16.gmra.mxu0 %v956
        %v1029 = vpop.f32.mrf.mxu0
        %v1030 = vadd.f32 0.0, %v1029
        %v1031 = vpop.f32.mrf.mxu0
        %v1032 = vadd.f32 0.0, %v1031
        %1033 = vmatmul.bf16.gmra.mxu0 %v959
        %v1034 = vpop.f32.mrf.mxu0
        %v1035 = vadd.f32 0.0, %v1034
        %v1036 = vpop.f32.mrf.mxu0
        %v1037 = vadd.f32 0.0, %v1036
        %1038 = vmatmul.bf16.gmra.mxu0 %v962
        %v1039 = vpop.f32.mrf.mxu0
        %v1040 = vadd.f32 0.0, %v1039
        %v1041 = vpop.f32.mrf.mxu0
        %v1042 = vadd.f32 0.0, %v1041
        %1043 = vmatmul.bf16.gmra.mxu0 %v965
        %v1044 = vpop.f32.mrf.mxu0
        %v1045 = vadd.f32 0.0, %v1044
        %v1046 = vpop.f32.mrf.mxu0
        %v1047 = vadd.f32 0.0, %v1046
        %1048 = vmatmul.bf16.gmra.mxu0 %v968
        %v1049 = vpop.f32.mrf.mxu0
        %v1050 = vadd.f32 0.0, %v1049
        %v1051 = vpop.f32.mrf.mxu0
        %v1052 = vadd.f32 0.0, %v1051
        %1053 = vmatmul.bf16.gmra.mxu0 %v971
        %v1054 = vpop.f32.mrf.mxu0
        %v1055 = vadd.f32 0.0, %v1054
        %v1056 = vpop.f32.mrf.mxu0
        %v1057 = vadd.f32 0.0, %v1056
        %1058 = vmatmul.bf16.gmra.mxu0 %v974
        %v1059 = vpop.f32.mrf.mxu0
        %v1060 = vadd.f32 0.0, %v1059
        %v1061 = vpop.f32.mrf.mxu0
        %v1062 = vadd.f32 0.0, %v1061
        %1063 = vmatmul.bf16.gmra.mxu0 %v977
        %v1064 = vpop.f32.mrf.mxu0
        %v1065 = vadd.f32 0.0, %v1064
        %v1066 = vpop.f32.mrf.mxu0
        %v1067 = vadd.f32 0.0, %v1066
        %1068 = vmatmul.bf16.gmra.mxu0 %v980
        %v1069 = vpop.f32.mrf.mxu0
        %v1070 = vadd.f32 0.0, %v1069
        %v1071 = vpop.f32.mrf.mxu0
        %v1072 = vadd.f32 0.0, %v1071
        %1073 = vmatmul.bf16.gmra.mxu0 %v983
        %v1074 = vpop.f32.mrf.mxu0
        %v1075 = vadd.f32 0.0, %v1074
        %v1076 = vpop.f32.mrf.mxu0
        %v1077 = vadd.f32 0.0, %v1076
        %1078 = vmatmul.bf16.gmra.mxu0 %v986
        %v1079 = vpop.f32.mrf.mxu0
        %v1080 = vadd.f32 0.0, %v1079
        %v1081 = vpop.f32.mrf.mxu0
        %v1082 = vadd.f32 0.0, %v1081
        %1083 = vmatmul.bf16.gmra.mxu0 %v989
        %v1084 = vpop.f32.mrf.mxu0
        %v1085 = vadd.f32 0.0, %v1084
        %v1086 = vpop.f32.mrf.mxu0
        %v1087 = vadd.f32 0.0, %v1086
        %1088 = vmatmul.bf16.gmra.mxu0 %v992
        %v1089 = vpop.f32.mrf.mxu0
        %v1090 = vadd.f32 0.0, %v1089
        %v1091 = vpop.f32.mrf.mxu0
        %v1092 = vadd.f32 0.0, %v1091
        %1093 = vmatmul.bf16.gmra.mxu0 %v995
        %v1094 = vpop.f32.mrf.mxu0
        %v1095 = vadd.f32 0.0, %v1094
        %v1096 = vpop.f32.mrf.mxu0
        %v1097 = vadd.f32 0.0, %v1096
        %1098 = vdwg.mxu0
        %v1099 = vadd.f32 %v812, %v1010
        %v1100 = vadd.f32 %v814, %v1012
        %v1101 = vadd.f32 %v817, %v1015
        %v1102 = vadd.f32 %v819, %v1017
        %v1103 = vadd.f32 %v822, %v1020
        %v1104 = vadd.f32 %v824, %v1022
        %v1105 = vadd.f32 %v827, %v1025
        %v1106 = vadd.f32 %v829, %v1027
        %v1107 = vadd.f32 %v832, %v1030
        %v1108 = vadd.f32 %v834, %v1032
        %v1109 = vadd.f32 %v837, %v1035
        %v1110 = vadd.f32 %v839, %v1037
        %v1111 = vadd.f32 %v842, %v1040
        %v1112 = vadd.f32 %v844, %v1042
        %v1113 = vadd.f32 %v847, %v1045
        %v1114 = vadd.f32 %v849, %v1047
        %v1115 = vadd.f32 %v852, %v1050
        %v1116 = vadd.f32 %v854, %v1052
        %v1117 = vadd.f32 %v857, %v1055
        %v1118 = vadd.f32 %v859, %v1057
        %v1119 = vadd.f32 %v862, %v1060
        %v1120 = vadd.f32 %v864, %v1062
        %v1121 = vadd.f32 %v867, %v1065
        %v1122 = vadd.f32 %v869, %v1067
        %v1123 = vadd.f32 %v872, %v1070
        %v1124 = vadd.f32 %v874, %v1072
        %v1125 = vadd.f32 %v877, %v1075
        %v1126 = vadd.f32 %v879, %v1077
        %v1127 = vadd.f32 %v882, %v1080
        %v1128 = vadd.f32 %v884, %v1082
        %v1129 = vadd.f32 %v887, %v1085
        %v1130 = vadd.f32 %v889, %v1087
        %v1131 = vadd.f32 %v892, %v1090
        %v1132 = vadd.f32 %v894, %v1092
        %v1133 = vadd.f32 %v897, %v1095
        %v1134 = vadd.f32 %v899, %v1097
        %v1135 = vld [vmem:[%s298 + $0x8] sm:$0xe]
        %v1136 = vld [vmem:[%s298 + $0xc] sm:$0xf]
        %v1137 = vld [vmem:[%s298 + $0x10] sm:$0xf]
        %v1138 = vld [vmem:[%s298 + $0x14] sm:$0xf]
        %v1139 = vld [vmem:[%s298 + $0x18] sm:$0xf]
        %v1140 = vld [vmem:[%s298 + $0x1c] sm:$0xf]
        %v1141 = vld [vmem:[%s298 + $0x20] sm:$0xf]
        %v1142 = vld [vmem:[%s298 + $0x24] sm:$0xf]
        %v1143 = vld [vmem:[%s298 + $0x28] sm:$0xf]
        %v1144 = vld [vmem:[%s298 + $0x2c] sm:$0xf]
        %v1145 = vld [vmem:[%s298 + $0x30] sm:$0xf]
        %v1146 = vld [vmem:[%s298 + $0x34] sm:$0xf]
        %v1147 = vld [vmem:[%s298 + $0x38] sm:$0xf]
        %v1148 = vld [vmem:[%s298 + $0x3c] sm:$0xf]
        %v1149 = vld [vmem:[%s298 + $0x40] sm:$0xf]
        %v1150 = vld [vmem:[%s298 + $0x44] sm:$0xf]
        %v1151 = vld [vmem:[%s298 + $0x48] sm:$0xf]
        %v1152 = vld [vmem:[%s298 + $0x4c] sm:$0xf]
        %v1153 = vld [vmem:[%s298 + $0x50] sm:$0xf]
        %v1154 = vld [vmem:[%s298 + $0x54] sm:$0xf]
        %v1155 = vld [vmem:[%s298 + $0x58] sm:$0xf]
        %v1156 = vld [vmem:[%s298 + $0x5c] sm:$0xf]
        %v1157 = vld [vmem:[%s298 + $0x60] sm:$0xf]
        %v1158 = vld [vmem:[%s298 + $0x64] sm:$0xf]
        %v1159 = vld [vmem:[%s298 + $0x68] sm:$0xf]
        %v1160 = vld [vmem:[%s298 + $0x6c] sm:$0xf]
        %v1161 = vld [vmem:[%s298 + $0x70] sm:$0xf]
        %v1162 = vld [vmem:[%s298 + $0x74] sm:$0xf]
        %v1163 = vld [vmem:[%s298 + $0x78] sm:$0xf]
        %v1164 = vld [vmem:[%s298 + $0x7c] sm:$0xf]
        %v1165 = vld [vmem:[%s298 + $0x80] sm:$0xf]
        %v1166 = vld [vmem:[%s298 + $0x84] sm:$0xf]
        %v1167 = vld [vmem:[%s298 + $0x88] sm:$0xf]
        %v1168 = vld [vmem:[%s298 + $0x8c] sm:$0xf]
        %v1169 = vld [vmem:[%s298 + $0x90] sm:$0xf]
        %v1170 = vld [vmem:[%s298 + $0x94] sm:$0xf]
        %s1171 = scalar_lea.vmem %s1, 6
        %v1172 = vld [vmem:[%s1171] sm:$0x3]
        %v1209 = vunpack.c.l.b16 %v1135
        %v1210 = vunpack.c.l.b16 %v1136
        %v1211 = vunpack.c.l.b16 %v1137
        %v1212 = vunpack.c.l.b16 %v1138
        %v1213 = vunpack.c.l.b16 %v1139
        %v1214 = vunpack.c.l.b16 %v1140
        %v1215 = vunpack.c.l.b16 %v1141
        %v1216 = vunpack.c.l.b16 %v1142
        %v1217 = vunpack.c.l.b16 %v1143
        %v1218 = vunpack.c.l.b16 %v1144
        %v1219 = vunpack.c.l.b16 %v1145
        %v1220 = vunpack.c.l.b16 %v1146
        %v1221 = vunpack.c.l.b16 %v1147
        %v1222 = vunpack.c.l.b16 %v1148
        %v1223 = vunpack.c.l.b16 %v1149
        %v1224 = vunpack.c.l.b16 %v1150
        %v1225 = vunpack.c.l.b16 %v1151
        %v1226 = vunpack.c.l.b16 %v1152
        %v1227 = vunpack.c.l.b16 %v1153
        %v1228 = vunpack.c.l.b16 %v1154
        %v1229 = vunpack.c.l.b16 %v1155
        %v1230 = vunpack.c.l.b16 %v1156
        %v1231 = vunpack.c.l.b16 %v1157
        %v1232 = vunpack.c.l.b16 %v1158
        %v1233 = vunpack.c.l.b16 %v1159
        %v1234 = vunpack.c.l.b16 %v1160
        %v1235 = vunpack.c.l.b16 %v1161
        %v1236 = vunpack.c.l.b16 %v1162
        %v1237 = vunpack.c.l.b16 %v1163
        %v1238 = vunpack.c.l.b16 %v1164
        %v1239 = vunpack.c.l.b16 %v1165
        %v1240 = vunpack.c.l.b16 %v1166
        %v1241 = vunpack.c.l.b16 %v1167
        %v1242 = vunpack.c.l.b16 %v1168
        %v1243 = vunpack.c.l.b16 %v1169
        %v1244 = vunpack.c.l.b16 %v1170
        %v1245 = vpack.c.b16 %v1210, %v1209
        %v1246 = vpack.c.b16 %v1212, %v1211
        %v1247 = vpack.c.b16 %v1214, %v1213
        %v1248 = vpack.c.b16 %v1216, %v1215
        %v1249 = vpack.c.b16 %v1218, %v1217
        %v1250 = vpack.c.b16 %v1220, %v1219
        %v1251 = vpack.c.b16 %v1222, %v1221
        %v1252 = vpack.c.b16 %v1224, %v1223
        %v1253 = vpack.c.b16 %v1226, %v1225
        %v1254 = vpack.c.b16 %v1228, %v1227
        %v1255 = vpack.c.b16 %v1230, %v1229
        %v1256 = vpack.c.b16 %v1232, %v1231
        %v1257 = vpack.c.b16 %v1234, %v1233
        %v1258 = vpack.c.b16 %v1236, %v1235
        %v1259 = vpack.c.b16 %v1238, %v1237
        %v1260 = vpack.c.b16 %v1240, %v1239
        %v1261 = vpack.c.b16 %v1242, %v1241
        %v1262 = vpack.c.b16 %v1244, %v1243
        %v1263 = vrot.slane %v1245, 1
        %v1264 = vrot.slane %v1246, 1
        %v1265 = vsel %vm907, %v1263, %v1264
        %v1266 = vrot.slane %v1247, 1
        %v1267 = vsel %vm907, %v1264, %v1266
        %v1268 = vrot.slane %v1248, 1
        %v1269 = vsel %vm907, %v1266, %v1268
        %v1270 = vrot.slane %v1249, 1
        %v1271 = vsel %vm907, %v1268, %v1270
        %v1272 = vrot.slane %v1250, 1
        %v1273 = vsel %vm907, %v1270, %v1272
        %v1274 = vrot.slane %v1251, 1
        %v1275 = vsel %vm907, %v1272, %v1274
        %v1276 = vrot.slane %v1252, 1
        %v1277 = vsel %vm907, %v1274, %v1276
        %v1278 = vrot.slane %v1253, 1
        %v1279 = vsel %vm907, %v1276, %v1278
        %v1280 = vrot.slane %v1254, 1
        %v1281 = vsel %vm907, %v1278, %v1280
        %v1282 = vrot.slane %v1255, 1
        %v1283 = vsel %vm907, %v1280, %v1282
        %v1284 = vrot.slane %v1256, 1
        %v1285 = vsel %vm907, %v1282, %v1284
        %v1286 = vrot.slane %v1257, 1
        %v1287 = vsel %vm907, %v1284, %v1286
        %v1288 = vrot.slane %v1258, 1
        %v1289 = vsel %vm907, %v1286, %v1288
        %v1290 = vrot.slane %v1259, 1
        %v1291 = vsel %vm907, %v1288, %v1290
        %v1292 = vrot.slane %v1260, 1
        %v1293 = vsel %vm907, %v1290, %v1292
        %v1294 = vrot.slane %v1261, 1
        %v1295 = vsel %vm907, %v1292, %v1294
        %v1296 = vrot.slane %v1262, 1
        %v1297 = vsel %vm907, %v1294, %v1296
        %v1299 = vsel %vm598, %v1265, 0
        %v1302 = vsel %vm598, %v1267, 0
        %v1305 = vsel %vm598, %v1269, 0
        %v1308 = vsel %vm598, %v1271, 0
        %v1311 = vsel %vm598, %v1273, 0
        %v1314 = vsel %vm598, %v1275, 0
        %v1317 = vsel %vm598, %v1277, 0
        %v1320 = vsel %vm598, %v1279, 0
        %v1323 = vsel %vm598, %v1281, 0
        %v1326 = vsel %vm598, %v1283, 0
        %v1329 = vsel %vm598, %v1285, 0
        %v1332 = vsel %vm598, %v1287, 0
        %v1335 = vsel %vm598, %v1289, 0
        %v1338 = vsel %vm598, %v1291, 0
        %v1341 = vsel %vm598, %v1293, 0
        %v1344 = vsel %vm598, %v1295, 0
        %v1347 = vsel %vm598, %v1297, 0
        %v1350 = vsel %vm598, %v1296, 0
        %v1353 = vand.u32 %v1172, %v656
        %1355 = vmatpush.bf16.msra.mxu0 0
        %1356 = vmatpush.bf16.msra.mxu0 0
        %1357 = vmatpush.bf16.msra.mxu0 0
        %1358 = vmatpush.bf16.msra.mxu0 0
        %1359 = vmatpush.bf16.msra.mxu0 0
        %1360 = vmatpush.bf16.msra.mxu0 0
        %1361 = vmatpush.bf16.msra.mxu0 0
        %1362 = vmatpush.bf16.msra.mxu0 %v1353
        %1363 = vmatmul.bf16.gmra.mxu0 %v1299
        %v1364 = vpop.f32.mrf.mxu0
        %v1365 = vadd.f32 0.0, %v1364
        %v1366 = vpop.f32.mrf.mxu0
        %v1367 = vadd.f32 0.0, %v1366
        %1368 = vmatmul.bf16.gmra.mxu0 %v1302
        %v1369 = vpop.f32.mrf.mxu0
        %v1370 = vadd.f32 0.0, %v1369
        %v1371 = vpop.f32.mrf.mxu0
        %v1372 = vadd.f32 0.0, %v1371
        %1373 = vmatmul.bf16.gmra.mxu0 %v1305
        %v1374 = vpop.f32.mrf.mxu0
        %v1375 = vadd.f32 0.0, %v1374
        %v1376 = vpop.f32.mrf.mxu0
        %v1377 = vadd.f32 0.0, %v1376
        %1378 = vmatmul.bf16.gmra.mxu0 %v1308
        %v1379 = vpop.f32.mrf.mxu0
        %v1380 = vadd.f32 0.0, %v1379
        %v1381 = vpop.f32.mrf.mxu0
        %v1382 = vadd.f32 0.0, %v1381
        %1383 = vmatmul.bf16.gmra.mxu0 %v1311
        %v1384 = vpop.f32.mrf.mxu0
        %v1385 = vadd.f32 0.0, %v1384
        %v1386 = vpop.f32.mrf.mxu0
        %v1387 = vadd.f32 0.0, %v1386
        %1388 = vmatmul.bf16.gmra.mxu0 %v1314
        %v1389 = vpop.f32.mrf.mxu0
        %v1390 = vadd.f32 0.0, %v1389
        %v1391 = vpop.f32.mrf.mxu0
        %v1392 = vadd.f32 0.0, %v1391
        %1393 = vmatmul.bf16.gmra.mxu0 %v1317
        %v1394 = vpop.f32.mrf.mxu0
        %v1395 = vadd.f32 0.0, %v1394
        %v1396 = vpop.f32.mrf.mxu0
        %v1397 = vadd.f32 0.0, %v1396
        %1398 = vmatmul.bf16.gmra.mxu0 %v1320
        %v1399 = vpop.f32.mrf.mxu0
        %v1400 = vadd.f32 0.0, %v1399
        %v1401 = vpop.f32.mrf.mxu0
        %v1402 = vadd.f32 0.0, %v1401
        %1403 = vmatmul.bf16.gmra.mxu0 %v1323
        %v1404 = vpop.f32.mrf.mxu0
        %v1405 = vadd.f32 0.0, %v1404
        %v1406 = vpop.f32.mrf.mxu0
        %v1407 = vadd.f32 0.0, %v1406
        %1408 = vmatmul.bf16.gmra.mxu0 %v1326
        %v1409 = vpop.f32.mrf.mxu0
        %v1410 = vadd.f32 0.0, %v1409
        %v1411 = vpop.f32.mrf.mxu0
        %v1412 = vadd.f32 0.0, %v1411
        %1413 = vmatmul.bf16.gmra.mxu0 %v1329
        %v1414 = vpop.f32.mrf.mxu0
        %v1415 = vadd.f32 0.0, %v1414
        %v1416 = vpop.f32.mrf.mxu0
        %v1417 = vadd.f32 0.0, %v1416
        %1418 = vmatmul.bf16.gmra.mxu0 %v1332
        %v1419 = vpop.f32.mrf.mxu0
        %v1420 = vadd.f32 0.0, %v1419
        %v1421 = vpop.f32.mrf.mxu0
        %v1422 = vadd.f32 0.0, %v1421
        %1423 = vmatmul.bf16.gmra.mxu0 %v1335
        %v1424 = vpop.f32.mrf.mxu0
        %v1425 = vadd.f32 0.0, %v1424
        %v1426 = vpop.f32.mrf.mxu0
        %v1427 = vadd.f32 0.0, %v1426
        %1428 = vmatmul.bf16.gmra.mxu0 %v1338
        %v1429 = vpop.f32.mrf.mxu0
        %v1430 = vadd.f32 0.0, %v1429
        %v1431 = vpop.f32.mrf.mxu0
        %v1432 = vadd.f32 0.0, %v1431
        %1433 = vmatmul.bf16.gmra.mxu0 %v1341
        %v1434 = vpop.f32.mrf.mxu0
        %v1435 = vadd.f32 0.0, %v1434
        %v1436 = vpop.f32.mrf.mxu0
        %v1437 = vadd.f32 0.0, %v1436
        %1438 = vmatmul.bf16.gmra.mxu0 %v1344
        %v1439 = vpop.f32.mrf.mxu0
        %v1440 = vadd.f32 0.0, %v1439
        %v1441 = vpop.f32.mrf.mxu0
        %v1442 = vadd.f32 0.0, %v1441
        %1443 = vmatmul.bf16.gmra.mxu0 %v1347
        %v1444 = vpop.f32.mrf.mxu0
        %v1445 = vadd.f32 0.0, %v1444
        %v1446 = vpop.f32.mrf.mxu0
        %v1447 = vadd.f32 0.0, %v1446
        %1448 = vmatmul.bf16.gmra.mxu0 %v1350
        %v1449 = vpop.f32.mrf.mxu0
        %v1450 = vadd.f32 0.0, %v1449
        %v1451 = vpop.f32.mrf.mxu0
        %v1452 = vadd.f32 0.0, %v1451
        %1453 = vdwg.mxu0
        %v1454 = vadd.f32 %v1099, %v1365
        %v1455 = vadd.f32 %v1100, %v1367
        %v1456 = vadd.f32 %v1101, %v1370
        %v1457 = vadd.f32 %v1102, %v1372
        %v1458 = vadd.f32 %v1103, %v1375
        %v1459 = vadd.f32 %v1104, %v1377
        %v1460 = vadd.f32 %v1105, %v1380
        %v1461 = vadd.f32 %v1106, %v1382
        %v1462 = vadd.f32 %v1107, %v1385
        %v1463 = vadd.f32 %v1108, %v1387
        %v1464 = vadd.f32 %v1109, %v1390
        %v1465 = vadd.f32 %v1110, %v1392
        %v1466 = vadd.f32 %v1111, %v1395
        %v1467 = vadd.f32 %v1112, %v1397
        %v1468 = vadd.f32 %v1113, %v1400
        %v1469 = vadd.f32 %v1114, %v1402
        %v1470 = vadd.f32 %v1115, %v1405
        %v1471 = vadd.f32 %v1116, %v1407
        %v1472 = vadd.f32 %v1117, %v1410
        %v1473 = vadd.f32 %v1118, %v1412
        %v1474 = vadd.f32 %v1119, %v1415
        %v1475 = vadd.f32 %v1120, %v1417
        %v1476 = vadd.f32 %v1121, %v1420
        %v1477 = vadd.f32 %v1122, %v1422
        %v1478 = vadd.f32 %v1123, %v1425
        %v1479 = vadd.f32 %v1124, %v1427
        %v1480 = vadd.f32 %v1125, %v1430
        %v1481 = vadd.f32 %v1126, %v1432
        %v1482 = vadd.f32 %v1127, %v1435
        %v1483 = vadd.f32 %v1128, %v1437
        %v1484 = vadd.f32 %v1129, %v1440
        %v1485 = vadd.f32 %v1130, %v1442
        %v1486 = vadd.f32 %v1131, %v1445
        %v1487 = vadd.f32 %v1132, %v1447
        %v1488 = vadd.f32 %v1133, %v1450
        %v1489 = vadd.f32 %v1134, %v1452
        %v1490 = vld [vmem:[%s298 + $0x8] sm:$0xe]
        %v1491 = vld [vmem:[%s298 + $0xc] sm:$0xf]
        %v1492 = vld [vmem:[%s298 + $0x10] sm:$0xf]
        %v1493 = vld [vmem:[%s298 + $0x14] sm:$0xf]
        %v1494 = vld [vmem:[%s298 + $0x18] sm:$0xf]
        %v1495 = vld [vmem:[%s298 + $0x1c] sm:$0xf]
        %v1496 = vld [vmem:[%s298 + $0x20] sm:$0xf]
        %v1497 = vld [vmem:[%s298 + $0x24] sm:$0xf]
        %v1498 = vld [vmem:[%s298 + $0x28] sm:$0xf]
        %v1499 = vld [vmem:[%s298 + $0x2c] sm:$0xf]
        %v1500 = vld [vmem:[%s298 + $0x30] sm:$0xf]
        %v1501 = vld [vmem:[%s298 + $0x34] sm:$0xf]
        %v1502 = vld [vmem:[%s298 + $0x38] sm:$0xf]
        %v1503 = vld [vmem:[%s298 + $0x3c] sm:$0xf]
        %v1504 = vld [vmem:[%s298 + $0x40] sm:$0xf]
        %v1505 = vld [vmem:[%s298 + $0x44] sm:$0xf]
        %v1506 = vld [vmem:[%s298 + $0x48] sm:$0xf]
        %v1507 = vld [vmem:[%s298 + $0x4c] sm:$0xf]
        %v1508 = vld [vmem:[%s298 + $0x50] sm:$0xf]
        %v1509 = vld [vmem:[%s298 + $0x54] sm:$0xf]
        %v1510 = vld [vmem:[%s298 + $0x58] sm:$0xf]
        %v1511 = vld [vmem:[%s298 + $0x5c] sm:$0xf]
        %v1512 = vld [vmem:[%s298 + $0x60] sm:$0xf]
        %v1513 = vld [vmem:[%s298 + $0x64] sm:$0xf]
        %v1514 = vld [vmem:[%s298 + $0x68] sm:$0xf]
        %v1515 = vld [vmem:[%s298 + $0x6c] sm:$0xf]
        %v1516 = vld [vmem:[%s298 + $0x70] sm:$0xf]
        %v1517 = vld [vmem:[%s298 + $0x74] sm:$0xf]
        %v1518 = vld [vmem:[%s298 + $0x78] sm:$0xf]
        %v1519 = vld [vmem:[%s298 + $0x7c] sm:$0xf]
        %v1520 = vld [vmem:[%s298 + $0x80] sm:$0xf]
        %v1521 = vld [vmem:[%s298 + $0x84] sm:$0xf]
        %v1522 = vld [vmem:[%s298 + $0x88] sm:$0xf]
        %v1523 = vld [vmem:[%s298 + $0x8c] sm:$0xf]
        %v1524 = vld [vmem:[%s298 + $0x90] sm:$0xf]
        %v1525 = vld [vmem:[%s298 + $0x94] sm:$0xf]
        %v1526 = vld [vmem:[%s298 + $0x98] sm:$0x1]
        %s1527 = scalar_lea.vmem %s1, 8
        %v1528 = vld [vmem:[%s1527] sm:$0x3]
        %v1566 = vunpack.c.l.b16 %v1490
        %v1567 = vunpack.c.l.b16 %v1491
        %v1568 = vunpack.c.l.b16 %v1492
        %v1569 = vunpack.c.l.b16 %v1493
        %v1570 = vunpack.c.l.b16 %v1494
        %v1571 = vunpack.c.l.b16 %v1495
        %v1572 = vunpack.c.l.b16 %v1496
        %v1573 = vunpack.c.l.b16 %v1497
        %v1574 = vunpack.c.l.b16 %v1498
        %v1575 = vunpack.c.l.b16 %v1499
        %v1576 = vunpack.c.l.b16 %v1500
        %v1577 = vunpack.c.l.b16 %v1501
        %v1578 = vunpack.c.l.b16 %v1502
        %v1579 = vunpack.c.l.b16 %v1503
        %v1580 = vunpack.c.l.b16 %v1504
        %v1581 = vunpack.c.l.b16 %v1505
        %v1582 = vunpack.c.l.b16 %v1506
        %v1583 = vunpack.c.l.b16 %v1507
        %v1584 = vunpack.c.l.b16 %v1508
        %v1585 = vunpack.c.l.b16 %v1509
        %v1586 = vunpack.c.l.b16 %v1510
        %v1587 = vunpack.c.l.b16 %v1511
        %v1588 = vunpack.c.l.b16 %v1512
        %v1589 = vunpack.c.l.b16 %v1513
        %v1590 = vunpack.c.l.b16 %v1514
        %v1591 = vunpack.c.l.b16 %v1515
        %v1592 = vunpack.c.l.b16 %v1516
        %v1593 = vunpack.c.l.b16 %v1517
        %v1594 = vunpack.c.l.b16 %v1518
        %v1595 = vunpack.c.l.b16 %v1519
        %v1596 = vunpack.c.l.b16 %v1520
        %v1597 = vunpack.c.l.b16 %v1521
        %v1598 = vunpack.c.l.b16 %v1522
        %v1599 = vunpack.c.l.b16 %v1523
        %v1600 = vunpack.c.l.b16 %v1524
        %v1601 = vunpack.c.l.b16 %v1525
        %v1602 = vunpack.c.l.b16 %v1526
        %v1603 = vpack.c.b16 %v1567, %v1566
        %v1604 = vpack.c.b16 %v1569, %v1568
        %v1605 = vpack.c.b16 %v1571, %v1570
        %v1606 = vpack.c.b16 %v1573, %v1572
        %v1607 = vpack.c.b16 %v1575, %v1574
        %v1608 = vpack.c.b16 %v1577, %v1576
        %v1609 = vpack.c.b16 %v1579, %v1578
        %v1610 = vpack.c.b16 %v1581, %v1580
        %v1611 = vpack.c.b16 %v1583, %v1582
        %v1612 = vpack.c.b16 %v1585, %v1584
        %v1613 = vpack.c.b16 %v1587, %v1586
        %v1614 = vpack.c.b16 %v1589, %v1588
        %v1615 = vpack.c.b16 %v1591, %v1590
        %v1616 = vpack.c.b16 %v1593, %v1592
        %v1617 = vpack.c.b16 %v1595, %v1594
        %v1618 = vpack.c.b16 %v1597, %v1596
        %v1619 = vpack.c.b16 %v1599, %v1598
        %v1620 = vpack.c.b16 %v1601, %v1600
        %v1621 = vpack.c.b16 %v1602, %v1602
        %vm1622 = vsmask.f32 6400
        %v1624 = vshrl.u32 %v1603, 16
        %v1626 = vrot.slane %v1624, 1
        %v1627 = vshll.u32 %v1603, 16
        %v1629 = vrot.slane %v1627, 2
        %v1630 = vor.u32 %v1626, %v1629
        %v1632 = vshrl.u32 %v1604, 16
        %v1634 = vrot.slane %v1632, 1
        %v1635 = vshll.u32 %v1604, 16
        %v1637 = vrot.slane %v1635, 2
        %v1638 = vor.u32 %v1634, %v1637
        %v1639 = vsel %vm1622, %v1630, %v1638
        %v1641 = vshrl.u32 %v1605, 16
        %v1643 = vrot.slane %v1641, 1
        %v1644 = vshll.u32 %v1605, 16
        %v1646 = vrot.slane %v1644, 2
        %v1647 = vor.u32 %v1643, %v1646
        %v1648 = vsel %vm1622, %v1638, %v1647
        %v1650 = vshrl.u32 %v1606, 16
        %v1652 = vrot.slane %v1650, 1
        %v1653 = vshll.u32 %v1606, 16
        %v1655 = vrot.slane %v1653, 2
        %v1656 = vor.u32 %v1652, %v1655
        %v1657 = vsel %vm1622, %v1647, %v1656
        %v1659 = vshrl.u32 %v1607, 16
        %v1661 = vrot.slane %v1659, 1
        %v1662 = vshll.u32 %v1607, 16
        %v1664 = vrot.slane %v1662, 2
        %v1665 = vor.u32 %v1661, %v1664
        %v1666 = vsel %vm1622, %v1656, %v1665
        %v1668 = vshrl.u32 %v1608, 16
        %v1670 = vrot.slane %v1668, 1
        %v1671 = vshll.u32 %v1608, 16
        %v1673 = vrot.slane %v1671, 2
        %v1674 = vor.u32 %v1670, %v1673
        %v1675 = vsel %vm1622, %v1665, %v1674
        %v1677 = vshrl.u32 %v1609, 16
        %v1679 = vrot.slane %v1677, 1
        %v1680 = vshll.u32 %v1609, 16
        %v1682 = vrot.slane %v1680, 2
        %v1683 = vor.u32 %v1679, %v1682
        %v1684 = vsel %vm1622, %v1674, %v1683
        %v1686 = vshrl.u32 %v1610, 16
        %v1688 = vrot.slane %v1686, 1
        %v1689 = vshll.u32 %v1610, 16
        %v1691 = vrot.slane %v1689, 2
        %v1692 = vor.u32 %v1688, %v1691
        %v1693 = vsel %vm1622, %v1683, %v1692
        %v1695 = vshrl.u32 %v1611, 16
        %v1697 = vrot.slane %v1695, 1
        %v1698 = vshll.u32 %v1611, 16
        %v1700 = vrot.slane %v1698, 2
        %v1701 = vor.u32 %v1697, %v1700
        %v1702 = vsel %vm1622, %v1692, %v1701
        %v1704 = vshrl.u32 %v1612, 16
        %v1706 = vrot.slane %v1704, 1
        %v1707 = vshll.u32 %v1612, 16
        %v1709 = vrot.slane %v1707, 2
        %v1710 = vor.u32 %v1706, %v1709
        %v1711 = vsel %vm1622, %v1701, %v1710
        %v1713 = vshrl.u32 %v1613, 16
        %v1715 = vrot.slane %v1713, 1
        %v1716 = vshll.u32 %v1613, 16
        %v1718 = vrot.slane %v1716, 2
        %v1719 = vor.u32 %v1715, %v1718
        %v1720 = vsel %vm1622, %v1710, %v1719
        %v1722 = vshrl.u32 %v1614, 16
        %v1724 = vrot.slane %v1722, 1
        %v1725 = vshll.u32 %v1614, 16
        %v1727 = vrot.slane %v1725, 2
        %v1728 = vor.u32 %v1724, %v1727
        %v1729 = vsel %vm1622, %v1719, %v1728
        %v1731 = vshrl.u32 %v1615, 16
        %v1733 = vrot.slane %v1731, 1
        %v1734 = vshll.u32 %v1615, 16
        %v1736 = vrot.slane %v1734, 2
        %v1737 = vor.u32 %v1733, %v1736
        %v1738 = vsel %vm1622, %v1728, %v1737
        %v1740 = vshrl.u32 %v1616, 16
        %v1742 = vrot.slane %v1740, 1
        %v1743 = vshll.u32 %v1616, 16
        %v1745 = vrot.slane %v1743, 2
        %v1746 = vor.u32 %v1742, %v1745
        %v1747 = vsel %vm1622, %v1737, %v1746
        %v1749 = vshrl.u32 %v1617, 16
        %v1751 = vrot.slane %v1749, 1
        %v1752 = vshll.u32 %v1617, 16
        %v1754 = vrot.slane %v1752, 2
        %v1755 = vor.u32 %v1751, %v1754
        %v1756 = vsel %vm1622, %v1746, %v1755
        %v1758 = vshrl.u32 %v1618, 16
        %v1760 = vrot.slane %v1758, 1
        %v1761 = vshll.u32 %v1618, 16
        %v1763 = vrot.slane %v1761, 2
        %v1764 = vor.u32 %v1760, %v1763
        %v1765 = vsel %vm1622, %v1755, %v1764
        %v1767 = vshrl.u32 %v1619, 16
        %v1769 = vrot.slane %v1767, 1
        %v1770 = vshll.u32 %v1619, 16
        %v1772 = vrot.slane %v1770, 2
        %v1773 = vor.u32 %v1769, %v1772
        %v1774 = vsel %vm1622, %v1764, %v1773
        %v1776 = vshrl.u32 %v1620, 16
        %v1778 = vrot.slane %v1776, 1
        %v1779 = vshll.u32 %v1620, 16
        %v1781 = vrot.slane %v1779, 2
        %v1782 = vor.u32 %v1778, %v1781
        %v1783 = vsel %vm1622, %v1773, %v1782
        %v1785 = vshll.u32 %v1621, 16
        %v1787 = vrot.slane %v1785, 2
        %v1788 = vsel %vm1622, %v1782, %v1787
        %v1790 = vsel %vm598, %v1639, 0
        %v1793 = vsel %vm598, %v1648, 0
        %v1796 = vsel %vm598, %v1657, 0
        %v1799 = vsel %vm598, %v1666, 0
        %v1802 = vsel %vm598, %v1675, 0
        %v1805 = vsel %vm598, %v1684, 0
        %v1808 = vsel %vm598, %v1693, 0
        %v1811 = vsel %vm598, %v1702, 0
        %v1814 = vsel %vm598, %v1711, 0
        %v1817 = vsel %vm598, %v1720, 0
        %v1820 = vsel %vm598, %v1729, 0
        %v1823 = vsel %vm598, %v1738, 0
        %v1826 = vsel %vm598, %v1747, 0
        %v1829 = vsel %vm598, %v1756, 0
        %v1832 = vsel %vm598, %v1765, 0
        %v1835 = vsel %vm598, %v1774, 0
        %v1838 = vsel %vm598, %v1783, 0
        %v1841 = vsel %vm598, %v1788, 0
        %v1844 = vand.u32 %v1528, %v656
        %1846 = vmatpush.bf16.msra.mxu0 0
        %1847 = vmatpush.bf16.msra.mxu0 0
        %1848 = vmatpush.bf16.msra.mxu0 0
        %1849 = vmatpush.bf16.msra.mxu0 0
        %1850 = vmatpush.bf16.msra.mxu0 0
        %1851 = vmatpush.bf16.msra.mxu0 0
        %1852 = vmatpush.bf16.msra.mxu0 0
        %1853 = vmatpush.bf16.msra.mxu0 %v1844
        %1854 = vmatmul.bf16.gmra.mxu0 %v1790
        %v1855 = vpop.f32.mrf.mxu0
        %v1856 = vadd.f32 0.0, %v1855
        %v1857 = vpop.f32.mrf.mxu0
        %v1858 = vadd.f32 0.0, %v1857
        %1859 = vmatmul.bf16.gmra.mxu0 %v1793
        %v1860 = vpop.f32.mrf.mxu0
        %v1861 = vadd.f32 0.0, %v1860
        %v1862 = vpop.f32.mrf.mxu0
        %v1863 = vadd.f32 0.0, %v1862
        %1864 = vmatmul.bf16.gmra.mxu0 %v1796
        %v1865 = vpop.f32.mrf.mxu0
        %v1866 = vadd.f32 0.0, %v1865
        %v1867 = vpop.f32.mrf.mxu0
        %v1868 = vadd.f32 0.0, %v1867
        %1869 = vmatmul.bf16.gmra.mxu0 %v1799
        %v1870 = vpop.f32.mrf.mxu0
        %v1871 = vadd.f32 0.0, %v1870
        %v1872 = vpop.f32.mrf.mxu0
        %v1873 = vadd.f32 0.0, %v1872
        %1874 = vmatmul.bf16.gmra.mxu0 %v1802
        %v1875 = vpop.f32.mrf.mxu0
        %v1876 = vadd.f32 0.0, %v1875
        %v1877 = vpop.f32.mrf.mxu0
        %v1878 = vadd.f32 0.0, %v1877
        %1879 = vmatmul.bf16.gmra.mxu0 %v1805
        %v1880 = vpop.f32.mrf.mxu0
        %v1881 = vadd.f32 0.0, %v1880
        %v1882 = vpop.f32.mrf.mxu0
        %v1883 = vadd.f32 0.0, %v1882
        %1884 = vmatmul.bf16.gmra.mxu0 %v1808
        %v1885 = vpop.f32.mrf.mxu0
        %v1886 = vadd.f32 0.0, %v1885
        %v1887 = vpop.f32.mrf.mxu0
        %v1888 = vadd.f32 0.0, %v1887
        %1889 = vmatmul.bf16.gmra.mxu0 %v1811
        %v1890 = vpop.f32.mrf.mxu0
        %v1891 = vadd.f32 0.0, %v1890
        %v1892 = vpop.f32.mrf.mxu0
        %v1893 = vadd.f32 0.0, %v1892
        %1894 = vmatmul.bf16.gmra.mxu0 %v1814
        %v1895 = vpop.f32.mrf.mxu0
        %v1896 = vadd.f32 0.0, %v1895
        %v1897 = vpop.f32.mrf.mxu0
        %v1898 = vadd.f32 0.0, %v1897
        %1899 = vmatmul.bf16.gmra.mxu0 %v1817
        %v1900 = vpop.f32.mrf.mxu0
        %v1901 = vadd.f32 0.0, %v1900
        %v1902 = vpop.f32.mrf.mxu0
        %v1903 = vadd.f32 0.0, %v1902
        %1904 = vmatmul.bf16.gmra.mxu0 %v1820
        %v1905 = vpop.f32.mrf.mxu0
        %v1906 = vadd.f32 0.0, %v1905
        %v1907 = vpop.f32.mrf.mxu0
        %v1908 = vadd.f32 0.0, %v1907
        %1909 = vmatmul.bf16.gmra.mxu0 %v1823
        %v1910 = vpop.f32.mrf.mxu0
        %v1911 = vadd.f32 0.0, %v1910
        %v1912 = vpop.f32.mrf.mxu0
        %v1913 = vadd.f32 0.0, %v1912
        %1914 = vmatmul.bf16.gmra.mxu0 %v1826
        %v1915 = vpop.f32.mrf.mxu0
        %v1916 = vadd.f32 0.0, %v1915
        %v1917 = vpop.f32.mrf.mxu0
        %v1918 = vadd.f32 0.0, %v1917
        %1919 = vmatmul.bf16.gmra.mxu0 %v1829
        %v1920 = vpop.f32.mrf.mxu0
        %v1921 = vadd.f32 0.0, %v1920
        %v1922 = vpop.f32.mrf.mxu0
        %v1923 = vadd.f32 0.0, %v1922
        %1924 = vmatmul.bf16.gmra.mxu0 %v1832
        %v1925 = vpop.f32.mrf.mxu0
        %v1926 = vadd.f32 0.0, %v1925
        %v1927 = vpop.f32.mrf.mxu0
        %v1928 = vadd.f32 0.0, %v1927
        %1929 = vmatmul.bf16.gmra.mxu0 %v1835
        %v1930 = vpop.f32.mrf.mxu0
        %v1931 = vadd.f32 0.0, %v1930
        %v1932 = vpop.f32.mrf.mxu0
        %v1933 = vadd.f32 0.0, %v1932
        %1934 = vmatmul.bf16.gmra.mxu0 %v1838
        %v1935 = vpop.f32.mrf.mxu0
        %v1936 = vadd.f32 0.0, %v1935
        %v1937 = vpop.f32.mrf.mxu0
        %v1938 = vadd.f32 0.0, %v1937
        %1939 = vmatmul.bf16.gmra.mxu0 %v1841
        %v1940 = vpop.f32.mrf.mxu0
        %v1941 = vadd.f32 0.0, %v1940
        %v1942 = vpop.f32.mrf.mxu0
        %v1943 = vadd.f32 0.0, %v1942
        %1944 = vdwg.mxu0
        %v1945 = vadd.f32 %v1454, %v1856
        %v1946 = vadd.f32 %v1455, %v1858
        %v1947 = vadd.f32 %v1456, %v1861
        %v1948 = vadd.f32 %v1457, %v1863
        %v1949 = vadd.f32 %v1458, %v1866
        %v1950 = vadd.f32 %v1459, %v1868
        %v1951 = vadd.f32 %v1460, %v1871
        %v1952 = vadd.f32 %v1461, %v1873
        %v1953 = vadd.f32 %v1462, %v1876
        %v1954 = vadd.f32 %v1463, %v1878
        %v1955 = vadd.f32 %v1464, %v1881
        %v1956 = vadd.f32 %v1465, %v1883
        %v1957 = vadd.f32 %v1466, %v1886
        %v1958 = vadd.f32 %v1467, %v1888
        %v1959 = vadd.f32 %v1468, %v1891
        %v1960 = vadd.f32 %v1469, %v1893
        %v1961 = vadd.f32 %v1470, %v1896
        %v1962 = vadd.f32 %v1471, %v1898
        %v1963 = vadd.f32 %v1472, %v1901
        %v1964 = vadd.f32 %v1473, %v1903
        %v1965 = vadd.f32 %v1474, %v1906
        %v1966 = vadd.f32 %v1475, %v1908
        %v1967 = vadd.f32 %v1476, %v1911
        %v1968 = vadd.f32 %v1477, %v1913
        %v1969 = vadd.f32 %v1478, %v1916
        %v1970 = vadd.f32 %v1479, %v1918
        %v1971 = vadd.f32 %v1480, %v1921
        %v1972 = vadd.f32 %v1481, %v1923
        %v1973 = vadd.f32 %v1482, %v1926
        %v1974 = vadd.f32 %v1483, %v1928
        %v1975 = vadd.f32 %v1484, %v1931
        %v1976 = vadd.f32 %v1485, %v1933
        %v1977 = vadd.f32 %v1486, %v1936
        %v1978 = vadd.f32 %v1487, %v1938
        %v1979 = vadd.f32 %v1488, %v1941
        %v1980 = vadd.f32 %v1489, %v1943
        %v1981 = vld [vmem:[%s298 + $0x8] sm:$0xc]
        %s1982 = scalar_lea.vmem %s1, 10
        %v1983 = vld [vmem:[%s1982] sm:$0x3]
        %v1985 = vunpack.c.l.b16 %v1981
        %v1986 = vpack.c.b16 %v1567, %v1985
        %vm1987 = vcmask 1045504
        %v1988 = vrot.slane %v1986, 2
        %v1989 = vrot.slane %v1604, 2
        %v1990 = vsel %vm1987, %v1988, %v1989
        %v1991 = vrot.slane %v1605, 2
        %v1992 = vsel %vm1987, %v1989, %v1991
        %v1993 = vrot.slane %v1606, 2
        %v1994 = vsel %vm1987, %v1991, %v1993
        %v1995 = vrot.slane %v1607, 2
        %v1996 = vsel %vm1987, %v1993, %v1995
        %v1997 = vrot.slane %v1608, 2
        %v1998 = vsel %vm1987, %v1995, %v1997
        %v1999 = vrot.slane %v1609, 2
        %v2000 = vsel %vm1987, %v1997, %v1999
        %v2001 = vrot.slane %v1610, 2
        %v2002 = vsel %vm1987, %v1999, %v2001
        %v2003 = vrot.slane %v1611, 2
        %v2004 = vsel %vm1987, %v2001, %v2003
        %v2005 = vrot.slane %v1612, 2
        %v2006 = vsel %vm1987, %v2003, %v2005
        %v2007 = vrot.slane %v1613, 2
        %v2008 = vsel %vm1987, %v2005, %v2007
        %v2009 = vrot.slane %v1614, 2
        %v2010 = vsel %vm1987, %v2007, %v2009
        %v2011 = vrot.slane %v1615, 2
        %v2012 = vsel %vm1987, %v2009, %v2011
        %v2013 = vrot.slane %v1616, 2
        %v2014 = vsel %vm1987, %v2011, %v2013
        %v2015 = vrot.slane %v1617, 2
        %v2016 = vsel %vm1987, %v2013, %v2015
        %v2017 = vrot.slane %v1618, 2
        %v2018 = vsel %vm1987, %v2015, %v2017
        %v2019 = vrot.slane %v1619, 2
        %v2020 = vsel %vm1987, %v2017, %v2019
        %v2021 = vrot.slane %v1620, 2
        %v2022 = vsel %vm1987, %v2019, %v2021
        %v2023 = vrot.slane %v1621, 2
        %v2024 = vsel %vm1987, %v2021, %v2023
        %v2026 = vsel %vm598, %v1990, 0
        %v2029 = vsel %vm598, %v1992, 0
        %v2032 = vsel %vm598, %v1994, 0
        %v2035 = vsel %vm598, %v1996, 0
        %v2038 = vsel %vm598, %v1998, 0
        %v2041 = vsel %vm598, %v2000, 0
        %v2044 = vsel %vm598, %v2002, 0
        %v2047 = vsel %vm598, %v2004, 0
        %v2050 = vsel %vm598, %v2006, 0
        %v2053 = vsel %vm598, %v2008, 0
        %v2056 = vsel %vm598, %v2010, 0
        %v2059 = vsel %vm598, %v2012, 0
        %v2062 = vsel %vm598, %v2014, 0
        %v2065 = vsel %vm598, %v2016, 0
        %v2068 = vsel %vm598, %v2018, 0
        %v2071 = vsel %vm598, %v2020, 0
        %v2074 = vsel %vm598, %v2022, 0
        %v2077 = vsel %vm598, %v2024, 0
        %v2080 = vand.u32 %v1983, %v656
        %2082 = vmatpush.bf16.msra.mxu0 0
        %2083 = vmatpush.bf16.msra.mxu0 0
        %2084 = vmatpush.bf16.msra.mxu0 0
        %2085 = vmatpush.bf16.msra.mxu0 0
        %2086 = vmatpush.bf16.msra.mxu0 0
        %2087 = vmatpush.bf16.msra.mxu0 0
        %2088 = vmatpush.bf16.msra.mxu0 0
        %2089 = vmatpush.bf16.msra.mxu0 %v2080
        %2090 = vmatmul.bf16.gmra.mxu0 %v2026
        %v2091 = vpop.f32.mrf.mxu0
        %v2092 = vadd.f32 0.0, %v2091
        %v2093 = vpop.f32.mrf.mxu0
        %v2094 = vadd.f32 0.0, %v2093
        %2095 = vmatmul.bf16.gmra.mxu0 %v2029
        %v2096 = vpop.f32.mrf.mxu0
        %v2097 = vadd.f32 0.0, %v2096
        %v2098 = vpop.f32.mrf.mxu0
        %v2099 = vadd.f32 0.0, %v2098
        %2100 = vmatmul.bf16.gmra.mxu0 %v2032
        %v2101 = vpop.f32.mrf.mxu0
        %v2102 = vadd.f32 0.0, %v2101
        %v2103 = vpop.f32.mrf.mxu0
        %v2104 = vadd.f32 0.0, %v2103
        %2105 = vmatmul.bf16.gmra.mxu0 %v2035
        %v2106 = vpop.f32.mrf.mxu0
        %v2107 = vadd.f32 0.0, %v2106
        %v2108 = vpop.f32.mrf.mxu0
        %v2109 = vadd.f32 0.0, %v2108
        %2110 = vmatmul.bf16.gmra.mxu0 %v2038
        %v2111 = vpop.f32.mrf.mxu0
        %v2112 = vadd.f32 0.0, %v2111
        %v2113 = vpop.f32.mrf.mxu0
        %v2114 = vadd.f32 0.0, %v2113
        %2115 = vmatmul.bf16.gmra.mxu0 %v2041
        %v2116 = vpop.f32.mrf.mxu0
        %v2117 = vadd.f32 0.0, %v2116
        %v2118 = vpop.f32.mrf.mxu0
        %v2119 = vadd.f32 0.0, %v2118
        %2120 = vmatmul.bf16.gmra.mxu0 %v2044
        %v2121 = vpop.f32.mrf.mxu0
        %v2122 = vadd.f32 0.0, %v2121
        %v2123 = vpop.f32.mrf.mxu0
        %v2124 = vadd.f32 0.0, %v2123
        %2125 = vmatmul.bf16.gmra.mxu0 %v2047
        %v2126 = vpop.f32.mrf.mxu0
        %v2127 = vadd.f32 0.0, %v2126
        %v2128 = vpop.f32.mrf.mxu0
        %v2129 = vadd.f32 0.0, %v2128
        %2130 = vmatmul.bf16.gmra.mxu0 %v2050
        %v2131 = vpop.f32.mrf.mxu0
        %v2132 = vadd.f32 0.0, %v2131
        %v2133 = vpop.f32.mrf.mxu0
        %v2134 = vadd.f32 0.0, %v2133
        %2135 = vmatmul.bf16.gmra.mxu0 %v2053
        %v2136 = vpop.f32.mrf.mxu0
        %v2137 = vadd.f32 0.0, %v2136
        %v2138 = vpop.f32.mrf.mxu0
        %v2139 = vadd.f32 0.0, %v2138
        %2140 = vmatmul.bf16.gmra.mxu0 %v2056
        %v2141 = vpop.f32.mrf.mxu0
        %v2142 = vadd.f32 0.0, %v2141
        %v2143 = vpop.f32.mrf.mxu0
        %v2144 = vadd.f32 0.0, %v2143
        %2145 = vmatmul.bf16.gmra.mxu0 %v2059
        %v2146 = vpop.f32.mrf.mxu0
        %v2147 = vadd.f32 0.0, %v2146
        %v2148 = vpop.f32.mrf.mxu0
        %v2149 = vadd.f32 0.0, %v2148
        %2150 = vmatmul.bf16.gmra.mxu0 %v2062
        %v2151 = vpop.f32.mrf.mxu0
        %v2152 = vadd.f32 0.0, %v2151
        %v2153 = vpop.f32.mrf.mxu0
        %v2154 = vadd.f32 0.0, %v2153
        %2155 = vmatmul.bf16.gmra.mxu0 %v2065
        %v2156 = vpop.f32.mrf.mxu0
        %v2157 = vadd.f32 0.0, %v2156
        %v2158 = vpop.f32.mrf.mxu0
        %v2159 = vadd.f32 0.0, %v2158
        %2160 = vmatmul.bf16.gmra.mxu0 %v2068
        %v2161 = vpop.f32.mrf.mxu0
        %v2162 = vadd.f32 0.0, %v2161
        %v2163 = vpop.f32.mrf.mxu0
        %v2164 = vadd.f32 0.0, %v2163
        %2165 = vmatmul.bf16.gmra.mxu0 %v2071
        %v2166 = vpop.f32.mrf.mxu0
        %v2167 = vadd.f32 0.0, %v2166
        %v2168 = vpop.f32.mrf.mxu0
        %v2169 = vadd.f32 0.0, %v2168
        %2170 = vmatmul.bf16.gmra.mxu0 %v2074
        %v2171 = vpop.f32.mrf.mxu0
        %v2172 = vadd.f32 0.0, %v2171
        %v2173 = vpop.f32.mrf.mxu0
        %v2174 = vadd.f32 0.0, %v2173
        %2175 = vmatmul.bf16.gmra.mxu0 %v2077
        %v2176 = vpop.f32.mrf.mxu0
        %v2177 = vadd.f32 0.0, %v2176
        %v2178 = vpop.f32.mrf.mxu0
        %v2179 = vadd.f32 0.0, %v2178
        %2180 = vdwg.mxu0
        %v2181 = vadd.f32 %v1945, %v2092
        %v2182 = vadd.f32 %v1946, %v2094
        %v2183 = vadd.f32 %v1947, %v2097
        %v2184 = vadd.f32 %v1948, %v2099
        %v2185 = vadd.f32 %v1949, %v2102
        %v2186 = vadd.f32 %v1950, %v2104
        %v2187 = vadd.f32 %v1951, %v2107
        %v2188 = vadd.f32 %v1952, %v2109
        %v2189 = vadd.f32 %v1953, %v2112
        %v2190 = vadd.f32 %v1954, %v2114
        %v2191 = vadd.f32 %v1955, %v2117
        %v2192 = vadd.f32 %v1956, %v2119
        %v2193 = vadd.f32 %v1957, %v2122
        %v2194 = vadd.f32 %v1958, %v2124
        %v2195 = vadd.f32 %v1959, %v2127
        %v2196 = vadd.f32 %v1960, %v2129
        %v2197 = vadd.f32 %v1961, %v2132
        %v2198 = vadd.f32 %v1962, %v2134
        %v2199 = vadd.f32 %v1963, %v2137
        %v2200 = vadd.f32 %v1964, %v2139
        %v2201 = vadd.f32 %v1965, %v2142
        %v2202 = vadd.f32 %v1966, %v2144
        %v2203 = vadd.f32 %v1967, %v2147
        %v2204 = vadd.f32 %v1968, %v2149
        %v2205 = vadd.f32 %v1969, %v2152
        %v2206 = vadd.f32 %v1970, %v2154
        %v2207 = vadd.f32 %v1971, %v2157
        %v2208 = vadd.f32 %v1972, %v2159
        %v2209 = vadd.f32 %v1973, %v2162
        %v2210 = vadd.f32 %v1974, %v2164
        %v2211 = vadd.f32 %v1975, %v2167
        %v2212 = vadd.f32 %v1976, %v2169
        %v2213 = vadd.f32 %v1977, %v2172
        %v2214 = vadd.f32 %v1978, %v2174
        %v2215 = vadd.f32 %v1979, %v2177
        %v2216 = vadd.f32 %v1980, %v2179
        %v2217 = vld [vmem:[%s298 + $0x10] sm:$0xc]
        %v2218 = vld [vmem:[%s298 + $0x14] sm:$0xf]
        %v2219 = vld [vmem:[%s298 + $0x18] sm:$0xf]
        %v2220 = vld [vmem:[%s298 + $0x1c] sm:$0xf]
        %v2221 = vld [vmem:[%s298 + $0x20] sm:$0xf]
        %v2222 = vld [vmem:[%s298 + $0x24] sm:$0xf]
        %v2223 = vld [vmem:[%s298 + $0x28] sm:$0xf]
        %v2224 = vld [vmem:[%s298 + $0x2c] sm:$0xf]
        %v2225 = vld [vmem:[%s298 + $0x30] sm:$0xf]
        %v2226 = vld [vmem:[%s298 + $0x34] sm:$0xf]
        %v2227 = vld [vmem:[%s298 + $0x38] sm:$0xf]
        %v2228 = vld [vmem:[%s298 + $0x3c] sm:$0xf]
        %v2229 = vld [vmem:[%s298 + $0x40] sm:$0xf]
        %v2230 = vld [vmem:[%s298 + $0x44] sm:$0xf]
        %v2231 = vld [vmem:[%s298 + $0x48] sm:$0xf]
        %v2232 = vld [vmem:[%s298 + $0x4c] sm:$0xf]
        %v2233 = vld [vmem:[%s298 + $0x50] sm:$0xf]
        %v2234 = vld [vmem:[%s298 + $0x54] sm:$0xf]
        %v2235 = vld [vmem:[%s298 + $0x58] sm:$0xf]
        %v2236 = vld [vmem:[%s298 + $0x5c] sm:$0xf]
        %v2237 = vld [vmem:[%s298 + $0x60] sm:$0xf]
        %v2238 = vld [vmem:[%s298 + $0x64] sm:$0xf]
        %v2239 = vld [vmem:[%s298 + $0x68] sm:$0xf]
        %v2240 = vld [vmem:[%s298 + $0x6c] sm:$0xf]
        %v2241 = vld [vmem:[%s298 + $0x70] sm:$0xf]
        %v2242 = vld [vmem:[%s298 + $0x74] sm:$0xf]
        %v2243 = vld [vmem:[%s298 + $0x78] sm:$0xf]
        %v2244 = vld [vmem:[%s298 + $0x7c] sm:$0xf]
        %v2245 = vld [vmem:[%s298 + $0x80] sm:$0xf]
        %v2246 = vld [vmem:[%s298 + $0x84] sm:$0xf]
        %v2247 = vld [vmem:[%s298 + $0x88] sm:$0xf]
        %v2248 = vld [vmem:[%s298 + $0x8c] sm:$0xf]
        %v2249 = vld [vmem:[%s298 + $0x90] sm:$0xf]
        %v2250 = vld [vmem:[%s298 + $0x94] sm:$0xf]
        %v2251 = vld [vmem:[%s298 + $0x98] sm:$0xf]
        %v2252 = vld [vmem:[%s298 + $0x9c] sm:$0xf]
        %v2253 = vld [vmem:[%s298 + $0xa0] sm:$0x1]
        %s2254 = scalar_lea.vmem %s1, 12
        %v2255 = vld [vmem:[%s2254] sm:$0x3]
        %v2293 = vunpack.c.l.b16 %v2217
        %v2294 = vunpack.c.l.b16 %v2218
        %v2295 = vunpack.c.l.b16 %v2219
        %v2296 = vunpack.c.l.b16 %v2220
        %v2297 = vunpack.c.l.b16 %v2221
        %v2298 = vunpack.c.l.b16 %v2222
        %v2299 = vunpack.c.l.b16 %v2223
        %v2300 = vunpack.c.l.b16 %v2224
        %v2301 = vunpack.c.l.b16 %v2225
        %v2302 = vunpack.c.l.b16 %v2226
        %v2303 = vunpack.c.l.b16 %v2227
        %v2304 = vunpack.c.l.b16 %v2228
        %v2305 = vunpack.c.l.b16 %v2229
        %v2306 = vunpack.c.l.b16 %v2230
        %v2307 = vunpack.c.l.b16 %v2231
        %v2308 = vunpack.c.l.b16 %v2232
        %v2309 = vunpack.c.l.b16 %v2233
        %v2310 = vunpack.c.l.b16 %v2234
        %v2311 = vunpack.c.l.b16 %v2235
        %v2312 = vunpack.c.l.b16 %v2236
        %v2313 = vunpack.c.l.b16 %v2237
        %v2314 = vunpack.c.l.b16 %v2238
        %v2315 = vunpack.c.l.b16 %v2239
        %v2316 = vunpack.c.l.b16 %v2240
        %v2317 = vunpack.c.l.b16 %v2241
        %v2318 = vunpack.c.l.b16 %v2242
        %v2319 = vunpack.c.l.b16 %v2243
        %v2320 = vunpack.c.l.b16 %v2244
        %v2321 = vunpack.c.l.b16 %v2245
        %v2322 = vunpack.c.l.b16 %v2246
        %v2323 = vunpack.c.l.b16 %v2247
        %v2324 = vunpack.c.l.b16 %v2248
        %v2325 = vunpack.c.l.b16 %v2249
        %v2326 = vunpack.c.l.b16 %v2250
        %v2327 = vunpack.c.l.b16 %v2251
        %v2328 = vunpack.c.l.b16 %v2252
        %v2329 = vunpack.c.l.b16 %v2253
        %v2330 = vpack.c.b16 %v2294, %v2293
        %v2331 = vpack.c.b16 %v2296, %v2295
        %v2332 = vpack.c.b16 %v2298, %v2297
        %v2333 = vpack.c.b16 %v2300, %v2299
        %v2334 = vpack.c.b16 %v2302, %v2301
        %v2335 = vpack.c.b16 %v2304, %v2303
        %v2336 = vpack.c.b16 %v2306, %v2305
        %v2337 = vpack.c.b16 %v2308, %v2307
        %v2338 = vpack.c.b16 %v2310, %v2309
        %v2339 = vpack.c.b16 %v2312, %v2311
        %v2340 = vpack.c.b16 %v2314, %v2313
        %v2341 = vpack.c.b16 %v2316, %v2315
        %v2342 = vpack.c.b16 %v2318, %v2317
        %v2343 = vpack.c.b16 %v2320, %v2319
        %v2344 = vpack.c.b16 %v2322, %v2321
        %v2345 = vpack.c.b16 %v2324, %v2323
        %v2346 = vpack.c.b16 %v2326, %v2325
        %v2347 = vpack.c.b16 %v2328, %v2327
        %v2348 = vpack.c.b16 %v2329, %v2329
        %v2349 = vrot.slane %v2330, 2
        %v2350 = vrot.slane %v2331, 2
        %v2351 = vsel %vm1987, %v2349, %v2350
        %v2352 = vrot.slane %v2332, 2
        %v2353 = vsel %vm1987, %v2350, %v2352
        %v2354 = vrot.slane %v2333, 2
        %v2355 = vsel %vm1987, %v2352, %v2354
        %v2356 = vrot.slane %v2334, 2
        %v2357 = vsel %vm1987, %v2354, %v2356
        %v2358 = vrot.slane %v2335, 2
        %v2359 = vsel %vm1987, %v2356, %v2358
        %v2360 = vrot.slane %v2336, 2
        %v2361 = vsel %vm1987, %v2358, %v2360
        %v2362 = vrot.slane %v2337, 2
        %v2363 = vsel %vm1987, %v2360, %v2362
        %v2364 = vrot.slane %v2338, 2
        %v2365 = vsel %vm1987, %v2362, %v2364
        %v2366 = vrot.slane %v2339, 2
        %v2367 = vsel %vm1987, %v2364, %v2366
        %v2368 = vrot.slane %v2340, 2
        %v2369 = vsel %vm1987, %v2366, %v2368
        %v2370 = vrot.slane %v2341, 2
        %v2371 = vsel %vm1987, %v2368, %v2370
        %v2372 = vrot.slane %v2342, 2
        %v2373 = vsel %vm1987, %v2370, %v2372
        %v2374 = vrot.slane %v2343, 2
        %v2375 = vsel %vm1987, %v2372, %v2374
        %v2376 = vrot.slane %v2344, 2
        %v2377 = vsel %vm1987, %v2374, %v2376
        %v2378 = vrot.slane %v2345, 2
        %v2379 = vsel %vm1987, %v2376, %v2378
        %v2380 = vrot.slane %v2346, 2
        %v2381 = vsel %vm1987, %v2378, %v2380
        %v2382 = vrot.slane %v2347, 2
        %v2383 = vsel %vm1987, %v2380, %v2382
        %v2384 = vrot.slane %v2348, 2
        %v2385 = vsel %vm1987, %v2382, %v2384
        %v2387 = vsel %vm598, %v2351, 0
        %v2390 = vsel %vm598, %v2353, 0
        %v2393 = vsel %vm598, %v2355, 0
        %v2396 = vsel %vm598, %v2357, 0
        %v2399 = vsel %vm598, %v2359, 0
        %v2402 = vsel %vm598, %v2361, 0
        %v2405 = vsel %vm598, %v2363, 0
        %v2408 = vsel %vm598, %v2365, 0
        %v2411 = vsel %vm598, %v2367, 0
        %v2414 = vsel %vm598, %v2369, 0
        %v2417 = vsel %vm598, %v2371, 0
        %v2420 = vsel %vm598, %v2373, 0
        %v2423 = vsel %vm598, %v2375, 0
        %v2426 = vsel %vm598, %v2377, 0
        %v2429 = vsel %vm598, %v2379, 0
        %v2432 = vsel %vm598, %v2381, 0
        %v2435 = vsel %vm598, %v2383, 0
        %v2438 = vsel %vm598, %v2385, 0
        %v2441 = vand.u32 %v2255, %v656
        %2443 = vmatpush.bf16.msra.mxu0 0
        %2444 = vmatpush.bf16.msra.mxu0 0
        %2445 = vmatpush.bf16.msra.mxu0 0
        %2446 = vmatpush.bf16.msra.mxu0 0
        %2447 = vmatpush.bf16.msra.mxu0 0
        %2448 = vmatpush.bf16.msra.mxu0 0
        %2449 = vmatpush.bf16.msra.mxu0 0
        %2450 = vmatpush.bf16.msra.mxu0 %v2441
        %2451 = vmatmul.bf16.gmra.mxu0 %v2387
        %v2452 = vpop.f32.mrf.mxu0
        %v2453 = vadd.f32 0.0, %v2452
        %v2454 = vpop.f32.mrf.mxu0
        %v2455 = vadd.f32 0.0, %v2454
        %2456 = vmatmul.bf16.gmra.mxu0 %v2390
        %v2457 = vpop.f32.mrf.mxu0
        %v2458 = vadd.f32 0.0, %v2457
        %v2459 = vpop.f32.mrf.mxu0
        %v2460 = vadd.f32 0.0, %v2459
        %2461 = vmatmul.bf16.gmra.mxu0 %v2393
        %v2462 = vpop.f32.mrf.mxu0
        %v2463 = vadd.f32 0.0, %v2462
        %v2464 = vpop.f32.mrf.mxu0
        %v2465 = vadd.f32 0.0, %v2464
        %2466 = vmatmul.bf16.gmra.mxu0 %v2396
        %v2467 = vpop.f32.mrf.mxu0
        %v2468 = vadd.f32 0.0, %v2467
        %v2469 = vpop.f32.mrf.mxu0
        %v2470 = vadd.f32 0.0, %v2469
        %2471 = vmatmul.bf16.gmra.mxu0 %v2399
        %v2472 = vpop.f32.mrf.mxu0
        %v2473 = vadd.f32 0.0, %v2472
        %v2474 = vpop.f32.mrf.mxu0
        %v2475 = vadd.f32 0.0, %v2474
        %2476 = vmatmul.bf16.gmra.mxu0 %v2402
        %v2477 = vpop.f32.mrf.mxu0
        %v2478 = vadd.f32 0.0, %v2477
        %v2479 = vpop.f32.mrf.mxu0
        %v2480 = vadd.f32 0.0, %v2479
        %2481 = vmatmul.bf16.gmra.mxu0 %v2405
        %v2482 = vpop.f32.mrf.mxu0
        %v2483 = vadd.f32 0.0, %v2482
        %v2484 = vpop.f32.mrf.mxu0
        %v2485 = vadd.f32 0.0, %v2484
        %2486 = vmatmul.bf16.gmra.mxu0 %v2408
        %v2487 = vpop.f32.mrf.mxu0
        %v2488 = vadd.f32 0.0, %v2487
        %v2489 = vpop.f32.mrf.mxu0
        %v2490 = vadd.f32 0.0, %v2489
        %2491 = vmatmul.bf16.gmra.mxu0 %v2411
        %v2492 = vpop.f32.mrf.mxu0
        %v2493 = vadd.f32 0.0, %v2492
        %v2494 = vpop.f32.mrf.mxu0
        %v2495 = vadd.f32 0.0, %v2494
        %2496 = vmatmul.bf16.gmra.mxu0 %v2414
        %v2497 = vpop.f32.mrf.mxu0
        %v2498 = vadd.f32 0.0, %v2497
        %v2499 = vpop.f32.mrf.mxu0
        %v2500 = vadd.f32 0.0, %v2499
        %2501 = vmatmul.bf16.gmra.mxu0 %v2417
        %v2502 = vpop.f32.mrf.mxu0
        %v2503 = vadd.f32 0.0, %v2502
        %v2504 = vpop.f32.mrf.mxu0
        %v2505 = vadd.f32 0.0, %v2504
        %2506 = vmatmul.bf16.gmra.mxu0 %v2420
        %v2507 = vpop.f32.mrf.mxu0
        %v2508 = vadd.f32 0.0, %v2507
        %v2509 = vpop.f32.mrf.mxu0
        %v2510 = vadd.f32 0.0, %v2509
        %2511 = vmatmul.bf16.gmra.mxu0 %v2423
        %v2512 = vpop.f32.mrf.mxu0
        %v2513 = vadd.f32 0.0, %v2512
        %v2514 = vpop.f32.mrf.mxu0
        %v2515 = vadd.f32 0.0, %v2514
        %2516 = vmatmul.bf16.gmra.mxu0 %v2426
        %v2517 = vpop.f32.mrf.mxu0
        %v2518 = vadd.f32 0.0, %v2517
        %v2519 = vpop.f32.mrf.mxu0
        %v2520 = vadd.f32 0.0, %v2519
        %2521 = vmatmul.bf16.gmra.mxu0 %v2429
        %v2522 = vpop.f32.mrf.mxu0
        %v2523 = vadd.f32 0.0, %v2522
        %v2524 = vpop.f32.mrf.mxu0
        %v2525 = vadd.f32 0.0, %v2524
        %2526 = vmatmul.bf16.gmra.mxu0 %v2432
        %v2527 = vpop.f32.mrf.mxu0
        %v2528 = vadd.f32 0.0, %v2527
        %v2529 = vpop.f32.mrf.mxu0
        %v2530 = vadd.f32 0.0, %v2529
        %2531 = vmatmul.bf16.gmra.mxu0 %v2435
        %v2532 = vpop.f32.mrf.mxu0
        %v2533 = vadd.f32 0.0, %v2532
        %v2534 = vpop.f32.mrf.mxu0
        %v2535 = vadd.f32 0.0, %v2534
        %2536 = vmatmul.bf16.gmra.mxu0 %v2438
        %v2537 = vpop.f32.mrf.mxu0
        %v2538 = vadd.f32 0.0, %v2537
        %v2539 = vpop.f32.mrf.mxu0
        %v2540 = vadd.f32 0.0, %v2539
        %2541 = vdwg.mxu0
        %v2542 = vadd.f32 %v2181, %v2453
        %v2543 = vadd.f32 %v2182, %v2455
        %v2544 = vadd.f32 %v2183, %v2458
        %v2545 = vadd.f32 %v2184, %v2460
        %v2546 = vadd.f32 %v2185, %v2463
        %v2547 = vadd.f32 %v2186, %v2465
        %v2548 = vadd.f32 %v2187, %v2468
        %v2549 = vadd.f32 %v2188, %v2470
        %v2550 = vadd.f32 %v2189, %v2473
        %v2551 = vadd.f32 %v2190, %v2475
        %v2552 = vadd.f32 %v2191, %v2478
        %v2553 = vadd.f32 %v2192, %v2480
        %v2554 = vadd.f32 %v2193, %v2483
        %v2555 = vadd.f32 %v2194, %v2485
        %v2556 = vadd.f32 %v2195, %v2488
        %v2557 = vadd.f32 %v2196, %v2490
        %v2558 = vadd.f32 %v2197, %v2493
        %v2559 = vadd.f32 %v2198, %v2495
        %v2560 = vadd.f32 %v2199, %v2498
        %v2561 = vadd.f32 %v2200, %v2500
        %v2562 = vadd.f32 %v2201, %v2503
        %v2563 = vadd.f32 %v2202, %v2505
        %v2564 = vadd.f32 %v2203, %v2508
        %v2565 = vadd.f32 %v2204, %v2510
        %v2566 = vadd.f32 %v2205, %v2513
        %v2567 = vadd.f32 %v2206, %v2515
        %v2568 = vadd.f32 %v2207, %v2518
        %v2569 = vadd.f32 %v2208, %v2520
        %v2570 = vadd.f32 %v2209, %v2523
        %v2571 = vadd.f32 %v2210, %v2525
        %v2572 = vadd.f32 %v2211, %v2528
        %v2573 = vadd.f32 %v2212, %v2530
        %v2574 = vadd.f32 %v2213, %v2533
        %v2575 = vadd.f32 %v2214, %v2535
        %v2576 = vadd.f32 %v2215, %v2538
        %v2577 = vadd.f32 %v2216, %v2540
        %v2578 = vld [vmem:[%s298 + $0xa0] sm:$0x3]
        %s2579 = scalar_lea.vmem %s1, 14
        %v2580 = vld [vmem:[%s2579] sm:$0x3]
        %v2582 = vunpack.c.l.b16 %v2578
        %v2583 = vpack.c.b16 %v2582, %v2582
        %vm2584 = vsmask.f32 5376
        %v2586 = vshrl.u32 %v2330, 16
        %v2588 = vrot.slane %v2586, 2
        %v2589 = vshll.u32 %v2330, 16
        %v2591 = vrot.slane %v2589, 3
        %v2592 = vor.u32 %v2588, %v2591
        %v2594 = vshrl.u32 %v2331, 16
        %v2596 = vrot.slane %v2594, 2
        %v2597 = vshll.u32 %v2331, 16
        %v2599 = vrot.slane %v2597, 3
        %v2600 = vor.u32 %v2596, %v2599
        %v2601 = vsel %vm2584, %v2592, %v2600
        %v2603 = vshrl.u32 %v2332, 16
        %v2605 = vrot.slane %v2603, 2
        %v2606 = vshll.u32 %v2332, 16
        %v2608 = vrot.slane %v2606, 3
        %v2609 = vor.u32 %v2605, %v2608
        %v2610 = vsel %vm2584, %v2600, %v2609
        %v2612 = vshrl.u32 %v2333, 16
        %v2614 = vrot.slane %v2612, 2
        %v2615 = vshll.u32 %v2333, 16
        %v2617 = vrot.slane %v2615, 3
        %v2618 = vor.u32 %v2614, %v2617
        %v2619 = vsel %vm2584, %v2609, %v2618
        %v2621 = vshrl.u32 %v2334, 16
        %v2623 = vrot.slane %v2621, 2
        %v2624 = vshll.u32 %v2334, 16
        %v2626 = vrot.slane %v2624, 3
        %v2627 = vor.u32 %v2623, %v2626
        %v2628 = vsel %vm2584, %v2618, %v2627
        %v2630 = vshrl.u32 %v2335, 16
        %v2632 = vrot.slane %v2630, 2
        %v2633 = vshll.u32 %v2335, 16
        %v2635 = vrot.slane %v2633, 3
        %v2636 = vor.u32 %v2632, %v2635
        %v2637 = vsel %vm2584, %v2627, %v2636
        %v2639 = vshrl.u32 %v2336, 16
        %v2641 = vrot.slane %v2639, 2
        %v2642 = vshll.u32 %v2336, 16
        %v2644 = vrot.slane %v2642, 3
        %v2645 = vor.u32 %v2641, %v2644
        %v2646 = vsel %vm2584, %v2636, %v2645
        %v2648 = vshrl.u32 %v2337, 16
        %v2650 = vrot.slane %v2648, 2
        %v2651 = vshll.u32 %v2337, 16
        %v2653 = vrot.slane %v2651, 3
        %v2654 = vor.u32 %v2650, %v2653
        %v2655 = vsel %vm2584, %v2645, %v2654
        %v2657 = vshrl.u32 %v2338, 16
        %v2659 = vrot.slane %v2657, 2
        %v2660 = vshll.u32 %v2338, 16
        %v2662 = vrot.slane %v2660, 3
        %v2663 = vor.u32 %v2659, %v2662
        %v2664 = vsel %vm2584, %v2654, %v2663
        %v2666 = vshrl.u32 %v2339, 16
        %v2668 = vrot.slane %v2666, 2
        %v2669 = vshll.u32 %v2339, 16
        %v2671 = vrot.slane %v2669, 3
        %v2672 = vor.u32 %v2668, %v2671
        %v2673 = vsel %vm2584, %v2663, %v2672
        %v2675 = vshrl.u32 %v2340, 16
        %v2677 = vrot.slane %v2675, 2
        %v2678 = vshll.u32 %v2340, 16
        %v2680 = vrot.slane %v2678, 3
        %v2681 = vor.u32 %v2677, %v2680
        %v2682 = vsel %vm2584, %v2672, %v2681
        %v2684 = vshrl.u32 %v2341, 16
        %v2686 = vrot.slane %v2684, 2
        %v2687 = vshll.u32 %v2341, 16
        %v2689 = vrot.slane %v2687, 3
        %v2690 = vor.u32 %v2686, %v2689
        %v2691 = vsel %vm2584, %v2681, %v2690
        %v2693 = vshrl.u32 %v2342, 16
        %v2695 = vrot.slane %v2693, 2
        %v2696 = vshll.u32 %v2342, 16
        %v2698 = vrot.slane %v2696, 3
        %v2699 = vor.u32 %v2695, %v2698
        %v2700 = vsel %vm2584, %v2690, %v2699
        %v2702 = vshrl.u32 %v2343, 16
        %v2704 = vrot.slane %v2702, 2
        %v2705 = vshll.u32 %v2343, 16
        %v2707 = vrot.slane %v2705, 3
        %v2708 = vor.u32 %v2704, %v2707
        %v2709 = vsel %vm2584, %v2699, %v2708
        %v2711 = vshrl.u32 %v2344, 16
        %v2713 = vrot.slane %v2711, 2
        %v2714 = vshll.u32 %v2344, 16
        %v2716 = vrot.slane %v2714, 3
        %v2717 = vor.u32 %v2713, %v2716
        %v2718 = vsel %vm2584, %v2708, %v2717
        %v2720 = vshrl.u32 %v2345, 16
        %v2722 = vrot.slane %v2720, 2
        %v2723 = vshll.u32 %v2345, 16
        %v2725 = vrot.slane %v2723, 3
        %v2726 = vor.u32 %v2722, %v2725
        %v2727 = vsel %vm2584, %v2717, %v2726
        %v2729 = vshrl.u32 %v2346, 16
        %v2731 = vrot.slane %v2729, 2
        %v2732 = vshll.u32 %v2346, 16
        %v2734 = vrot.slane %v2732, 3
        %v2735 = vor.u32 %v2731, %v2734
        %v2736 = vsel %vm2584, %v2726, %v2735
        %v2738 = vshrl.u32 %v2347, 16
        %v2740 = vrot.slane %v2738, 2
        %v2741 = vshll.u32 %v2347, 16
        %v2743 = vrot.slane %v2741, 3
        %v2744 = vor.u32 %v2740, %v2743
        %v2745 = vsel %vm2584, %v2735, %v2744
        %v2747 = vshrl.u32 %v2583, 16
        %v2749 = vrot.slane %v2747, 2
        %v2750 = vshll.u32 %v2583, 16
        %v2752 = vrot.slane %v2750, 3
        %v2753 = vor.u32 %v2749, %v2752
        %v2754 = vsel %vm2584, %v2744, %v2753
        %v2756 = vsel %vm598, %v2601, 0
        %v2759 = vsel %vm598, %v2610, 0
        %v2762 = vsel %vm598, %v2619, 0
        %v2765 = vsel %vm598, %v2628, 0
        %v2768 = vsel %vm598, %v2637, 0
        %v2771 = vsel %vm598, %v2646, 0
        %v2774 = vsel %vm598, %v2655, 0
        %v2777 = vsel %vm598, %v2664, 0
        %v2780 = vsel %vm598, %v2673, 0
        %v2783 = vsel %vm598, %v2682, 0
        %v2786 = vsel %vm598, %v2691, 0
        %v2789 = vsel %vm598, %v2700, 0
        %v2792 = vsel %vm598, %v2709, 0
        %v2795 = vsel %vm598, %v2718, 0
        %v2798 = vsel %vm598, %v2727, 0
        %v2801 = vsel %vm598, %v2736, 0
        %v2804 = vsel %vm598, %v2745, 0
        %v2807 = vsel %vm598, %v2754, 0
        %v2810 = vand.u32 %v2580, %v656
        %2812 = vmatpush.bf16.msra.mxu0 0
        %2813 = vmatpush.bf16.msra.mxu0 0
        %2814 = vmatpush.bf16.msra.mxu0 0
        %2815 = vmatpush.bf16.msra.mxu0 0
        %2816 = vmatpush.bf16.msra.mxu0 0
        %2817 = vmatpush.bf16.msra.mxu0 0
        %2818 = vmatpush.bf16.msra.mxu0 0
        %2819 = vmatpush.bf16.msra.mxu0 %v2810
        %2820 = vmatmul.bf16.gmra.mxu0 %v2756
        %v2821 = vpop.f32.mrf.mxu0
        %v2822 = vadd.f32 0.0, %v2821
        %v2823 = vpop.f32.mrf.mxu0
        %v2824 = vadd.f32 0.0, %v2823
        %2825 = vmatmul.bf16.gmra.mxu0 %v2759
        %v2826 = vpop.f32.mrf.mxu0
        %v2827 = vadd.f32 0.0, %v2826
        %v2828 = vpop.f32.mrf.mxu0
        %v2829 = vadd.f32 0.0, %v2828
        %2830 = vmatmul.bf16.gmra.mxu0 %v2762
        %v2831 = vpop.f32.mrf.mxu0
        %v2832 = vadd.f32 0.0, %v2831
        %v2833 = vpop.f32.mrf.mxu0
        %v2834 = vadd.f32 0.0, %v2833
        %2835 = vmatmul.bf16.gmra.mxu0 %v2765
        %v2836 = vpop.f32.mrf.mxu0
        %v2837 = vadd.f32 0.0, %v2836
        %v2838 = vpop.f32.mrf.mxu0
        %v2839 = vadd.f32 0.0, %v2838
        %2840 = vmatmul.bf16.gmra.mxu0 %v2768
        %v2841 = vpop.f32.mrf.mxu0
        %v2842 = vadd.f32 0.0, %v2841
        %v2843 = vpop.f32.mrf.mxu0
        %v2844 = vadd.f32 0.0, %v2843
        %2845 = vmatmul.bf16.gmra.mxu0 %v2771
        %v2846 = vpop.f32.mrf.mxu0
        %v2847 = vadd.f32 0.0, %v2846
        %v2848 = vpop.f32.mrf.mxu0
        %v2849 = vadd.f32 0.0, %v2848
        %2850 = vmatmul.bf16.gmra.mxu0 %v2774
        %v2851 = vpop.f32.mrf.mxu0
        %v2852 = vadd.f32 0.0, %v2851
        %v2853 = vpop.f32.mrf.mxu0
        %v2854 = vadd.f32 0.0, %v2853
        %2855 = vmatmul.bf16.gmra.mxu0 %v2777
        %v2856 = vpop.f32.mrf.mxu0
        %v2857 = vadd.f32 0.0, %v2856
        %v2858 = vpop.f32.mrf.mxu0
        %v2859 = vadd.f32 0.0, %v2858
        %2860 = vmatmul.bf16.gmra.mxu0 %v2780
        %v2861 = vpop.f32.mrf.mxu0
        %v2862 = vadd.f32 0.0, %v2861
        %v2863 = vpop.f32.mrf.mxu0
        %v2864 = vadd.f32 0.0, %v2863
        %2865 = vmatmul.bf16.gmra.mxu0 %v2783
        %v2866 = vpop.f32.mrf.mxu0
        %v2867 = vadd.f32 0.0, %v2866
        %v2868 = vpop.f32.mrf.mxu0
        %v2869 = vadd.f32 0.0, %v2868
        %2870 = vmatmul.bf16.gmra.mxu0 %v2786
        %v2871 = vpop.f32.mrf.mxu0
        %v2872 = vadd.f32 0.0, %v2871
        %v2873 = vpop.f32.mrf.mxu0
        %v2874 = vadd.f32 0.0, %v2873
        %2875 = vmatmul.bf16.gmra.mxu0 %v2789
        %v2876 = vpop.f32.mrf.mxu0
        %v2877 = vadd.f32 0.0, %v2876
        %v2878 = vpop.f32.mrf.mxu0
        %v2879 = vadd.f32 0.0, %v2878
        %2880 = vmatmul.bf16.gmra.mxu0 %v2792
        %v2881 = vpop.f32.mrf.mxu0
        %v2882 = vadd.f32 0.0, %v2881
        %v2883 = vpop.f32.mrf.mxu0
        %v2884 = vadd.f32 0.0, %v2883
        %2885 = vmatmul.bf16.gmra.mxu0 %v2795
        %v2886 = vpop.f32.mrf.mxu0
        %v2887 = vadd.f32 0.0, %v2886
        %v2888 = vpop.f32.mrf.mxu0
        %v2889 = vadd.f32 0.0, %v2888
        %2890 = vmatmul.bf16.gmra.mxu0 %v2798
        %v2891 = vpop.f32.mrf.mxu0
        %v2892 = vadd.f32 0.0, %v2891
        %v2893 = vpop.f32.mrf.mxu0
        %v2894 = vadd.f32 0.0, %v2893
        %2895 = vmatmul.bf16.gmra.mxu0 %v2801
        %v2896 = vpop.f32.mrf.mxu0
        %v2897 = vadd.f32 0.0, %v2896
        %v2898 = vpop.f32.mrf.mxu0
        %v2899 = vadd.f32 0.0, %v2898
        %2900 = vmatmul.bf16.gmra.mxu0 %v2804
        %v2901 = vpop.f32.mrf.mxu0
        %v2902 = vadd.f32 0.0, %v2901
        %v2903 = vpop.f32.mrf.mxu0
        %v2904 = vadd.f32 0.0, %v2903
        %2905 = vmatmul.bf16.gmra.mxu0 %v2807
        %v2906 = vpop.f32.mrf.mxu0
        %v2907 = vadd.f32 0.0, %v2906
        %v2908 = vpop.f32.mrf.mxu0
        %v2909 = vadd.f32 0.0, %v2908
        %2910 = vdwg.mxu0
        %v2911 = vadd.f32 %v2542, %v2822
        %v2912 = vadd.f32 %v2543, %v2824
        %v2913 = vadd.f32 %v2544, %v2827
        %v2914 = vadd.f32 %v2545, %v2829
        %v2915 = vadd.f32 %v2546, %v2832
        %v2916 = vadd.f32 %v2547, %v2834
        %v2917 = vadd.f32 %v2548, %v2837
        %v2918 = vadd.f32 %v2549, %v2839
        %v2919 = vadd.f32 %v2550, %v2842
        %v2920 = vadd.f32 %v2551, %v2844
        %v2921 = vadd.f32 %v2552, %v2847
        %v2922 = vadd.f32 %v2553, %v2849
        %v2923 = vadd.f32 %v2554, %v2852
        %v2924 = vadd.f32 %v2555, %v2854
        %v2925 = vadd.f32 %v2556, %v2857
        %v2926 = vadd.f32 %v2557, %v2859
        %v2927 = vadd.f32 %v2558, %v2862
        %v2928 = vadd.f32 %v2559, %v2864
        %v2929 = vadd.f32 %v2560, %v2867
        %v2930 = vadd.f32 %v2561, %v2869
        %v2931 = vadd.f32 %v2562, %v2872
        %v2932 = vadd.f32 %v2563, %v2874
        %v2933 = vadd.f32 %v2564, %v2877
        %v2934 = vadd.f32 %v2565, %v2879
        %v2935 = vadd.f32 %v2566, %v2882
        %v2936 = vadd.f32 %v2567, %v2884
        %v2937 = vadd.f32 %v2568, %v2887
        %v2938 = vadd.f32 %v2569, %v2889
        %v2939 = vadd.f32 %v2570, %v2892
        %v2940 = vadd.f32 %v2571, %v2894
        %v2941 = vadd.f32 %v2572, %v2897
        %v2942 = vadd.f32 %v2573, %v2899
        %v2943 = vadd.f32 %v2574, %v2902
        %v2944 = vadd.f32 %v2575, %v2904
        %v2945 = vadd.f32 %v2576, %v2907
        %v2946 = vadd.f32 %v2577, %v2909
        %v2947 = vld [vmem:[%s298 + $0x10] sm:$0x8]
        %s2948 = scalar_lea.vmem %s1, 16
        %v2949 = vld [vmem:[%s2948] sm:$0x3]
        %v2951 = vunpack.c.l.b16 %v2947
        %v2952 = vpack.c.b16 %v2294, %v2951
        %vm2953 = vcmask 1044480
        %v2954 = vrot.slane %v2952, 3
        %v2955 = vrot.slane %v2331, 3
        %v2956 = vsel %vm2953, %v2954, %v2955
        %v2957 = vrot.slane %v2332, 3
        %v2958 = vsel %vm2953, %v2955, %v2957
        %v2959 = vrot.slane %v2333, 3
        %v2960 = vsel %vm2953, %v2957, %v2959
        %v2961 = vrot.slane %v2334, 3
        %v2962 = vsel %vm2953, %v2959, %v2961
        %v2963 = vrot.slane %v2335, 3
        %v2964 = vsel %vm2953, %v2961, %v2963
        %v2965 = vrot.slane %v2336, 3
        %v2966 = vsel %vm2953, %v2963, %v2965
        %v2967 = vrot.slane %v2337, 3
        %v2968 = vsel %vm2953, %v2965, %v2967
        %v2969 = vrot.slane %v2338, 3
        %v2970 = vsel %vm2953, %v2967, %v2969
        %v2971 = vrot.slane %v2339, 3
        %v2972 = vsel %vm2953, %v2969, %v2971
        %v2973 = vrot.slane %v2340, 3
        %v2974 = vsel %vm2953, %v2971, %v2973
        %v2975 = vrot.slane %v2341, 3
        %v2976 = vsel %vm2953, %v2973, %v2975
        %v2977 = vrot.slane %v2342, 3
        %v2978 = vsel %vm2953, %v2975, %v2977
        %v2979 = vrot.slane %v2343, 3
        %v2980 = vsel %vm2953, %v2977, %v2979
        %v2981 = vrot.slane %v2344, 3
        %v2982 = vsel %vm2953, %v2979, %v2981
        %v2983 = vrot.slane %v2345, 3
        %v2984 = vsel %vm2953, %v2981, %v2983
        %v2985 = vrot.slane %v2346, 3
        %v2986 = vsel %vm2953, %v2983, %v2985
        %v2987 = vrot.slane %v2347, 3
        %v2988 = vsel %vm2953, %v2985, %v2987
        %v2989 = vrot.slane %v2583, 3
        %v2990 = vsel %vm2953, %v2987, %v2989
        %v2992 = vsel %vm598, %v2956, 0
        %v2995 = vsel %vm598, %v2958, 0
        %v2998 = vsel %vm598, %v2960, 0
        %v3001 = vsel %vm598, %v2962, 0
        %v3004 = vsel %vm598, %v2964, 0
        %v3007 = vsel %vm598, %v2966, 0
        %v3010 = vsel %vm598, %v2968, 0
        %v3013 = vsel %vm598, %v2970, 0
        %v3016 = vsel %vm598, %v2972, 0
        %v3019 = vsel %vm598, %v2974, 0
        %v3022 = vsel %vm598, %v2976, 0
        %v3025 = vsel %vm598, %v2978, 0
        %v3028 = vsel %vm598, %v2980, 0
        %v3031 = vsel %vm598, %v2982, 0
        %v3034 = vsel %vm598, %v2984, 0
        %v3037 = vsel %vm598, %v2986, 0
        %v3040 = vsel %vm598, %v2988, 0
        %v3043 = vsel %vm598, %v2990, 0
        %v3046 = vand.u32 %v2949, %v656
        %3048 = vmatpush.bf16.msra.mxu0 0
        %3049 = vmatpush.bf16.msra.mxu0 0
        %3050 = vmatpush.bf16.msra.mxu0 0
        %3051 = vmatpush.bf16.msra.mxu0 0
        %3052 = vmatpush.bf16.msra.mxu0 0
        %3053 = vmatpush.bf16.msra.mxu0 0
        %3054 = vmatpush.bf16.msra.mxu0 0
        %3055 = vmatpush.bf16.msra.mxu0 %v3046
        %3056 = vmatmul.bf16.gmra.mxu0 %v2992
        %v3057 = vpop.f32.mrf.mxu0
        %v3058 = vadd.f32 0.0, %v3057
        %v3059 = vpop.f32.mrf.mxu0
        %v3060 = vadd.f32 0.0, %v3059
        %3061 = vmatmul.bf16.gmra.mxu0 %v2995
        %v3062 = vpop.f32.mrf.mxu0
        %v3063 = vadd.f32 0.0, %v3062
        %v3064 = vpop.f32.mrf.mxu0
        %v3065 = vadd.f32 0.0, %v3064
        %3066 = vmatmul.bf16.gmra.mxu0 %v2998
        %v3067 = vpop.f32.mrf.mxu0
        %v3068 = vadd.f32 0.0, %v3067
        %v3069 = vpop.f32.mrf.mxu0
        %v3070 = vadd.f32 0.0, %v3069
        %3071 = vmatmul.bf16.gmra.mxu0 %v3001
        %v3072 = vpop.f32.mrf.mxu0
        %v3073 = vadd.f32 0.0, %v3072
        %v3074 = vpop.f32.mrf.mxu0
        %v3075 = vadd.f32 0.0, %v3074
        %3076 = vmatmul.bf16.gmra.mxu0 %v3004
        %v3077 = vpop.f32.mrf.mxu0
        %v3078 = vadd.f32 0.0, %v3077
        %v3079 = vpop.f32.mrf.mxu0
        %v3080 = vadd.f32 0.0, %v3079
        %3081 = vmatmul.bf16.gmra.mxu0 %v3007
        %v3082 = vpop.f32.mrf.mxu0
        %v3083 = vadd.f32 0.0, %v3082
        %v3084 = vpop.f32.mrf.mxu0
        %v3085 = vadd.f32 0.0, %v3084
        %3086 = vmatmul.bf16.gmra.mxu0 %v3010
        %v3087 = vpop.f32.mrf.mxu0
        %v3088 = vadd.f32 0.0, %v3087
        %v3089 = vpop.f32.mrf.mxu0
        %v3090 = vadd.f32 0.0, %v3089
        %3091 = vmatmul.bf16.gmra.mxu0 %v3013
        %v3092 = vpop.f32.mrf.mxu0
        %v3093 = vadd.f32 0.0, %v3092
        %v3094 = vpop.f32.mrf.mxu0
        %v3095 = vadd.f32 0.0, %v3094
        %3096 = vmatmul.bf16.gmra.mxu0 %v3016
        %v3097 = vpop.f32.mrf.mxu0
        %v3098 = vadd.f32 0.0, %v3097
        %v3099 = vpop.f32.mrf.mxu0
        %v3100 = vadd.f32 0.0, %v3099
        %3101 = vmatmul.bf16.gmra.mxu0 %v3019
        %v3102 = vpop.f32.mrf.mxu0
        %v3103 = vadd.f32 0.0, %v3102
        %v3104 = vpop.f32.mrf.mxu0
        %v3105 = vadd.f32 0.0, %v3104
        %3106 = vmatmul.bf16.gmra.mxu0 %v3022
        %v3107 = vpop.f32.mrf.mxu0
        %v3108 = vadd.f32 0.0, %v3107
        %v3109 = vpop.f32.mrf.mxu0
        %v3110 = vadd.f32 0.0, %v3109
        %3111 = vmatmul.bf16.gmra.mxu0 %v3025
        %v3112 = vpop.f32.mrf.mxu0
        %v3113 = vadd.f32 0.0, %v3112
        %v3114 = vpop.f32.mrf.mxu0
        %v3115 = vadd.f32 0.0, %v3114
        %3116 = vmatmul.bf16.gmra.mxu0 %v3028
        %v3117 = vpop.f32.mrf.mxu0
        %v3118 = vadd.f32 0.0, %v3117
        %v3119 = vpop.f32.mrf.mxu0
        %v3120 = vadd.f32 0.0, %v3119
        %3121 = vmatmul.bf16.gmra.mxu0 %v3031
        %v3122 = vpop.f32.mrf.mxu0
        %v3123 = vadd.f32 0.0, %v3122
        %v3124 = vpop.f32.mrf.mxu0
        %v3125 = vadd.f32 0.0, %v3124
        %3126 = vmatmul.bf16.gmra.mxu0 %v3034
        %v3127 = vpop.f32.mrf.mxu0
        %v3128 = vadd.f32 0.0, %v3127
        %v3129 = vpop.f32.mrf.mxu0
        %v3130 = vadd.f32 0.0, %v3129
        %3131 = vmatmul.bf16.gmra.mxu0 %v3037
        %v3132 = vpop.f32.mrf.mxu0
        %v3133 = vadd.f32 0.0, %v3132
        %v3134 = vpop.f32.mrf.mxu0
        %v3135 = vadd.f32 0.0, %v3134
        %3136 = vmatmul.bf16.gmra.mxu0 %v3040
        %v3137 = vpop.f32.mrf.mxu0
        %v3138 = vadd.f32 0.0, %v3137
        %v3139 = vpop.f32.mrf.mxu0
        %v3140 = vadd.f32 0.0, %v3139
        %3141 = vmatmul.bf16.gmra.mxu0 %v3043
        %v3142 = vpop.f32.mrf.mxu0
        %v3143 = vadd.f32 0.0, %v3142
        %v3144 = vpop.f32.mrf.mxu0
        %v3145 = vadd.f32 0.0, %v3144
        %3146 = vdwg.mxu0
        %v3147 = vadd.f32 %v2911, %v3058
        %v3148 = vadd.f32 %v2912, %v3060
        %v3149 = vadd.f32 %v2913, %v3063
        %v3150 = vadd.f32 %v2914, %v3065
        %v3151 = vadd.f32 %v2915, %v3068
        %v3152 = vadd.f32 %v2916, %v3070
        %v3153 = vadd.f32 %v2917, %v3073
        %v3154 = vadd.f32 %v2918, %v3075
        %v3155 = vadd.f32 %v2919, %v3078
        %v3156 = vadd.f32 %v2920, %v3080
        %v3157 = vadd.f32 %v2921, %v3083
        %v3158 = vadd.f32 %v2922, %v3085
        %v3159 = vadd.f32 %v2923, %v3088
        %v3160 = vadd.f32 %v2924, %v3090
        %v3161 = vadd.f32 %v2925, %v3093
        %v3162 = vadd.f32 %v2926, %v3095
        %v3163 = vadd.f32 %v2927, %v3098
        %v3164 = vadd.f32 %v2928, %v3100
        %v3165 = vadd.f32 %v2929, %v3103
        %v3166 = vadd.f32 %v2930, %v3105
        %v3167 = vadd.f32 %v2931, %v3108
        %v3168 = vadd.f32 %v2932, %v3110
        %v3169 = vadd.f32 %v2933, %v3113
        %v3170 = vadd.f32 %v2934, %v3115
        %v3171 = vadd.f32 %v2935, %v3118
        %v3172 = vadd.f32 %v2936, %v3120
        %v3173 = vadd.f32 %v2937, %v3123
        %v3174 = vadd.f32 %v2938, %v3125
        %v3175 = vadd.f32 %v2939, %v3128
        %v3176 = vadd.f32 %v2940, %v3130
        %v3177 = vadd.f32 %v2941, %v3133
        %v3178 = vadd.f32 %v2942, %v3135
        %v3179 = vadd.f32 %v2943, %v3138
        %v3180 = vadd.f32 %v2944, %v3140
        %v3181 = vadd.f32 %v2945, %v3143
        %v3182 = vadd.f32 %v2946, %v3145
        %v3183 = vmul.f32 %v3147, 0.09
        %v3184 = vmul.f32 %v3148, 0.09
        %v3185 = vmul.f32 %v3149, 0.09
        %v3186 = vmul.f32 %v3150, 0.09
        %v3187 = vmul.f32 %v3151, 0.09
        %v3188 = vmul.f32 %v3152, 0.09
        %v3189 = vmul.f32 %v3153, 0.09
        %v3190 = vmul.f32 %v3154, 0.09
        %v3191 = vmul.f32 %v3155, 0.09
        %v3192 = vmul.f32 %v3156, 0.09
        %v3193 = vmul.f32 %v3157, 0.09
        %v3194 = vmul.f32 %v3158, 0.09
        %v3195 = vmul.f32 %v3159, 0.09
        %v3196 = vmul.f32 %v3160, 0.09
        %v3197 = vmul.f32 %v3161, 0.09
        %v3198 = vmul.f32 %v3162, 0.09
        %v3199 = vmul.f32 %v3163, 0.09
        %v3200 = vmul.f32 %v3164, 0.09
        %v3201 = vmul.f32 %v3165, 0.09
        %v3202 = vmul.f32 %v3166, 0.09
        %v3203 = vmul.f32 %v3167, 0.09
        %v3204 = vmul.f32 %v3168, 0.09
        %v3205 = vmul.f32 %v3169, 0.09
        %v3206 = vmul.f32 %v3170, 0.09
        %v3207 = vmul.f32 %v3171, 0.09
        %v3208 = vmul.f32 %v3172, 0.09
        %v3209 = vmul.f32 %v3173, 0.09
        %v3210 = vmul.f32 %v3174, 0.09
        %v3211 = vmul.f32 %v3175, 0.09
        %v3212 = vmul.f32 %v3176, 0.09
        %v3213 = vmul.f32 %v3177, 0.09
        %v3214 = vmul.f32 %v3178, 0.09
        %v3215 = vmul.f32 %v3179, 0.09
        %v3216 = vmul.f32 %v3180, 0.09
        %v3217 = vmul.f32 %v3181, 0.09
        %v3218 = vmul.f32 %v3182, 0.09
        %v3219 = vadd.f32 %v3183, 0.5
        %v3220 = vadd.f32 %v3184, 0.5
        %v3221 = vadd.f32 %v3185, 0.5
        %v3222 = vadd.f32 %v3186, 0.5
        %v3223 = vadd.f32 %v3187, 0.5
        %v3224 = vadd.f32 %v3188, 0.5
        %v3225 = vadd.f32 %v3189, 0.5
        %v3226 = vadd.f32 %v3190, 0.5
        %v3227 = vadd.f32 %v3191, 0.5
        %v3228 = vadd.f32 %v3192, 0.5
        %v3229 = vadd.f32 %v3193, 0.5
        %v3230 = vadd.f32 %v3194, 0.5
        %v3231 = vadd.f32 %v3195, 0.5
        %v3232 = vadd.f32 %v3196, 0.5
        %v3233 = vadd.f32 %v3197, 0.5
        %v3234 = vadd.f32 %v3198, 0.5
        %v3235 = vadd.f32 %v3199, 0.5
        %v3236 = vadd.f32 %v3200, 0.5
        %v3237 = vadd.f32 %v3201, 0.5
        %v3238 = vadd.f32 %v3202, 0.5
        %v3239 = vadd.f32 %v3203, 0.5
        %v3240 = vadd.f32 %v3204, 0.5
        %v3241 = vadd.f32 %v3205, 0.5
        %v3242 = vadd.f32 %v3206, 0.5
        %v3243 = vadd.f32 %v3207, 0.5
        %v3244 = vadd.f32 %v3208, 0.5
        %v3245 = vadd.f32 %v3209, 0.5
        %v3246 = vadd.f32 %v3210, 0.5
        %v3247 = vadd.f32 %v3211, 0.5
        %v3248 = vadd.f32 %v3212, 0.5
        %v3249 = vadd.f32 %v3213, 0.5
        %v3250 = vadd.f32 %v3214, 0.5
        %v3251 = vadd.f32 %v3215, 0.5
        %v3252 = vadd.f32 %v3216, 0.5
        %v3253 = vadd.f32 %v3217, 0.5
        %v3254 = vadd.f32 %v3218, 0.5
        %v3255 = vmul.f32 %v3147, %v3219
        %v3256 = vmul.f32 %v3148, %v3220
        %v3257 = vmul.f32 %v3149, %v3221
        %v3258 = vmul.f32 %v3150, %v3222
        %v3259 = vmul.f32 %v3151, %v3223
        %v3260 = vmul.f32 %v3152, %v3224
        %v3261 = vmul.f32 %v3153, %v3225
        %v3262 = vmul.f32 %v3154, %v3226
        %v3263 = vmul.f32 %v3155, %v3227
        %v3264 = vmul.f32 %v3156, %v3228
        %v3265 = vmul.f32 %v3157, %v3229
        %v3266 = vmul.f32 %v3158, %v3230
        %v3267 = vmul.f32 %v3159, %v3231
        %v3268 = vmul.f32 %v3160, %v3232
        %v3269 = vmul.f32 %v3161, %v3233
        %v3270 = vmul.f32 %v3162, %v3234
        %v3271 = vmul.f32 %v3163, %v3235
        %v3272 = vmul.f32 %v3164, %v3236
        %v3273 = vmul.f32 %v3165, %v3237
        %v3274 = vmul.f32 %v3166, %v3238
        %v3275 = vmul.f32 %v3167, %v3239
        %v3276 = vmul.f32 %v3168, %v3240
        %v3277 = vmul.f32 %v3169, %v3241
        %v3278 = vmul.f32 %v3170, %v3242
        %v3279 = vmul.f32 %v3171, %v3243
        %v3280 = vmul.f32 %v3172, %v3244
        %v3281 = vmul.f32 %v3173, %v3245
        %v3282 = vmul.f32 %v3174, %v3246
        %v3283 = vmul.f32 %v3175, %v3247
        %v3284 = vmul.f32 %v3176, %v3248
        %v3285 = vmul.f32 %v3177, %v3249
        %v3286 = vmul.f32 %v3178, %v3250
        %v3287 = vmul.f32 %v3179, %v3251
        %v3288 = vmul.f32 %v3180, %v3252
        %v3289 = vmul.f32 %v3181, %v3253
        %v3290 = vmul.f32 %v3182, %v3254
        %v3291 = vadd.f32 %v3255, 0.47
        %v3292 = vadd.f32 %v3256, 0.47
        %v3293 = vadd.f32 %v3257, 0.47
        %v3294 = vadd.f32 %v3258, 0.47
        %v3295 = vadd.f32 %v3259, 0.47
        %v3296 = vadd.f32 %v3260, 0.47
        %v3297 = vadd.f32 %v3261, 0.47
        %v3298 = vadd.f32 %v3262, 0.47
        %v3299 = vadd.f32 %v3263, 0.47
        %v3300 = vadd.f32 %v3264, 0.47
        %v3301 = vadd.f32 %v3265, 0.47
        %v3302 = vadd.f32 %v3266, 0.47
        %v3303 = vadd.f32 %v3267, 0.47
        %v3304 = vadd.f32 %v3268, 0.47
        %v3305 = vadd.f32 %v3269, 0.47
        %v3306 = vadd.f32 %v3270, 0.47
        %v3307 = vadd.f32 %v3271, 0.47
        %v3308 = vadd.f32 %v3272, 0.47
        %v3309 = vadd.f32 %v3273, 0.47
        %v3310 = vadd.f32 %v3274, 0.47
        %v3311 = vadd.f32 %v3275, 0.47
        %v3312 = vadd.f32 %v3276, 0.47
        %v3313 = vadd.f32 %v3277, 0.47
        %v3314 = vadd.f32 %v3278, 0.47
        %v3315 = vadd.f32 %v3279, 0.47
        %v3316 = vadd.f32 %v3280, 0.47
        %v3317 = vadd.f32 %v3281, 0.47
        %v3318 = vadd.f32 %v3282, 0.47
        %v3319 = vadd.f32 %v3283, 0.47
        %v3320 = vadd.f32 %v3284, 0.47
        %v3321 = vadd.f32 %v3285, 0.47
        %v3322 = vadd.f32 %v3286, 0.47
        %v3323 = vadd.f32 %v3287, 0.47
        %v3324 = vadd.f32 %v3288, 0.47
        %v3325 = vadd.f32 %v3289, 0.47
        %v3326 = vadd.f32 %v3290, 0.47
        %3327 = vst.msk [vmem:[#allocation2] sm:$0xff] %vm300, %v3291
        %3328 = vst.msk [vmem:[#allocation2 + $0x8] sm:$0xff] %vm300, %v3292
        %3329 = vst.msk [vmem:[#allocation2 + $0x10] sm:$0xff] %vm300, %v3293
        %3330 = vst.msk [vmem:[#allocation2 + $0x18] sm:$0xff] %vm300, %v3294
        %3331 = vst.msk [vmem:[#allocation2 + $0x20] sm:$0xff] %vm300, %v3295
        %3332 = vst.msk [vmem:[#allocation2 + $0x28] sm:$0xff] %vm300, %v3296
        %3333 = vst.msk [vmem:[#allocation2 + $0x30] sm:$0xff] %vm300, %v3297
        %3334 = vst.msk [vmem:[#allocation2 + $0x38] sm:$0xff] %vm300, %v3298
        %3335 = vst.msk [vmem:[#allocation2 + $0x40] sm:$0xff] %vm300, %v3299
        %3336 = vst.msk [vmem:[#allocation2 + $0x48] sm:$0xff] %vm300, %v3300
        %3337 = vst.msk [vmem:[#allocation2 + $0x50] sm:$0xff] %vm300, %v3301
        %3338 = vst.msk [vmem:[#allocation2 + $0x58] sm:$0xff] %vm300, %v3302
        %3339 = vst.msk [vmem:[#allocation2 + $0x60] sm:$0xff] %vm300, %v3303
        %3340 = vst.msk [vmem:[#allocation2 + $0x68] sm:$0xff] %vm300, %v3304
        %3341 = vst.msk [vmem:[#allocation2 + $0x70] sm:$0xff] %vm300, %v3305
        %3342 = vst.msk [vmem:[#allocation2 + $0x78] sm:$0xff] %vm300, %v3306
        %3343 = vst.msk [vmem:[#allocation2 + $0x80] sm:$0xff] %vm300, %v3307
        %3344 = vst.msk [vmem:[#allocation2 + $0x88] sm:$0xff] %vm300, %v3308
        %3345 = vst.msk [vmem:[#allocation2 + $0x90] sm:$0xff] %vm300, %v3309
        %3346 = vst.msk [vmem:[#allocation2 + $0x98] sm:$0xff] %vm300, %v3310
        %3347 = vst.msk [vmem:[#allocation2 + $0xa0] sm:$0xff] %vm300, %v3311
        %3348 = vst.msk [vmem:[#allocation2 + $0xa8] sm:$0xff] %vm300, %v3312
        %3349 = vst.msk [vmem:[#allocation2 + $0xb0] sm:$0xff] %vm300, %v3313
        %3350 = vst.msk [vmem:[#allocation2 + $0xb8] sm:$0xff] %vm300, %v3314
        %3351 = vst.msk [vmem:[#allocation2 + $0xc0] sm:$0xff] %vm300, %v3315
        %3352 = vst.msk [vmem:[#allocation2 + $0xc8] sm:$0xff] %vm300, %v3316
        %3353 = vst.msk [vmem:[#allocation2 + $0xd0] sm:$0xff] %vm300, %v3317
        %3354 = vst.msk [vmem:[#allocation2 + $0xd8] sm:$0xff] %vm300, %v3318
        %3355 = vst.msk [vmem:[#allocation2 + $0xe0] sm:$0xff] %vm300, %v3319
        %3356 = vst.msk [vmem:[#allocation2 + $0xe8] sm:$0xff] %vm300, %v3320
        %3357 = vst.msk [vmem:[#allocation2 + $0xf0] sm:$0xff] %vm300, %v3321
        %3358 = vst.msk [vmem:[#allocation2 + $0xf8] sm:$0xff] %vm300, %v3322
        %3359 = vst.msk [vmem:[#allocation2 + $0x100] sm:$0xff] %vm300, %v3323
        %3360 = vst.msk [vmem:[#allocation2 + $0x108] sm:$0xff] %vm300, %v3324
        %3361 = vst.msk [vmem:[#allocation2 + $0x110] sm:$0xff] %vm300, %v3325
        %vm3362 = vcmask 259072
        %3363 = vst.msk [vmem:[#allocation2 + $0x118] sm:$0x3f] %vm3362, %v3326
        %v3364 = vld [vmem:[#allocation2] ss:$2 sm:$0xff]
        %s3365 = scalar_lea.vmem [#allocation2], 1
        %v3366 = vld [vmem:[%s3365] ss:$2 sm:$0xff]
        %v3367 = vadd.f32 %v3364, %v3366
        %s3368 = scalar_lea.vmem [#allocation2], 18
        %v3369 = vld [vmem:[%s3368] ss:$2 sm:$0xff]
        %v3370 = vadd.f32 %v3367, %v3369
        %s3371 = scalar_lea.vmem [#allocation2], 19
        %v3372 = vld [vmem:[%s3371] ss:$2 sm:$0xff]
        %v3373 = vadd.f32 %v3370, %v3372
        %v3374 = vmul.f32 %v3373, 0.25
        %3375 = vst.msk [vmem:[#allocation3 + $0xb] sm:$0xff] %vm300, %v3374
        %s3376 = scalar_lea.vmem [#allocation2], 36
        %v3377 = vld [vmem:[%s3376] ss:$2 sm:$0xff]
        %s3378 = scalar_lea.vmem [#allocation2], 37
        %v3379 = vld [vmem:[%s3378] ss:$2 sm:$0xff]
        %v3380 = vadd.f32 %v3377, %v3379
        %s3381 = scalar_lea.vmem [#allocation2], 54
        %v3382 = vld [vmem:[%s3381] ss:$2 sm:$0xff]
        %v3383 = vadd.f32 %v3380, %v3382
        %s3384 = scalar_lea.vmem [#allocation2], 55
        %v3385 = vld [vmem:[%s3384] ss:$2 sm:$0xff]
        %v3386 = vadd.f32 %v3383, %v3385
        %v3387 = vmul.f32 %v3386, 0.25
        %3388 = vst.msk [vmem:[#allocation3 + $0x15] sm:$0xff] %vm300, %v3387
        %s3389 = scalar_lea.vmem [#allocation2], 72
        %v3390 = vld [vmem:[%s3389] ss:$2 sm:$0xff]
        %s3391 = scalar_lea.vmem [#allocation2], 73
        %v3392 = vld [vmem:[%s3391] ss:$2 sm:$0xff]
        %v3393 = vadd.f32 %v3390, %v3392
        %s3394 = scalar_lea.vmem [#allocation2], 90
        %v3395 = vld [vmem:[%s3394] ss:$2 sm:$0xff]
        %v3396 = vadd.f32 %v3393, %v3395
        %s3397 = scalar_lea.vmem [#allocation2], 91
        %v3398 = vld [vmem:[%s3397] ss:$2 sm:$0xff]
        %v3399 = vadd.f32 %v3396, %v3398
        %v3400 = vmul.f32 %v3399, 0.25
        %3401 = vst.msk [vmem:[#allocation3 + $0x1f] sm:$0xff] %vm300, %v3400
        %s3402 = scalar_lea.vmem [#allocation2], 108
        %v3403 = vld [vmem:[%s3402] ss:$2 sm:$0xff]
        %s3404 = scalar_lea.vmem [#allocation2], 109
        %v3405 = vld [vmem:[%s3404] ss:$2 sm:$0xff]
        %v3406 = vadd.f32 %v3403, %v3405
        %s3407 = scalar_lea.vmem [#allocation2], 126
        %v3408 = vld [vmem:[%s3407] ss:$2 sm:$0xff]
        %v3409 = vadd.f32 %v3406, %v3408
        %s3410 = scalar_lea.vmem [#allocation2], 127
        %v3411 = vld [vmem:[%s3410] ss:$2 sm:$0xff]
        %v3412 = vadd.f32 %v3409, %v3411
        %v3413 = vmul.f32 %v3412, 0.25
        %3414 = vst.msk [vmem:[#allocation3 + $0x29] sm:$0xff] %vm300, %v3413
        %s3415 = scalar_lea.vmem [#allocation2], 144
        %v3416 = vld [vmem:[%s3415] ss:$2 sm:$0xff]
        %s3417 = scalar_lea.vmem [#allocation2], 145
        %v3418 = vld [vmem:[%s3417] ss:$2 sm:$0xff]
        %v3419 = vadd.f32 %v3416, %v3418
        %s3420 = scalar_lea.vmem [#allocation2], 162
        %v3421 = vld [vmem:[%s3420] ss:$2 sm:$0xff]
        %v3422 = vadd.f32 %v3419, %v3421
        %s3423 = scalar_lea.vmem [#allocation2], 163
        %v3424 = vld [vmem:[%s3423] ss:$2 sm:$0xff]
        %v3425 = vadd.f32 %v3422, %v3424
        %v3426 = vmul.f32 %v3425, 0.25
        %3427 = vst.msk [vmem:[#allocation3 + $0x33] sm:$0xff] %vm300, %v3426
        %s3428 = scalar_lea.vmem [#allocation2], 180
        %v3429 = vld [vmem:[%s3428] ss:$2 sm:$0xff]
        %s3430 = scalar_lea.vmem [#allocation2], 181
        %v3431 = vld [vmem:[%s3430] ss:$2 sm:$0xff]
        %v3432 = vadd.f32 %v3429, %v3431
        %s3433 = scalar_lea.vmem [#allocation2], 198
        %v3434 = vld [vmem:[%s3433] ss:$2 sm:$0xff]
        %v3435 = vadd.f32 %v3432, %v3434
        %s3436 = scalar_lea.vmem [#allocation2], 199
        %v3437 = vld [vmem:[%s3436] ss:$2 sm:$0xff]
        %v3438 = vadd.f32 %v3435, %v3437
        %v3439 = vmul.f32 %v3438, 0.25
        %3440 = vst.msk [vmem:[#allocation3 + $0x3d] sm:$0xff] %vm300, %v3439
        %s3441 = scalar_lea.vmem [#allocation2], 216
        %v3442 = vld [vmem:[%s3441] ss:$2 sm:$0xff]
        %s3443 = scalar_lea.vmem [#allocation2], 217
        %v3444 = vld [vmem:[%s3443] ss:$2 sm:$0xff]
        %v3445 = vadd.f32 %v3442, %v3444
        %s3446 = scalar_lea.vmem [#allocation2], 234
        %v3447 = vld [vmem:[%s3446] ss:$2 sm:$0xff]
        %v3448 = vadd.f32 %v3445, %v3447
        %s3449 = scalar_lea.vmem [#allocation2], 235
        %v3450 = vld [vmem:[%s3449] ss:$2 sm:$0xff]
        %v3451 = vadd.f32 %v3448, %v3450
        %v3452 = vmul.f32 %v3451, 0.25
        %3453 = vst.msk [vmem:[#allocation3 + $0x47] sm:$0xff] %vm300, %v3452
        %s3454 = scalar_lea.vmem [#allocation2], 252
        %v3455 = vld [vmem:[%s3454] ss:$2 sm:$0xff]
        %s3456 = scalar_lea.vmem [#allocation2], 253
        %v3457 = vld [vmem:[%s3456] ss:$2 sm:$0xff]
        %v3458 = vadd.f32 %v3455, %v3457
        %s3459 = scalar_lea.vmem [#allocation2], 270
        %v3460 = vld [vmem:[%s3459] ss:$2 sm:$0xff]
        %v3461 = vadd.f32 %v3458, %v3460
        %s3462 = scalar_lea.vmem [#allocation2], 271
        %v3463 = vld [vmem:[%s3462] ss:$2 sm:$0xff]
        %v3464 = vadd.f32 %v3461, %v3463
        %v3465 = vmul.f32 %v3464, 0.25
        %3466 = vst.msk [vmem:[#allocation3 + $0x51] sm:$0xff] %vm300, %v3465
        %v3467 = vld [vmem:[#allocation3] sm:$0xff]
        %v3468 = vld [vmem:[#allocation3 + $0x8] sm:$0xff]
        %v3469 = vld [vmem:[#allocation3 + $0x10] sm:$0xff]
        %v3470 = vld [vmem:[#allocation3 + $0x18] sm:$0xff]
        %v3471 = vld [vmem:[#allocation3 + $0x20] sm:$0xff]
        %v3472 = vld [vmem:[#allocation3 + $0x28] sm:$0xff]
        %v3473 = vld [vmem:[#allocation3 + $0x30] sm:$0xff]
        %v3474 = vld [vmem:[#allocation3 + $0x38] sm:$0xff]
        %v3475 = vld [vmem:[#allocation3 + $0x40] sm:$0xff]
        %v3476 = vld [vmem:[#allocation3 + $0x48] sm:$0x3f]
        %v3477 = vpack.c.bf16 %v3468, %v3467
        %v3478 = vpack.c.bf16 %v3470, %v3469
        %v3479 = vpack.c.bf16 %v3472, %v3471
        %v3480 = vpack.c.bf16 %v3474, %v3473
        %v3481 = vpack.c.bf16 %v3476, %v3475
        %v3482 = vld [vmem:[#allocation9] sm:$0xf]
        %v3483 = vld [vmem:[#allocation9 + $0x4] sm:$0xf]
        %v3484 = vld [vmem:[#allocation9 + $0x8] sm:$0xf]
        %v3485 = vld [vmem:[#allocation9 + $0xc] sm:$0xf]
        %v3486 = vld [vmem:[#allocation3 + $0x1] sm:$0xff]
        %v3487 = vld [vmem:[#allocation3 + $0x9] sm:$0xff]
        %v3488 = vld [vmem:[#allocation3 + $0x11] sm:$0xff]
        %v3489 = vld [vmem:[#allocation3 + $0x19] sm:$0xff]
        %v3490 = vld [vmem:[#allocation3 + $0x21] sm:$0xff]
        %v3491 = vld [vmem:[#allocation3 + $0x29] sm:$0xff]
        %v3492 = vld [vmem:[#allocation3 + $0x31] sm:$0xff]
        %v3493 = vld [vmem:[#allocation3 + $0x39] sm:$0xff]
        %v3494 = vld [vmem:[#allocation3 + $0x41] sm:$0xff]
        %v3495 = vld [vmem:[#allocation3 + $0x49] sm:$0x3f]
        %v3496 = vpack.c.bf16 %v3487, %v3486
        %v3497 = vpack.c.bf16 %v3489, %v3488
        %v3498 = vpack.c.bf16 %v3491, %v3490
        %v3499 = vpack.c.bf16 %v3493, %v3492
        %v3500 = vpack.c.bf16 %v3495, %v3494
        %s3501 = scalar_lea.vmem [#allocation9], 16
        %v3502 = vld [vmem:[%s3501] sm:$0xf]
        %v3503 = vld [vmem:[%s3501 + $0x4] sm:$0xf]
        %v3504 = vld [vmem:[%s3501 + $0x8] sm:$0xf]
        %v3505 = vld [vmem:[%s3501 + $0xc] sm:$0xf]
        %v3510 = vunpack.c.l.b16 %v3502
        %v3511 = vunpack.c.l.b16 %v3503
        %v3512 = vunpack.c.l.b16 %v3504
        %v3513 = vunpack.c.l.b16 %v3505
        %v3514 = vpack.c.b16 %v3511, %v3510
        %v3515 = vpack.c.b16 %v3513, %v3512
        %v3519 = vsel %vm300, %v3496, 0
        %v3522 = vsel %vm300, %v3497, 0
        %v3525 = vsel %vm300, %v3498, 0
        %v3528 = vsel %vm300, %v3499, 0
        %v3531 = vsel %vm300, %v3500, 0
        %3533 = vmatpush.bf16.msra.mxu0 0
        %3534 = vmatpush.bf16.msra.mxu0 0
        %3535 = vmatpush.bf16.msra.mxu0 0
        %3536 = vmatpush.bf16.msra.mxu0 0
        %3537 = vmatpush.bf16.msra.mxu0 0
        %3538 = vmatpush.bf16.msra.mxu0 0
        %3539 = vmatpush.bf16.msra.mxu0 %v3515
        %3540 = vmatpush.bf16.msra.mxu0 %v3514
        %3541 = vmatmul.bf16.gmra.mxu0 %v3519
        %v3542 = vpop.f32.mrf.mxu0
        %v3543 = vadd.f32 0.0, %v3542
        %v3544 = vpop.f32.mrf.mxu0
        %v3545 = vadd.f32 0.0, %v3544
        %3546 = vmatmul.bf16.gmra.mxu0 %v3522
        %v3547 = vpop.f32.mrf.mxu0
        %v3548 = vadd.f32 0.0, %v3547
        %v3549 = vpop.f32.mrf.mxu0
        %v3550 = vadd.f32 0.0, %v3549
        %3551 = vmatmul.bf16.gmra.mxu0 %v3525
        %v3552 = vpop.f32.mrf.mxu0
        %v3553 = vadd.f32 0.0, %v3552
        %v3554 = vpop.f32.mrf.mxu0
        %v3555 = vadd.f32 0.0, %v3554
        %3556 = vmatmul.bf16.gmra.mxu0 %v3528
        %v3557 = vpop.f32.mrf.mxu0
        %v3558 = vadd.f32 0.0, %v3557
        %v3559 = vpop.f32.mrf.mxu0
        %v3560 = vadd.f32 0.0, %v3559
        %3561 = vmatmul.bf16.gmra.mxu0 %v3531
        %v3562 = vpop.f32.mrf.mxu0
        %v3563 = vadd.f32 0.0, %v3562
        %v3564 = vpop.f32.mrf.mxu0
        %v3565 = vadd.f32 0.0, %v3564
        %3566 = vdwg.mxu0
        %v3571 = vunpack.c.l.b16 %v3482
        %v3572 = vunpack.c.l.b16 %v3483
        %v3573 = vunpack.c.l.b16 %v3484
        %v3574 = vunpack.c.l.b16 %v3485
        %v3575 = vpack.c.b16 %v3572, %v3571
        %v3576 = vpack.c.b16 %v3574, %v3573
        %v3580 = vsel %vm300, %v3477, 0
        %v3583 = vsel %vm300, %v3478, 0
        %v3586 = vsel %vm300, %v3479, 0
        %v3589 = vsel %vm300, %v3480, 0
        %v3592 = vsel %vm300, %v3481, 0
        %3594 = vmatpush.bf16.msra.mxu0 0
        %3595 = vmatpush.bf16.msra.mxu0 0
        %3596 = vmatpush.bf16.msra.mxu0 0
        %3597 = vmatpush.bf16.msra.mxu0 0
        %3598 = vmatpush.bf16.msra.mxu0 0
        %3599 = vmatpush.bf16.msra.mxu0 0
        %3600 = vmatpush.bf16.msra.mxu0 %v3576
        %3601 = vmatpush.bf16.msra.mxu0 %v3575
        %3602 = vmatmul.bf16.gmra.mxu0 %v3580
        %v3603 = vpop.f32.mrf.mxu0
        %v3604 = vadd.f32 %v3543, %v3603
        %v3605 = vpop.f32.mrf.mxu0
        %v3606 = vadd.f32 %v3545, %v3605
        %3607 = vmatmul.bf16.gmra.mxu0 %v3583
        %v3608 = vpop.f32.mrf.mxu0
        %v3609 = vadd.f32 %v3548, %v3608
        %v3610 = vpop.f32.mrf.mxu0
        %v3611 = vadd.f32 %v3550, %v3610
        %3612 = vmatmul.bf16.gmra.mxu0 %v3586
        %v3613 = vpop.f32.mrf.mxu0
        %v3614 = vadd.f32 %v3553, %v3613
        %v3615 = vpop.f32.mrf.mxu0
        %v3616 = vadd.f32 %v3555, %v3615
        %3617 = vmatmul.bf16.gmra.mxu0 %v3589
        %v3618 = vpop.f32.mrf.mxu0
        %v3619 = vadd.f32 %v3558, %v3618
        %v3620 = vpop.f32.mrf.mxu0
        %v3621 = vadd.f32 %v3560, %v3620
        %3622 = vmatmul.bf16.gmra.mxu0 %v3592
        %v3623 = vpop.f32.mrf.mxu0
        %v3624 = vadd.f32 %v3563, %v3623
        %v3625 = vpop.f32.mrf.mxu0
        %v3626 = vadd.f32 %v3565, %v3625
        %3627 = vdwg.mxu0
        %v3628 = vld [vmem:[#allocation3 + $0x2] sm:$0xff]
        %v3629 = vld [vmem:[#allocation3 + $0xa] sm:$0xff]
        %v3630 = vld [vmem:[#allocation3 + $0x12] sm:$0xff]
        %v3631 = vld [vmem:[#allocation3 + $0x1a] sm:$0xff]
        %v3632 = vld [vmem:[#allocation3 + $0x22] sm:$0xff]
        %v3633 = vld [vmem:[#allocation3 + $0x2a] sm:$0xff]
        %v3634 = vld [vmem:[#allocation3 + $0x32] sm:$0xff]
        %v3635 = vld [vmem:[#allocation3 + $0x3a] sm:$0xff]
        %v3636 = vld [vmem:[#allocation3 + $0x42] sm:$0xff]
        %v3637 = vld [vmem:[#allocation3 + $0x4a] sm:$0x3f]
        %v3638 = vpack.c.bf16 %v3629, %v3628
        %v3639 = vpack.c.bf16 %v3631, %v3630
        %v3640 = vpack.c.bf16 %v3633, %v3632
        %v3641 = vpack.c.bf16 %v3635, %v3634
        %v3642 = vpack.c.bf16 %v3637, %v3636
        %s3643 = scalar_lea.vmem [#allocation9], 32
        %v3644 = vld [vmem:[%s3643] sm:$0xf]
        %v3645 = vld [vmem:[%s3643 + $0x4] sm:$0xf]
        %v3646 = vld [vmem:[%s3643 + $0x8] sm:$0xf]
        %v3647 = vld [vmem:[%s3643 + $0xc] sm:$0xf]
        %v3652 = vunpack.c.l.b16 %v3644
        %v3653 = vunpack.c.l.b16 %v3645
        %v3654 = vunpack.c.l.b16 %v3646
        %v3655 = vunpack.c.l.b16 %v3647
        %v3656 = vpack.c.b16 %v3653, %v3652
        %v3657 = vpack.c.b16 %v3655, %v3654
        %v3661 = vsel %vm300, %v3638, 0
        %v3664 = vsel %vm300, %v3639, 0
        %v3667 = vsel %vm300, %v3640, 0
        %v3670 = vsel %vm300, %v3641, 0
        %v3673 = vsel %vm300, %v3642, 0
        %3675 = vmatpush.bf16.msra.mxu0 0
        %3676 = vmatpush.bf16.msra.mxu0 0
        %3677 = vmatpush.bf16.msra.mxu0 0
        %3678 = vmatpush.bf16.msra.mxu0 0
        %3679 = vmatpush.bf16.msra.mxu0 0
        %3680 = vmatpush.bf16.msra.mxu0 0
        %3681 = vmatpush.bf16.msra.mxu0 %v3657
        %3682 = vmatpush.bf16.msra.mxu0 %v3656
        %3683 = vmatmul.bf16.gmra.mxu0 %v3661
        %v3684 = vpop.f32.mrf.mxu0
        %v3685 = vadd.f32 0.0, %v3684
        %v3686 = vpop.f32.mrf.mxu0
        %v3687 = vadd.f32 0.0, %v3686
        %3688 = vmatmul.bf16.gmra.mxu0 %v3664
        %v3689 = vpop.f32.mrf.mxu0
        %v3690 = vadd.f32 0.0, %v3689
        %v3691 = vpop.f32.mrf.mxu0
        %v3692 = vadd.f32 0.0, %v3691
        %3693 = vmatmul.bf16.gmra.mxu0 %v3667
        %v3694 = vpop.f32.mrf.mxu0
        %v3695 = vadd.f32 0.0, %v3694
        %v3696 = vpop.f32.mrf.mxu0
        %v3697 = vadd.f32 0.0, %v3696
        %3698 = vmatmul.bf16.gmra.mxu0 %v3670
        %v3699 = vpop.f32.mrf.mxu0
        %v3700 = vadd.f32 0.0, %v3699
        %v3701 = vpop.f32.mrf.mxu0
        %v3702 = vadd.f32 0.0, %v3701
        %3703 = vmatmul.bf16.gmra.mxu0 %v3673
        %v3704 = vpop.f32.mrf.mxu0
        %v3705 = vadd.f32 0.0, %v3704
        %v3706 = vpop.f32.mrf.mxu0
        %v3707 = vadd.f32 0.0, %v3706
        %3708 = vdwg.mxu0
        %v3709 = vadd.f32 %v3604, %v3685
        %v3710 = vadd.f32 %v3606, %v3687
        %v3711 = vadd.f32 %v3609, %v3690
        %v3712 = vadd.f32 %v3611, %v3692
        %v3713 = vadd.f32 %v3614, %v3695
        %v3714 = vadd.f32 %v3616, %v3697
        %v3715 = vadd.f32 %v3619, %v3700
        %v3716 = vadd.f32 %v3621, %v3702
        %v3717 = vadd.f32 %v3624, %v3705
        %v3718 = vadd.f32 %v3626, %v3707
        %v3719 = vld [vmem:[#allocation3 + $0xa] sm:$0xff]
        %v3720 = vld [vmem:[#allocation3 + $0x12] sm:$0xff]
        %v3721 = vld [vmem:[#allocation3 + $0x1a] sm:$0xff]
        %v3722 = vld [vmem:[#allocation3 + $0x22] sm:$0xff]
        %v3723 = vld [vmem:[#allocation3 + $0x2a] sm:$0xff]
        %v3724 = vld [vmem:[#allocation3 + $0x32] sm:$0xff]
        %v3725 = vld [vmem:[#allocation3 + $0x3a] sm:$0xff]
        %v3726 = vld [vmem:[#allocation3 + $0x42] sm:$0xff]
        %v3727 = vld [vmem:[#allocation3 + $0x4a] sm:$0xff]
        %v3728 = vld [vmem:[#allocation3 + $0x52] sm:$0x3f]
        %v3729 = vpack.c.bf16 %v3720, %v3719
        %v3730 = vpack.c.bf16 %v3722, %v3721
        %v3731 = vpack.c.bf16 %v3724, %v3723
        %v3732 = vpack.c.bf16 %v3726, %v3725
        %v3733 = vpack.c.bf16 %v3728, %v3727
        %s3734 = scalar_lea.vmem [#allocation9], 48
        %v3735 = vld [vmem:[%s3734] sm:$0xf]
        %v3736 = vld [vmem:[%s3734 + $0x4] sm:$0xf]
        %v3737 = vld [vmem:[%s3734 + $0x8] sm:$0xf]
        %v3738 = vld [vmem:[%s3734 + $0xc] sm:$0xf]
        %v3743 = vunpack.c.l.b16 %v3735
        %v3744 = vunpack.c.l.b16 %v3736
        %v3745 = vunpack.c.l.b16 %v3737
        %v3746 = vunpack.c.l.b16 %v3738
        %v3747 = vpack.c.b16 %v3744, %v3743
        %v3748 = vpack.c.b16 %v3746, %v3745
        %v3752 = vsel %vm300, %v3729, 0
        %v3755 = vsel %vm300, %v3730, 0
        %v3758 = vsel %vm300, %v3731, 0
        %v3761 = vsel %vm300, %v3732, 0
        %v3764 = vsel %vm300, %v3733, 0
        %3766 = vmatpush.bf16.msra.mxu0 0
        %3767 = vmatpush.bf16.msra.mxu0 0
        %3768 = vmatpush.bf16.msra.mxu0 0
        %3769 = vmatpush.bf16.msra.mxu0 0
        %3770 = vmatpush.bf16.msra.mxu0 0
        %3771 = vmatpush.bf16.msra.mxu0 0
        %3772 = vmatpush.bf16.msra.mxu0 %v3748
        %3773 = vmatpush.bf16.msra.mxu0 %v3747
        %3774 = vmatmul.bf16.gmra.mxu0 %v3752
        %v3775 = vpop.f32.mrf.mxu0
        %v3776 = vadd.f32 0.0, %v3775
        %v3777 = vpop.f32.mrf.mxu0
        %v3778 = vadd.f32 0.0, %v3777
        %3779 = vmatmul.bf16.gmra.mxu0 %v3755
        %v3780 = vpop.f32.mrf.mxu0
        %v3781 = vadd.f32 0.0, %v3780
        %v3782 = vpop.f32.mrf.mxu0
        %v3783 = vadd.f32 0.0, %v3782
        %3784 = vmatmul.bf16.gmra.mxu0 %v3758
        %v3785 = vpop.f32.mrf.mxu0
        %v3786 = vadd.f32 0.0, %v3785
        %v3787 = vpop.f32.mrf.mxu0
        %v3788 = vadd.f32 0.0, %v3787
        %3789 = vmatmul.bf16.gmra.mxu0 %v3761
        %v3790 = vpop.f32.mrf.mxu0
        %v3791 = vadd.f32 0.0, %v3790
        %v3792 = vpop.f32.mrf.mxu0
        %v3793 = vadd.f32 0.0, %v3792
        %3794 = vmatmul.bf16.gmra.mxu0 %v3764
        %v3795 = vpop.f32.mrf.mxu0
        %v3796 = vadd.f32 0.0, %v3795
        %v3797 = vpop.f32.mrf.mxu0
        %v3798 = vadd.f32 0.0, %v3797
        %3799 = vdwg.mxu0
        %v3800 = vadd.f32 %v3709, %v3776
        %v3801 = vadd.f32 %v3710, %v3778
        %v3802 = vadd.f32 %v3711, %v3781
        %v3803 = vadd.f32 %v3712, %v3783
        %v3804 = vadd.f32 %v3713, %v3786
        %v3805 = vadd.f32 %v3714, %v3788
        %v3806 = vadd.f32 %v3715, %v3791
        %v3807 = vadd.f32 %v3716, %v3793
        %v3808 = vadd.f32 %v3717, %v3796
        %v3809 = vadd.f32 %v3718, %v3798
        %v3810 = vld [vmem:[#allocation3 + $0xb] sm:$0xff]
        %v3811 = vld [vmem:[#allocation3 + $0x13] sm:$0xff]
        %v3812 = vld [vmem:[#allocation3 + $0x1b] sm:$0xff]
        %v3813 = vld [vmem:[#allocation3 + $0x23] sm:$0xff]
        %v3814 = vld [vmem:[#allocation3 + $0x2b] sm:$0xff]
        %v3815 = vld [vmem:[#allocation3 + $0x33] sm:$0xff]
        %v3816 = vld [vmem:[#allocation3 + $0x3b] sm:$0xff]
        %v3817 = vld [vmem:[#allocation3 + $0x43] sm:$0xff]
        %v3818 = vld [vmem:[#allocation3 + $0x4b] sm:$0xff]
        %v3819 = vld [vmem:[#allocation3 + $0x53] sm:$0x3f]
        %v3820 = vpack.c.bf16 %v3811, %v3810
        %v3821 = vpack.c.bf16 %v3813, %v3812
        %v3822 = vpack.c.bf16 %v3815, %v3814
        %v3823 = vpack.c.bf16 %v3817, %v3816
        %v3824 = vpack.c.bf16 %v3819, %v3818
        %s3825 = scalar_lea.vmem [#allocation9], 64
        %v3826 = vld [vmem:[%s3825] sm:$0xf]
        %v3827 = vld [vmem:[%s3825 + $0x4] sm:$0xf]
        %v3828 = vld [vmem:[%s3825 + $0x8] sm:$0xf]
        %v3829 = vld [vmem:[%s3825 + $0xc] sm:$0xf]
        %v3834 = vunpack.c.l.b16 %v3826
        %v3835 = vunpack.c.l.b16 %v3827
        %v3836 = vunpack.c.l.b16 %v3828
        %v3837 = vunpack.c.l.b16 %v3829
        %v3838 = vpack.c.b16 %v3835, %v3834
        %v3839 = vpack.c.b16 %v3837, %v3836
        %v3843 = vsel %vm300, %v3820, 0
        %v3846 = vsel %vm300, %v3821, 0
        %v3849 = vsel %vm300, %v3822, 0
        %v3852 = vsel %vm300, %v3823, 0
        %v3855 = vsel %vm300, %v3824, 0
        %3857 = vmatpush.bf16.msra.mxu0 0
        %3858 = vmatpush.bf16.msra.mxu0 0
        %3859 = vmatpush.bf16.msra.mxu0 0
        %3860 = vmatpush.bf16.msra.mxu0 0
        %3861 = vmatpush.bf16.msra.mxu0 0
        %3862 = vmatpush.bf16.msra.mxu0 0
        %3863 = vmatpush.bf16.msra.mxu0 %v3839
        %3864 = vmatpush.bf16.msra.mxu0 %v3838
        %3865 = vmatmul.bf16.gmra.mxu0 %v3843
        %v3866 = vpop.f32.mrf.mxu0
        %v3867 = vadd.f32 0.0, %v3866
        %v3868 = vpop.f32.mrf.mxu0
        %v3869 = vadd.f32 0.0, %v3868
        %3870 = vmatmul.bf16.gmra.mxu0 %v3846
        %v3871 = vpop.f32.mrf.mxu0
        %v3872 = vadd.f32 0.0, %v3871
        %v3873 = vpop.f32.mrf.mxu0
        %v3874 = vadd.f32 0.0, %v3873
        %3875 = vmatmul.bf16.gmra.mxu0 %v3849
        %v3876 = vpop.f32.mrf.mxu0
        %v3877 = vadd.f32 0.0, %v3876
        %v3878 = vpop.f32.mrf.mxu0
        %v3879 = vadd.f32 0.0, %v3878
        %3880 = vmatmul.bf16.gmra.mxu0 %v3852
        %v3881 = vpop.f32.mrf.mxu0
        %v3882 = vadd.f32 0.0, %v3881
        %v3883 = vpop.f32.mrf.mxu0
        %v3884 = vadd.f32 0.0, %v3883
        %3885 = vmatmul.bf16.gmra.mxu0 %v3855
        %v3886 = vpop.f32.mrf.mxu0
        %v3887 = vadd.f32 0.0, %v3886
        %v3888 = vpop.f32.mrf.mxu0
        %v3889 = vadd.f32 0.0, %v3888
        %3890 = vdwg.mxu0
        %v3891 = vadd.f32 %v3800, %v3867
        %v3892 = vadd.f32 %v3801, %v3869
        %v3893 = vadd.f32 %v3802, %v3872
        %v3894 = vadd.f32 %v3803, %v3874
        %v3895 = vadd.f32 %v3804, %v3877
        %v3896 = vadd.f32 %v3805, %v3879
        %v3897 = vadd.f32 %v3806, %v3882
        %v3898 = vadd.f32 %v3807, %v3884
        %v3899 = vadd.f32 %v3808, %v3887
        %v3900 = vadd.f32 %v3809, %v3889
        %v3901 = vld [vmem:[#allocation3 + $0xc] sm:$0xff]
        %v3902 = vld [vmem:[#allocation3 + $0x14] sm:$0xff]
        %v3903 = vld [vmem:[#allocation3 + $0x1c] sm:$0xff]
        %v3904 = vld [vmem:[#allocation3 + $0x24] sm:$0xff]
        %v3905 = vld [vmem:[#allocation3 + $0x2c] sm:$0xff]
        %v3906 = vld [vmem:[#allocation3 + $0x34] sm:$0xff]
        %v3907 = vld [vmem:[#allocation3 + $0x3c] sm:$0xff]
        %v3908 = vld [vmem:[#allocation3 + $0x44] sm:$0xff]
        %v3909 = vld [vmem:[#allocation3 + $0x4c] sm:$0xff]
        %v3910 = vld [vmem:[#allocation3 + $0x54] sm:$0x3f]
        %v3911 = vpack.c.bf16 %v3902, %v3901
        %v3912 = vpack.c.bf16 %v3904, %v3903
        %v3913 = vpack.c.bf16 %v3906, %v3905
        %v3914 = vpack.c.bf16 %v3908, %v3907
        %v3915 = vpack.c.bf16 %v3910, %v3909
        %s3916 = scalar_lea.vmem [#allocation9], 80
        %v3917 = vld [vmem:[%s3916] sm:$0xf]
        %v3918 = vld [vmem:[%s3916 + $0x4] sm:$0xf]
        %v3919 = vld [vmem:[%s3916 + $0x8] sm:$0xf]
        %v3920 = vld [vmem:[%s3916 + $0xc] sm:$0xf]
        %v3925 = vunpack.c.l.b16 %v3917
        %v3926 = vunpack.c.l.b16 %v3918
        %v3927 = vunpack.c.l.b16 %v3919
        %v3928 = vunpack.c.l.b16 %v3920
        %v3929 = vpack.c.b16 %v3926, %v3925
        %v3930 = vpack.c.b16 %v3928, %v3927
        %v3934 = vsel %vm300, %v3911, 0
        %v3937 = vsel %vm300, %v3912, 0
        %v3940 = vsel %vm300, %v3913, 0
        %v3943 = vsel %vm300, %v3914, 0
        %v3946 = vsel %vm300, %v3915, 0
        %3948 = vmatpush.bf16.msra.mxu0 0
        %3949 = vmatpush.bf16.msra.mxu0 0
        %3950 = vmatpush.bf16.msra.mxu0 0
        %3951 = vmatpush.bf16.msra.mxu0 0
        %3952 = vmatpush.bf16.msra.mxu0 0
        %3953 = vmatpush.bf16.msra.mxu0 0
        %3954 = vmatpush.bf16.msra.mxu0 %v3930
        %3955 = vmatpush.bf16.msra.mxu0 %v3929
        %3956 = vmatmul.bf16.gmra.mxu0 %v3934
        %v3957 = vpop.f32.mrf.mxu0
        %v3958 = vadd.f32 0.0, %v3957
        %v3959 = vpop.f32.mrf.mxu0
        %v3960 = vadd.f32 0.0, %v3959
        %3961 = vmatmul.bf16.gmra.mxu0 %v3937
        %v3962 = vpop.f32.mrf.mxu0
        %v3963 = vadd.f32 0.0, %v3962
        %v3964 = vpop.f32.mrf.mxu0
        %v3965 = vadd.f32 0.0, %v3964
        %3966 = vmatmul.bf16.gmra.mxu0 %v3940
        %v3967 = vpop.f32.mrf.mxu0
        %v3968 = vadd.f32 0.0, %v3967
        %v3969 = vpop.f32.mrf.mxu0
        %v3970 = vadd.f32 0.0, %v3969
        %3971 = vmatmul.bf16.gmra.mxu0 %v3943
        %v3972 = vpop.f32.mrf.mxu0
        %v3973 = vadd.f32 0.0, %v3972
        %v3974 = vpop.f32.mrf.mxu0
        %v3975 = vadd.f32 0.0, %v3974
        %3976 = vmatmul.bf16.gmra.mxu0 %v3946
        %v3977 = vpop.f32.mrf.mxu0
        %v3978 = vadd.f32 0.0, %v3977
        %v3979 = vpop.f32.mrf.mxu0
        %v3980 = vadd.f32 0.0, %v3979
        %3981 = vdwg.mxu0
        %v3982 = vadd.f32 %v3891, %v3958
        %v3983 = vadd.f32 %v3892, %v3960
        %v3984 = vadd.f32 %v3893, %v3963
        %v3985 = vadd.f32 %v3894, %v3965
        %v3986 = vadd.f32 %v3895, %v3968
        %v3987 = vadd.f32 %v3896, %v3970
        %v3988 = vadd.f32 %v3897, %v3973
        %v3989 = vadd.f32 %v3898, %v3975
        %v3990 = vadd.f32 %v3899, %v3978
        %v3991 = vadd.f32 %v3900, %v3980
        %v3992 = vld [vmem:[#allocation3 + $0x14] sm:$0xff]
        %v3993 = vld [vmem:[#allocation3 + $0x1c] sm:$0xff]
        %v3994 = vld [vmem:[#allocation3 + $0x24] sm:$0xff]
        %v3995 = vld [vmem:[#allocation3 + $0x2c] sm:$0xff]
        %v3996 = vld [vmem:[#allocation3 + $0x34] sm:$0xff]
        %v3997 = vld [vmem:[#allocation3 + $0x3c] sm:$0xff]
        %v3998 = vld [vmem:[#allocation3 + $0x44] sm:$0xff]
        %v3999 = vld [vmem:[#allocation3 + $0x4c] sm:$0xff]
        %v4000 = vld [vmem:[#allocation3 + $0x54] sm:$0xff]
        %v4001 = vld [vmem:[#allocation3 + $0x5c] sm:$0x3f]
        %v4002 = vpack.c.bf16 %v3993, %v3992
        %v4003 = vpack.c.bf16 %v3995, %v3994
        %v4004 = vpack.c.bf16 %v3997, %v3996
        %v4005 = vpack.c.bf16 %v3999, %v3998
        %v4006 = vpack.c.bf16 %v4001, %v4000
        %s4007 = scalar_lea.vmem [#allocation9], 96
        %v4008 = vld [vmem:[%s4007] sm:$0xf]
        %v4009 = vld [vmem:[%s4007 + $0x4] sm:$0xf]
        %v4010 = vld [vmem:[%s4007 + $0x8] sm:$0xf]
        %v4011 = vld [vmem:[%s4007 + $0xc] sm:$0xf]
        %v4016 = vunpack.c.l.b16 %v4008
        %v4017 = vunpack.c.l.b16 %v4009
        %v4018 = vunpack.c.l.b16 %v4010
        %v4019 = vunpack.c.l.b16 %v4011
        %v4020 = vpack.c.b16 %v4017, %v4016
        %v4021 = vpack.c.b16 %v4019, %v4018
        %v4025 = vsel %vm300, %v4002, 0
        %v4028 = vsel %vm300, %v4003, 0
        %v4031 = vsel %vm300, %v4004, 0
        %v4034 = vsel %vm300, %v4005, 0
        %v4037 = vsel %vm300, %v4006, 0
        %4039 = vmatpush.bf16.msra.mxu0 0
        %4040 = vmatpush.bf16.msra.mxu0 0
        %4041 = vmatpush.bf16.msra.mxu0 0
        %4042 = vmatpush.bf16.msra.mxu0 0
        %4043 = vmatpush.bf16.msra.mxu0 0
        %4044 = vmatpush.bf16.msra.mxu0 0
        %4045 = vmatpush.bf16.msra.mxu0 %v4021
        %4046 = vmatpush.bf16.msra.mxu0 %v4020
        %4047 = vmatmul.bf16.gmra.mxu0 %v4025
        %v4048 = vpop.f32.mrf.mxu0
        %v4049 = vadd.f32 0.0, %v4048
        %v4050 = vpop.f32.mrf.mxu0
        %v4051 = vadd.f32 0.0, %v4050
        %4052 = vmatmul.bf16.gmra.mxu0 %v4028
        %v4053 = vpop.f32.mrf.mxu0
        %v4054 = vadd.f32 0.0, %v4053
        %v4055 = vpop.f32.mrf.mxu0
        %v4056 = vadd.f32 0.0, %v4055
        %4057 = vmatmul.bf16.gmra.mxu0 %v4031
        %v4058 = vpop.f32.mrf.mxu0
        %v4059 = vadd.f32 0.0, %v4058
        %v4060 = vpop.f32.mrf.mxu0
        %v4061 = vadd.f32 0.0, %v4060
        %4062 = vmatmul.bf16.gmra.mxu0 %v4034
        %v4063 = vpop.f32.mrf.mxu0
        %v4064 = vadd.f32 0.0, %v4063
        %v4065 = vpop.f32.mrf.mxu0
        %v4066 = vadd.f32 0.0, %v4065
        %4067 = vmatmul.bf16.gmra.mxu0 %v4037
        %v4068 = vpop.f32.mrf.mxu0
        %v4069 = vadd.f32 0.0, %v4068
        %v4070 = vpop.f32.mrf.mxu0
        %v4071 = vadd.f32 0.0, %v4070
        %4072 = vdwg.mxu0
        %v4073 = vadd.f32 %v3982, %v4049
        %v4074 = vadd.f32 %v3983, %v4051
        %v4075 = vadd.f32 %v3984, %v4054
        %v4076 = vadd.f32 %v3985, %v4056
        %v4077 = vadd.f32 %v3986, %v4059
        %v4078 = vadd.f32 %v3987, %v4061
        %v4079 = vadd.f32 %v3988, %v4064
        %v4080 = vadd.f32 %v3989, %v4066
        %v4081 = vadd.f32 %v3990, %v4069
        %v4082 = vadd.f32 %v3991, %v4071
        %v4083 = vld [vmem:[#allocation3 + $0x15] sm:$0xff]
        %v4084 = vld [vmem:[#allocation3 + $0x1d] sm:$0xff]
        %v4085 = vld [vmem:[#allocation3 + $0x25] sm:$0xff]
        %v4086 = vld [vmem:[#allocation3 + $0x2d] sm:$0xff]
        %v4087 = vld [vmem:[#allocation3 + $0x35] sm:$0xff]
        %v4088 = vld [vmem:[#allocation3 + $0x3d] sm:$0xff]
        %v4089 = vld [vmem:[#allocation3 + $0x45] sm:$0xff]
        %v4090 = vld [vmem:[#allocation3 + $0x4d] sm:$0xff]
        %v4091 = vld [vmem:[#allocation3 + $0x55] sm:$0xff]
        %v4092 = vld [vmem:[#allocation3 + $0x5d] sm:$0x3f]
        %v4093 = vpack.c.bf16 %v4084, %v4083
        %v4094 = vpack.c.bf16 %v4086, %v4085
        %v4095 = vpack.c.bf16 %v4088, %v4087
        %v4096 = vpack.c.bf16 %v4090, %v4089
        %v4097 = vpack.c.bf16 %v4092, %v4091
        %s4098 = scalar_lea.vmem [#allocation9], 112
        %v4099 = vld [vmem:[%s4098] sm:$0xf]
        %v4100 = vld [vmem:[%s4098 + $0x4] sm:$0xf]
        %v4101 = vld [vmem:[%s4098 + $0x8] sm:$0xf]
        %v4102 = vld [vmem:[%s4098 + $0xc] sm:$0xf]
        %v4107 = vunpack.c.l.b16 %v4099
        %v4108 = vunpack.c.l.b16 %v4100
        %v4109 = vunpack.c.l.b16 %v4101
        %v4110 = vunpack.c.l.b16 %v4102
        %v4111 = vpack.c.b16 %v4108, %v4107
        %v4112 = vpack.c.b16 %v4110, %v4109
        %v4116 = vsel %vm300, %v4093, 0
        %v4119 = vsel %vm300, %v4094, 0
        %v4122 = vsel %vm300, %v4095, 0
        %v4125 = vsel %vm300, %v4096, 0
        %v4128 = vsel %vm300, %v4097, 0
        %4130 = vmatpush.bf16.msra.mxu0 0
        %4131 = vmatpush.bf16.msra.mxu0 0
        %4132 = vmatpush.bf16.msra.mxu0 0
        %4133 = vmatpush.bf16.msra.mxu0 0
        %4134 = vmatpush.bf16.msra.mxu0 0
        %4135 = vmatpush.bf16.msra.mxu0 0
        %4136 = vmatpush.bf16.msra.mxu0 %v4112
        %4137 = vmatpush.bf16.msra.mxu0 %v4111
        %4138 = vmatmul.bf16.gmra.mxu0 %v4116
        %v4139 = vpop.f32.mrf.mxu0
        %v4140 = vadd.f32 0.0, %v4139
        %v4141 = vpop.f32.mrf.mxu0
        %v4142 = vadd.f32 0.0, %v4141
        %4143 = vmatmul.bf16.gmra.mxu0 %v4119
        %v4144 = vpop.f32.mrf.mxu0
        %v4145 = vadd.f32 0.0, %v4144
        %v4146 = vpop.f32.mrf.mxu0
        %v4147 = vadd.f32 0.0, %v4146
        %4148 = vmatmul.bf16.gmra.mxu0 %v4122
        %v4149 = vpop.f32.mrf.mxu0
        %v4150 = vadd.f32 0.0, %v4149
        %v4151 = vpop.f32.mrf.mxu0
        %v4152 = vadd.f32 0.0, %v4151
        %4153 = vmatmul.bf16.gmra.mxu0 %v4125
        %v4154 = vpop.f32.mrf.mxu0
        %v4155 = vadd.f32 0.0, %v4154
        %v4156 = vpop.f32.mrf.mxu0
        %v4157 = vadd.f32 0.0, %v4156
        %4158 = vmatmul.bf16.gmra.mxu0 %v4128
        %v4159 = vpop.f32.mrf.mxu0
        %v4160 = vadd.f32 0.0, %v4159
        %v4161 = vpop.f32.mrf.mxu0
        %v4162 = vadd.f32 0.0, %v4161
        %4163 = vdwg.mxu0
        %v4164 = vadd.f32 %v4073, %v4140
        %v4165 = vadd.f32 %v4074, %v4142
        %v4166 = vadd.f32 %v4075, %v4145
        %v4167 = vadd.f32 %v4076, %v4147
        %v4168 = vadd.f32 %v4077, %v4150
        %v4169 = vadd.f32 %v4078, %v4152
        %v4170 = vadd.f32 %v4079, %v4155
        %v4171 = vadd.f32 %v4080, %v4157
        %v4172 = vadd.f32 %v4081, %v4160
        %v4173 = vadd.f32 %v4082, %v4162
        %v4174 = vld [vmem:[#allocation3 + $0x16] sm:$0xff]
        %v4175 = vld [vmem:[#allocation3 + $0x1e] sm:$0xff]
        %v4176 = vld [vmem:[#allocation3 + $0x26] sm:$0xff]
        %v4177 = vld [vmem:[#allocation3 + $0x2e] sm:$0xff]
        %v4178 = vld [vmem:[#allocation3 + $0x36] sm:$0xff]
        %v4179 = vld [vmem:[#allocation3 + $0x3e] sm:$0xff]
        %v4180 = vld [vmem:[#allocation3 + $0x46] sm:$0xff]
        %v4181 = vld [vmem:[#allocation3 + $0x4e] sm:$0xff]
        %v4182 = vld [vmem:[#allocation3 + $0x56] sm:$0xff]
        %v4183 = vld [vmem:[#allocation3 + $0x5e] sm:$0x3f]
        %v4184 = vpack.c.bf16 %v4175, %v4174
        %v4185 = vpack.c.bf16 %v4177, %v4176
        %v4186 = vpack.c.bf16 %v4179, %v4178
        %v4187 = vpack.c.bf16 %v4181, %v4180
        %v4188 = vpack.c.bf16 %v4183, %v4182
        %s4189 = scalar_lea.vmem [#allocation9], 128
        %v4190 = vld [vmem:[%s4189] sm:$0xf]
        %v4191 = vld [vmem:[%s4189 + $0x4] sm:$0xf]
        %v4192 = vld [vmem:[%s4189 + $0x8] sm:$0xf]
        %v4193 = vld [vmem:[%s4189 + $0xc] sm:$0xf]
        %v4198 = vunpack.c.l.b16 %v4190
        %v4199 = vunpack.c.l.b16 %v4191
        %v4200 = vunpack.c.l.b16 %v4192
        %v4201 = vunpack.c.l.b16 %v4193
        %v4202 = vpack.c.b16 %v4199, %v4198
        %v4203 = vpack.c.b16 %v4201, %v4200
        %v4207 = vsel %vm300, %v4184, 0
        %v4210 = vsel %vm300, %v4185, 0
        %v4213 = vsel %vm300, %v4186, 0
        %v4216 = vsel %vm300, %v4187, 0
        %v4219 = vsel %vm300, %v4188, 0
        %4221 = vmatpush.bf16.msra.mxu0 0
        %4222 = vmatpush.bf16.msra.mxu0 0
        %4223 = vmatpush.bf16.msra.mxu0 0
        %4224 = vmatpush.bf16.msra.mxu0 0
        %4225 = vmatpush.bf16.msra.mxu0 0
        %4226 = vmatpush.bf16.msra.mxu0 0
        %4227 = vmatpush.bf16.msra.mxu0 %v4203
        %4228 = vmatpush.bf16.msra.mxu0 %v4202
        %4229 = vmatmul.bf16.gmra.mxu0 %v4207
        %v4230 = vpop.f32.mrf.mxu0
        %v4231 = vadd.f32 0.0, %v4230
        %v4232 = vpop.f32.mrf.mxu0
        %v4233 = vadd.f32 0.0, %v4232
        %4234 = vmatmul.bf16.gmra.mxu0 %v4210
        %v4235 = vpop.f32.mrf.mxu0
        %v4236 = vadd.f32 0.0, %v4235
        %v4237 = vpop.f32.mrf.mxu0
        %v4238 = vadd.f32 0.0, %v4237
        %4239 = vmatmul.bf16.gmra.mxu0 %v4213
        %v4240 = vpop.f32.mrf.mxu0
        %v4241 = vadd.f32 0.0, %v4240
        %v4242 = vpop.f32.mrf.mxu0
        %v4243 = vadd.f32 0.0, %v4242
        %4244 = vmatmul.bf16.gmra.mxu0 %v4216
        %v4245 = vpop.f32.mrf.mxu0
        %v4246 = vadd.f32 0.0, %v4245
        %v4247 = vpop.f32.mrf.mxu0
        %v4248 = vadd.f32 0.0, %v4247
        %4249 = vmatmul.bf16.gmra.mxu0 %v4219
        %v4250 = vpop.f32.mrf.mxu0
        %v4251 = vadd.f32 0.0, %v4250
        %v4252 = vpop.f32.mrf.mxu0
        %v4253 = vadd.f32 0.0, %v4252
        %4254 = vdwg.mxu0
        %v4255 = vadd.f32 %v4164, %v4231
        %v4256 = vadd.f32 %v4165, %v4233
        %v4257 = vadd.f32 %v4166, %v4236
        %v4258 = vadd.f32 %v4167, %v4238
        %v4259 = vadd.f32 %v4168, %v4241
        %v4260 = vadd.f32 %v4169, %v4243
        %v4261 = vadd.f32 %v4170, %v4246
        %v4262 = vadd.f32 %v4171, %v4248
        %v4263 = vadd.f32 %v4172, %v4251
        %v4264 = vadd.f32 %v4173, %v4253
        %v4265 = vmul.f32 %v4255, 0.09
        %v4266 = vmul.f32 %v4256, 0.09
        %v4267 = vmul.f32 %v4257, 0.09
        %v4268 = vmul.f32 %v4258, 0.09
        %v4269 = vmul.f32 %v4259, 0.09
        %v4270 = vmul.f32 %v4260, 0.09
        %v4271 = vmul.f32 %v4261, 0.09
        %v4272 = vmul.f32 %v4262, 0.09
        %v4273 = vmul.f32 %v4263, 0.09
        %v4274 = vmul.f32 %v4264, 0.09
        %v4275 = vadd.f32 %v4265, 0.5
        %v4276 = vadd.f32 %v4266, 0.5
        %v4277 = vadd.f32 %v4267, 0.5
        %v4278 = vadd.f32 %v4268, 0.5
        %v4279 = vadd.f32 %v4269, 0.5
        %v4280 = vadd.f32 %v4270, 0.5
        %v4281 = vadd.f32 %v4271, 0.5
        %v4282 = vadd.f32 %v4272, 0.5
        %v4283 = vadd.f32 %v4273, 0.5
        %v4284 = vadd.f32 %v4274, 0.5
        %v4285 = vmul.f32 %v4255, %v4275
        %v4286 = vmul.f32 %v4256, %v4276
        %v4287 = vmul.f32 %v4257, %v4277
        %v4288 = vmul.f32 %v4258, %v4278
        %v4289 = vmul.f32 %v4259, %v4279
        %v4290 = vmul.f32 %v4260, %v4280
        %v4291 = vmul.f32 %v4261, %v4281
        %v4292 = vmul.f32 %v4262, %v4282
        %v4293 = vmul.f32 %v4263, %v4283
        %v4294 = vmul.f32 %v4264, %v4284
        %v4295 = vadd.f32 %v4285, 0.47
        %v4296 = vadd.f32 %v4286, 0.47
        %v4297 = vadd.f32 %v4287, 0.47
        %v4298 = vadd.f32 %v4288, 0.47
        %v4299 = vadd.f32 %v4289, 0.47
        %v4300 = vadd.f32 %v4290, 0.47
        %v4301 = vadd.f32 %v4291, 0.47
        %v4302 = vadd.f32 %v4292, 0.47
        %v4303 = vadd.f32 %v4293, 0.47
        %v4304 = vadd.f32 %v4294, 0.47
        %4305 = vst.msk [vmem:[#allocation4] sm:$0xff] %vm315, %v4295
        %4306 = vst.msk [vmem:[#allocation4 + $0x8] sm:$0xff] %vm315, %v4296
        %4307 = vst.msk [vmem:[#allocation4 + $0x10] sm:$0xff] %vm315, %v4297
        %4308 = vst.msk [vmem:[#allocation4 + $0x18] sm:$0xff] %vm315, %v4298
        %4309 = vst.msk [vmem:[#allocation4 + $0x20] sm:$0xff] %vm315, %v4299
        %4310 = vst.msk [vmem:[#allocation4 + $0x28] sm:$0xff] %vm315, %v4300
        %4311 = vst.msk [vmem:[#allocation4 + $0x30] sm:$0xff] %vm315, %v4301
        %4312 = vst.msk [vmem:[#allocation4 + $0x38] sm:$0xff] %vm315, %v4302
        %4313 = vst.msk [vmem:[#allocation4 + $0x40] sm:$0xff] %vm315, %v4303
        %vm4314 = vcmask 521216
        %4315 = vst.msk [vmem:[#allocation4 + $0x48] sm:$0x3f] %vm4314, %v4304
        %v4316 = vld [vmem:[#allocation4] ss:$2 sm:$0xf]
        %s4317 = scalar_lea.vmem [#allocation4], 1
        %v4318 = vld [vmem:[%s4317] ss:$2 sm:$0xf]
        %v4319 = vadd.f32 %v4316, %v4318
        %s4320 = scalar_lea.vmem [#allocation4], 10
        %v4321 = vld [vmem:[%s4320] ss:$2 sm:$0xf]
        %v4322 = vadd.f32 %v4319, %v4321
        %s4323 = scalar_lea.vmem [#allocation4], 11
        %v4324 = vld [vmem:[%s4323] ss:$2 sm:$0xf]
        %v4325 = vadd.f32 %v4322, %v4324
        %v4326 = vmul.f32 %v4325, 0.25
        %4327 = vst.msk [vmem:[#allocation5 + $0x7] sm:$0xf] %vm320, %v4326
        %s4328 = scalar_lea.vmem [#allocation4], 20
        %v4329 = vld [vmem:[%s4328] ss:$2 sm:$0xf]
        %s4330 = scalar_lea.vmem [#allocation4], 21
        %v4331 = vld [vmem:[%s4330] ss:$2 sm:$0xf]
        %v4332 = vadd.f32 %v4329, %v4331
        %s4333 = scalar_lea.vmem [#allocation4], 30
        %v4334 = vld [vmem:[%s4333] ss:$2 sm:$0xf]
        %v4335 = vadd.f32 %v4332, %v4334
        %s4336 = scalar_lea.vmem [#allocation4], 31
        %v4337 = vld [vmem:[%s4336] ss:$2 sm:$0xf]
        %v4338 = vadd.f32 %v4335, %v4337
        %v4339 = vmul.f32 %v4338, 0.25
        %4340 = vst.msk [vmem:[#allocation5 + $0xd] sm:$0xf] %vm320, %v4339
        %s4341 = scalar_lea.vmem [#allocation4], 40
        %v4342 = vld [vmem:[%s4341] ss:$2 sm:$0xf]
        %s4343 = scalar_lea.vmem [#allocation4], 41
        %v4344 = vld [vmem:[%s4343] ss:$2 sm:$0xf]
        %v4345 = vadd.f32 %v4342, %v4344
        %s4346 = scalar_lea.vmem [#allocation4], 50
        %v4347 = vld [vmem:[%s4346] ss:$2 sm:$0xf]
        %v4348 = vadd.f32 %v4345, %v4347
        %s4349 = scalar_lea.vmem [#allocation4], 51
        %v4350 = vld [vmem:[%s4349] ss:$2 sm:$0xf]
        %v4351 = vadd.f32 %v4348, %v4350
        %v4352 = vmul.f32 %v4351, 0.25
        %4353 = vst.msk [vmem:[#allocation5 + $0x13] sm:$0xf] %vm320, %v4352
        %s4354 = scalar_lea.vmem [#allocation4], 60
        %v4355 = vld [vmem:[%s4354] ss:$2 sm:$0xf]
        %s4356 = scalar_lea.vmem [#allocation4], 61
        %v4357 = vld [vmem:[%s4356] ss:$2 sm:$0xf]
        %v4358 = vadd.f32 %v4355, %v4357
        %s4359 = scalar_lea.vmem [#allocation4], 70
        %v4360 = vld [vmem:[%s4359] ss:$2 sm:$0xf]
        %v4361 = vadd.f32 %v4358, %v4360
        %s4362 = scalar_lea.vmem [#allocation4], 71
        %v4363 = vld [vmem:[%s4362] ss:$2 sm:$0xf]
        %v4364 = vadd.f32 %v4361, %v4363
        %v4365 = vmul.f32 %v4364, 0.25
        %4366 = vst.msk [vmem:[#allocation5 + $0x19] sm:$0xf] %vm320, %v4365
        %v4367 = vld [vmem:[#allocation5] sm:$0xff]
        %v4368 = vld [vmem:[#allocation5 + $0x8] sm:$0xff]
        %v4369 = vld [vmem:[#allocation5 + $0x10] sm:$0x3f]
        %v4370 = vpack.c.bf16 %v4368, %v4367
        %v4371 = vpack.c.bf16 %v4369, %v4369
        %v4372 = vld [vmem:[%s3] sm:$0xf]
        %v4373 = vld [vmem:[%s3 + $0x4] sm:$0xf]
        %v4374 = vld [vmem:[%s3 + $0x8] sm:$0xf]
        %v4375 = vld [vmem:[%s3 + $0xc] sm:$0xf]
        %v4376 = vld [vmem:[%s3 + $0x10] sm:$0xf]
        %v4377 = vld [vmem:[%s3 + $0x14] sm:$0xf]
        %v4378 = vld [vmem:[%s3 + $0x18] sm:$0xf]
        %v4379 = vld [vmem:[%s3 + $0x1c] sm:$0xf]
        %v4380 = vld [vmem:[#allocation5 + $0x1] sm:$0xff]
        %v4381 = vld [vmem:[#allocation5 + $0x9] sm:$0xff]
        %v4382 = vld [vmem:[#allocation5 + $0x11] sm:$0x3f]
        %v4383 = vpack.c.bf16 %v4381, %v4380
        %v4384 = vpack.c.bf16 %v4382, %v4382
        %s4385 = scalar_lea.vmem %s3, 32
        %v4386 = vld [vmem:[%s4385] sm:$0xf]
        %v4387 = vld [vmem:[%s4385 + $0x4] sm:$0xf]
        %v4388 = vld [vmem:[%s4385 + $0x8] sm:$0xf]
        %v4389 = vld [vmem:[%s4385 + $0xc] sm:$0xf]
        %v4390 = vld [vmem:[%s4385 + $0x10] sm:$0xf]
        %v4391 = vld [vmem:[%s4385 + $0x14] sm:$0xf]
        %v4392 = vld [vmem:[%s4385 + $0x18] sm:$0xf]
        %v4393 = vld [vmem:[%s4385 + $0x1c] sm:$0xf]
        %v4402 = vunpack.c.l.b16 %v4386
        %v4403 = vunpack.c.l.b16 %v4387
        %v4404 = vunpack.c.l.b16 %v4388
        %v4405 = vunpack.c.l.b16 %v4389
        %v4406 = vunpack.c.l.b16 %v4390
        %v4407 = vunpack.c.l.b16 %v4391
        %v4408 = vunpack.c.l.b16 %v4392
        %v4409 = vunpack.c.l.b16 %v4393
        %v4410 = vpack.c.b16 %v4403, %v4402
        %v4411 = vpack.c.b16 %v4405, %v4404
        %v4412 = vpack.c.b16 %v4407, %v4406
        %v4413 = vpack.c.b16 %v4409, %v4408
        %v4419 = vsel %vm315, %v4383, 0
        %v4422 = vsel %vm315, %v4384, 0
        %4424 = vmatpush.bf16.msra.mxu0 0
        %4425 = vmatpush.bf16.msra.mxu0 0
        %4426 = vmatpush.bf16.msra.mxu0 0
        %4427 = vmatpush.bf16.msra.mxu0 0
        %4428 = vmatpush.bf16.msra.mxu0 %v4413
        %4429 = vmatpush.bf16.msra.mxu0 %v4412
        %4430 = vmatpush.bf16.msra.mxu0 %v4411
        %4431 = vmatpush.bf16.msra.mxu0 %v4410
        %4432 = vmatmul.bf16.gmra.mxu0 %v4419
        %v4433 = vpop.f32.mrf.mxu0
        %v4434 = vadd.f32 0.0, %v4433
        %v4435 = vpop.f32.mrf.mxu0
        %v4436 = vadd.f32 0.0, %v4435
        %4437 = vmatmul.bf16.gmra.mxu0 %v4422
        %v4438 = vpop.f32.mrf.mxu0
        %v4439 = vadd.f32 0.0, %v4438
        %v4440 = vpop.f32.mrf.mxu0
        %4441 = vdwg.mxu0
        %v4450 = vunpack.c.l.b16 %v4372
        %v4451 = vunpack.c.l.b16 %v4373
        %v4452 = vunpack.c.l.b16 %v4374
        %v4453 = vunpack.c.l.b16 %v4375
        %v4454 = vunpack.c.l.b16 %v4376
        %v4455 = vunpack.c.l.b16 %v4377
        %v4456 = vunpack.c.l.b16 %v4378
        %v4457 = vunpack.c.l.b16 %v4379
        %v4458 = vpack.c.b16 %v4451, %v4450
        %v4459 = vpack.c.b16 %v4453, %v4452
        %v4460 = vpack.c.b16 %v4455, %v4454
        %v4461 = vpack.c.b16 %v4457, %v4456
        %v4467 = vsel %vm315, %v4370, 0
        %v4470 = vsel %vm315, %v4371, 0
        %4472 = vmatpush.bf16.msra.mxu0 0
        %4473 = vmatpush.bf16.msra.mxu0 0
        %4474 = vmatpush.bf16.msra.mxu0 0
        %4475 = vmatpush.bf16.msra.mxu0 0
        %4476 = vmatpush.bf16.msra.mxu0 %v4461
        %4477 = vmatpush.bf16.msra.mxu0 %v4460
        %4478 = vmatpush.bf16.msra.mxu0 %v4459
        %4479 = vmatpush.bf16.msra.mxu0 %v4458
        %4480 = vmatmul.bf16.gmra.mxu0 %v4467
        %v4481 = vpop.f32.mrf.mxu0
        %v4482 = vadd.f32 %v4434, %v4481
        %v4483 = vpop.f32.mrf.mxu0
        %v4484 = vadd.f32 %v4436, %v4483
        %4485 = vmatmul.bf16.gmra.mxu0 %v4470
        %v4486 = vpop.f32.mrf.mxu0
        %v4487 = vadd.f32 %v4439, %v4486
        %v4488 = vpop.f32.mrf.mxu0
        %4489 = vdwg.mxu0
        %v4490 = vld [vmem:[#allocation5 + $0x2] sm:$0xff]
        %v4491 = vld [vmem:[#allocation5 + $0xa] sm:$0xff]
        %v4492 = vld [vmem:[#allocation5 + $0x12] sm:$0x3f]
        %v4493 = vpack.c.bf16 %v4491, %v4490
        %v4494 = vpack.c.bf16 %v4492, %v4492
        %s4495 = scalar_lea.vmem %s3, 64
        %v4496 = vld [vmem:[%s4495] sm:$0xf]
        %v4497 = vld [vmem:[%s4495 + $0x4] sm:$0xf]
        %v4498 = vld [vmem:[%s4495 + $0x8] sm:$0xf]
        %v4499 = vld [vmem:[%s4495 + $0xc] sm:$0xf]
        %v4500 = vld [vmem:[%s4495 + $0x10] sm:$0xf]
        %v4501 = vld [vmem:[%s4495 + $0x14] sm:$0xf]
        %v4502 = vld [vmem:[%s4495 + $0x18] sm:$0xf]
        %v4503 = vld [vmem:[%s4495 + $0x1c] sm:$0xf]
        %v4512 = vunpack.c.l.b16 %v4496
        %v4513 = vunpack.c.l.b16 %v4497
        %v4514 = vunpack.c.l.b16 %v4498
        %v4515 = vunpack.c.l.b16 %v4499
        %v4516 = vunpack.c.l.b16 %v4500
        %v4517 = vunpack.c.l.b16 %v4501
        %v4518 = vunpack.c.l.b16 %v4502
        %v4519 = vunpack.c.l.b16 %v4503
        %v4520 = vpack.c.b16 %v4513, %v4512
        %v4521 = vpack.c.b16 %v4515, %v4514
        %v4522 = vpack.c.b16 %v4517, %v4516
        %v4523 = vpack.c.b16 %v4519, %v4518
        %v4529 = vsel %vm315, %v4493, 0
        %v4532 = vsel %vm315, %v4494, 0
        %4534 = vmatpush.bf16.msra.mxu0 0
        %4535 = vmatpush.bf16.msra.mxu0 0
        %4536 = vmatpush.bf16.msra.mxu0 0
        %4537 = vmatpush.bf16.msra.mxu0 0
        %4538 = vmatpush.bf16.msra.mxu0 %v4523
        %4539 = vmatpush.bf16.msra.mxu0 %v4522
        %4540 = vmatpush.bf16.msra.mxu0 %v4521
        %4541 = vmatpush.bf16.msra.mxu0 %v4520
        %4542 = vmatmul.bf16.gmra.mxu0 %v4529
        %v4543 = vpop.f32.mrf.mxu0
        %v4544 = vadd.f32 0.0, %v4543
        %v4545 = vpop.f32.mrf.mxu0
        %v4546 = vadd.f32 0.0, %v4545
        %4547 = vmatmul.bf16.gmra.mxu0 %v4532
        %v4548 = vpop.f32.mrf.mxu0
        %v4549 = vadd.f32 0.0, %v4548
        %v4550 = vpop.f32.mrf.mxu0
        %4551 = vdwg.mxu0
        %v4552 = vadd.f32 %v4482, %v4544
        %v4553 = vadd.f32 %v4484, %v4546
        %v4554 = vadd.f32 %v4487, %v4549
        %v4555 = vld [vmem:[#allocation5 + $0x6] sm:$0xff]
        %v4556 = vld [vmem:[#allocation5 + $0xe] sm:$0xff]
        %v4557 = vld [vmem:[#allocation5 + $0x16] sm:$0x3f]
        %v4558 = vpack.c.bf16 %v4556, %v4555
        %v4559 = vpack.c.bf16 %v4557, %v4557
        %s4560 = scalar_lea.vmem %s3, 96
        %v4561 = vld [vmem:[%s4560] sm:$0xf]
        %v4562 = vld [vmem:[%s4560 + $0x4] sm:$0xf]
        %v4563 = vld [vmem:[%s4560 + $0x8] sm:$0xf]
        %v4564 = vld [vmem:[%s4560 + $0xc] sm:$0xf]
        %v4565 = vld [vmem:[%s4560 + $0x10] sm:$0xf]
        %v4566 = vld [vmem:[%s4560 + $0x14] sm:$0xf]
        %v4567 = vld [vmem:[%s4560 + $0x18] sm:$0xf]
        %v4568 = vld [vmem:[%s4560 + $0x1c] sm:$0xf]
        %v4577 = vunpack.c.l.b16 %v4561
        %v4578 = vunpack.c.l.b16 %v4562
        %v4579 = vunpack.c.l.b16 %v4563
        %v4580 = vunpack.c.l.b16 %v4564
        %v4581 = vunpack.c.l.b16 %v4565
        %v4582 = vunpack.c.l.b16 %v4566
        %v4583 = vunpack.c.l.b16 %v4567
        %v4584 = vunpack.c.l.b16 %v4568
        %v4585 = vpack.c.b16 %v4578, %v4577
        %v4586 = vpack.c.b16 %v4580, %v4579
        %v4587 = vpack.c.b16 %v4582, %v4581
        %v4588 = vpack.c.b16 %v4584, %v4583
        %v4594 = vsel %vm315, %v4558, 0
        %v4597 = vsel %vm315, %v4559, 0
        %4599 = vmatpush.bf16.msra.mxu0 0
        %4600 = vmatpush.bf16.msra.mxu0 0
        %4601 = vmatpush.bf16.msra.mxu0 0
        %4602 = vmatpush.bf16.msra.mxu0 0
        %4603 = vmatpush.bf16.msra.mxu0 %v4588
        %4604 = vmatpush.bf16.msra.mxu0 %v4587
        %4605 = vmatpush.bf16.msra.mxu0 %v4586
        %4606 = vmatpush.bf16.msra.mxu0 %v4585
        %4607 = vmatmul.bf16.gmra.mxu0 %v4594
        %v4608 = vpop.f32.mrf.mxu0
        %v4609 = vadd.f32 0.0, %v4608
        %v4610 = vpop.f32.mrf.mxu0
        %v4611 = vadd.f32 0.0, %v4610
        %4612 = vmatmul.bf16.gmra.mxu0 %v4597
        %v4613 = vpop.f32.mrf.mxu0
        %v4614 = vadd.f32 0.0, %v4613
        %v4615 = vpop.f32.mrf.mxu0
        %4616 = vdwg.mxu0
        %v4617 = vadd.f32 %v4552, %v4609
        %v4618 = vadd.f32 %v4553, %v4611
        %v4619 = vadd.f32 %v4554, %v4614
        %v4620 = vld [vmem:[#allocation5 + $0x7] sm:$0xff]
        %v4621 = vld [vmem:[#allocation5 + $0xf] sm:$0xff]
        %v4622 = vld [vmem:[#allocation5 + $0x17] sm:$0x3f]
        %v4623 = vpack.c.bf16 %v4621, %v4620
        %v4624 = vpack.c.bf16 %v4622, %v4622
        %s4625 = scalar_lea.vmem %s3, 128
        %v4626 = vld [vmem:[%s4625] sm:$0xf]
        %v4627 = vld [vmem:[%s4625 + $0x4] sm:$0xf]
        %v4628 = vld [vmem:[%s4625 + $0x8] sm:$0xf]
        %v4629 = vld [vmem:[%s4625 + $0xc] sm:$0xf]
        %v4630 = vld [vmem:[%s4625 + $0x10] sm:$0xf]
        %v4631 = vld [vmem:[%s4625 + $0x14] sm:$0xf]
        %v4632 = vld [vmem:[%s4625 + $0x18] sm:$0xf]
        %v4633 = vld [vmem:[%s4625 + $0x1c] sm:$0xf]
        %v4642 = vunpack.c.l.b16 %v4626
        %v4643 = vunpack.c.l.b16 %v4627
        %v4644 = vunpack.c.l.b16 %v4628
        %v4645 = vunpack.c.l.b16 %v4629
        %v4646 = vunpack.c.l.b16 %v4630
        %v4647 = vunpack.c.l.b16 %v4631
        %v4648 = vunpack.c.l.b16 %v4632
        %v4649 = vunpack.c.l.b16 %v4633
        %v4650 = vpack.c.b16 %v4643, %v4642
        %v4651 = vpack.c.b16 %v4645, %v4644
        %v4652 = vpack.c.b16 %v4647, %v4646
        %v4653 = vpack.c.b16 %v4649, %v4648
        %v4659 = vsel %vm315, %v4623, 0
        %v4662 = vsel %vm315, %v4624, 0
        %4664 = vmatpush.bf16.msra.mxu0 0
        %4665 = vmatpush.bf16.msra.mxu0 0
        %4666 = vmatpush.bf16.msra.mxu0 0
        %4667 = vmatpush.bf16.msra.mxu0 0
        %4668 = vmatpush.bf16.msra.mxu0 %v4653
        %4669 = vmatpush.bf16.msra.mxu0 %v4652
        %4670 = vmatpush.bf16.msra.mxu0 %v4651
        %4671 = vmatpush.bf16.msra.mxu0 %v4650
        %4672 = vmatmul.bf16.gmra.mxu0 %v4659
        %v4673 = vpop.f32.mrf.mxu0
        %v4674 = vadd.f32 0.0, %v4673
        %v4675 = vpop.f32.mrf.mxu0
        %v4676 = vadd.f32 0.0, %v4675
        %4677 = vmatmul.bf16.gmra.mxu0 %v4662
        %v4678 = vpop.f32.mrf.mxu0
        %v4679 = vadd.f32 0.0, %v4678
        %v4680 = vpop.f32.mrf.mxu0
        %4681 = vdwg.mxu0
        %v4682 = vadd.f32 %v4617, %v4674
        %v4683 = vadd.f32 %v4618, %v4676
        %v4684 = vadd.f32 %v4619, %v4679
        %v4685 = vld [vmem:[#allocation5 + $0x8] sm:$0xff]
        %v4686 = vld [vmem:[#allocation5 + $0x10] sm:$0xff]
        %v4687 = vld [vmem:[#allocation5 + $0x18] sm:$0x3f]
        %v4688 = vpack.c.bf16 %v4686, %v4685
        %v4689 = vpack.c.bf16 %v4687, %v4687
        %s4690 = scalar_lea.vmem %s3, 160
        %v4691 = vld [vmem:[%s4690] sm:$0xf]
        %v4692 = vld [vmem:[%s4690 + $0x4] sm:$0xf]
        %v4693 = vld [vmem:[%s4690 + $0x8] sm:$0xf]
        %v4694 = vld [vmem:[%s4690 + $0xc] sm:$0xf]
        %v4695 = vld [vmem:[%s4690 + $0x10] sm:$0xf]
        %v4696 = vld [vmem:[%s4690 + $0x14] sm:$0xf]
        %v4697 = vld [vmem:[%s4690 + $0x18] sm:$0xf]
        %v4698 = vld [vmem:[%s4690 + $0x1c] sm:$0xf]
        %v4707 = vunpack.c.l.b16 %v4691
        %v4708 = vunpack.c.l.b16 %v4692
        %v4709 = vunpack.c.l.b16 %v4693
        %v4710 = vunpack.c.l.b16 %v4694
        %v4711 = vunpack.c.l.b16 %v4695
        %v4712 = vunpack.c.l.b16 %v4696
        %v4713 = vunpack.c.l.b16 %v4697
        %v4714 = vunpack.c.l.b16 %v4698
        %v4715 = vpack.c.b16 %v4708, %v4707
        %v4716 = vpack.c.b16 %v4710, %v4709
        %v4717 = vpack.c.b16 %v4712, %v4711
        %v4718 = vpack.c.b16 %v4714, %v4713
        %v4724 = vsel %vm315, %v4688, 0
        %v4727 = vsel %vm315, %v4689, 0
        %4729 = vmatpush.bf16.msra.mxu0 0
        %4730 = vmatpush.bf16.msra.mxu0 0
        %4731 = vmatpush.bf16.msra.mxu0 0
        %4732 = vmatpush.bf16.msra.mxu0 0
        %4733 = vmatpush.bf16.msra.mxu0 %v4718
        %4734 = vmatpush.bf16.msra.mxu0 %v4717
        %4735 = vmatpush.bf16.msra.mxu0 %v4716
        %4736 = vmatpush.bf16.msra.mxu0 %v4715
        %4737 = vmatmul.bf16.gmra.mxu0 %v4724
        %v4738 = vpop.f32.mrf.mxu0
        %v4739 = vadd.f32 0.0, %v4738
        %v4740 = vpop.f32.mrf.mxu0
        %v4741 = vadd.f32 0.0, %v4740
        %4742 = vmatmul.bf16.gmra.mxu0 %v4727
        %v4743 = vpop.f32.mrf.mxu0
        %v4744 = vadd.f32 0.0, %v4743
        %v4745 = vpop.f32.mrf.mxu0
        %4746 = vdwg.mxu0
        %v4747 = vadd.f32 %v4682, %v4739
        %v4748 = vadd.f32 %v4683, %v4741
        %v4749 = vadd.f32 %v4684, %v4744
        %v4750 = vld [vmem:[#allocation5 + $0xc] sm:$0xff]
        %v4751 = vld [vmem:[#allocation5 + $0x14] sm:$0xff]
        %v4752 = vld [vmem:[#allocation5 + $0x1c] sm:$0x3f]
        %v4753 = vpack.c.bf16 %v4751, %v4750
        %v4754 = vpack.c.bf16 %v4752, %v4752
        %s4755 = scalar_lea.vmem %s3, 192
        %v4756 = vld [vmem:[%s4755] sm:$0xf]
        %v4757 = vld [vmem:[%s4755 + $0x4] sm:$0xf]
        %v4758 = vld [vmem:[%s4755 + $0x8] sm:$0xf]
        %v4759 = vld [vmem:[%s4755 + $0xc] sm:$0xf]
        %v4760 = vld [vmem:[%s4755 + $0x10] sm:$0xf]
        %v4761 = vld [vmem:[%s4755 + $0x14] sm:$0xf]
        %v4762 = vld [vmem:[%s4755 + $0x18] sm:$0xf]
        %v4763 = vld [vmem:[%s4755 + $0x1c] sm:$0xf]
        %v4772 = vunpack.c.l.b16 %v4756
        %v4773 = vunpack.c.l.b16 %v4757
        %v4774 = vunpack.c.l.b16 %v4758
        %v4775 = vunpack.c.l.b16 %v4759
        %v4776 = vunpack.c.l.b16 %v4760
        %v4777 = vunpack.c.l.b16 %v4761
        %v4778 = vunpack.c.l.b16 %v4762
        %v4779 = vunpack.c.l.b16 %v4763
        %v4780 = vpack.c.b16 %v4773, %v4772
        %v4781 = vpack.c.b16 %v4775, %v4774
        %v4782 = vpack.c.b16 %v4777, %v4776
        %v4783 = vpack.c.b16 %v4779, %v4778
        %v4789 = vsel %vm315, %v4753, 0
        %v4792 = vsel %vm315, %v4754, 0
        %4794 = vmatpush.bf16.msra.mxu0 0
        %4795 = vmatpush.bf16.msra.mxu0 0
        %4796 = vmatpush.bf16.msra.mxu0 0
        %4797 = vmatpush.bf16.msra.mxu0 0
        %4798 = vmatpush.bf16.msra.mxu0 %v4783
        %4799 = vmatpush.bf16.msra.mxu0 %v4782
        %4800 = vmatpush.bf16.msra.mxu0 %v4781
        %4801 = vmatpush.bf16.msra.mxu0 %v4780
        %4802 = vmatmul.bf16.gmra.mxu0 %v4789
        %v4803 = vpop.f32.mrf.mxu0
        %v4804 = vadd.f32 0.0, %v4803
        %v4805 = vpop.f32.mrf.mxu0
        %v4806 = vadd.f32 0.0, %v4805
        %4807 = vmatmul.bf16.gmra.mxu0 %v4792
        %v4808 = vpop.f32.mrf.mxu0
        %v4809 = vadd.f32 0.0, %v4808
        %v4810 = vpop.f32.mrf.mxu0
        %4811 = vdwg.mxu0
        %v4812 = vadd.f32 %v4747, %v4804
        %v4813 = vadd.f32 %v4748, %v4806
        %v4814 = vadd.f32 %v4749, %v4809
        %v4815 = vld [vmem:[#allocation5 + $0xd] sm:$0xff]
        %v4816 = vld [vmem:[#allocation5 + $0x15] sm:$0xff]
        %v4817 = vld [vmem:[#allocation5 + $0x1d] sm:$0x3f]
        %v4818 = vpack.c.bf16 %v4816, %v4815
        %v4819 = vpack.c.bf16 %v4817, %v4817
        %s4820 = scalar_lea.vmem %s3, 224
        %v4821 = vld [vmem:[%s4820] sm:$0xf]
        %v4822 = vld [vmem:[%s4820 + $0x4] sm:$0xf]
        %v4823 = vld [vmem:[%s4820 + $0x8] sm:$0xf]
        %v4824 = vld [vmem:[%s4820 + $0xc] sm:$0xf]
        %v4825 = vld [vmem:[%s4820 + $0x10] sm:$0xf]
        %v4826 = vld [vmem:[%s4820 + $0x14] sm:$0xf]
        %v4827 = vld [vmem:[%s4820 + $0x18] sm:$0xf]
        %v4828 = vld [vmem:[%s4820 + $0x1c] sm:$0xf]
        %v4837 = vunpack.c.l.b16 %v4821
        %v4838 = vunpack.c.l.b16 %v4822
        %v4839 = vunpack.c.l.b16 %v4823
        %v4840 = vunpack.c.l.b16 %v4824
        %v4841 = vunpack.c.l.b16 %v4825
        %v4842 = vunpack.c.l.b16 %v4826
        %v4843 = vunpack.c.l.b16 %v4827
        %v4844 = vunpack.c.l.b16 %v4828
        %v4845 = vpack.c.b16 %v4838, %v4837
        %v4846 = vpack.c.b16 %v4840, %v4839
        %v4847 = vpack.c.b16 %v4842, %v4841
        %v4848 = vpack.c.b16 %v4844, %v4843
        %v4854 = vsel %vm315, %v4818, 0
        %v4857 = vsel %vm315, %v4819, 0
        %4859 = vmatpush.bf16.msra.mxu0 0
        %4860 = vmatpush.bf16.msra.mxu0 0
        %4861 = vmatpush.bf16.msra.mxu0 0
        %4862 = vmatpush.bf16.msra.mxu0 0
        %4863 = vmatpush.bf16.msra.mxu0 %v4848
        %4864 = vmatpush.bf16.msra.mxu0 %v4847
        %4865 = vmatpush.bf16.msra.mxu0 %v4846
        %4866 = vmatpush.bf16.msra.mxu0 %v4845
        %4867 = vmatmul.bf16.gmra.mxu0 %v4854
        %v4868 = vpop.f32.mrf.mxu0
        %v4869 = vadd.f32 0.0, %v4868
        %v4870 = vpop.f32.mrf.mxu0
        %v4871 = vadd.f32 0.0, %v4870
        %4872 = vmatmul.bf16.gmra.mxu0 %v4857
        %v4873 = vpop.f32.mrf.mxu0
        %v4874 = vadd.f32 0.0, %v4873
        %v4875 = vpop.f32.mrf.mxu0
        %4876 = vdwg.mxu0
        %v4877 = vadd.f32 %v4812, %v4869
        %v4878 = vadd.f32 %v4813, %v4871
        %v4879 = vadd.f32 %v4814, %v4874
        %v4880 = vld [vmem:[#allocation5 + $0xe] sm:$0xff]
        %v4881 = vld [vmem:[#allocation5 + $0x16] sm:$0xff]
        %v4882 = vld [vmem:[#allocation5 + $0x1e] sm:$0x3f]
        %v4883 = vpack.c.bf16 %v4881, %v4880
        %v4884 = vpack.c.bf16 %v4882, %v4882
        %s4885 = scalar_lea.vmem %s3, 256
        %v4886 = vld [vmem:[%s4885] sm:$0xf]
        %v4887 = vld [vmem:[%s4885 + $0x4] sm:$0xf]
        %v4888 = vld [vmem:[%s4885 + $0x8] sm:$0xf]
        %v4889 = vld [vmem:[%s4885 + $0xc] sm:$0xf]
        %v4890 = vld [vmem:[%s4885 + $0x10] sm:$0xf]
        %v4891 = vld [vmem:[%s4885 + $0x14] sm:$0xf]
        %v4892 = vld [vmem:[%s4885 + $0x18] sm:$0xf]
        %v4893 = vld [vmem:[%s4885 + $0x1c] sm:$0xf]
        %v4902 = vunpack.c.l.b16 %v4886
        %v4903 = vunpack.c.l.b16 %v4887
        %v4904 = vunpack.c.l.b16 %v4888
        %v4905 = vunpack.c.l.b16 %v4889
        %v4906 = vunpack.c.l.b16 %v4890
        %v4907 = vunpack.c.l.b16 %v4891
        %v4908 = vunpack.c.l.b16 %v4892
        %v4909 = vunpack.c.l.b16 %v4893
        %v4910 = vpack.c.b16 %v4903, %v4902
        %v4911 = vpack.c.b16 %v4905, %v4904
        %v4912 = vpack.c.b16 %v4907, %v4906
        %v4913 = vpack.c.b16 %v4909, %v4908
        %v4919 = vsel %vm315, %v4883, 0
        %v4922 = vsel %vm315, %v4884, 0
        %4924 = vmatpush.bf16.msra.mxu0 0
        %4925 = vmatpush.bf16.msra.mxu0 0
        %4926 = vmatpush.bf16.msra.mxu0 0
        %4927 = vmatpush.bf16.msra.mxu0 0
        %4928 = vmatpush.bf16.msra.mxu0 %v4913
        %4929 = vmatpush.bf16.msra.mxu0 %v4912
        %4930 = vmatpush.bf16.msra.mxu0 %v4911
        %4931 = vmatpush.bf16.msra.mxu0 %v4910
        %4932 = vmatmul.bf16.gmra.mxu0 %v4919
        %v4933 = vpop.f32.mrf.mxu0
        %v4934 = vadd.f32 0.0, %v4933
        %v4935 = vpop.f32.mrf.mxu0
        %v4936 = vadd.f32 0.0, %v4935
        %4937 = vmatmul.bf16.gmra.mxu0 %v4922
        %v4938 = vpop.f32.mrf.mxu0
        %v4939 = vadd.f32 0.0, %v4938
        %v4940 = vpop.f32.mrf.mxu0
        %4941 = vdwg.mxu0
        %v4942 = vadd.f32 %v4877, %v4934
        %v4943 = vadd.f32 %v4878, %v4936
        %v4944 = vadd.f32 %v4879, %v4939
        %v4945 = vmul.f32 %v4942, 0.09
        %v4946 = vmul.f32 %v4943, 0.09
        %v4947 = vmul.f32 %v4944, 0.09
        %v4948 = vadd.f32 %v4945, 0.5
        %v4949 = vadd.f32 %v4946, 0.5
        %v4950 = vadd.f32 %v4947, 0.5
        %v4951 = vmul.f32 %v4942, %v4948
        %v4952 = vmul.f32 %v4943, %v4949
        %v4953 = vmul.f32 %v4944, %v4950
        %v4954 = vadd.f32 %v4951, 0.47
        %v4955 = vadd.f32 %v4952, 0.47
        %v4956 = vadd.f32 %v4953, 0.47
        %4957 = vst [vmem:[#allocation6] sm:$0xff] %v4954
        %4958 = vst [vmem:[#allocation6 + $0x8] sm:$0xff] %v4955
        %4959 = vst [vmem:[#allocation6 + $0x10] sm:$0x3f] %v4956
        %v4960 = vld [vmem:[#allocation6] ss:$2 sm:$0x3]
        %s4961 = scalar_lea.vmem [#allocation6], 1
        %v4962 = vld [vmem:[%s4961] ss:$2 sm:$0x3]
        %v4963 = vadd.f32 %v4960, %v4962
        %s4964 = scalar_lea.vmem [#allocation6], 6
        %v4965 = vld [vmem:[%s4964] ss:$2 sm:$0x3]
        %v4966 = vadd.f32 %v4963, %v4965
        %s4967 = scalar_lea.vmem [#allocation6], 7
        %v4968 = vld [vmem:[%s4967] ss:$2 sm:$0x3]
        %v4969 = vadd.f32 %v4966, %v4968
        %v4970 = vmul.f32 %v4969, 0.25
        %4971 = vst [vmem:[#allocation7 + $0x5] sm:$0x3] %v4970
        %s4972 = scalar_lea.vmem [#allocation6], 12
        %v4973 = vld [vmem:[%s4972] ss:$2 sm:$0x3]
        %s4974 = scalar_lea.vmem [#allocation6], 13
        %v4975 = vld [vmem:[%s4974] ss:$2 sm:$0x3]
        %v4976 = vadd.f32 %v4973, %v4975
        %s4977 = scalar_lea.vmem [#allocation6], 18
        %v4978 = vld [vmem:[%s4977] ss:$2 sm:$0x3]
        %v4979 = vadd.f32 %v4976, %v4978
        %s4980 = scalar_lea.vmem [#allocation6], 19
        %v4981 = vld [vmem:[%s4980] ss:$2 sm:$0x3]
        %v4982 = vadd.f32 %v4979, %v4981
        %v4983 = vmul.f32 %v4982, 0.25
        %4984 = vst [vmem:[#allocation7 + $0x9] sm:$0x3] %v4983
        %v4985 = vld [vmem:[#allocation7] sm:$0x3f]
        %v4986 = vpack.c.bf16 %v4985, %v4985
        %v4987 = vld [vmem:[#allocation12] sm:$0xff]
        %v4988 = vld [vmem:[#allocation12 + $0x8] sm:$0xff]
        %v4989 = vld [vmem:[#allocation12 + $0x10] sm:$0xff]
        %v4990 = vld [vmem:[#allocation12 + $0x18] sm:$0xff]
        %v4991 = vld [vmem:[#allocation12 + $0x20] sm:$0xff]
        %v4992 = vld [vmem:[#allocation12 + $0x28] sm:$0xff]
        %v4993 = vld [vmem:[#allocation12 + $0x30] sm:$0xff]
        %v4994 = vld [vmem:[#allocation12 + $0x38] sm:$0xff]
        %v4995 = vld [vmem:[#allocation12 + $0x40] sm:$0xff]
        %v4996 = vld [vmem:[#allocation12 + $0x48] sm:$0xff]
        %v4997 = vld [vmem:[#allocation12 + $0x50] sm:$0xff]
        %v4998 = vld [vmem:[#allocation12 + $0x58] sm:$0xff]
        %v4999 = vld [vmem:[#allocation12 + $0x60] sm:$0xff]
        %v5000 = vld [vmem:[#allocation12 + $0x68] sm:$0xff]
        %v5001 = vld [vmem:[#allocation12 + $0x70] sm:$0xff]
        %v5002 = vld [vmem:[#allocation12 + $0x78] sm:$0xff]
        %v5003 = vld [vmem:[#allocation7 + $0x1] sm:$0x3f]
        %v5004 = vpack.c.bf16 %v5003, %v5003
        %s5005 = scalar_lea.vmem [#allocation12], 128
        %v5006 = vld [vmem:[%s5005] sm:$0xff]
        %v5007 = vld [vmem:[%s5005 + $0x8] sm:$0xff]
        %v5008 = vld [vmem:[%s5005 + $0x10] sm:$0xff]
        %v5009 = vld [vmem:[%s5005 + $0x18] sm:$0xff]
        %v5010 = vld [vmem:[%s5005 + $0x20] sm:$0xff]
        %v5011 = vld [vmem:[%s5005 + $0x28] sm:$0xff]
        %v5012 = vld [vmem:[%s5005 + $0x30] sm:$0xff]
        %v5013 = vld [vmem:[%s5005 + $0x38] sm:$0xff]
        %v5014 = vld [vmem:[%s5005 + $0x40] sm:$0xff]
        %v5015 = vld [vmem:[%s5005 + $0x48] sm:$0xff]
        %v5016 = vld [vmem:[%s5005 + $0x50] sm:$0xff]
        %v5017 = vld [vmem:[%s5005 + $0x58] sm:$0xff]
        %v5018 = vld [vmem:[%s5005 + $0x60] sm:$0xff]
        %v5019 = vld [vmem:[%s5005 + $0x68] sm:$0xff]
        %v5020 = vld [vmem:[%s5005 + $0x70] sm:$0xff]
        %v5021 = vld [vmem:[%s5005 + $0x78] sm:$0xff]
        %v5038 = vunpack.c.l.b16 %v5006
        %v5039 = vunpack.c.h.b16 %v5006
        %v5040 = vunpack.c.l.b16 %v5007
        %v5041 = vunpack.c.h.b16 %v5007
        %v5042 = vunpack.c.l.b16 %v5008
        %v5043 = vunpack.c.h.b16 %v5008
        %v5044 = vunpack.c.l.b16 %v5009
        %v5045 = vunpack.c.h.b16 %v5009
        %v5046 = vunpack.c.l.b16 %v5010
        %v5047 = vunpack.c.h.b16 %v5010
        %v5048 = vunpack.c.l.b16 %v5011
        %v5049 = vunpack.c.h.b16 %v5011
        %v5050 = vunpack.c.l.b16 %v5012
        %v5051 = vunpack.c.h.b16 %v5012
        %v5052 = vunpack.c.l.b16 %v5013
        %v5053 = vunpack.c.h.b16 %v5013
        %v5054 = vunpack.c.l.b16 %v5014
        %v5055 = vunpack.c.h.b16 %v5014
        %v5056 = vunpack.c.l.b16 %v5015
        %v5057 = vunpack.c.h.b16 %v5015
        %v5058 = vunpack.c.l.b16 %v5016
        %v5059 = vunpack.c.h.b16 %v5016
        %v5060 = vunpack.c.l.b16 %v5017
        %v5061 = vunpack.c.h.b16 %v5017
        %v5062 = vunpack.c.l.b16 %v5018
        %v5063 = vunpack.c.h.b16 %v5018
        %v5064 = vunpack.c.l.b16 %v5019
        %v5065 = vunpack.c.h.b16 %v5019
        %v5066 = vunpack.c.l.b16 %v5020
        %v5067 = vunpack.c.h.b16 %v5020
        %v5068 = vunpack.c.l.b16 %v5021
        %v5069 = vunpack.c.h.b16 %v5021
        %v5070 = vpack.c.b16 %v5040, %v5038
        %v5071 = vpack.c.b16 %v5041, %v5039
        %v5072 = vpack.c.b16 %v5044, %v5042
        %v5073 = vpack.c.b16 %v5045, %v5043
        %v5074 = vpack.c.b16 %v5048, %v5046
        %v5075 = vpack.c.b16 %v5049, %v5047
        %v5076 = vpack.c.b16 %v5052, %v5050
        %v5077 = vpack.c.b16 %v5053, %v5051
        %v5078 = vpack.c.b16 %v5056, %v5054
        %v5079 = vpack.c.b16 %v5057, %v5055
        %v5080 = vpack.c.b16 %v5060, %v5058
        %v5081 = vpack.c.b16 %v5061, %v5059
        %v5082 = vpack.c.b16 %v5064, %v5062
        %v5083 = vpack.c.b16 %v5065, %v5063
        %v5084 = vpack.c.b16 %v5068, %v5066
        %v5085 = vpack.c.b16 %v5069, %v5067
        %5102 = vmatpush.bf16.msra.mxu0 %v5084
        %5103 = vmatpush.bf16.msra.mxu0 %v5082
        %5104 = vmatpush.bf16.msra.mxu0 %v5080
        %5105 = vmatpush.bf16.msra.mxu0 %v5078
        %5106 = vmatpush.bf16.msra.mxu0 %v5076
        %5107 = vmatpush.bf16.msra.mxu0 %v5074
        %5108 = vmatpush.bf16.msra.mxu0 %v5072
        %5109 = vmatpush.bf16.msra.mxu0 %v5070
        %5110 = vmatmul.bf16.gmra.mxu0 %v5004
        %v5111 = vpop.f32.mrf.mxu0
        %v5112 = vadd.f32 0.0, %v5111
        %v5113 = vpop.f32.mrf.mxu0
        %5114 = vdwg.mxu0
        %5115 = vmatpush.bf16.msra.mxu0 %v5085
        %5116 = vmatpush.bf16.msra.mxu0 %v5083
        %5117 = vmatpush.bf16.msra.mxu0 %v5081
        %5118 = vmatpush.bf16.msra.mxu0 %v5079
        %5119 = vmatpush.bf16.msra.mxu0 %v5077
        %5120 = vmatpush.bf16.msra.mxu0 %v5075
        %5121 = vmatpush.bf16.msra.mxu0 %v5073
        %5122 = vmatpush.bf16.msra.mxu0 %v5071
        %5123 = vmatmul.bf16.gmra.mxu0 %v5004
        %v5124 = vpop.f32.mrf.mxu0
        %v5125 = vadd.f32 0.0, %v5124
        %v5126 = vpop.f32.mrf.mxu0
        %5127 = vdwg.mxu0
        %v5144 = vunpack.c.l.b16 %v4987
        %v5145 = vunpack.c.h.b16 %v4987
        %v5146 = vunpack.c.l.b16 %v4988
        %v5147 = vunpack.c.h.b16 %v4988
        %v5148 = vunpack.c.l.b16 %v4989
        %v5149 = vunpack.c.h.b16 %v4989
        %v5150 = vunpack.c.l.b16 %v4990
        %v5151 = vunpack.c.h.b16 %v4990
        %v5152 = vunpack.c.l.b16 %v4991
        %v5153 = vunpack.c.h.b16 %v4991
        %v5154 = vunpack.c.l.b16 %v4992
        %v5155 = vunpack.c.h.b16 %v4992
        %v5156 = vunpack.c.l.b16 %v4993
        %v5157 = vunpack.c.h.b16 %v4993
        %v5158 = vunpack.c.l.b16 %v4994
        %v5159 = vunpack.c.h.b16 %v4994
        %v5160 = vunpack.c.l.b16 %v4995
        %v5161 = vunpack.c.h.b16 %v4995
        %v5162 = vunpack.c.l.b16 %v4996
        %v5163 = vunpack.c.h.b16 %v4996
        %v5164 = vunpack.c.l.b16 %v4997
        %v5165 = vunpack.c.h.b16 %v4997
        %v5166 = vunpack.c.l.b16 %v4998
        %v5167 = vunpack.c.h.b16 %v4998
        %v5168 = vunpack.c.l.b16 %v4999
        %v5169 = vunpack.c.h.b16 %v4999
        %v5170 = vunpack.c.l.b16 %v5000
        %v5171 = vunpack.c.h.b16 %v5000
        %v5172 = vunpack.c.l.b16 %v5001
        %v5173 = vunpack.c.h.b16 %v5001
        %v5174 = vunpack.c.l.b16 %v5002
        %v5175 = vunpack.c.h.b16 %v5002
        %v5176 = vpack.c.b16 %v5146, %v5144
        %v5177 = vpack.c.b16 %v5147, %v5145
        %v5178 = vpack.c.b16 %v5150, %v5148
        %v5179 = vpack.c.b16 %v5151, %v5149
        %v5180 = vpack.c.b16 %v5154, %v5152
        %v5181 = vpack.c.b16 %v5155, %v5153
        %v5182 = vpack.c.b16 %v5158, %v5156
        %v5183 = vpack.c.b16 %v5159, %v5157
        %v5184 = vpack.c.b16 %v5162, %v5160
        %v5185 = vpack.c.b16 %v5163, %v5161
        %v5186 = vpack.c.b16 %v5166, %v5164
        %v5187 = vpack.c.b16 %v5167, %v5165
        %v5188 = vpack.c.b16 %v5170, %v5168
        %v5189 = vpack.c.b16 %v5171, %v5169
        %v5190 = vpack.c.b16 %v5174, %v5172
        %v5191 = vpack.c.b16 %v5175, %v5173
        %5208 = vmatpush.bf16.msra.mxu0 %v5190
        %5209 = vmatpush.bf16.msra.mxu0 %v5188
        %5210 = vmatpush.bf16.msra.mxu0 %v5186
        %5211 = vmatpush.bf16.msra.mxu0 %v5184
        %5212 = vmatpush.bf16.msra.mxu0 %v5182
        %5213 = vmatpush.bf16.msra.mxu0 %v5180
        %5214 = vmatpush.bf16.msra.mxu0 %v5178
        %5215 = vmatpush.bf16.msra.mxu0 %v5176
        %5216 = vmatmul.bf16.gmra.mxu0 %v4986
        %v5217 = vpop.f32.mrf.mxu0
        %v5218 = vadd.f32 %v5112, %v5217
        %v5219 = vpop.f32.mrf.mxu0
        %5220 = vdwg.mxu0
        %5221 = vmatpush.bf16.msra.mxu0 %v5191
        %5222 = vmatpush.bf16.msra.mxu0 %v5189
        %5223 = vmatpush.bf16.msra.mxu0 %v5187
        %5224 = vmatpush.bf16.msra.mxu0 %v5185
        %5225 = vmatpush.bf16.msra.mxu0 %v5183
        %5226 = vmatpush.bf16.msra.mxu0 %v5181
        %5227 = vmatpush.bf16.msra.mxu0 %v5179
        %5228 = vmatpush.bf16.msra.mxu0 %v5177
        %5229 = vmatmul.bf16.gmra.mxu0 %v4986
        %v5230 = vpop.f32.mrf.mxu0
        %v5231 = vadd.f32 %v5125, %v5230
        %v5232 = vpop.f32.mrf.mxu0
        %5233 = vdwg.mxu0
        %v5234 = vld [vmem:[#allocation7 + $0x2] sm:$0x3f]
        %v5235 = vpack.c.bf16 %v5234, %v5234
        %s5236 = scalar_lea.vmem [#allocation12], 256
        %v5237 = vld [vmem:[%s5236] sm:$0xff]
        %v5238 = vld [vmem:[%s5236 + $0x8] sm:$0xff]
        %v5239 = vld [vmem:[%s5236 + $0x10] sm:$0xff]
        %v5240 = vld [vmem:[%s5236 + $0x18] sm:$0xff]
        %v5241 = vld [vmem:[%s5236 + $0x20] sm:$0xff]
        %v5242 = vld [vmem:[%s5236 + $0x28] sm:$0xff]
        %v5243 = vld [vmem:[%s5236 + $0x30] sm:$0xff]
        %v5244 = vld [vmem:[%s5236 + $0x38] sm:$0xff]
        %v5245 = vld [vmem:[%s5236 + $0x40] sm:$0xff]
        %v5246 = vld [vmem:[%s5236 + $0x48] sm:$0xff]
        %v5247 = vld [vmem:[%s5236 + $0x50] sm:$0xff]
        %v5248 = vld [vmem:[%s5236 + $0x58] sm:$0xff]
        %v5249 = vld [vmem:[%s5236 + $0x60] sm:$0xff]
        %v5250 = vld [vmem:[%s5236 + $0x68] sm:$0xff]
        %v5251 = vld [vmem:[%s5236 + $0x70] sm:$0xff]
        %v5252 = vld [vmem:[%s5236 + $0x78] sm:$0xff]
        %v5269 = vunpack.c.l.b16 %v5237
        %v5270 = vunpack.c.h.b16 %v5237
        %v5271 = vunpack.c.l.b16 %v5238
        %v5272 = vunpack.c.h.b16 %v5238
        %v5273 = vunpack.c.l.b16 %v5239
        %v5274 = vunpack.c.h.b16 %v5239
        %v5275 = vunpack.c.l.b16 %v5240
        %v5276 = vunpack.c.h.b16 %v5240
        %v5277 = vunpack.c.l.b16 %v5241
        %v5278 = vunpack.c.h.b16 %v5241
        %v5279 = vunpack.c.l.b16 %v5242
        %v5280 = vunpack.c.h.b16 %v5242
        %v5281 = vunpack.c.l.b16 %v5243
        %v5282 = vunpack.c.h.b16 %v5243
        %v5283 = vunpack.c.l.b16 %v5244
        %v5284 = vunpack.c.h.b16 %v5244
        %v5285 = vunpack.c.l.b16 %v5245
        %v5286 = vunpack.c.h.b16 %v5245
        %v5287 = vunpack.c.l.b16 %v5246
        %v5288 = vunpack.c.h.b16 %v5246
        %v5289 = vunpack.c.l.b16 %v5247
        %v5290 = vunpack.c.h.b16 %v5247
        %v5291 = vunpack.c.l.b16 %v5248
        %v5292 = vunpack.c.h.b16 %v5248
        %v5293 = vunpack.c.l.b16 %v5249
        %v5294 = vunpack.c.h.b16 %v5249
        %v5295 = vunpack.c.l.b16 %v5250
        %v5296 = vunpack.c.h.b16 %v5250
        %v5297 = vunpack.c.l.b16 %v5251
        %v5298 = vunpack.c.h.b16 %v5251
        %v5299 = vunpack.c.l.b16 %v5252
        %v5300 = vunpack.c.h.b16 %v5252
        %v5301 = vpack.c.b16 %v5271, %v5269
        %v5302 = vpack.c.b16 %v5272, %v5270
        %v5303 = vpack.c.b16 %v5275, %v5273
        %v5304 = vpack.c.b16 %v5276, %v5274
        %v5305 = vpack.c.b16 %v5279, %v5277
        %v5306 = vpack.c.b16 %v5280, %v5278
        %v5307 = vpack.c.b16 %v5283, %v5281
        %v5308 = vpack.c.b16 %v5284, %v5282
        %v5309 = vpack.c.b16 %v5287, %v5285
        %v5310 = vpack.c.b16 %v5288, %v5286
        %v5311 = vpack.c.b16 %v5291, %v5289
        %v5312 = vpack.c.b16 %v5292, %v5290
        %v5313 = vpack.c.b16 %v5295, %v5293
        %v5314 = vpack.c.b16 %v5296, %v5294
        %v5315 = vpack.c.b16 %v5299, %v5297
        %v5316 = vpack.c.b16 %v5300, %v5298
        %5333 = vmatpush.bf16.msra.mxu0 %v5315
        %5334 = vmatpush.bf16.msra.mxu0 %v5313
        %5335 = vmatpush.bf16.msra.mxu0 %v5311
        %5336 = vmatpush.bf16.msra.mxu0 %v5309
        %5337 = vmatpush.bf16.msra.mxu0 %v5307
        %5338 = vmatpush.bf16.msra.mxu0 %v5305
        %5339 = vmatpush.bf16.msra.mxu0 %v5303
        %5340 = vmatpush.bf16.msra.mxu0 %v5301
        %5341 = vmatmul.bf16.gmra.mxu0 %v5235
        %v5342 = vpop.f32.mrf.mxu0
        %v5343 = vadd.f32 0.0, %v5342
        %v5344 = vpop.f32.mrf.mxu0
        %5345 = vdwg.mxu0
        %5346 = vmatpush.bf16.msra.mxu0 %v5316
        %5347 = vmatpush.bf16.msra.mxu0 %v5314
        %5348 = vmatpush.bf16.msra.mxu0 %v5312
        %5349 = vmatpush.bf16.msra.mxu0 %v5310
        %5350 = vmatpush.bf16.msra.mxu0 %v5308
        %5351 = vmatpush.bf16.msra.mxu0 %v5306
        %5352 = vmatpush.bf16.msra.mxu0 %v5304
        %5353 = vmatpush.bf16.msra.mxu0 %v5302
        %5354 = vmatmul.bf16.gmra.mxu0 %v5235
        %v5355 = vpop.f32.mrf.mxu0
        %v5356 = vadd.f32 0.0, %v5355
        %v5357 = vpop.f32.mrf.mxu0
        %5358 = vdwg.mxu0
        %v5359 = vadd.f32 %v5218, %v5343
        %v5360 = vadd.f32 %v5231, %v5356
        %v5361 = vld [vmem:[#allocation7 + $0x4] sm:$0x3f]
        %v5362 = vpack.c.bf16 %v5361, %v5361
        %s5363 = scalar_lea.vmem [#allocation12], 384
        %v5364 = vld [vmem:[%s5363] sm:$0xff]
        %v5365 = vld [vmem:[%s5363 + $0x8] sm:$0xff]
        %v5366 = vld [vmem:[%s5363 + $0x10] sm:$0xff]
        %v5367 = vld [vmem:[%s5363 + $0x18] sm:$0xff]
        %v5368 = vld [vmem:[%s5363 + $0x20] sm:$0xff]
        %v5369 = vld [vmem:[%s5363 + $0x28] sm:$0xff]
        %v5370 = vld [vmem:[%s5363 + $0x30] sm:$0xff]
        %v5371 = vld [vmem:[%s5363 + $0x38] sm:$0xff]
        %v5372 = vld [vmem:[%s5363 + $0x40] sm:$0xff]
        %v5373 = vld [vmem:[%s5363 + $0x48] sm:$0xff]
        %v5374 = vld [vmem:[%s5363 + $0x50] sm:$0xff]
        %v5375 = vld [vmem:[%s5363 + $0x58] sm:$0xff]
        %v5376 = vld [vmem:[%s5363 + $0x60] sm:$0xff]
        %v5377 = vld [vmem:[%s5363 + $0x68] sm:$0xff]
        %v5378 = vld [vmem:[%s5363 + $0x70] sm:$0xff]
        %v5379 = vld [vmem:[%s5363 + $0x78] sm:$0xff]
        %v5396 = vunpack.c.l.b16 %v5364
        %v5397 = vunpack.c.h.b16 %v5364
        %v5398 = vunpack.c.l.b16 %v5365
        %v5399 = vunpack.c.h.b16 %v5365
        %v5400 = vunpack.c.l.b16 %v5366
        %v5401 = vunpack.c.h.b16 %v5366
        %v5402 = vunpack.c.l.b16 %v5367
        %v5403 = vunpack.c.h.b16 %v5367
        %v5404 = vunpack.c.l.b16 %v5368
        %v5405 = vunpack.c.h.b16 %v5368
        %v5406 = vunpack.c.l.b16 %v5369
        %v5407 = vunpack.c.h.b16 %v5369
        %v5408 = vunpack.c.l.b16 %v5370
        %v5409 = vunpack.c.h.b16 %v5370
        %v5410 = vunpack.c.l.b16 %v5371
        %v5411 = vunpack.c.h.b16 %v5371
        %v5412 = vunpack.c.l.b16 %v5372
        %v5413 = vunpack.c.h.b16 %v5372
        %v5414 = vunpack.c.l.b16 %v5373
        %v5415 = vunpack.c.h.b16 %v5373
        %v5416 = vunpack.c.l.b16 %v5374
        %v5417 = vunpack.c.h.b16 %v5374
        %v5418 = vunpack.c.l.b16 %v5375
        %v5419 = vunpack.c.h.b16 %v5375
        %v5420 = vunpack.c.l.b16 %v5376
        %v5421 = vunpack.c.h.b16 %v5376
        %v5422 = vunpack.c.l.b16 %v5377
        %v5423 = vunpack.c.h.b16 %v5377
        %v5424 = vunpack.c.l.b16 %v5378
        %v5425 = vunpack.c.h.b16 %v5378
        %v5426 = vunpack.c.l.b16 %v5379
        %v5427 = vunpack.c.h.b16 %v5379
        %v5428 = vpack.c.b16 %v5398, %v5396
        %v5429 = vpack.c.b16 %v5399, %v5397
        %v5430 = vpack.c.b16 %v5402, %v5400
        %v5431 = vpack.c.b16 %v5403, %v5401
        %v5432 = vpack.c.b16 %v5406, %v5404
        %v5433 = vpack.c.b16 %v5407, %v5405
        %v5434 = vpack.c.b16 %v5410, %v5408
        %v5435 = vpack.c.b16 %v5411, %v5409
        %v5436 = vpack.c.b16 %v5414, %v5412
        %v5437 = vpack.c.b16 %v5415, %v5413
        %v5438 = vpack.c.b16 %v5418, %v5416
        %v5439 = vpack.c.b16 %v5419, %v5417
        %v5440 = vpack.c.b16 %v5422, %v5420
        %v5441 = vpack.c.b16 %v5423, %v5421
        %v5442 = vpack.c.b16 %v5426, %v5424
        %v5443 = vpack.c.b16 %v5427, %v5425
        %5460 = vmatpush.bf16.msra.mxu0 %v5442
        %5461 = vmatpush.bf16.msra.mxu0 %v5440
        %5462 = vmatpush.bf16.msra.mxu0 %v5438
        %5463 = vmatpush.bf16.msra.mxu0 %v5436
        %5464 = vmatpush.bf16.msra.mxu0 %v5434
        %5465 = vmatpush.bf16.msra.mxu0 %v5432
        %5466 = vmatpush.bf16.msra.mxu0 %v5430
        %5467 = vmatpush.bf16.msra.mxu0 %v5428
        %5468 = vmatmul.bf16.gmra.mxu0 %v5362
        %v5469 = vpop.f32.mrf.mxu0
        %v5470 = vadd.f32 0.0, %v5469
        %v5471 = vpop.f32.mrf.mxu0
        %5472 = vdwg.mxu0
        %5473 = vmatpush.bf16.msra.mxu0 %v5443
        %5474 = vmatpush.bf16.msra.mxu0 %v5441
        %5475 = vmatpush.bf16.msra.mxu0 %v5439
        %5476 = vmatpush.bf16.msra.mxu0 %v5437
        %5477 = vmatpush.bf16.msra.mxu0 %v5435
        %5478 = vmatpush.bf16.msra.mxu0 %v5433
        %5479 = vmatpush.bf16.msra.mxu0 %v5431
        %5480 = vmatpush.bf16.msra.mxu0 %v5429
        %5481 = vmatmul.bf16.gmra.mxu0 %v5362
        %v5482 = vpop.f32.mrf.mxu0
        %v5483 = vadd.f32 0.0, %v5482
        %v5484 = vpop.f32.mrf.mxu0
        %5485 = vdwg.mxu0
        %v5486 = vadd.f32 %v5359, %v5470
        %v5487 = vadd.f32 %v5360, %v5483
        %v5488 = vld [vmem:[#allocation7 + $0x5] sm:$0x3f]
        %v5489 = vpack.c.bf16 %v5488, %v5488
        %s5490 = scalar_lea.vmem [#allocation12], 512
        %v5491 = vld [vmem:[%s5490] sm:$0xff]
        %v5492 = vld [vmem:[%s5490 + $0x8] sm:$0xff]
        %v5493 = vld [vmem:[%s5490 + $0x10] sm:$0xff]
        %v5494 = vld [vmem:[%s5490 + $0x18] sm:$0xff]
        %v5495 = vld [vmem:[%s5490 + $0x20] sm:$0xff]
        %v5496 = vld [vmem:[%s5490 + $0x28] sm:$0xff]
        %v5497 = vld [vmem:[%s5490 + $0x30] sm:$0xff]
        %v5498 = vld [vmem:[%s5490 + $0x38] sm:$0xff]
        %v5499 = vld [vmem:[%s5490 + $0x40] sm:$0xff]
        %v5500 = vld [vmem:[%s5490 + $0x48] sm:$0xff]
        %v5501 = vld [vmem:[%s5490 + $0x50] sm:$0xff]
        %v5502 = vld [vmem:[%s5490 + $0x58] sm:$0xff]
        %v5503 = vld [vmem:[%s5490 + $0x60] sm:$0xff]
        %v5504 = vld [vmem:[%s5490 + $0x68] sm:$0xff]
        %v5505 = vld [vmem:[%s5490 + $0x70] sm:$0xff]
        %v5506 = vld [vmem:[%s5490 + $0x78] sm:$0xff]
        %v5523 = vunpack.c.l.b16 %v5491
        %v5524 = vunpack.c.h.b16 %v5491
        %v5525 = vunpack.c.l.b16 %v5492
        %v5526 = vunpack.c.h.b16 %v5492
        %v5527 = vunpack.c.l.b16 %v5493
        %v5528 = vunpack.c.h.b16 %v5493
        %v5529 = vunpack.c.l.b16 %v5494
        %v5530 = vunpack.c.h.b16 %v5494
        %v5531 = vunpack.c.l.b16 %v5495
        %v5532 = vunpack.c.h.b16 %v5495
        %v5533 = vunpack.c.l.b16 %v5496
        %v5534 = vunpack.c.h.b16 %v5496
        %v5535 = vunpack.c.l.b16 %v5497
        %v5536 = vunpack.c.h.b16 %v5497
        %v5537 = vunpack.c.l.b16 %v5498
        %v5538 = vunpack.c.h.b16 %v5498
        %v5539 = vunpack.c.l.b16 %v5499
        %v5540 = vunpack.c.h.b16 %v5499
        %v5541 = vunpack.c.l.b16 %v5500
        %v5542 = vunpack.c.h.b16 %v5500
        %v5543 = vunpack.c.l.b16 %v5501
        %v5544 = vunpack.c.h.b16 %v5501
        %v5545 = vunpack.c.l.b16 %v5502
        %v5546 = vunpack.c.h.b16 %v5502
        %v5547 = vunpack.c.l.b16 %v5503
        %v5548 = vunpack.c.h.b16 %v5503
        %v5549 = vunpack.c.l.b16 %v5504
        %v5550 = vunpack.c.h.b16 %v5504
        %v5551 = vunpack.c.l.b16 %v5505
        %v5552 = vunpack.c.h.b16 %v5505
        %v5553 = vunpack.c.l.b16 %v5506
        %v5554 = vunpack.c.h.b16 %v5506
        %v5555 = vpack.c.b16 %v5525, %v5523
        %v5556 = vpack.c.b16 %v5526, %v5524
        %v5557 = vpack.c.b16 %v5529, %v5527
        %v5558 = vpack.c.b16 %v5530, %v5528
        %v5559 = vpack.c.b16 %v5533, %v5531
        %v5560 = vpack.c.b16 %v5534, %v5532
        %v5561 = vpack.c.b16 %v5537, %v5535
        %v5562 = vpack.c.b16 %v5538, %v5536
        %v5563 = vpack.c.b16 %v5541, %v5539
        %v5564 = vpack.c.b16 %v5542, %v5540
        %v5565 = vpack.c.b16 %v5545, %v5543
        %v5566 = vpack.c.b16 %v5546, %v5544
        %v5567 = vpack.c.b16 %v5549, %v5547
        %v5568 = vpack.c.b16 %v5550, %v5548
        %v5569 = vpack.c.b16 %v5553, %v5551
        %v5570 = vpack.c.b16 %v5554, %v5552
        %5587 = vmatpush.bf16.msra.mxu0 %v5569
        %5588 = vmatpush.bf16.msra.mxu0 %v5567
        %5589 = vmatpush.bf16.msra.mxu0 %v5565
        %5590 = vmatpush.bf16.msra.mxu0 %v5563
        %5591 = vmatpush.bf16.msra.mxu0 %v5561
        %5592 = vmatpush.bf16.msra.mxu0 %v5559
        %5593 = vmatpush.bf16.msra.mxu0 %v5557
        %5594 = vmatpush.bf16.msra.mxu0 %v5555
        %5595 = vmatmul.bf16.gmra.mxu0 %v5489
        %v5596 = vpop.f32.mrf.mxu0
        %v5597 = vadd.f32 0.0, %v5596
        %v5598 = vpop.f32.mrf.mxu0
        %5599 = vdwg.mxu0
        %5600 = vmatpush.bf16.msra.mxu0 %v5570
        %5601 = vmatpush.bf16.msra.mxu0 %v5568
        %5602 = vmatpush.bf16.msra.mxu0 %v5566
        %5603 = vmatpush.bf16.msra.mxu0 %v5564
        %5604 = vmatpush.bf16.msra.mxu0 %v5562
        %5605 = vmatpush.bf16.msra.mxu0 %v5560
        %5606 = vmatpush.bf16.msra.mxu0 %v5558
        %5607 = vmatpush.bf16.msra.mxu0 %v5556
        %5608 = vmatmul.bf16.gmra.mxu0 %v5489
        %v5609 = vpop.f32.mrf.mxu0
        %v5610 = vadd.f32 0.0, %v5609
        %v5611 = vpop.f32.mrf.mxu0
        %5612 = vdwg.mxu0
        %v5613 = vadd.f32 %v5486, %v5597
        %v5614 = vadd.f32 %v5487, %v5610
        %v5615 = vld [vmem:[#allocation7 + $0x6] sm:$0x3f]
        %v5616 = vpack.c.bf16 %v5615, %v5615
        %s5617 = scalar_lea.vmem [#allocation12], 640
        %v5618 = vld [vmem:[%s5617] sm:$0xff]
        %v5619 = vld [vmem:[%s5617 + $0x8] sm:$0xff]
        %v5620 = vld [vmem:[%s5617 + $0x10] sm:$0xff]
        %v5621 = vld [vmem:[%s5617 + $0x18] sm:$0xff]
        %v5622 = vld [vmem:[%s5617 + $0x20] sm:$0xff]
        %v5623 = vld [vmem:[%s5617 + $0x28] sm:$0xff]
        %v5624 = vld [vmem:[%s5617 + $0x30] sm:$0xff]
        %v5625 = vld [vmem:[%s5617 + $0x38] sm:$0xff]
        %v5626 = vld [vmem:[%s5617 + $0x40] sm:$0xff]
        %v5627 = vld [vmem:[%s5617 + $0x48] sm:$0xff]
        %v5628 = vld [vmem:[%s5617 + $0x50] sm:$0xff]
        %v5629 = vld [vmem:[%s5617 + $0x58] sm:$0xff]
        %v5630 = vld [vmem:[%s5617 + $0x60] sm:$0xff]
        %v5631 = vld [vmem:[%s5617 + $0x68] sm:$0xff]
        %v5632 = vld [vmem:[%s5617 + $0x70] sm:$0xff]
        %v5633 = vld [vmem:[%s5617 + $0x78] sm:$0xff]
        %v5650 = vunpack.c.l.b16 %v5618
        %v5651 = vunpack.c.h.b16 %v5618
        %v5652 = vunpack.c.l.b16 %v5619
        %v5653 = vunpack.c.h.b16 %v5619
        %v5654 = vunpack.c.l.b16 %v5620
        %v5655 = vunpack.c.h.b16 %v5620
        %v5656 = vunpack.c.l.b16 %v5621
        %v5657 = vunpack.c.h.b16 %v5621
        %v5658 = vunpack.c.l.b16 %v5622
        %v5659 = vunpack.c.h.b16 %v5622
        %v5660 = vunpack.c.l.b16 %v5623
        %v5661 = vunpack.c.h.b16 %v5623
        %v5662 = vunpack.c.l.b16 %v5624
        %v5663 = vunpack.c.h.b16 %v5624
        %v5664 = vunpack.c.l.b16 %v5625
        %v5665 = vunpack.c.h.b16 %v5625
        %v5666 = vunpack.c.l.b16 %v5626
        %v5667 = vunpack.c.h.b16 %v5626
        %v5668 = vunpack.c.l.b16 %v5627
        %v5669 = vunpack.c.h.b16 %v5627
        %v5670 = vunpack.c.l.b16 %v5628
        %v5671 = vunpack.c.h.b16 %v5628
        %v5672 = vunpack.c.l.b16 %v5629
        %v5673 = vunpack.c.h.b16 %v5629
        %v5674 = vunpack.c.l.b16 %v5630
        %v5675 = vunpack.c.h.b16 %v5630
        %v5676 = vunpack.c.l.b16 %v5631
        %v5677 = vunpack.c.h.b16 %v5631
        %v5678 = vunpack.c.l.b16 %v5632
        %v5679 = vunpack.c.h.b16 %v5632
        %v5680 = vunpack.c.l.b16 %v5633
        %v5681 = vunpack.c.h.b16 %v5633
        %v5682 = vpack.c.b16 %v5652, %v5650
        %v5683 = vpack.c.b16 %v5653, %v5651
        %v5684 = vpack.c.b16 %v5656, %v5654
        %v5685 = vpack.c.b16 %v5657, %v5655
        %v5686 = vpack.c.b16 %v5660, %v5658
        %v5687 = vpack.c.b16 %v5661, %v5659
        %v5688 = vpack.c.b16 %v5664, %v5662
        %v5689 = vpack.c.b16 %v5665, %v5663
        %v5690 = vpack.c.b16 %v5668, %v5666
        %v5691 = vpack.c.b16 %v5669, %v5667
        %v5692 = vpack.c.b16 %v5672, %v5670
        %v5693 = vpack.c.b16 %v5673, %v5671
        %v5694 = vpack.c.b16 %v5676, %v5674
        %v5695 = vpack.c.b16 %v5677, %v5675
        %v5696 = vpack.c.b16 %v5680, %v5678
        %v5697 = vpack.c.b16 %v5681, %v5679
        %5714 = vmatpush.bf16.msra.mxu0 %v5696
        %5715 = vmatpush.bf16.msra.mxu0 %v5694
        %5716 = vmatpush.bf16.msra.mxu0 %v5692
        %5717 = vmatpush.bf16.msra.mxu0 %v5690
        %5718 = vmatpush.bf16.msra.mxu0 %v5688
        %5719 = vmatpush.bf16.msra.mxu0 %v5686
        %5720 = vmatpush.bf16.msra.mxu0 %v5684
        %5721 = vmatpush.bf16.msra.mxu0 %v5682
        %5722 = vmatmul.bf16.gmra.mxu0 %v5616
        %v5723 = vpop.f32.mrf.mxu0
        %v5724 = vadd.f32 0.0, %v5723
        %v5725 = vpop.f32.mrf.mxu0
        %5726 = vdwg.mxu0
        %5727 = vmatpush.bf16.msra.mxu0 %v5697
        %5728 = vmatpush.bf16.msra.mxu0 %v5695
        %5729 = vmatpush.bf16.msra.mxu0 %v5693
        %5730 = vmatpush.bf16.msra.mxu0 %v5691
        %5731 = vmatpush.bf16.msra.mxu0 %v5689
        %5732 = vmatpush.bf16.msra.mxu0 %v5687
        %5733 = vmatpush.bf16.msra.mxu0 %v5685
        %5734 = vmatpush.bf16.msra.mxu0 %v5683
        %5735 = vmatmul.bf16.gmra.mxu0 %v5616
        %v5736 = vpop.f32.mrf.mxu0
        %v5737 = vadd.f32 0.0, %v5736
        %v5738 = vpop.f32.mrf.mxu0
        %5739 = vdwg.mxu0
        %v5740 = vadd.f32 %v5613, %v5724
        %v5741 = vadd.f32 %v5614, %v5737
        %v5742 = vld [vmem:[#allocation7 + $0x8] sm:$0x3f]
        %v5743 = vpack.c.bf16 %v5742, %v5742
        %s5744 = scalar_lea.vmem [#allocation12], 768
        %v5745 = vld [vmem:[%s5744] sm:$0xff]
        %v5746 = vld [vmem:[%s5744 + $0x8] sm:$0xff]
        %v5747 = vld [vmem:[%s5744 + $0x10] sm:$0xff]
        %v5748 = vld [vmem:[%s5744 + $0x18] sm:$0xff]
        %v5749 = vld [vmem:[%s5744 + $0x20] sm:$0xff]
        %v5750 = vld [vmem:[%s5744 + $0x28] sm:$0xff]
        %v5751 = vld [vmem:[%s5744 + $0x30] sm:$0xff]
        %v5752 = vld [vmem:[%s5744 + $0x38] sm:$0xff]
        %v5753 = vld [vmem:[%s5744 + $0x40] sm:$0xff]
        %v5754 = vld [vmem:[%s5744 + $0x48] sm:$0xff]
        %v5755 = vld [vmem:[%s5744 + $0x50] sm:$0xff]
        %v5756 = vld [vmem:[%s5744 + $0x58] sm:$0xff]
        %v5757 = vld [vmem:[%s5744 + $0x60] sm:$0xff]
        %v5758 = vld [vmem:[%s5744 + $0x68] sm:$0xff]
        %v5759 = vld [vmem:[%s5744 + $0x70] sm:$0xff]
        %v5760 = vld [vmem:[%s5744 + $0x78] sm:$0xff]
        %v5777 = vunpack.c.l.b16 %v5745
        %v5778 = vunpack.c.h.b16 %v5745
        %v5779 = vunpack.c.l.b16 %v5746
        %v5780 = vunpack.c.h.b16 %v5746
        %v5781 = vunpack.c.l.b16 %v5747
        %v5782 = vunpack.c.h.b16 %v5747
        %v5783 = vunpack.c.l.b16 %v5748
        %v5784 = vunpack.c.h.b16 %v5748
        %v5785 = vunpack.c.l.b16 %v5749
        %v5786 = vunpack.c.h.b16 %v5749
        %v5787 = vunpack.c.l.b16 %v5750
        %v5788 = vunpack.c.h.b16 %v5750
        %v5789 = vunpack.c.l.b16 %v5751
        %v5790 = vunpack.c.h.b16 %v5751
        %v5791 = vunpack.c.l.b16 %v5752
        %v5792 = vunpack.c.h.b16 %v5752
        %v5793 = vunpack.c.l.b16 %v5753
        %v5794 = vunpack.c.h.b16 %v5753
        %v5795 = vunpack.c.l.b16 %v5754
        %v5796 = vunpack.c.h.b16 %v5754
        %v5797 = vunpack.c.l.b16 %v5755
        %v5798 = vunpack.c.h.b16 %v5755
        %v5799 = vunpack.c.l.b16 %v5756
        %v5800 = vunpack.c.h.b16 %v5756
        %v5801 = vunpack.c.l.b16 %v5757
        %v5802 = vunpack.c.h.b16 %v5757
        %v5803 = vunpack.c.l.b16 %v5758
        %v5804 = vunpack.c.h.b16 %v5758
        %v5805 = vunpack.c.l.b16 %v5759
        %v5806 = vunpack.c.h.b16 %v5759
        %v5807 = vunpack.c.l.b16 %v5760
        %v5808 = vunpack.c.h.b16 %v5760
        %v5809 = vpack.c.b16 %v5779, %v5777
        %v5810 = vpack.c.b16 %v5780, %v5778
        %v5811 = vpack.c.b16 %v5783, %v5781
        %v5812 = vpack.c.b16 %v5784, %v5782
        %v5813 = vpack.c.b16 %v5787, %v5785
        %v5814 = vpack.c.b16 %v5788, %v5786
        %v5815 = vpack.c.b16 %v5791, %v5789
        %v5816 = vpack.c.b16 %v5792, %v5790
        %v5817 = vpack.c.b16 %v5795, %v5793
        %v5818 = vpack.c.b16 %v5796, %v5794
        %v5819 = vpack.c.b16 %v5799, %v5797
        %v5820 = vpack.c.b16 %v5800, %v5798
        %v5821 = vpack.c.b16 %v5803, %v5801
        %v5822 = vpack.c.b16 %v5804, %v5802
        %v5823 = vpack.c.b16 %v5807, %v5805
        %v5824 = vpack.c.b16 %v5808, %v5806
        %5841 = vmatpush.bf16.msra.mxu0 %v5823
        %5842 = vmatpush.bf16.msra.mxu0 %v5821
        %5843 = vmatpush.bf16.msra.mxu0 %v5819
        %5844 = vmatpush.bf16.msra.mxu0 %v5817
        %5845 = vmatpush.bf16.msra.mxu0 %v5815
        %5846 = vmatpush.bf16.msra.mxu0 %v5813
        %5847 = vmatpush.bf16.msra.mxu0 %v5811
        %5848 = vmatpush.bf16.msra.mxu0 %v5809
        %5849 = vmatmul.bf16.gmra.mxu0 %v5743
        %v5850 = vpop.f32.mrf.mxu0
        %v5851 = vadd.f32 0.0, %v5850
        %v5852 = vpop.f32.mrf.mxu0
        %5853 = vdwg.mxu0
        %5854 = vmatpush.bf16.msra.mxu0 %v5824
        %5855 = vmatpush.bf16.msra.mxu0 %v5822
        %5856 = vmatpush.bf16.msra.mxu0 %v5820
        %5857 = vmatpush.bf16.msra.mxu0 %v5818
        %5858 = vmatpush.bf16.msra.mxu0 %v5816
        %5859 = vmatpush.bf16.msra.mxu0 %v5814
        %5860 = vmatpush.bf16.msra.mxu0 %v5812
        %5861 = vmatpush.bf16.msra.mxu0 %v5810
        %5862 = vmatmul.bf16.gmra.mxu0 %v5743
        %v5863 = vpop.f32.mrf.mxu0
        %v5864 = vadd.f32 0.0, %v5863
        %v5865 = vpop.f32.mrf.mxu0
        %5866 = vdwg.mxu0
        %v5867 = vadd.f32 %v5740, %v5851
        %v5868 = vadd.f32 %v5741, %v5864
        %v5869 = vld [vmem:[#allocation7 + $0x9] sm:$0x3f]
        %v5870 = vpack.c.bf16 %v5869, %v5869
        %s5871 = scalar_lea.vmem [#allocation12], 896
        %v5872 = vld [vmem:[%s5871] sm:$0xff]
        %v5873 = vld [vmem:[%s5871 + $0x8] sm:$0xff]
        %v5874 = vld [vmem:[%s5871 + $0x10] sm:$0xff]
        %v5875 = vld [vmem:[%s5871 + $0x18] sm:$0xff]
        %v5876 = vld [vmem:[%s5871 + $0x20] sm:$0xff]
        %v5877 = vld [vmem:[%s5871 + $0x28] sm:$0xff]
        %v5878 = vld [vmem:[%s5871 + $0x30] sm:$0xff]
        %v5879 = vld [vmem:[%s5871 + $0x38] sm:$0xff]
        %v5880 = vld [vmem:[%s5871 + $0x40] sm:$0xff]
        %v5881 = vld [vmem:[%s5871 + $0x48] sm:$0xff]
        %v5882 = vld [vmem:[%s5871 + $0x50] sm:$0xff]
        %v5883 = vld [vmem:[%s5871 + $0x58] sm:$0xff]
        %v5884 = vld [vmem:[%s5871 + $0x60] sm:$0xff]
        %v5885 = vld [vmem:[%s5871 + $0x68] sm:$0xff]
        %v5886 = vld [vmem:[%s5871 + $0x70] sm:$0xff]
        %v5887 = vld [vmem:[%s5871 + $0x78] sm:$0xff]
        %v5904 = vunpack.c.l.b16 %v5872
        %v5905 = vunpack.c.h.b16 %v5872
        %v5906 = vunpack.c.l.b16 %v5873
        %v5907 = vunpack.c.h.b16 %v5873
        %v5908 = vunpack.c.l.b16 %v5874
        %v5909 = vunpack.c.h.b16 %v5874
        %v5910 = vunpack.c.l.b16 %v5875
        %v5911 = vunpack.c.h.b16 %v5875
        %v5912 = vunpack.c.l.b16 %v5876
        %v5913 = vunpack.c.h.b16 %v5876
        %v5914 = vunpack.c.l.b16 %v5877
        %v5915 = vunpack.c.h.b16 %v5877
        %v5916 = vunpack.c.l.b16 %v5878
        %v5917 = vunpack.c.h.b16 %v5878
        %v5918 = vunpack.c.l.b16 %v5879
        %v5919 = vunpack.c.h.b16 %v5879
        %v5920 = vunpack.c.l.b16 %v5880
        %v5921 = vunpack.c.h.b16 %v5880
        %v5922 = vunpack.c.l.b16 %v5881
        %v5923 = vunpack.c.h.b16 %v5881
        %v5924 = vunpack.c.l.b16 %v5882
        %v5925 = vunpack.c.h.b16 %v5882
        %v5926 = vunpack.c.l.b16 %v5883
        %v5927 = vunpack.c.h.b16 %v5883
        %v5928 = vunpack.c.l.b16 %v5884
        %v5929 = vunpack.c.h.b16 %v5884
        %v5930 = vunpack.c.l.b16 %v5885
        %v5931 = vunpack.c.h.b16 %v5885
        %v5932 = vunpack.c.l.b16 %v5886
        %v5933 = vunpack.c.h.b16 %v5886
        %v5934 = vunpack.c.l.b16 %v5887
        %v5935 = vunpack.c.h.b16 %v5887
        %v5936 = vpack.c.b16 %v5906, %v5904
        %v5937 = vpack.c.b16 %v5907, %v5905
        %v5938 = vpack.c.b16 %v5910, %v5908
        %v5939 = vpack.c.b16 %v5911, %v5909
        %v5940 = vpack.c.b16 %v5914, %v5912
        %v5941 = vpack.c.b16 %v5915, %v5913
        %v5942 = vpack.c.b16 %v5918, %v5916
        %v5943 = vpack.c.b16 %v5919, %v5917
        %v5944 = vpack.c.b16 %v5922, %v5920
        %v5945 = vpack.c.b16 %v5923, %v5921
        %v5946 = vpack.c.b16 %v5926, %v5924
        %v5947 = vpack.c.b16 %v5927, %v5925
        %v5948 = vpack.c.b16 %v5930, %v5928
        %v5949 = vpack.c.b16 %v5931, %v5929
        %v5950 = vpack.c.b16 %v5934, %v5932
        %v5951 = vpack.c.b16 %v5935, %v5933
        %5968 = vmatpush.bf16.msra.mxu0 %v5950
        %5969 = vmatpush.bf16.msra.mxu0 %v5948
        %5970 = vmatpush.bf16.msra.mxu0 %v5946
        %5971 = vmatpush.bf16.msra.mxu0 %v5944
        %5972 = vmatpush.bf16.msra.mxu0 %v5942
        %5973 = vmatpush.bf16.msra.mxu0 %v5940
        %5974 = vmatpush.bf16.msra.mxu0 %v5938
        %5975 = vmatpush.bf16.msra.mxu0 %v5936
        %5976 = vmatmul.bf16.gmra.mxu0 %v5870
        %v5977 = vpop.f32.mrf.mxu0
        %v5978 = vadd.f32 0.0, %v5977
        %v5979 = vpop.f32.mrf.mxu0
        %5980 = vdwg.mxu0
        %5981 = vmatpush.bf16.msra.mxu0 %v5951
        %5982 = vmatpush.bf16.msra.mxu0 %v5949
        %5983 = vmatpush.bf16.msra.mxu0 %v5947
        %5984 = vmatpush.bf16.msra.mxu0 %v5945
        %5985 = vmatpush.bf16.msra.mxu0 %v5943
        %5986 = vmatpush.bf16.msra.mxu0 %v5941
        %5987 = vmatpush.bf16.msra.mxu0 %v5939
        %5988 = vmatpush.bf16.msra.mxu0 %v5937
        %5989 = vmatmul.bf16.gmra.mxu0 %v5870
        %v5990 = vpop.f32.mrf.mxu0
        %v5991 = vadd.f32 0.0, %v5990
        %v5992 = vpop.f32.mrf.mxu0
        %5993 = vdwg.mxu0
        %v5994 = vadd.f32 %v5867, %v5978
        %v5995 = vadd.f32 %v5868, %v5991
        %v5996 = vld [vmem:[#allocation7 + $0xa] sm:$0x3f]
        %v5997 = vpack.c.bf16 %v5996, %v5996
        %s5998 = scalar_lea.vmem [#allocation12], 1024
        %v5999 = vld [vmem:[%s5998] sm:$0xff]
        %v6000 = vld [vmem:[%s5998 + $0x8] sm:$0xff]
        %v6001 = vld [vmem:[%s5998 + $0x10] sm:$0xff]
        %v6002 = vld [vmem:[%s5998 + $0x18] sm:$0xff]
        %v6003 = vld [vmem:[%s5998 + $0x20] sm:$0xff]
        %v6004 = vld [vmem:[%s5998 + $0x28] sm:$0xff]
        %v6005 = vld [vmem:[%s5998 + $0x30] sm:$0xff]
        %v6006 = vld [vmem:[%s5998 + $0x38] sm:$0xff]
        %v6007 = vld [vmem:[%s5998 + $0x40] sm:$0xff]
        %v6008 = vld [vmem:[%s5998 + $0x48] sm:$0xff]
        %v6009 = vld [vmem:[%s5998 + $0x50] sm:$0xff]
        %v6010 = vld [vmem:[%s5998 + $0x58] sm:$0xff]
        %v6011 = vld [vmem:[%s5998 + $0x60] sm:$0xff]
        %v6012 = vld [vmem:[%s5998 + $0x68] sm:$0xff]
        %v6013 = vld [vmem:[%s5998 + $0x70] sm:$0xff]
        %v6014 = vld [vmem:[%s5998 + $0x78] sm:$0xff]
        %v6031 = vunpack.c.l.b16 %v5999
        %v6032 = vunpack.c.h.b16 %v5999
        %v6033 = vunpack.c.l.b16 %v6000
        %v6034 = vunpack.c.h.b16 %v6000
        %v6035 = vunpack.c.l.b16 %v6001
        %v6036 = vunpack.c.h.b16 %v6001
        %v6037 = vunpack.c.l.b16 %v6002
        %v6038 = vunpack.c.h.b16 %v6002
        %v6039 = vunpack.c.l.b16 %v6003
        %v6040 = vunpack.c.h.b16 %v6003
        %v6041 = vunpack.c.l.b16 %v6004
        %v6042 = vunpack.c.h.b16 %v6004
        %v6043 = vunpack.c.l.b16 %v6005
        %v6044 = vunpack.c.h.b16 %v6005
        %v6045 = vunpack.c.l.b16 %v6006
        %v6046 = vunpack.c.h.b16 %v6006
        %v6047 = vunpack.c.l.b16 %v6007
        %v6048 = vunpack.c.h.b16 %v6007
        %v6049 = vunpack.c.l.b16 %v6008
        %v6050 = vunpack.c.h.b16 %v6008
        %v6051 = vunpack.c.l.b16 %v6009
        %v6052 = vunpack.c.h.b16 %v6009
        %v6053 = vunpack.c.l.b16 %v6010
        %v6054 = vunpack.c.h.b16 %v6010
        %v6055 = vunpack.c.l.b16 %v6011
        %v6056 = vunpack.c.h.b16 %v6011
        %v6057 = vunpack.c.l.b16 %v6012
        %v6058 = vunpack.c.h.b16 %v6012
        %v6059 = vunpack.c.l.b16 %v6013
        %v6060 = vunpack.c.h.b16 %v6013
        %v6061 = vunpack.c.l.b16 %v6014
        %v6062 = vunpack.c.h.b16 %v6014
        %v6063 = vpack.c.b16 %v6033, %v6031
        %v6064 = vpack.c.b16 %v6034, %v6032
        %v6065 = vpack.c.b16 %v6037, %v6035
        %v6066 = vpack.c.b16 %v6038, %v6036
        %v6067 = vpack.c.b16 %v6041, %v6039
        %v6068 = vpack.c.b16 %v6042, %v6040
        %v6069 = vpack.c.b16 %v6045, %v6043
        %v6070 = vpack.c.b16 %v6046, %v6044
        %v6071 = vpack.c.b16 %v6049, %v6047
        %v6072 = vpack.c.b16 %v6050, %v6048
        %v6073 = vpack.c.b16 %v6053, %v6051
        %v6074 = vpack.c.b16 %v6054, %v6052
        %v6075 = vpack.c.b16 %v6057, %v6055
        %v6076 = vpack.c.b16 %v6058, %v6056
        %v6077 = vpack.c.b16 %v6061, %v6059
        %v6078 = vpack.c.b16 %v6062, %v6060
        %6095 = vmatpush.bf16.msra.mxu0 %v6077
        %6096 = vmatpush.bf16.msra.mxu0 %v6075
        %6097 = vmatpush.bf16.msra.mxu0 %v6073
        %6098 = vmatpush.bf16.msra.mxu0 %v6071
        %6099 = vmatpush.bf16.msra.mxu0 %v6069
        %6100 = vmatpush.bf16.msra.mxu0 %v6067
        %6101 = vmatpush.bf16.msra.mxu0 %v6065
        %6102 = vmatpush.bf16.msra.mxu0 %v6063
        %6103 = vmatmul.bf16.gmra.mxu0 %v5997
        %v6104 = vpop.f32.mrf.mxu0
        %v6105 = vadd.f32 0.0, %v6104
        %v6106 = vpop.f32.mrf.mxu0
        %6107 = vdwg.mxu0
        %6108 = vmatpush.bf16.msra.mxu0 %v6078
        %6109 = vmatpush.bf16.msra.mxu0 %v6076
        %6110 = vmatpush.bf16.msra.mxu0 %v6074
        %6111 = vmatpush.bf16.msra.mxu0 %v6072
        %6112 = vmatpush.bf16.msra.mxu0 %v6070
        %6113 = vmatpush.bf16.msra.mxu0 %v6068
        %6114 = vmatpush.bf16.msra.mxu0 %v6066
        %6115 = vmatpush.bf16.msra.mxu0 %v6064
        %6116 = vmatmul.bf16.gmra.mxu0 %v5997
        %v6117 = vpop.f32.mrf.mxu0
        %v6118 = vadd.f32 0.0, %v6117
        %v6119 = vpop.f32.mrf.mxu0
        %6120 = vdwg.mxu0
        %v6121 = vadd.f32 %v5994, %v6105
        %v6122 = vadd.f32 %v5995, %v6118
        %v6123 = vmul.f32 %v6121, 0.09
        %v6124 = vmul.f32 %v6122, 0.09
        %v6125 = vadd.f32 %v6123, 0.5
        %v6126 = vadd.f32 %v6124, 0.5
        %v6127 = vmul.f32 %v6121, %v6125
        %v6128 = vmul.f32 %v6122, %v6126
        %v6129 = vadd.f32 %v6127, 0.47
        %v6130 = vadd.f32 %v6128, 0.47
        %6131 = vst [vmem:[#allocation8] sm:$0x3f] %v6129
        %6132 = vst [vmem:[#allocation8 + $0x8] sm:$0x3f] %v6130
        %v6133 = vld [vmem:[#allocation8] ss:$8 sm:$0x3]
        %s6134 = scalar_lea.vmem [#allocation8], 1
        %v6135 = vld [vmem:[%s6134] ss:$8 sm:$0x3]
        %v6136 = vadd.f32 %v6133, %v6135
        %s6137 = scalar_lea.vmem [#allocation8], 4
        %v6138 = vld [vmem:[%s6137] ss:$8 sm:$0x3]
        %v6139 = vadd.f32 %v6136, %v6138
        %s6140 = scalar_lea.vmem [#allocation8], 5
        %v6141 = vld [vmem:[%s6140] ss:$8 sm:$0x3]
        %v6142 = vadd.f32 %v6139, %v6141
        %v6143 = vmul.f32 %v6142, 0.25
        %v6145 = vperm.slane %v6143, 0
        %v6146 = vperm.slane %v6143, 1
        %v6149 = vpack.c.bf16 %v6145, %v6145
        %v6150 = vpack.c.bf16 %v6146, %v6146
        %v6151 = vld [vmem:[#allocation14] sm:$0xf]
        %v6152 = vld [vmem:[#allocation14 + $0x4] sm:$0xf]
        %v6153 = vld [vmem:[#allocation14 + $0x8] sm:$0xf]
        %v6154 = vld [vmem:[#allocation14 + $0xc] sm:$0xf]
        %v6155 = vld [vmem:[#allocation14 + $0x10] sm:$0xf]
        %v6156 = vld [vmem:[#allocation14 + $0x14] sm:$0xf]
        %v6157 = vld [vmem:[#allocation14 + $0x18] sm:$0xf]
        %v6158 = vld [vmem:[#allocation14 + $0x1c] sm:$0xf]
        %v6159 = vld [vmem:[#allocation14 + $0x20] sm:$0xf]
        %v6160 = vld [vmem:[#allocation14 + $0x24] sm:$0xf]
        %v6161 = vld [vmem:[#allocation14 + $0x28] sm:$0xf]
        %v6162 = vld [vmem:[#allocation14 + $0x2c] sm:$0xf]
        %v6163 = vld [vmem:[#allocation14 + $0x30] sm:$0xf]
        %v6164 = vld [vmem:[#allocation14 + $0x34] sm:$0xf]
        %v6165 = vld [vmem:[#allocation14 + $0x38] sm:$0xf]
        %v6166 = vld [vmem:[#allocation14 + $0x3c] sm:$0xf]
        %v6167 = vld [vmem:[#allocation14 + $0x40] sm:$0xf]
        %v6168 = vld [vmem:[#allocation14 + $0x44] sm:$0xf]
        %v6169 = vld [vmem:[#allocation14 + $0x48] sm:$0xf]
        %v6170 = vld [vmem:[#allocation14 + $0x4c] sm:$0xf]
        %v6171 = vld [vmem:[#allocation14 + $0x50] sm:$0xf]
        %v6172 = vld [vmem:[#allocation14 + $0x54] sm:$0xf]
        %v6173 = vld [vmem:[#allocation14 + $0x58] sm:$0xf]
        %v6174 = vld [vmem:[#allocation14 + $0x5c] sm:$0xf]
        %v6175 = vld [vmem:[#allocation14 + $0x60] sm:$0xf]
        %v6176 = vld [vmem:[#allocation14 + $0x64] sm:$0xf]
        %v6177 = vld [vmem:[#allocation14 + $0x68] sm:$0xf]
        %v6178 = vld [vmem:[#allocation14 + $0x6c] sm:$0xf]
        %v6179 = vld [vmem:[#allocation14 + $0x70] sm:$0xf]
        %v6180 = vld [vmem:[#allocation14 + $0x74] sm:$0xf]
        %v6181 = vld [vmem:[#allocation14 + $0x78] sm:$0xf]
        %v6182 = vld [vmem:[#allocation14 + $0x7c] sm:$0xf]
        %v6215 = vunpack.c.l.b16 %v6151
        %v6216 = vunpack.c.l.b16 %v6152
        %v6217 = vunpack.c.l.b16 %v6153
        %v6218 = vunpack.c.l.b16 %v6154
        %v6219 = vunpack.c.l.b16 %v6155
        %v6220 = vunpack.c.l.b16 %v6156
        %v6221 = vunpack.c.l.b16 %v6157
        %v6222 = vunpack.c.l.b16 %v6158
        %v6223 = vunpack.c.l.b16 %v6159
        %v6224 = vunpack.c.l.b16 %v6160
        %v6225 = vunpack.c.l.b16 %v6161
        %v6226 = vunpack.c.l.b16 %v6162
        %v6227 = vunpack.c.l.b16 %v6163
        %v6228 = vunpack.c.l.b16 %v6164
        %v6229 = vunpack.c.l.b16 %v6165
        %v6230 = vunpack.c.l.b16 %v6166
        %v6231 = vunpack.c.l.b16 %v6167
        %v6232 = vunpack.c.l.b16 %v6168
        %v6233 = vunpack.c.l.b16 %v6169
        %v6234 = vunpack.c.l.b16 %v6170
        %v6235 = vunpack.c.l.b16 %v6171
        %v6236 = vunpack.c.l.b16 %v6172
        %v6237 = vunpack.c.l.b16 %v6173
        %v6238 = vunpack.c.l.b16 %v6174
        %v6239 = vunpack.c.l.b16 %v6175
        %v6240 = vunpack.c.l.b16 %v6176
        %v6241 = vunpack.c.l.b16 %v6177
        %v6242 = vunpack.c.l.b16 %v6178
        %v6243 = vunpack.c.l.b16 %v6179
        %v6244 = vunpack.c.l.b16 %v6180
        %v6245 = vunpack.c.l.b16 %v6181
        %v6246 = vunpack.c.l.b16 %v6182
        %v6247 = vpack.c.b16 %v6216, %v6215
        %v6248 = vpack.c.b16 %v6218, %v6217
        %v6249 = vpack.c.b16 %v6220, %v6219
        %v6250 = vpack.c.b16 %v6222, %v6221
        %v6251 = vpack.c.b16 %v6224, %v6223
        %v6252 = vpack.c.b16 %v6226, %v6225
        %v6253 = vpack.c.b16 %v6228, %v6227
        %v6254 = vpack.c.b16 %v6230, %v6229
        %v6255 = vpack.c.b16 %v6232, %v6231
        %v6256 = vpack.c.b16 %v6234, %v6233
        %v6257 = vpack.c.b16 %v6236, %v6235
        %v6258 = vpack.c.b16 %v6238, %v6237
        %v6259 = vpack.c.b16 %v6240, %v6239
        %v6260 = vpack.c.b16 %v6242, %v6241
        %v6261 = vpack.c.b16 %v6244, %v6243
        %v6262 = vpack.c.b16 %v6246, %v6245
        %6279 = vmatpush.bf16.msra.mxu0 %v6254
        %6280 = vmatpush.bf16.msra.mxu0 %v6253
        %6281 = vmatpush.bf16.msra.mxu0 %v6252
        %6282 = vmatpush.bf16.msra.mxu0 %v6251
        %6283 = vmatpush.bf16.msra.mxu0 %v6250
        %6284 = vmatpush.bf16.msra.mxu0 %v6249
        %6285 = vmatpush.bf16.msra.mxu0 %v6248
        %6286 = vmatpush.bf16.msra.mxu0 %v6247
        %6287 = vmatmul.bf16.gmra.mxu0 %v6149
        %v6288 = vpop.f32.mrf.mxu0
        %v6289 = vadd.f32 0.0, %v6288
        %v6290 = vpop.f32.mrf.mxu0
        %6291 = vdwg.mxu0
        %6292 = vmatpush.bf16.msra.mxu0 %v6262
        %6293 = vmatpush.bf16.msra.mxu0 %v6261
        %6294 = vmatpush.bf16.msra.mxu0 %v6260
        %6295 = vmatpush.bf16.msra.mxu0 %v6259
        %6296 = vmatpush.bf16.msra.mxu0 %v6258
        %6297 = vmatpush.bf16.msra.mxu0 %v6257
        %6298 = vmatpush.bf16.msra.mxu0 %v6256
        %6299 = vmatpush.bf16.msra.mxu0 %v6255
        %6300 = vmatmul.bf16.gmra.mxu0 %v6150
        %v6301 = vpop.f32.mrf.mxu0
        %v6302 = vadd.f32 %v6289, %v6301
        %v6303 = vpop.f32.mrf.mxu0
        %6304 = vdwg.mxu0
        %6305 = vst [vmem:[%s293] sm:$0x1] %v6302
        %s6306 = sand.u32 %s161, 1
        %s6307 = scalar_lea.sflag [#allocation11], %s6306
        %s6308 = sand.u32 %s161, 1
        %s6309 = scalar_lea.vmem [#allocation15], %s6308
        // Predicated region
        $region57: #{tpu_custom_call.1} parent=43 // pred_check
          %p6310 = pneg %p171
        $region58: #{tpu_custom_call.1} parent=43 // pred_check_branch
          %6312 = sbr.rel (%p6310) target = $region60
        $region59: #{tpu_custom_call.1} parent=43 // pred_region
          %6314 = vsyncadd %s6307, 0
          %s6315 = scalar_lea.hbm %s6, %s22
          %s6317 = sshll.u32 %s6309, 4
          %s6318 = int_to_ptr.vmem [resolvable:$true] %s6317
          %s6319 = sshll.u32 %s6315, 4
          %s6320 = int_to_ptr.hbm [resolvable:$true] %s6319
          %6322 = dma.vmem_to_hbm [thread:$0]  %s6318, 16, %s6320, %s6307
        $region60: #{tpu_custom_call.1} parent=43 // pred_fallthru
          _
      $region44: #{tpu_custom_call.1} parent=5 // pred_fallthru
        _
      %p6323 = scmp.le.s32.totalorder 2, %s17
      // Predicated region
      $region61: #{tpu_custom_call.1} parent=5 // pred_check
        %p6324 = pneg %p6323
      $region62: #{tpu_custom_call.1} parent=5 // pred_check_branch
        %6326 = sbr.rel (%p6324) target = $region64
      $region63: #{tpu_custom_call.1} parent=5 // pred_region
        %s6327 = ssub.s32 %s17, 2
        // Predicated region
        $region65: #{tpu_custom_call.1} parent=63 // pred_check
          %p6328 = pneg %p177
        $region66: #{tpu_custom_call.1} parent=63 // pred_check_branch
          %6330 = sbr.rel (%p6328) target = $region68
        $region67: #{tpu_custom_call.1} parent=63 // pred_region
          %s6331 = sand.u32 %s162, 1
          %s6332 = scalar_lea.sflag [#allocation11], %s6331
          %s6333 = sand.u32 %s162, 1
          %s6334 = scalar_lea.vmem [#allocation15], %s6333
          %6336 = dma.done %s6332, 16
        $region68: #{tpu_custom_call.1} parent=63 // pred_fallthru
          _
      $region64: #{tpu_custom_call.1} parent=5 // pred_fallthru
        _
    $region6: #{tpu_custom_call.1} parent=1 // loop_footer
      %s21 = sadd.s32 1, %s17
    $region7: #{tpu_custom_call.1} parent=1 // loop_footer_branch
      %16 = sbr.rel target = $region3
    $region8: #{tpu_custom_call.1} parent=1 // loop_exit
      _
    %6337 = vsyncpa [#allocation10], 1
    %s6338 = scalar_lea.sflag [#allocation10], 1
    %6339 = vsyncpa %s6338, 1
    %6340 = vsyncpa [#allocation13], 1
    %6341 = vsyncpa [#allocation11], 1
    %s6342 = scalar_lea.sflag [#allocation11], 1
    %6343 = vsyncpa %s6342, 1

</llo_original>
